<compile_context>
chip_gen: v7x
topology: tpu7x:2x2x1
jax: 0.10.0
libtpu: 0.0.40
codegen_flags: <defaults>
</compile_context>

<pallas_src>
import jax
import jax.numpy as jnp
from jax.experimental import pallas as pl
from jax.experimental.pallas import tpu as pltpu

EPS = 1e-5  # PyTorch LayerNorm default eps


def _layernorm_relu(y, gamma, beta):
    mu = jnp.mean(y, axis=-1, keepdims=True)
    var = jnp.mean(jnp.square(y - mu), axis=-1, keepdims=True)
    yn = (y - mu) * jax.lax.rsqrt(var + EPS)
    return jnp.maximum(yn * gamma + beta, 0.0)


def _mm(a, w):
    # bf16 MXU operands, f32 accumulation (weights passed to the kernel are already bf16).
    return jnp.dot(a.astype(jnp.bfloat16), w.astype(jnp.bfloat16),
                   preferred_element_type=jnp.float32)


# ----------------------------------------------------------------------------
# Single fused kernel: full chain recurrence + output head
# ----------------------------------------------------------------------------
def lattice_kernel(x_ref, hext_ref, cext_ref, hin_ref, cin_ref,
                   whT_ref, whB_ref, wcT_ref, wcB_ref, whh_ref,
                   hproc_ref, cproc_ref, lstm_ref,
                   wres_ref, bres_ref, wout_ref, outln_ref,
                   out_ref, fh_ref, fc_ref, hout_ref, cout_ref):
    L, _, H = hin_ref.shape

    xv = x_ref[...]                      # [B, L]  resident, loaded once
    h_space = hext_ref[...]              # [B, H]  running "spatial" neighbor state
    c_space = cext_ref[...]

    # Chain recurrence: inherently sequential; fully unrolled (L is small and static),
    # so all weight/ref indices below are static.
    for i in range(L):
        h_time = hin_ref[i]              # [B, H]  previous state of cell i
        c_time = cin_ref[i]

        hp = hproc_ref[i]                # [3, H]: (bias, gamma, beta) of hidden_processor
        cp = cproc_ref[i]                # [3, H]: (bias, gamma, beta) of cell_processor
        ls = lstm_ref[i]                 # [2, 4H]: (w_ih row, b_ih + b_hh)

        # hidden_processor / cell_processor: Linear(2H,H) + LayerNorm + ReLU (+ Dropout p=0)
        # concat-free: cat([a, b]) @ W  ==  a @ W_top + b @ W_bot
        yh = _mm(h_space, whT_ref[i]) + _mm(h_time, whB_ref[i]) + hp[0:1]
        ph = _layernorm_relu(yh, hp[1:2], hp[2:3])
        yc = _mm(c_space, wcT_ref[i]) + _mm(c_time, wcB_ref[i]) + cp[0:1]
        pc = _layernorm_relu(yc, cp[1:2], cp[2:3])

        # nn.LSTMCell(input_size=1, hidden_size=H), gate order (i, f, g, o)
        x_i = xv[:, i:i + 1]                                    # [B, 1]
        gates = x_i * ls[0:1] + ls[1:2] + _mm(ph, whh_ref[i])   # [B, 4H]
        i_g = jax.nn.sigmoid(gates[:, 0 * H:1 * H])
        f_g = jax.nn.sigmoid(gates[:, 1 * H:2 * H])
        g_g = jnp.tanh(gates[:, 2 * H:3 * H])
        o_g = jax.nn.sigmoid(gates[:, 3 * H:4 * H])

        c_new = f_g * pc + i_g * g_g
        h_new = o_g * jnp.tanh(c_new)

        hout_ref[i] = h_new
        cout_ref[i] = c_new
        h_space, c_space = h_new, c_new   # carry updated state to next chain position

    # Fused output head: final = cat(final_h, final_c) + input_residual_proj(x);
    # output = fc_out(final) = ReLU(LN(final @ Wout + bout)).  Concat-free via Wout split.
    fh_ref[...] = h_space
    fc_ref[...] = c_space
    xp = jnp.dot(xv, wres_ref[...], preferred_element_type=jnp.float32) + bres_ref[...]
    ft = h_space + xp[:, :H]
    fb = c_space + xp[:, H:]
    y = (jnp.dot(ft, wout_ref[:H, :], preferred_element_type=jnp.float32)
         + jnp.dot(fb, wout_ref[H:, :], preferred_element_type=jnp.float32)
         + outln_ref[0:1, :])
    out_ref[...] = _layernorm_relu(y, outln_ref[1:2, :], outln_ref[2:3, :])


# ----------------------------------------------------------------------------
# Parameter packing (one-time, outside the jitted forward)
# ----------------------------------------------------------------------------
def pack_params(p):
    H = p["Wh"].shape[-1]
    return {
        # split Linear(2H,H) weights into top/bottom HxH halves; matmul operands in bf16
        "whT": p["Wh"][:, :H, :].astype(jnp.bfloat16),
        "whB": p["Wh"][:, H:, :].astype(jnp.bfloat16),
        "wcT": p["Wc"][:, :H, :].astype(jnp.bfloat16),
        "wcB": p["Wc"][:, H:, :].astype(jnp.bfloat16),
        "whh": p["Whh"].astype(jnp.bfloat16),
        # pack small per-cell vectors: (bias, gamma, beta) -> [L, 3, H]
        "hproc": jnp.concatenate([p["bh"], p["gh"], p["beh"]], axis=1),
        "cproc": jnp.concatenate([p["bc"], p["gc"], p["bec"]], axis=1),
        # (w_ih row, pre-folded b_ih + b_hh) -> [L, 2, 4H]   (input_size == 1)
        "lstm": jnp.concatenate([p["Wih"], p["bih"] + p["bhh"]], axis=1),
        # output head (kept f32; tiny matmuls, preserves residual precision)
        "wres": p["Wres"],
        "bres": p["bres"],
        "wout": p["Wout"],
        "outln": jnp.concatenate([p["bout"], p["gout"], p["beout"]], axis=0),  # [3, O]
    }


# ----------------------------------------------------------------------------
# Wrapper
# ----------------------------------------------------------------------------
def lattice_rnn_forward(x, h_ext, c_ext, chain_h, chain_c, kp):
    B, L, _ = x.shape
    H = h_ext.shape[-1]
    O = kp["wout"].shape[-1]
    x2d = x.reshape(B, L).astype(jnp.float32)        # x.squeeze(2)

    out_shapes = (
        jax.ShapeDtypeStruct((B, O), jnp.float32),   # output
        jax.ShapeDtypeStruct((B, H), jnp.float32),   # final_h
        jax.ShapeDtypeStruct((B, H), jnp.float32),   # final_c
        jax.ShapeDtypeStruct((L, B, H), jnp.float32),  # chain_h (updated)
        jax.ShapeDtypeStruct((L, B, H), jnp.float32),  # chain_c (updated)
    )

    # Single invocation, no grid: every operand is a whole-array VMEM block (~3 MiB total
    # at L=8, H=128), DMA'd once.  For much larger L, fall back to a pipelined grid
    # (per-cell weights are ~0.27 MiB bf16, so ~L<=100 fits comfortably even on v7x).
    out, fh, fc, ch_h, ch_c = pl.pallas_call(
        lattice_kernel,
        out_shape=out_shapes,
        compiler_params=pltpu.CompilerParams(vmem_limit_bytes=32 * 1024 * 1024),
    )(x2d,
      h_ext.astype(jnp.float32), c_ext.astype(jnp.float32),
      chain_h.astype(jnp.float32), chain_c.astype(jnp.float32),
      kp["whT"], kp["whB"], kp["wcT"], kp["wcB"], kp["whh"],
      kp["hproc"], kp["cproc"], kp["lstm"],
      kp["wres"], kp["bres"], kp["wout"], kp["outln"])
    return out, fh, fc, ch_h, ch_c


# ----------------------------------------------------------------------------
# Deterministic parameter init (shapes follow the module's __init__)
# ----------------------------------------------------------------------------
def init_params(key, input_size, H, O, L):
    ks = jax.random.split(key, 12)

    def uni(k, fan_in, shape):
        s = 1.0 / jnp.sqrt(jnp.float32(fan_in))
        return jax.random.uniform(k, shape, jnp.float32, -s, s)

    return {
        # per-cell hidden_processor: Linear(2H -> H) + LayerNorm(H)
        "Wh": uni(ks[0], 2 * H, (L, 2 * H, H)),
        "bh": uni(ks[1], 2 * H, (L, 1, H)),
        "gh": jnp.ones((L, 1, H), jnp.float32),
        "beh": jnp.zeros((L, 1, H), jnp.float32),
        # per-cell cell_processor
        "Wc": uni(ks[2], 2 * H, (L, 2 * H, H)),
        "bc": uni(ks[3], 2 * H, (L, 1, H)),
        "gc": jnp.ones((L, 1, H), jnp.float32),
        "bec": jnp.zeros((L, 1, H), jnp.float32),
        # per-cell LSTMCell(input_size, H), gates (i, f, g, o); weights stored transposed
        "Wih": uni(ks[4], H, (L, input_size, 4 * H)),
        "Whh": uni(ks[5], H, (L, H, 4 * H)),
        "bih": uni(ks[6], H, (L, 1, 4 * H)),
        "bhh": uni(ks[7], H, (L, 1, 4 * H)),
        # input_residual_proj: Linear(input_size*L -> 2H)
        "Wres": uni(ks[8], input_size * L, (input_size * L, 2 * H)),
        "bres": uni(ks[9], input_size * L, (1, 2 * H)),
        # fc_out: Linear(2H -> O) + LayerNorm(O)
        "Wout": uni(ks[10], 2 * H, (2 * H, O)),
        "bout": uni(ks[11], 2 * H, (1, O)),
        "gout": jnp.ones((1, O), jnp.float32),
        "beout": jnp.zeros((1, O), jnp.float32),
    }


# ----------------------------------------------------------------------------
# Pure-JAX reference (same mixed-precision policy: bf16 matmul operands, f32 accumulate)
# ----------------------------------------------------------------------------
def reference_forward(x, h_ext, c_ext, chain_h, chain_c, p):
    B, L, _ = x.shape
    H = h_ext.shape[-1]
    xf = x.reshape(B, L).astype(jnp.float32)

    ch_h = [chain_h[i] for i in range(L)]
    ch_c = [chain_c[i] for i in range(L)]
    for i in range(L):
        h_space = h_ext if i == 0 else ch_h[i - 1]
        c_space = c_ext if i == 0 else ch_c[i - 1]
        h_time, c_time = ch_h[i], ch_c[i]
        ph = _layernorm_relu(
            _mm(jnp.concatenate([h_space, h_time], 1), p["Wh"][i]) + p["bh"][i, 0],
            p["gh"][i, 0], p["beh"][i, 0])
        pc = _layernorm_relu(
            _mm(jnp.concatenate([c_space, c_time], 1), p["Wc"][i]) + p["bc"][i, 0],
            p["gc"][i, 0], p["bec"][i, 0])
        x_i = xf[:, i:i + 1]
        gates = x_i * p["Wih"][i, 0] + p["bih"][i, 0] + _mm(ph, p["Whh"][i]) + p["bhh"][i, 0]
        i_g = jax.nn.sigmoid(gates[:, :H])
        f_g = jax.nn.sigmoid(gates[:, H:2 * H])
        g_g = jnp.tanh(gates[:, 2 * H:3 * H])
        o_g = jax.nn.sigmoid(gates[:, 3 * H:])
        c_new = f_g * pc + i_g * g_g
        h_new = o_g * jnp.tanh(c_new)
        ch_h[i], ch_c[i] = h_new, c_new

    final_h, final_c = ch_h[-1], ch_c[-1]
    final = jnp.concatenate([final_h, final_c], 1) + xf @ p["Wres"] + p["bres"][0]
    out = _layernorm_relu(final @ p["Wout"] + p["bout"][0], p["gout"][0], p["beout"][0])
    return out, final_h, final_c, jnp.stack(ch_h), jnp.stack(ch_c)


if __name__ == "__main__":
    B, L, H, O, IN = 8, 8, 128, 16, 1   # batch, chain_length, hidden, output, input_size

    key = jax.random.PRNGKey(0)
    k1, k2, k3, k4, k5, kpk = jax.random.split(key, 6)
    x = jax.random.normal(k1, (B, L, IN), jnp.float32)
    h_ext = jax.random.normal(k2, (B, H), jnp.float32)
    c_ext = jax.random.normal(k3, (B, H), jnp.float32)
    chain_h = jax.random.normal(k4, (L, B, H), jnp.float32)
    chain_c = jax.random.normal(k5, (L, B, H), jnp.float32)
    params = init_params(kpk, IN, H, O, L)
    kparams = pack_params(params)       # one-time packing (split/cast/fold biases)

    fwd = jax.jit(lattice_rnn_forward)
    out, fh, fc, ch_h_new, ch_c_new = fwd(x, h_ext, c_ext, chain_h, chain_c, kparams)
    jax.block_until_ready((out, fh, fc, ch_h_new, ch_c_new))

    # sanity check against pure-JAX reference (same bf16-operand / f32-accum policy)
    ro, rfh, rfc, rchh, rchc = reference_forward(x, h_ext, c_ext, chain_h, chain_c, params)
    assert jnp.allclose(out, ro, atol=2e-2, rtol=2e-2), "output mismatch"
    assert jnp.allclose(fh, rfh, atol=2e-2, rtol=2e-2), "final_h mismatch"
    assert jnp.allclose(fc, rfc, atol=2e-2, rtol=2e-2), "final_c mismatch"
    assert jnp.allclose(ch_h_new, rchh, atol=2e-2, rtol=2e-2), "chain_h mismatch"
    assert jnp.allclose(ch_c_new, rchc, atol=2e-2, rtol=2e-2), "chain_c mismatch"

    print("KERNEL_OK")
</pallas_src>

<mosaic_0001>
module attributes {stable_mosaic.version = 11 : i64} {
  func.func @lattice_kernel(%arg0: memref<8x8xf32, #tpu.memory_space<vmem>>, %arg1: memref<8x128xf32, #tpu.memory_space<vmem>>, %arg2: memref<8x128xf32, #tpu.memory_space<vmem>>, %arg3: memref<8x8x128xf32, #tpu.memory_space<vmem>>, %arg4: memref<8x8x128xf32, #tpu.memory_space<vmem>>, %arg5: memref<8x128x128xbf16, #tpu.memory_space<vmem>>, %arg6: memref<8x128x128xbf16, #tpu.memory_space<vmem>>, %arg7: memref<8x128x128xbf16, #tpu.memory_space<vmem>>, %arg8: memref<8x128x128xbf16, #tpu.memory_space<vmem>>, %arg9: memref<8x128x512xbf16, #tpu.memory_space<vmem>>, %arg10: memref<8x3x128xf32, #tpu.memory_space<vmem>>, %arg11: memref<8x3x128xf32, #tpu.memory_space<vmem>>, %arg12: memref<8x2x512xf32, #tpu.memory_space<vmem>>, %arg13: memref<8x256xf32, #tpu.memory_space<vmem>>, %arg14: memref<1x256xf32, #tpu.memory_space<vmem>>, %arg15: memref<256x16xf32, #tpu.memory_space<vmem>>, %arg16: memref<3x16xf32, #tpu.memory_space<vmem>>, %arg17: memref<8x16xf32, #tpu.memory_space<vmem>>, %arg18: memref<8x128xf32, #tpu.memory_space<vmem>>, %arg19: memref<8x128xf32, #tpu.memory_space<vmem>>, %arg20: memref<8x8x128xf32, #tpu.memory_space<vmem>>, %arg21: memref<8x8x128xf32, #tpu.memory_space<vmem>>) attributes {dimension_semantics = [], scalar_prefetch = 0 : i64, scratch_operands = 0 : i64, tpu.core_type = #tpu.core_type<tc>} {
    %c0 = arith.constant 0 : index
    %c0_0 = arith.constant 0 : index
    %0 = vector.load %arg0[%c0, %c0_0] : memref<8x8xf32, #tpu.memory_space<vmem>>, vector<8x8xf32>
    %c0_1 = arith.constant 0 : index
    %c0_2 = arith.constant 0 : index
    %1 = vector.load %arg1[%c0_1, %c0_2] : memref<8x128xf32, #tpu.memory_space<vmem>>, vector<8x128xf32>
    %c0_3 = arith.constant 0 : index
    %c0_4 = arith.constant 0 : index
    %2 = vector.load %arg2[%c0_3, %c0_4] : memref<8x128xf32, #tpu.memory_space<vmem>>, vector<8x128xf32>
    %c0_5 = arith.constant 0 : index
    %c0_6 = arith.constant 0 : index
    %c0_7 = arith.constant 0 : index
    %3 = vector.load %arg3[%c0_5, %c0_6, %c0_7] : memref<8x8x128xf32, #tpu.memory_space<vmem>>, vector<1x8x128xf32>
    %4 = vector.shape_cast %3 : vector<1x8x128xf32> to vector<8x128xf32>
    %c0_8 = arith.constant 0 : index
    %c0_9 = arith.constant 0 : index
    %c0_10 = arith.constant 0 : index
    %5 = vector.load %arg4[%c0_8, %c0_9, %c0_10] : memref<8x8x128xf32, #tpu.memory_space<vmem>>, vector<1x8x128xf32>
    %6 = vector.shape_cast %5 : vector<1x8x128xf32> to vector<8x128xf32>
    %c0_11 = arith.constant 0 : index
    %c0_12 = arith.constant 0 : index
    %c0_13 = arith.constant 0 : index
    %7 = vector.load %arg10[%c0_11, %c0_12, %c0_13] : memref<8x3x128xf32, #tpu.memory_space<vmem>>, vector<1x3x128xf32>
    %8 = vector.shape_cast %7 : vector<1x3x128xf32> to vector<3x128xf32>
    %c0_14 = arith.constant 0 : index
    %c0_15 = arith.constant 0 : index
    %c0_16 = arith.constant 0 : index
    %9 = vector.load %arg11[%c0_14, %c0_15, %c0_16] : memref<8x3x128xf32, #tpu.memory_space<vmem>>, vector<1x3x128xf32>
    %10 = vector.shape_cast %9 : vector<1x3x128xf32> to vector<3x128xf32>
    %c0_17 = arith.constant 0 : index
    %c0_18 = arith.constant 0 : index
    %c0_19 = arith.constant 0 : index
    %11 = vector.load %arg12[%c0_17, %c0_18, %c0_19] : memref<8x2x512xf32, #tpu.memory_space<vmem>>, vector<1x2x512xf32>
    %12 = vector.shape_cast %11 : vector<1x2x512xf32> to vector<2x512xf32>
    %c0_20 = arith.constant 0 : index
    %c0_21 = arith.constant 0 : index
    %c0_22 = arith.constant 0 : index
    %13 = vector.load %arg5[%c0_20, %c0_21, %c0_22] : memref<8x128x128xbf16, #tpu.memory_space<vmem>>, vector<1x128x128xbf16>
    %14 = vector.shape_cast %13 : vector<1x128x128xbf16> to vector<128x128xbf16>
    %15 = arith.truncf %1 : vector<8x128xf32> to vector<8x128xbf16>
    %cst = arith.constant dense<0.000000e+00> : vector<8x128xf32>
    %16 = tpu.matmul %15, %14, %cst {dimension_numbers = #tpu.dot_dimension_numbers<[1], [0], [0], [1], [0, 0, 1, 1], [], []>} : vector<8x128xbf16>, vector<128x128xbf16>, vector<8x128xf32> -> vector<8x128xf32>
    %c0_23 = arith.constant 0 : index
    %c0_24 = arith.constant 0 : index
    %c0_25 = arith.constant 0 : index
    %17 = vector.load %arg6[%c0_23, %c0_24, %c0_25] : memref<8x128x128xbf16, #tpu.memory_space<vmem>>, vector<1x128x128xbf16>
    %18 = vector.shape_cast %17 : vector<1x128x128xbf16> to vector<128x128xbf16>
    %19 = arith.truncf %4 : vector<8x128xf32> to vector<8x128xbf16>
    %cst_26 = arith.constant dense<0.000000e+00> : vector<8x128xf32>
    %20 = tpu.matmul %19, %18, %cst_26 {dimension_numbers = #tpu.dot_dimension_numbers<[1], [0], [0], [1], [0, 0, 1, 1], [], []>} : vector<8x128xbf16>, vector<128x128xbf16>, vector<8x128xf32> -> vector<8x128xf32>
    %21 = arith.addf %16, %20 : vector<8x128xf32>
    %22 = vector.extract_strided_slice %8 {offsets = [0, 0], sizes = [1, 128], strides = [1, 1]} : vector<3x128xf32> to vector<1x128xf32>
    %23 = vector.broadcast %22 : vector<1x128xf32> to vector<8x128xf32>
    %24 = arith.addf %21, %23 : vector<8x128xf32>
    %25 = vector.extract_strided_slice %8 {offsets = [1, 0], sizes = [1, 128], strides = [1, 1]} : vector<3x128xf32> to vector<1x128xf32>
    %26 = vector.extract_strided_slice %8 {offsets = [2, 0], sizes = [1, 128], strides = [1, 1]} : vector<3x128xf32> to vector<1x128xf32>
    %cst_27 = arith.constant dense<0.000000e+00> : vector<8xf32>
    %27 = vector.multi_reduction <add>, %24, %cst_27 [1] : vector<8x128xf32> to vector<8xf32>
    %28 = vector.shape_cast %27 : vector<8xf32> to vector<8x1xf32>
    %cst_28 = arith.constant 1.280000e+02 : f32
    %29 = vector.broadcast %cst_28 : f32 to vector<8x1xf32>
    %30 = arith.divf %28, %29 : vector<8x1xf32>
    %31 = vector.broadcast %30 : vector<8x1xf32> to vector<8x128xf32>
    %32 = arith.subf %24, %31 : vector<8x128xf32>
    %33 = arith.mulf %32, %32 : vector<8x128xf32>
    %cst_29 = arith.constant dense<0.000000e+00> : vector<8xf32>
    %34 = vector.multi_reduction <add>, %33, %cst_29 [1] : vector<8x128xf32> to vector<8xf32>
    %35 = vector.shape_cast %34 : vector<8xf32> to vector<8x1xf32>
    %cst_30 = arith.constant 1.280000e+02 : f32
    %36 = vector.broadcast %cst_30 : f32 to vector<8x1xf32>
    %37 = arith.divf %35, %36 : vector<8x1xf32>
    %38 = vector.broadcast %30 : vector<8x1xf32> to vector<8x128xf32>
    %39 = arith.subf %24, %38 : vector<8x128xf32>
    %cst_31 = arith.constant 9.99999974E-6 : f32
    %40 = vector.broadcast %cst_31 : f32 to vector<8x1xf32>
    %41 = arith.addf %37, %40 : vector<8x1xf32>
    %42 = math.rsqrt %41 : vector<8x1xf32>
    %43 = vector.broadcast %42 : vector<8x1xf32> to vector<8x128xf32>
    %44 = arith.mulf %39, %43 : vector<8x128xf32>
    %45 = vector.broadcast %25 : vector<1x128xf32> to vector<8x128xf32>
    %46 = arith.mulf %44, %45 : vector<8x128xf32>
    %47 = vector.broadcast %26 : vector<1x128xf32> to vector<8x128xf32>
    %48 = arith.addf %46, %47 : vector<8x128xf32>
    %cst_32 = arith.constant 0.000000e+00 : f32
    %49 = vector.broadcast %cst_32 : f32 to vector<8x128xf32>
    %50 = arith.maximumf %48, %49 : vector<8x128xf32>
    %c0_33 = arith.constant 0 : index
    %c0_34 = arith.constant 0 : index
    %c0_35 = arith.constant 0 : index
    %51 = vector.load %arg7[%c0_33, %c0_34, %c0_35] : memref<8x128x128xbf16, #tpu.memory_space<vmem>>, vector<1x128x128xbf16>
    %52 = vector.shape_cast %51 : vector<1x128x128xbf16> to vector<128x128xbf16>
    %53 = arith.truncf %2 : vector<8x128xf32> to vector<8x128xbf16>
    %cst_36 = arith.constant dense<0.000000e+00> : vector<8x128xf32>
    %54 = tpu.matmul %53, %52, %cst_36 {dimension_numbers = #tpu.dot_dimension_numbers<[1], [0], [0], [1], [0, 0, 1, 1], [], []>} : vector<8x128xbf16>, vector<128x128xbf16>, vector<8x128xf32> -> vector<8x128xf32>
    %c0_37 = arith.constant 0 : index
    %c0_38 = arith.constant 0 : index
    %c0_39 = arith.constant 0 : index
    %55 = vector.load %arg8[%c0_37, %c0_38, %c0_39] : memref<8x128x128xbf16, #tpu.memory_space<vmem>>, vector<1x128x128xbf16>
    %56 = vector.shape_cast %55 : vector<1x128x128xbf16> to vector<128x128xbf16>
    %57 = arith.truncf %6 : vector<8x128xf32> to vector<8x128xbf16>
    %cst_40 = arith.constant dense<0.000000e+00> : vector<8x128xf32>
    %58 = tpu.matmul %57, %56, %cst_40 {dimension_numbers = #tpu.dot_dimension_numbers<[1], [0], [0], [1], [0, 0, 1, 1], [], []>} : vector<8x128xbf16>, vector<128x128xbf16>, vector<8x128xf32> -> vector<8x128xf32>
    %59 = arith.addf %54, %58 : vector<8x128xf32>
    %60 = vector.extract_strided_slice %10 {offsets = [0, 0], sizes = [1, 128], strides = [1, 1]} : vector<3x128xf32> to vector<1x128xf32>
    %61 = vector.broadcast %60 : vector<1x128xf32> to vector<8x128xf32>
    %62 = arith.addf %59, %61 : vector<8x128xf32>
    %63 = vector.extract_strided_slice %10 {offsets = [1, 0], sizes = [1, 128], strides = [1, 1]} : vector<3x128xf32> to vector<1x128xf32>
    %64 = vector.extract_strided_slice %10 {offsets = [2, 0], sizes = [1, 128], strides = [1, 1]} : vector<3x128xf32> to vector<1x128xf32>
    %cst_41 = arith.constant dense<0.000000e+00> : vector<8xf32>
    %65 = vector.multi_reduction <add>, %62, %cst_41 [1] : vector<8x128xf32> to vector<8xf32>
    %66 = vector.shape_cast %65 : vector<8xf32> to vector<8x1xf32>
    %cst_42 = arith.constant 1.280000e+02 : f32
    %67 = vector.broadcast %cst_42 : f32 to vector<8x1xf32>
    %68 = arith.divf %66, %67 : vector<8x1xf32>
    %69 = vector.broadcast %68 : vector<8x1xf32> to vector<8x128xf32>
    %70 = arith.subf %62, %69 : vector<8x128xf32>
    %71 = arith.mulf %70, %70 : vector<8x128xf32>
    %cst_43 = arith.constant dense<0.000000e+00> : vector<8xf32>
    %72 = vector.multi_reduction <add>, %71, %cst_43 [1] : vector<8x128xf32> to vector<8xf32>
    %73 = vector.shape_cast %72 : vector<8xf32> to vector<8x1xf32>
    %cst_44 = arith.constant 1.280000e+02 : f32
    %74 = vector.broadcast %cst_44 : f32 to vector<8x1xf32>
    %75 = arith.divf %73, %74 : vector<8x1xf32>
    %76 = vector.broadcast %68 : vector<8x1xf32> to vector<8x128xf32>
    %77 = arith.subf %62, %76 : vector<8x128xf32>
    %cst_45 = arith.constant 9.99999974E-6 : f32
    %78 = vector.broadcast %cst_45 : f32 to vector<8x1xf32>
    %79 = arith.addf %75, %78 : vector<8x1xf32>
    %80 = math.rsqrt %79 : vector<8x1xf32>
    %81 = vector.broadcast %80 : vector<8x1xf32> to vector<8x128xf32>
    %82 = arith.mulf %77, %81 : vector<8x128xf32>
    %83 = vector.broadcast %63 : vector<1x128xf32> to vector<8x128xf32>
    %84 = arith.mulf %82, %83 : vector<8x128xf32>
    %85 = vector.broadcast %64 : vector<1x128xf32> to vector<8x128xf32>
    %86 = arith.addf %84, %85 : vector<8x128xf32>
    %cst_46 = arith.constant 0.000000e+00 : f32
    %87 = vector.broadcast %cst_46 : f32 to vector<8x128xf32>
    %88 = arith.maximumf %86, %87 : vector<8x128xf32>
    %89 = vector.extract_strided_slice %0 {offsets = [0, 0], sizes = [8, 1], strides = [1, 1]} : vector<8x8xf32> to vector<8x1xf32>
    %90 = vector.extract_strided_slice %12 {offsets = [0, 0], sizes = [1, 512], strides = [1, 1]} : vector<2x512xf32> to vector<1x512xf32>
    %91 = vector.broadcast %89 : vector<8x1xf32> to vector<8x512xf32>
    %92 = vector.broadcast %90 : vector<1x512xf32> to vector<8x512xf32>
    %93 = arith.mulf %91, %92 : vector<8x512xf32>
    %94 = vector.extract_strided_slice %12 {offsets = [1, 0], sizes = [1, 512], strides = [1, 1]} : vector<2x512xf32> to vector<1x512xf32>
    %95 = vector.broadcast %94 : vector<1x512xf32> to vector<8x512xf32>
    %96 = arith.addf %93, %95 : vector<8x512xf32>
    %c0_47 = arith.constant 0 : index
    %c0_48 = arith.constant 0 : index
    %c0_49 = arith.constant 0 : index
    %97 = vector.load %arg9[%c0_47, %c0_48, %c0_49] : memref<8x128x512xbf16, #tpu.memory_space<vmem>>, vector<1x128x512xbf16>
    %98 = vector.shape_cast %97 : vector<1x128x512xbf16> to vector<128x512xbf16>
    %99 = arith.truncf %50 : vector<8x128xf32> to vector<8x128xbf16>
    %cst_50 = arith.constant dense<0.000000e+00> : vector<8x512xf32>
    %100 = tpu.matmul %99, %98, %cst_50 {dimension_numbers = #tpu.dot_dimension_numbers<[1], [0], [0], [1], [0, 0, 1, 1], [], []>} : vector<8x128xbf16>, vector<128x512xbf16>, vector<8x512xf32> -> vector<8x512xf32>
    %101 = arith.addf %96, %100 : vector<8x512xf32>
    %102 = vector.extract_strided_slice %101 {offsets = [0, 0], sizes = [8, 128], strides = [1, 1]} : vector<8x512xf32> to vector<8x128xf32>
    %103 = arith.negf %102 : vector<8x128xf32>
    %104 = math.exp %103 : vector<8x128xf32>
    %cst_51 = arith.constant 1.000000e+00 : f32
    %105 = vector.broadcast %cst_51 : f32 to vector<8x128xf32>
    %106 = arith.addf %105, %104 : vector<8x128xf32>
    %107 = arith.divf %105, %106 : vector<8x128xf32>
    %108 = vector.extract_strided_slice %101 {offsets = [0, 128], sizes = [8, 128], strides = [1, 1]} : vector<8x512xf32> to vector<8x128xf32>
    %109 = arith.negf %108 : vector<8x128xf32>
    %110 = math.exp %109 : vector<8x128xf32>
    %cst_52 = arith.constant 1.000000e+00 : f32
    %111 = vector.broadcast %cst_52 : f32 to vector<8x128xf32>
    %112 = arith.addf %111, %110 : vector<8x128xf32>
    %113 = arith.divf %111, %112 : vector<8x128xf32>
    %114 = vector.extract_strided_slice %101 {offsets = [0, 256], sizes = [8, 128], strides = [1, 1]} : vector<8x512xf32> to vector<8x128xf32>
    %115 = math.tanh %114 : vector<8x128xf32>
    %116 = vector.extract_strided_slice %101 {offsets = [0, 384], sizes = [8, 128], strides = [1, 1]} : vector<8x512xf32> to vector<8x128xf32>
    %117 = arith.negf %116 : vector<8x128xf32>
    %118 = math.exp %117 : vector<8x128xf32>
    %cst_53 = arith.constant 1.000000e+00 : f32
    %119 = vector.broadcast %cst_53 : f32 to vector<8x128xf32>
    %120 = arith.addf %119, %118 : vector<8x128xf32>
    %121 = arith.divf %119, %120 : vector<8x128xf32>
    %122 = arith.mulf %113, %88 : vector<8x128xf32>
    %123 = arith.mulf %107, %115 : vector<8x128xf32>
    %124 = arith.addf %122, %123 : vector<8x128xf32>
    %125 = math.tanh %124 : vector<8x128xf32>
    %126 = arith.mulf %121, %125 : vector<8x128xf32>
    %c0_54 = arith.constant 0 : index
    %c0_55 = arith.constant 0 : index
    %c0_56 = arith.constant 0 : index
    %127 = vector.load %arg20[%c0_54, %c0_55, %c0_56] : memref<8x8x128xf32, #tpu.memory_space<vmem>>, vector<1x8x128xf32>
    %128 = vector.shape_cast %127 : vector<1x8x128xf32> to vector<8x128xf32>
    %129 = vector.shape_cast %126 : vector<8x128xf32> to vector<1x8x128xf32>
    tpu.vector_store %arg20[%c0_54, %c0_55, %c0_56], %129 {strides = array<i32>} : memref<8x8x128xf32, #tpu.memory_space<vmem>>, vector<1x8x128xf32>,
    %c0_57 = arith.constant 0 : index
    %c0_58 = arith.constant 0 : index
    %c0_59 = arith.constant 0 : index
    %130 = vector.load %arg21[%c0_57, %c0_58, %c0_59] : memref<8x8x128xf32, #tpu.memory_space<vmem>>, vector<1x8x128xf32>
    %131 = vector.shape_cast %130 : vector<1x8x128xf32> to vector<8x128xf32>
    %132 = vector.shape_cast %124 : vector<8x128xf32> to vector<1x8x128xf32>
    tpu.vector_store %arg21[%c0_57, %c0_58, %c0_59], %132 {strides = array<i32>} : memref<8x8x128xf32, #tpu.memory_space<vmem>>, vector<1x8x128xf32>,
    %c1 = arith.constant 1 : index
    %c0_60 = arith.constant 0 : index
    %c0_61 = arith.constant 0 : index
    %133 = vector.load %arg3[%c1, %c0_60, %c0_61] : memref<8x8x128xf32, #tpu.memory_space<vmem>>, vector<1x8x128xf32>
    %134 = vector.shape_cast %133 : vector<1x8x128xf32> to vector<8x128xf32>
    %c1_62 = arith.constant 1 : index
    %c0_63 = arith.constant 0 : index
    %c0_64 = arith.constant 0 : index
    %135 = vector.load %arg4[%c1_62, %c0_63, %c0_64] : memref<8x8x128xf32, #tpu.memory_space<vmem>>, vector<1x8x128xf32>
    %136 = vector.shape_cast %135 : vector<1x8x128xf32> to vector<8x128xf32>
    %c1_65 = arith.constant 1 : index
    %c0_66 = arith.constant 0 : index
    %c0_67 = arith.constant 0 : index
    %137 = vector.load %arg10[%c1_65, %c0_66, %c0_67] : memref<8x3x128xf32, #tpu.memory_space<vmem>>, vector<1x3x128xf32>
    %138 = vector.shape_cast %137 : vector<1x3x128xf32> to vector<3x128xf32>
    %c1_68 = arith.constant 1 : index
    %c0_69 = arith.constant 0 : index
    %c0_70 = arith.constant 0 : index
    %139 = vector.load %arg11[%c1_68, %c0_69, %c0_70] : memref<8x3x128xf32, #tpu.memory_space<vmem>>, vector<1x3x128xf32>
    %140 = vector.shape_cast %139 : vector<1x3x128xf32> to vector<3x128xf32>
    %c1_71 = arith.constant 1 : index
    %c0_72 = arith.constant 0 : index
    %c0_73 = arith.constant 0 : index
    %141 = vector.load %arg12[%c1_71, %c0_72, %c0_73] : memref<8x2x512xf32, #tpu.memory_space<vmem>>, vector<1x2x512xf32>
    %142 = vector.shape_cast %141 : vector<1x2x512xf32> to vector<2x512xf32>
    %c1_74 = arith.constant 1 : index
    %c0_75 = arith.constant 0 : index
    %c0_76 = arith.constant 0 : index
    %143 = vector.load %arg5[%c1_74, %c0_75, %c0_76] : memref<8x128x128xbf16, #tpu.memory_space<vmem>>, vector<1x128x128xbf16>
    %144 = vector.shape_cast %143 : vector<1x128x128xbf16> to vector<128x128xbf16>
    %145 = arith.truncf %126 : vector<8x128xf32> to vector<8x128xbf16>
    %cst_77 = arith.constant dense<0.000000e+00> : vector<8x128xf32>
    %146 = tpu.matmul %145, %144, %cst_77 {dimension_numbers = #tpu.dot_dimension_numbers<[1], [0], [0], [1], [0, 0, 1, 1], [], []>} : vector<8x128xbf16>, vector<128x128xbf16>, vector<8x128xf32> -> vector<8x128xf32>
    %c1_78 = arith.constant 1 : index
    %c0_79 = arith.constant 0 : index
    %c0_80 = arith.constant 0 : index
    %147 = vector.load %arg6[%c1_78, %c0_79, %c0_80] : memref<8x128x128xbf16, #tpu.memory_space<vmem>>, vector<1x128x128xbf16>
    %148 = vector.shape_cast %147 : vector<1x128x128xbf16> to vector<128x128xbf16>
    %149 = arith.truncf %134 : vector<8x128xf32> to vector<8x128xbf16>
    %cst_81 = arith.constant dense<0.000000e+00> : vector<8x128xf32>
    %150 = tpu.matmul %149, %148, %cst_81 {dimension_numbers = #tpu.dot_dimension_numbers<[1], [0], [0], [1], [0, 0, 1, 1], [], []>} : vector<8x128xbf16>, vector<128x128xbf16>, vector<8x128xf32> -> vector<8x128xf32>
    %151 = arith.addf %146, %150 : vector<8x128xf32>
    %152 = vector.extract_strided_slice %138 {offsets = [0, 0], sizes = [1, 128], strides = [1, 1]} : vector<3x128xf32> to vector<1x128xf32>
    %153 = vector.broadcast %152 : vector<1x128xf32> to vector<8x128xf32>
    %154 = arith.addf %151, %153 : vector<8x128xf32>
    %155 = vector.extract_strided_slice %138 {offsets = [1, 0], sizes = [1, 128], strides = [1, 1]} : vector<3x128xf32> to vector<1x128xf32>
    %156 = vector.extract_strided_slice %138 {offsets = [2, 0], sizes = [1, 128], strides = [1, 1]} : vector<3x128xf32> to vector<1x128xf32>
    %cst_82 = arith.constant dense<0.000000e+00> : vector<8xf32>
    %157 = vector.multi_reduction <add>, %154, %cst_82 [1] : vector<8x128xf32> to vector<8xf32>
    %158 = vector.shape_cast %157 : vector<8xf32> to vector<8x1xf32>
    %cst_83 = arith.constant 1.280000e+02 : f32
    %159 = vector.broadcast %cst_83 : f32 to vector<8x1xf32>
    %160 = arith.divf %158, %159 : vector<8x1xf32>
    %161 = vector.broadcast %160 : vector<8x1xf32> to vector<8x128xf32>
    %162 = arith.subf %154, %161 : vector<8x128xf32>
    %163 = arith.mulf %162, %162 : vector<8x128xf32>
    %cst_84 = arith.constant dense<0.000000e+00> : vector<8xf32>
    %164 = vector.multi_reduction <add>, %163, %cst_84 [1] : vector<8x128xf32> to vector<8xf32>
    %165 = vector.shape_cast %164 : vector<8xf32> to vector<8x1xf32>
    %cst_85 = arith.constant 1.280000e+02 : f32
    %166 = vector.broadcast %cst_85 : f32 to vector<8x1xf32>
    %167 = arith.divf %165, %166 : vector<8x1xf32>
    %168 = vector.broadcast %160 : vector<8x1xf32> to vector<8x128xf32>
    %169 = arith.subf %154, %168 : vector<8x128xf32>
    %cst_86 = arith.constant 9.99999974E-6 : f32
    %170 = vector.broadcast %cst_86 : f32 to vector<8x1xf32>
    %171 = arith.addf %167, %170 : vector<8x1xf32>
    %172 = math.rsqrt %171 : vector<8x1xf32>
    %173 = vector.broadcast %172 : vector<8x1xf32> to vector<8x128xf32>
    %174 = arith.mulf %169, %173 : vector<8x128xf32>
    %175 = vector.broadcast %155 : vector<1x128xf32> to vector<8x128xf32>
    %176 = arith.mulf %174, %175 : vector<8x128xf32>
    %177 = vector.broadcast %156 : vector<1x128xf32> to vector<8x128xf32>
    %178 = arith.addf %176, %177 : vector<8x128xf32>
    %cst_87 = arith.constant 0.000000e+00 : f32
    %179 = vector.broadcast %cst_87 : f32 to vector<8x128xf32>
    %180 = arith.maximumf %178, %179 : vector<8x128xf32>
    %c1_88 = arith.constant 1 : index
    %c0_89 = arith.constant 0 : index
    %c0_90 = arith.constant 0 : index
    %181 = vector.load %arg7[%c1_88, %c0_89, %c0_90] : memref<8x128x128xbf16, #tpu.memory_space<vmem>>, vector<1x128x128xbf16>
    %182 = vector.shape_cast %181 : vector<1x128x128xbf16> to vector<128x128xbf16>
    %183 = arith.truncf %124 : vector<8x128xf32> to vector<8x128xbf16>
    %cst_91 = arith.constant dense<0.000000e+00> : vector<8x128xf32>
    %184 = tpu.matmul %183, %182, %cst_91 {dimension_numbers = #tpu.dot_dimension_numbers<[1], [0], [0], [1], [0, 0, 1, 1], [], []>} : vector<8x128xbf16>, vector<128x128xbf16>, vector<8x128xf32> -> vector<8x128xf32>
    %c1_92 = arith.constant 1 : index
    %c0_93 = arith.constant 0 : index
    %c0_94 = arith.constant 0 : index
    %185 = vector.load %arg8[%c1_92, %c0_93, %c0_94] : memref<8x128x128xbf16, #tpu.memory_space<vmem>>, vector<1x128x128xbf16>
    %186 = vector.shape_cast %185 : vector<1x128x128xbf16> to vector<128x128xbf16>
    %187 = arith.truncf %136 : vector<8x128xf32> to vector<8x128xbf16>
    %cst_95 = arith.constant dense<0.000000e+00> : vector<8x128xf32>
    %188 = tpu.matmul %187, %186, %cst_95 {dimension_numbers = #tpu.dot_dimension_numbers<[1], [0], [0], [1], [0, 0, 1, 1], [], []>} : vector<8x128xbf16>, vector<128x128xbf16>, vector<8x128xf32> -> vector<8x128xf32>
    %189 = arith.addf %184, %188 : vector<8x128xf32>
    %190 = vector.extract_strided_slice %140 {offsets = [0, 0], sizes = [1, 128], strides = [1, 1]} : vector<3x128xf32> to vector<1x128xf32>
    %191 = vector.broadcast %190 : vector<1x128xf32> to vector<8x128xf32>
    %192 = arith.addf %189, %191 : vector<8x128xf32>
    %193 = vector.extract_strided_slice %140 {offsets = [1, 0], sizes = [1, 128], strides = [1, 1]} : vector<3x128xf32> to vector<1x128xf32>
    %194 = vector.extract_strided_slice %140 {offsets = [2, 0], sizes = [1, 128], strides = [1, 1]} : vector<3x128xf32> to vector<1x128xf32>
    %cst_96 = arith.constant dense<0.000000e+00> : vector<8xf32>
    %195 = vector.multi_reduction <add>, %192, %cst_96 [1] : vector<8x128xf32> to vector<8xf32>
    %196 = vector.shape_cast %195 : vector<8xf32> to vector<8x1xf32>
    %cst_97 = arith.constant 1.280000e+02 : f32
    %197 = vector.broadcast %cst_97 : f32 to vector<8x1xf32>
    %198 = arith.divf %196, %197 : vector<8x1xf32>
    %199 = vector.broadcast %198 : vector<8x1xf32> to vector<8x128xf32>
    %200 = arith.subf %192, %199 : vector<8x128xf32>
    %201 = arith.mulf %200, %200 : vector<8x128xf32>
    %cst_98 = arith.constant dense<0.000000e+00> : vector<8xf32>
    %202 = vector.multi_reduction <add>, %201, %cst_98 [1] : vector<8x128xf32> to vector<8xf32>
    %203 = vector.shape_cast %202 : vector<8xf32> to vector<8x1xf32>
    %cst_99 = arith.constant 1.280000e+02 : f32
    %204 = vector.broadcast %cst_99 : f32 to vector<8x1xf32>
    %205 = arith.divf %203, %204 : vector<8x1xf32>
    %206 = vector.broadcast %198 : vector<8x1xf32> to vector<8x128xf32>
    %207 = arith.subf %192, %206 : vector<8x128xf32>
    %cst_100 = arith.constant 9.99999974E-6 : f32
    %208 = vector.broadcast %cst_100 : f32 to vector<8x1xf32>
    %209 = arith.addf %205, %208 : vector<8x1xf32>
    %210 = math.rsqrt %209 : vector<8x1xf32>
    %211 = vector.broadcast %210 : vector<8x1xf32> to vector<8x128xf32>
    %212 = arith.mulf %207, %211 : vector<8x128xf32>
    %213 = vector.broadcast %193 : vector<1x128xf32> to vector<8x128xf32>
    %214 = arith.mulf %212, %213 : vector<8x128xf32>
    %215 = vector.broadcast %194 : vector<1x128xf32> to vector<8x128xf32>
    %216 = arith.addf %214, %215 : vector<8x128xf32>
    %cst_101 = arith.constant 0.000000e+00 : f32
    %217 = vector.broadcast %cst_101 : f32 to vector<8x128xf32>
    %218 = arith.maximumf %216, %217 : vector<8x128xf32>
    %219 = vector.extract_strided_slice %0 {offsets = [0, 1], sizes = [8, 1], strides = [1, 1]} : vector<8x8xf32> to vector<8x1xf32>
    %220 = vector.extract_strided_slice %142 {offsets = [0, 0], sizes = [1, 512], strides = [1, 1]} : vector<2x512xf32> to vector<1x512xf32>
    %221 = vector.broadcast %219 : vector<8x1xf32> to vector<8x512xf32>
    %222 = vector.broadcast %220 : vector<1x512xf32> to vector<8x512xf32>
    %223 = arith.mulf %221, %222 : vector<8x512xf32>
    %224 = vector.extract_strided_slice %142 {offsets = [1, 0], sizes = [1, 512], strides = [1, 1]} : vector<2x512xf32> to vector<1x512xf32>
    %225 = vector.broadcast %224 : vector<1x512xf32> to vector<8x512xf32>
    %226 = arith.addf %223, %225 : vector<8x512xf32>
    %c1_102 = arith.constant 1 : index
    %c0_103 = arith.constant 0 : index
    %c0_104 = arith.constant 0 : index
    %227 = vector.load %arg9[%c1_102, %c0_103, %c0_104] : memref<8x128x512xbf16, #tpu.memory_space<vmem>>, vector<1x128x512xbf16>
    %228 = vector.shape_cast %227 : vector<1x128x512xbf16> to vector<128x512xbf16>
    %229 = arith.truncf %180 : vector<8x128xf32> to vector<8x128xbf16>
    %cst_105 = arith.constant dense<0.000000e+00> : vector<8x512xf32>
    %230 = tpu.matmul %229, %228, %cst_105 {dimension_numbers = #tpu.dot_dimension_numbers<[1], [0], [0], [1], [0, 0, 1, 1], [], []>} : vector<8x128xbf16>, vector<128x512xbf16>, vector<8x512xf32> -> vector<8x512xf32>
    %231 = arith.addf %226, %230 : vector<8x512xf32>
    %232 = vector.extract_strided_slice %231 {offsets = [0, 0], sizes = [8, 128], strides = [1, 1]} : vector<8x512xf32> to vector<8x128xf32>
    %233 = arith.negf %232 : vector<8x128xf32>
    %234 = math.exp %233 : vector<8x128xf32>
    %cst_106 = arith.constant 1.000000e+00 : f32
    %235 = vector.broadcast %cst_106 : f32 to vector<8x128xf32>
    %236 = arith.addf %235, %234 : vector<8x128xf32>
    %237 = arith.divf %235, %236 : vector<8x128xf32>
    %238 = vector.extract_strided_slice %231 {offsets = [0, 128], sizes = [8, 128], strides = [1, 1]} : vector<8x512xf32> to vector<8x128xf32>
    %239 = arith.negf %238 : vector<8x128xf32>
    %240 = math.exp %239 : vector<8x128xf32>
    %cst_107 = arith.constant 1.000000e+00 : f32
    %241 = vector.broadcast %cst_107 : f32 to vector<8x128xf32>
    %242 = arith.addf %241, %240 : vector<8x128xf32>
    %243 = arith.divf %241, %242 : vector<8x128xf32>
    %244 = vector.extract_strided_slice %231 {offsets = [0, 256], sizes = [8, 128], strides = [1, 1]} : vector<8x512xf32> to vector<8x128xf32>
    %245 = math.tanh %244 : vector<8x128xf32>
    %246 = vector.extract_strided_slice %231 {offsets = [0, 384], sizes = [8, 128], strides = [1, 1]} : vector<8x512xf32> to vector<8x128xf32>
    %247 = arith.negf %246 : vector<8x128xf32>
    %248 = math.exp %247 : vector<8x128xf32>
    %cst_108 = arith.constant 1.000000e+00 : f32
    %249 = vector.broadcast %cst_108 : f32 to vector<8x128xf32>
    %250 = arith.addf %249, %248 : vector<8x128xf32>
    %251 = arith.divf %249, %250 : vector<8x128xf32>
    %252 = arith.mulf %243, %218 : vector<8x128xf32>
    %253 = arith.mulf %237, %245 : vector<8x128xf32>
    %254 = arith.addf %252, %253 : vector<8x128xf32>
    %255 = math.tanh %254 : vector<8x128xf32>
    %256 = arith.mulf %251, %255 : vector<8x128xf32>
    %c1_109 = arith.constant 1 : index
    %c0_110 = arith.constant 0 : index
    %c0_111 = arith.constant 0 : index
    %257 = vector.load %arg20[%c1_109, %c0_110, %c0_111] : memref<8x8x128xf32, #tpu.memory_space<vmem>>, vector<1x8x128xf32>
    %258 = vector.shape_cast %257 : vector<1x8x128xf32> to vector<8x128xf32>
    %259 = vector.shape_cast %256 : vector<8x128xf32> to vector<1x8x128xf32>
    tpu.vector_store %arg20[%c1_109, %c0_110, %c0_111], %259 {strides = array<i32>} : memref<8x8x128xf32, #tpu.memory_space<vmem>>, vector<1x8x128xf32>,
    %c1_112 = arith.constant 1 : index
    %c0_113 = arith.constant 0 : index
    %c0_114 = arith.constant 0 : index
    %260 = vector.load %arg21[%c1_112, %c0_113, %c0_114] : memref<8x8x128xf32, #tpu.memory_space<vmem>>, vector<1x8x128xf32>
    %261 = vector.shape_cast %260 : vector<1x8x128xf32> to vector<8x128xf32>
    %262 = vector.shape_cast %254 : vector<8x128xf32> to vector<1x8x128xf32>
    tpu.vector_store %arg21[%c1_112, %c0_113, %c0_114], %262 {strides = array<i32>} : memref<8x8x128xf32, #tpu.memory_space<vmem>>, vector<1x8x128xf32>,
    %c2 = arith.constant 2 : index
    %c0_115 = arith.constant 0 : index
    %c0_116 = arith.constant 0 : index
    %263 = vector.load %arg3[%c2, %c0_115, %c0_116] : memref<8x8x128xf32, #tpu.memory_space<vmem>>, vector<1x8x128xf32>
    %264 = vector.shape_cast %263 : vector<1x8x128xf32> to vector<8x128xf32>
    %c2_117 = arith.constant 2 : index
    %c0_118 = arith.constant 0 : index
    %c0_119 = arith.constant 0 : index
    %265 = vector.load %arg4[%c2_117, %c0_118, %c0_119] : memref<8x8x128xf32, #tpu.memory_space<vmem>>, vector<1x8x128xf32>
    %266 = vector.shape_cast %265 : vector<1x8x128xf32> to vector<8x128xf32>
    %c2_120 = arith.constant 2 : index
    %c0_121 = arith.constant 0 : index
    %c0_122 = arith.constant 0 : index
    %267 = vector.load %arg10[%c2_120, %c0_121, %c0_122] : memref<8x3x128xf32, #tpu.memory_space<vmem>>, vector<1x3x128xf32>
    %268 = vector.shape_cast %267 : vector<1x3x128xf32> to vector<3x128xf32>
    %c2_123 = arith.constant 2 : index
    %c0_124 = arith.constant 0 : index
    %c0_125 = arith.constant 0 : index
    %269 = vector.load %arg11[%c2_123, %c0_124, %c0_125] : memref<8x3x128xf32, #tpu.memory_space<vmem>>, vector<1x3x128xf32>
    %270 = vector.shape_cast %269 : vector<1x3x128xf32> to vector<3x128xf32>
    %c2_126 = arith.constant 2 : index
    %c0_127 = arith.constant 0 : index
    %c0_128 = arith.constant 0 : index
    %271 = vector.load %arg12[%c2_126, %c0_127, %c0_128] : memref<8x2x512xf32, #tpu.memory_space<vmem>>, vector<1x2x512xf32>
    %272 = vector.shape_cast %271 : vector<1x2x512xf32> to vector<2x512xf32>
    %c2_129 = arith.constant 2 : index
    %c0_130 = arith.constant 0 : index
    %c0_131 = arith.constant 0 : index
    %273 = vector.load %arg5[%c2_129, %c0_130, %c0_131] : memref<8x128x128xbf16, #tpu.memory_space<vmem>>, vector<1x128x128xbf16>
    %274 = vector.shape_cast %273 : vector<1x128x128xbf16> to vector<128x128xbf16>
    %275 = arith.truncf %256 : vector<8x128xf32> to vector<8x128xbf16>
    %cst_132 = arith.constant dense<0.000000e+00> : vector<8x128xf32>
    %276 = tpu.matmul %275, %274, %cst_132 {dimension_numbers = #tpu.dot_dimension_numbers<[1], [0], [0], [1], [0, 0, 1, 1], [], []>} : vector<8x128xbf16>, vector<128x128xbf16>, vector<8x128xf32> -> vector<8x128xf32>
    %c2_133 = arith.constant 2 : index
    %c0_134 = arith.constant 0 : index
    %c0_135 = arith.constant 0 : index
    %277 = vector.load %arg6[%c2_133, %c0_134, %c0_135] : memref<8x128x128xbf16, #tpu.memory_space<vmem>>, vector<1x128x128xbf16>
    %278 = vector.shape_cast %277 : vector<1x128x128xbf16> to vector<128x128xbf16>
    %279 = arith.truncf %264 : vector<8x128xf32> to vector<8x128xbf16>
    %cst_136 = arith.constant dense<0.000000e+00> : vector<8x128xf32>
    %280 = tpu.matmul %279, %278, %cst_136 {dimension_numbers = #tpu.dot_dimension_numbers<[1], [0], [0], [1], [0, 0, 1, 1], [], []>} : vector<8x128xbf16>, vector<128x128xbf16>, vector<8x128xf32> -> vector<8x128xf32>
    %281 = arith.addf %276, %280 : vector<8x128xf32>
    %282 = vector.extract_strided_slice %268 {offsets = [0, 0], sizes = [1, 128], strides = [1, 1]} : vector<3x128xf32> to vector<1x128xf32>
    %283 = vector.broadcast %282 : vector<1x128xf32> to vector<8x128xf32>
    %284 = arith.addf %281, %283 : vector<8x128xf32>
    %285 = vector.extract_strided_slice %268 {offsets = [1, 0], sizes = [1, 128], strides = [1, 1]} : vector<3x128xf32> to vector<1x128xf32>
    %286 = vector.extract_strided_slice %268 {offsets = [2, 0], sizes = [1, 128], strides = [1, 1]} : vector<3x128xf32> to vector<1x128xf32>
    %cst_137 = arith.constant dense<0.000000e+00> : vector<8xf32>
    %287 = vector.multi_reduction <add>, %284, %cst_137 [1] : vector<8x128xf32> to vector<8xf32>
    %288 = vector.shape_cast %287 : vector<8xf32> to vector<8x1xf32>
    %cst_138 = arith.constant 1.280000e+02 : f32
    %289 = vector.broadcast %cst_138 : f32 to vector<8x1xf32>
    %290 = arith.divf %288, %289 : vector<8x1xf32>
    %291 = vector.broadcast %290 : vector<8x1xf32> to vector<8x128xf32>
    %292 = arith.subf %284, %291 : vector<8x128xf32>
    %293 = arith.mulf %292, %292 : vector<8x128xf32>
    %cst_139 = arith.constant dense<0.000000e+00> : vector<8xf32>
    %294 = vector.multi_reduction <add>, %293, %cst_139 [1] : vector<8x128xf32> to vector<8xf32>
    %295 = vector.shape_cast %294 : vector<8xf32> to vector<8x1xf32>
    %cst_140 = arith.constant 1.280000e+02 : f32
    %296 = vector.broadcast %cst_140 : f32 to vector<8x1xf32>
    %297 = arith.divf %295, %296 : vector<8x1xf32>
    %298 = vector.broadcast %290 : vector<8x1xf32> to vector<8x128xf32>
    %299 = arith.subf %284, %298 : vector<8x128xf32>
    %cst_141 = arith.constant 9.99999974E-6 : f32
    %300 = vector.broadcast %cst_141 : f32 to vector<8x1xf32>
    %301 = arith.addf %297, %300 : vector<8x1xf32>
    %302 = math.rsqrt %301 : vector<8x1xf32>
    %303 = vector.broadcast %302 : vector<8x1xf32> to vector<8x128xf32>
    %304 = arith.mulf %299, %303 : vector<8x128xf32>
    %305 = vector.broadcast %285 : vector<1x128xf32> to vector<8x128xf32>
    %306 = arith.mulf %304, %305 : vector<8x128xf32>
    %307 = vector.broadcast %286 : vector<1x128xf32> to vector<8x128xf32>
    %308 = arith.addf %306, %307 : vector<8x128xf32>
    %cst_142 = arith.constant 0.000000e+00 : f32
    %309 = vector.broadcast %cst_142 : f32 to vector<8x128xf32>
    %310 = arith.maximumf %308, %309 : vector<8x128xf32>
    %c2_143 = arith.constant 2 : index
    %c0_144 = arith.constant 0 : index
    %c0_145 = arith.constant 0 : index
    %311 = vector.load %arg7[%c2_143, %c0_144, %c0_145] : memref<8x128x128xbf16, #tpu.memory_space<vmem>>, vector<1x128x128xbf16>
    %312 = vector.shape_cast %311 : vector<1x128x128xbf16> to vector<128x128xbf16>
    %313 = arith.truncf %254 : vector<8x128xf32> to vector<8x128xbf16>
    %cst_146 = arith.constant dense<0.000000e+00> : vector<8x128xf32>
    %314 = tpu.matmul %313, %312, %cst_146 {dimension_numbers = #tpu.dot_dimension_numbers<[1], [0], [0], [1], [0, 0, 1, 1], [], []>} : vector<8x128xbf16>, vector<128x128xbf16>, vector<8x128xf32> -> vector<8x128xf32>
    %c2_147 = arith.constant 2 : index
    %c0_148 = arith.constant 0 : index
    %c0_149 = arith.constant 0 : index
    %315 = vector.load %arg8[%c2_147, %c0_148, %c0_149] : memref<8x128x128xbf16, #tpu.memory_space<vmem>>, vector<1x128x128xbf16>
    %316 = vector.shape_cast %315 : vector<1x128x128xbf16> to vector<128x128xbf16>
    %317 = arith.truncf %266 : vector<8x128xf32> to vector<8x128xbf16>
    %cst_150 = arith.constant dense<0.000000e+00> : vector<8x128xf32>
    %318 = tpu.matmul %317, %316, %cst_150 {dimension_numbers = #tpu.dot_dimension_numbers<[1], [0], [0], [1], [0, 0, 1, 1], [], []>} : vector<8x128xbf16>, vector<128x128xbf16>, vector<8x128xf32> -> vector<8x128xf32>
    %319 = arith.addf %314, %318 : vector<8x128xf32>
    %320 = vector.extract_strided_slice %270 {offsets = [0, 0], sizes = [1, 128], strides = [1, 1]} : vector<3x128xf32> to vector<1x128xf32>
    %321 = vector.broadcast %320 : vector<1x128xf32> to vector<8x128xf32>
    %322 = arith.addf %319, %321 : vector<8x128xf32>
    %323 = vector.extract_strided_slice %270 {offsets = [1, 0], sizes = [1, 128], strides = [1, 1]} : vector<3x128xf32> to vector<1x128xf32>
    %324 = vector.extract_strided_slice %270 {offsets = [2, 0], sizes = [1, 128], strides = [1, 1]} : vector<3x128xf32> to vector<1x128xf32>
    %cst_151 = arith.constant dense<0.000000e+00> : vector<8xf32>
    %325 = vector.multi_reduction <add>, %322, %cst_151 [1] : vector<8x128xf32> to vector<8xf32>
    %326 = vector.shape_cast %325 : vector<8xf32> to vector<8x1xf32>
    %cst_152 = arith.constant 1.280000e+02 : f32
    %327 = vector.broadcast %cst_152 : f32 to vector<8x1xf32>
    %328 = arith.divf %326, %327 : vector<8x1xf32>
    %329 = vector.broadcast %328 : vector<8x1xf32> to vector<8x128xf32>
    %330 = arith.subf %322, %329 : vector<8x128xf32>
    %331 = arith.mulf %330, %330 : vector<8x128xf32>
    %cst_153 = arith.constant dense<0.000000e+00> : vector<8xf32>
    %332 = vector.multi_reduction <add>, %331, %cst_153 [1] : vector<8x128xf32> to vector<8xf32>
    %333 = vector.shape_cast %332 : vector<8xf32> to vector<8x1xf32>
    %cst_154 = arith.constant 1.280000e+02 : f32
    %334 = vector.broadcast %cst_154 : f32 to vector<8x1xf32>
    %335 = arith.divf %333, %334 : vector<8x1xf32>
    %336 = vector.broadcast %328 : vector<8x1xf32> to vector<8x128xf32>
    %337 = arith.subf %322, %336 : vector<8x128xf32>
    %cst_155 = arith.constant 9.99999974E-6 : f32
    %338 = vector.broadcast %cst_155 : f32 to vector<8x1xf32>
    %339 = arith.addf %335, %338 : vector<8x1xf32>
    %340 = math.rsqrt %339 : vector<8x1xf32>
    %341 = vector.broadcast %340 : vector<8x1xf32> to vector<8x128xf32>
    %342 = arith.mulf %337, %341 : vector<8x128xf32>
    %343 = vector.broadcast %323 : vector<1x128xf32> to vector<8x128xf32>
    %344 = arith.mulf %342, %343 : vector<8x128xf32>
    %345 = vector.broadcast %324 : vector<1x128xf32> to vector<8x128xf32>
    %346 = arith.addf %344, %345 : vector<8x128xf32>
    %cst_156 = arith.constant 0.000000e+00 : f32
    %347 = vector.broadcast %cst_156 : f32 to vector<8x128xf32>
    %348 = arith.maximumf %346, %347 : vector<8x128xf32>
    %349 = vector.extract_strided_slice %0 {offsets = [0, 2], sizes = [8, 1], strides = [1, 1]} : vector<8x8xf32> to vector<8x1xf32>
    %350 = vector.extract_strided_slice %272 {offsets = [0, 0], sizes = [1, 512], strides = [1, 1]} : vector<2x512xf32> to vector<1x512xf32>
    %351 = vector.broadcast %349 : vector<8x1xf32> to vector<8x512xf32>
    %352 = vector.broadcast %350 : vector<1x512xf32> to vector<8x512xf32>
    %353 = arith.mulf %351, %352 : vector<8x512xf32>
    %354 = vector.extract_strided_slice %272 {offsets = [1, 0], sizes = [1, 512], strides = [1, 1]} : vector<2x512xf32> to vector<1x512xf32>
    %355 = vector.broadcast %354 : vector<1x512xf32> to vector<8x512xf32>
    %356 = arith.addf %353, %355 : vector<8x512xf32>
    %c2_157 = arith.constant 2 : index
    %c0_158 = arith.constant 0 : index
    %c0_159 = arith.constant 0 : index
    %357 = vector.load %arg9[%c2_157, %c0_158, %c0_159] : memref<8x128x512xbf16, #tpu.memory_space<vmem>>, vector<1x128x512xbf16>
    %358 = vector.shape_cast %357 : vector<1x128x512xbf16> to vector<128x512xbf16>
    %359 = arith.truncf %310 : vector<8x128xf32> to vector<8x128xbf16>
    %cst_160 = arith.constant dense<0.000000e+00> : vector<8x512xf32>
    %360 = tpu.matmul %359, %358, %cst_160 {dimension_numbers = #tpu.dot_dimension_numbers<[1], [0], [0], [1], [0, 0, 1, 1], [], []>} : vector<8x128xbf16>, vector<128x512xbf16>, vector<8x512xf32> -> vector<8x512xf32>
    %361 = arith.addf %356, %360 : vector<8x512xf32>
    %362 = vector.extract_strided_slice %361 {offsets = [0, 0], sizes = [8, 128], strides = [1, 1]} : vector<8x512xf32> to vector<8x128xf32>
    %363 = arith.negf %362 : vector<8x128xf32>
    %364 = math.exp %363 : vector<8x128xf32>
    %cst_161 = arith.constant 1.000000e+00 : f32
    %365 = vector.broadcast %cst_161 : f32 to vector<8x128xf32>
    %366 = arith.addf %365, %364 : vector<8x128xf32>
    %367 = arith.divf %365, %366 : vector<8x128xf32>
    %368 = vector.extract_strided_slice %361 {offsets = [0, 128], sizes = [8, 128], strides = [1, 1]} : vector<8x512xf32> to vector<8x128xf32>
    %369 = arith.negf %368 : vector<8x128xf32>
    %370 = math.exp %369 : vector<8x128xf32>
    %cst_162 = arith.constant 1.000000e+00 : f32
    %371 = vector.broadcast %cst_162 : f32 to vector<8x128xf32>
    %372 = arith.addf %371, %370 : vector<8x128xf32>
    %373 = arith.divf %371, %372 : vector<8x128xf32>
    %374 = vector.extract_strided_slice %361 {offsets = [0, 256], sizes = [8, 128], strides = [1, 1]} : vector<8x512xf32> to vector<8x128xf32>
    %375 = math.tanh %374 : vector<8x128xf32>
    %376 = vector.extract_strided_slice %361 {offsets = [0, 384], sizes = [8, 128], strides = [1, 1]} : vector<8x512xf32> to vector<8x128xf32>
    %377 = arith.negf %376 : vector<8x128xf32>
    %378 = math.exp %377 : vector<8x128xf32>
    %cst_163 = arith.constant 1.000000e+00 : f32
    %379 = vector.broadcast %cst_163 : f32 to vector<8x128xf32>
    %380 = arith.addf %379, %378 : vector<8x128xf32>
    %381 = arith.divf %379, %380 : vector<8x128xf32>
    %382 = arith.mulf %373, %348 : vector<8x128xf32>
    %383 = arith.mulf %367, %375 : vector<8x128xf32>
    %384 = arith.addf %382, %383 : vector<8x128xf32>
    %385 = math.tanh %384 : vector<8x128xf32>
    %386 = arith.mulf %381, %385 : vector<8x128xf32>
    %c2_164 = arith.constant 2 : index
    %c0_165 = arith.constant 0 : index
    %c0_166 = arith.constant 0 : index
    %387 = vector.load %arg20[%c2_164, %c0_165, %c0_166] : memref<8x8x128xf32, #tpu.memory_space<vmem>>, vector<1x8x128xf32>
    %388 = vector.shape_cast %387 : vector<1x8x128xf32> to vector<8x128xf32>
    %389 = vector.shape_cast %386 : vector<8x128xf32> to vector<1x8x128xf32>
    tpu.vector_store %arg20[%c2_164, %c0_165, %c0_166], %389 {strides = array<i32>} : memref<8x8x128xf32, #tpu.memory_space<vmem>>, vector<1x8x128xf32>,
    %c2_167 = arith.constant 2 : index
    %c0_168 = arith.constant 0 : index
    %c0_169 = arith.constant 0 : index
    %390 = vector.load %arg21[%c2_167, %c0_168, %c0_169] : memref<8x8x128xf32, #tpu.memory_space<vmem>>, vector<1x8x128xf32>
    %391 = vector.shape_cast %390 : vector<1x8x128xf32> to vector<8x128xf32>
    %392 = vector.shape_cast %384 : vector<8x128xf32> to vector<1x8x128xf32>
    tpu.vector_store %arg21[%c2_167, %c0_168, %c0_169], %392 {strides = array<i32>} : memref<8x8x128xf32, #tpu.memory_space<vmem>>, vector<1x8x128xf32>,
    %c3 = arith.constant 3 : index
    %c0_170 = arith.constant 0 : index
    %c0_171 = arith.constant 0 : index
    %393 = vector.load %arg3[%c3, %c0_170, %c0_171] : memref<8x8x128xf32, #tpu.memory_space<vmem>>, vector<1x8x128xf32>
    %394 = vector.shape_cast %393 : vector<1x8x128xf32> to vector<8x128xf32>
    %c3_172 = arith.constant 3 : index
    %c0_173 = arith.constant 0 : index
    %c0_174 = arith.constant 0 : index
    %395 = vector.load %arg4[%c3_172, %c0_173, %c0_174] : memref<8x8x128xf32, #tpu.memory_space<vmem>>, vector<1x8x128xf32>
    %396 = vector.shape_cast %395 : vector<1x8x128xf32> to vector<8x128xf32>
    %c3_175 = arith.constant 3 : index
    %c0_176 = arith.constant 0 : index
    %c0_177 = arith.constant 0 : index
    %397 = vector.load %arg10[%c3_175, %c0_176, %c0_177] : memref<8x3x128xf32, #tpu.memory_space<vmem>>, vector<1x3x128xf32>
    %398 = vector.shape_cast %397 : vector<1x3x128xf32> to vector<3x128xf32>
    %c3_178 = arith.constant 3 : index
    %c0_179 = arith.constant 0 : index
    %c0_180 = arith.constant 0 : index
    %399 = vector.load %arg11[%c3_178, %c0_179, %c0_180] : memref<8x3x128xf32, #tpu.memory_space<vmem>>, vector<1x3x128xf32>
    %400 = vector.shape_cast %399 : vector<1x3x128xf32> to vector<3x128xf32>
    %c3_181 = arith.constant 3 : index
    %c0_182 = arith.constant 0 : index
    %c0_183 = arith.constant 0 : index
    %401 = vector.load %arg12[%c3_181, %c0_182, %c0_183] : memref<8x2x512xf32, #tpu.memory_space<vmem>>, vector<1x2x512xf32>
    %402 = vector.shape_cast %401 : vector<1x2x512xf32> to vector<2x512xf32>
    %c3_184 = arith.constant 3 : index
    %c0_185 = arith.constant 0 : index
    %c0_186 = arith.constant 0 : index
    %403 = vector.load %arg5[%c3_184, %c0_185, %c0_186] : memref<8x128x128xbf16, #tpu.memory_space<vmem>>, vector<1x128x128xbf16>
    %404 = vector.shape_cast %403 : vector<1x128x128xbf16> to vector<128x128xbf16>
    %405 = arith.truncf %386 : vector<8x128xf32> to vector<8x128xbf16>
    %cst_187 = arith.constant dense<0.000000e+00> : vector<8x128xf32>
    %406 = tpu.matmul %405, %404, %cst_187 {dimension_numbers = #tpu.dot_dimension_numbers<[1], [0], [0], [1], [0, 0, 1, 1], [], []>} : vector<8x128xbf16>, vector<128x128xbf16>, vector<8x128xf32> -> vector<8x128xf32>
    %c3_188 = arith.constant 3 : index
    %c0_189 = arith.constant 0 : index
    %c0_190 = arith.constant 0 : index
    %407 = vector.load %arg6[%c3_188, %c0_189, %c0_190] : memref<8x128x128xbf16, #tpu.memory_space<vmem>>, vector<1x128x128xbf16>
    %408 = vector.shape_cast %407 : vector<1x128x128xbf16> to vector<128x128xbf16>
    %409 = arith.truncf %394 : vector<8x128xf32> to vector<8x128xbf16>
    %cst_191 = arith.constant dense<0.000000e+00> : vector<8x128xf32>
    %410 = tpu.matmul %409, %408, %cst_191 {dimension_numbers = #tpu.dot_dimension_numbers<[1], [0], [0], [1], [0, 0, 1, 1], [], []>} : vector<8x128xbf16>, vector<128x128xbf16>, vector<8x128xf32> -> vector<8x128xf32>
    %411 = arith.addf %406, %410 : vector<8x128xf32>
    %412 = vector.extract_strided_slice %398 {offsets = [0, 0], sizes = [1, 128], strides = [1, 1]} : vector<3x128xf32> to vector<1x128xf32>
    %413 = vector.broadcast %412 : vector<1x128xf32> to vector<8x128xf32>
    %414 = arith.addf %411, %413 : vector<8x128xf32>
    %415 = vector.extract_strided_slice %398 {offsets = [1, 0], sizes = [1, 128], strides = [1, 1]} : vector<3x128xf32> to vector<1x128xf32>
    %416 = vector.extract_strided_slice %398 {offsets = [2, 0], sizes = [1, 128], strides = [1, 1]} : vector<3x128xf32> to vector<1x128xf32>
    %cst_192 = arith.constant dense<0.000000e+00> : vector<8xf32>
    %417 = vector.multi_reduction <add>, %414, %cst_192 [1] : vector<8x128xf32> to vector<8xf32>
    %418 = vector.shape_cast %417 : vector<8xf32> to vector<8x1xf32>
    %cst_193 = arith.constant 1.280000e+02 : f32
    %419 = vector.broadcast %cst_193 : f32 to vector<8x1xf32>
    %420 = arith.divf %418, %419 : vector<8x1xf32>
    %421 = vector.broadcast %420 : vector<8x1xf32> to vector<8x128xf32>
    %422 = arith.subf %414, %421 : vector<8x128xf32>
    %423 = arith.mulf %422, %422 : vector<8x128xf32>
    %cst_194 = arith.constant dense<0.000000e+00> : vector<8xf32>
    %424 = vector.multi_reduction <add>, %423, %cst_194 [1] : vector<8x128xf32> to vector<8xf32>
    %425 = vector.shape_cast %424 : vector<8xf32> to vector<8x1xf32>
    %cst_195 = arith.constant 1.280000e+02 : f32
    %426 = vector.broadcast %cst_195 : f32 to vector<8x1xf32>
    %427 = arith.divf %425, %426 : vector<8x1xf32>
    %428 = vector.broadcast %420 : vector<8x1xf32> to vector<8x128xf32>
    %429 = arith.subf %414, %428 : vector<8x128xf32>
    %cst_196 = arith.constant 9.99999974E-6 : f32
    %430 = vector.broadcast %cst_196 : f32 to vector<8x1xf32>
    %431 = arith.addf %427, %430 : vector<8x1xf32>
    %432 = math.rsqrt %431 : vector<8x1xf32>
    %433 = vector.broadcast %432 : vector<8x1xf32> to vector<8x128xf32>
    %434 = arith.mulf %429, %433 : vector<8x128xf32>
    %435 = vector.broadcast %415 : vector<1x128xf32> to vector<8x128xf32>
    %436 = arith.mulf %434, %435 : vector<8x128xf32>
    %437 = vector.broadcast %416 : vector<1x128xf32> to vector<8x128xf32>
    %438 = arith.addf %436, %437 : vector<8x128xf32>
    %cst_197 = arith.constant 0.000000e+00 : f32
    %439 = vector.broadcast %cst_197 : f32 to vector<8x128xf32>
    %440 = arith.maximumf %438, %439 : vector<8x128xf32>
    %c3_198 = arith.constant 3 : index
    %c0_199 = arith.constant 0 : index
    %c0_200 = arith.constant 0 : index
    %441 = vector.load %arg7[%c3_198, %c0_199, %c0_200] : memref<8x128x128xbf16, #tpu.memory_space<vmem>>, vector<1x128x128xbf16>
    %442 = vector.shape_cast %441 : vector<1x128x128xbf16> to vector<128x128xbf16>
    %443 = arith.truncf %384 : vector<8x128xf32> to vector<8x128xbf16>
    %cst_201 = arith.constant dense<0.000000e+00> : vector<8x128xf32>
    %444 = tpu.matmul %443, %442, %cst_201 {dimension_numbers = #tpu.dot_dimension_numbers<[1], [0], [0], [1], [0, 0, 1, 1], [], []>} : vector<8x128xbf16>, vector<128x128xbf16>, vector<8x128xf32> -> vector<8x128xf32>
    %c3_202 = arith.constant 3 : index
    %c0_203 = arith.constant 0 : index
    %c0_204 = arith.constant 0 : index
    %445 = vector.load %arg8[%c3_202, %c0_203, %c0_204] : memref<8x128x128xbf16, #tpu.memory_space<vmem>>, vector<1x128x128xbf16>
    %446 = vector.shape_cast %445 : vector<1x128x128xbf16> to vector<128x128xbf16>
    %447 = arith.truncf %396 : vector<8x128xf32> to vector<8x128xbf16>
    %cst_205 = arith.constant dense<0.000000e+00> : vector<8x128xf32>
    %448 = tpu.matmul %447, %446, %cst_205 {dimension_numbers = #tpu.dot_dimension_numbers<[1], [0], [0], [1], [0, 0, 1, 1], [], []>} : vector<8x128xbf16>, vector<128x128xbf16>, vector<8x128xf32> -> vector<8x128xf32>
    %449 = arith.addf %444, %448 : vector<8x128xf32>
    %450 = vector.extract_strided_slice %400 {offsets = [0, 0], sizes = [1, 128], strides = [1, 1]} : vector<3x128xf32> to vector<1x128xf32>
    %451 = vector.broadcast %450 : vector<1x128xf32> to vector<8x128xf32>
    %452 = arith.addf %449, %451 : vector<8x128xf32>
    %453 = vector.extract_strided_slice %400 {offsets = [1, 0], sizes = [1, 128], strides = [1, 1]} : vector<3x128xf32> to vector<1x128xf32>
    %454 = vector.extract_strided_slice %400 {offsets = [2, 0], sizes = [1, 128], strides = [1, 1]} : vector<3x128xf32> to vector<1x128xf32>
    %cst_206 = arith.constant dense<0.000000e+00> : vector<8xf32>
    %455 = vector.multi_reduction <add>, %452, %cst_206 [1] : vector<8x128xf32> to vector<8xf32>
    %456 = vector.shape_cast %455 : vector<8xf32> to vector<8x1xf32>
    %cst_207 = arith.constant 1.280000e+02 : f32
    %457 = vector.broadcast %cst_207 : f32 to vector<8x1xf32>
    %458 = arith.divf %456, %457 : vector<8x1xf32>
    %459 = vector.broadcast %458 : vector<8x1xf32> to vector<8x128xf32>
    %460 = arith.subf %452, %459 : vector<8x128xf32>
    %461 = arith.mulf %460, %460 : vector<8x128xf32>
    %cst_208 = arith.constant dense<0.000000e+00> : vector<8xf32>
    %462 = vector.multi_reduction <add>, %461, %cst_208 [1] : vector<8x128xf32> to vector<8xf32>
    %463 = vector.shape_cast %462 : vector<8xf32> to vector<8x1xf32>
    %cst_209 = arith.constant 1.280000e+02 : f32
    %464 = vector.broadcast %cst_209 : f32 to vector<8x1xf32>
    %465 = arith.divf %463, %464 : vector<8x1xf32>
    %466 = vector.broadcast %458 : vector<8x1xf32> to vector<8x128xf32>
    %467 = arith.subf %452, %466 : vector<8x128xf32>
    %cst_210 = arith.constant 9.99999974E-6 : f32
    %468 = vector.broadcast %cst_210 : f32 to vector<8x1xf32>
    %469 = arith.addf %465, %468 : vector<8x1xf32>
    %470 = math.rsqrt %469 : vector<8x1xf32>
    %471 = vector.broadcast %470 : vector<8x1xf32> to vector<8x128xf32>
    %472 = arith.mulf %467, %471 : vector<8x128xf32>
    %473 = vector.broadcast %453 : vector<1x128xf32> to vector<8x128xf32>
    %474 = arith.mulf %472, %473 : vector<8x128xf32>
    %475 = vector.broadcast %454 : vector<1x128xf32> to vector<8x128xf32>
    %476 = arith.addf %474, %475 : vector<8x128xf32>
    %cst_211 = arith.constant 0.000000e+00 : f32
    %477 = vector.broadcast %cst_211 : f32 to vector<8x128xf32>
    %478 = arith.maximumf %476, %477 : vector<8x128xf32>
    %479 = vector.extract_strided_slice %0 {offsets = [0, 3], sizes = [8, 1], strides = [1, 1]} : vector<8x8xf32> to vector<8x1xf32>
    %480 = vector.extract_strided_slice %402 {offsets = [0, 0], sizes = [1, 512], strides = [1, 1]} : vector<2x512xf32> to vector<1x512xf32>
    %481 = vector.broadcast %479 : vector<8x1xf32> to vector<8x512xf32>
    %482 = vector.broadcast %480 : vector<1x512xf32> to vector<8x512xf32>
    %483 = arith.mulf %481, %482 : vector<8x512xf32>
    %484 = vector.extract_strided_slice %402 {offsets = [1, 0], sizes = [1, 512], strides = [1, 1]} : vector<2x512xf32> to vector<1x512xf32>
    %485 = vector.broadcast %484 : vector<1x512xf32> to vector<8x512xf32>
    %486 = arith.addf %483, %485 : vector<8x512xf32>
    %c3_212 = arith.constant 3 : index
    %c0_213 = arith.constant 0 : index
    %c0_214 = arith.constant 0 : index
    %487 = vector.load %arg9[%c3_212, %c0_213, %c0_214] : memref<8x128x512xbf16, #tpu.memory_space<vmem>>, vector<1x128x512xbf16>
    %488 = vector.shape_cast %487 : vector<1x128x512xbf16> to vector<128x512xbf16>
    %489 = arith.truncf %440 : vector<8x128xf32> to vector<8x128xbf16>
    %cst_215 = arith.constant dense<0.000000e+00> : vector<8x512xf32>
    %490 = tpu.matmul %489, %488, %cst_215 {dimension_numbers = #tpu.dot_dimension_numbers<[1], [0], [0], [1], [0, 0, 1, 1], [], []>} : vector<8x128xbf16>, vector<128x512xbf16>, vector<8x512xf32> -> vector<8x512xf32>
    %491 = arith.addf %486, %490 : vector<8x512xf32>
    %492 = vector.extract_strided_slice %491 {offsets = [0, 0], sizes = [8, 128], strides = [1, 1]} : vector<8x512xf32> to vector<8x128xf32>
    %493 = arith.negf %492 : vector<8x128xf32>
    %494 = math.exp %493 : vector<8x128xf32>
    %cst_216 = arith.constant 1.000000e+00 : f32
    %495 = vector.broadcast %cst_216 : f32 to vector<8x128xf32>
    %496 = arith.addf %495, %494 : vector<8x128xf32>
    %497 = arith.divf %495, %496 : vector<8x128xf32>
    %498 = vector.extract_strided_slice %491 {offsets = [0, 128], sizes = [8, 128], strides = [1, 1]} : vector<8x512xf32> to vector<8x128xf32>
    %499 = arith.negf %498 : vector<8x128xf32>
    %500 = math.exp %499 : vector<8x128xf32>
    %cst_217 = arith.constant 1.000000e+00 : f32
    %501 = vector.broadcast %cst_217 : f32 to vector<8x128xf32>
    %502 = arith.addf %501, %500 : vector<8x128xf32>
    %503 = arith.divf %501, %502 : vector<8x128xf32>
    %504 = vector.extract_strided_slice %491 {offsets = [0, 256], sizes = [8, 128], strides = [1, 1]} : vector<8x512xf32> to vector<8x128xf32>
    %505 = math.tanh %504 : vector<8x128xf32>
    %506 = vector.extract_strided_slice %491 {offsets = [0, 384], sizes = [8, 128], strides = [1, 1]} : vector<8x512xf32> to vector<8x128xf32>
    %507 = arith.negf %506 : vector<8x128xf32>
    %508 = math.exp %507 : vector<8x128xf32>
    %cst_218 = arith.constant 1.000000e+00 : f32
    %509 = vector.broadcast %cst_218 : f32 to vector<8x128xf32>
    %510 = arith.addf %509, %508 : vector<8x128xf32>
    %511 = arith.divf %509, %510 : vector<8x128xf32>
    %512 = arith.mulf %503, %478 : vector<8x128xf32>
    %513 = arith.mulf %497, %505 : vector<8x128xf32>
    %514 = arith.addf %512, %513 : vector<8x128xf32>
    %515 = math.tanh %514 : vector<8x128xf32>
    %516 = arith.mulf %511, %515 : vector<8x128xf32>
    %c3_219 = arith.constant 3 : index
    %c0_220 = arith.constant 0 : index
    %c0_221 = arith.constant 0 : index
    %517 = vector.load %arg20[%c3_219, %c0_220, %c0_221] : memref<8x8x128xf32, #tpu.memory_space<vmem>>, vector<1x8x128xf32>
    %518 = vector.shape_cast %517 : vector<1x8x128xf32> to vector<8x128xf32>
    %519 = vector.shape_cast %516 : vector<8x128xf32> to vector<1x8x128xf32>
    tpu.vector_store %arg20[%c3_219, %c0_220, %c0_221], %519 {strides = array<i32>} : memref<8x8x128xf32, #tpu.memory_space<vmem>>, vector<1x8x128xf32>,
    %c3_222 = arith.constant 3 : index
    %c0_223 = arith.constant 0 : index
    %c0_224 = arith.constant 0 : index
    %520 = vector.load %arg21[%c3_222, %c0_223, %c0_224] : memref<8x8x128xf32, #tpu.memory_space<vmem>>, vector<1x8x128xf32>
    %521 = vector.shape_cast %520 : vector<1x8x128xf32> to vector<8x128xf32>
    %522 = vector.shape_cast %514 : vector<8x128xf32> to vector<1x8x128xf32>
    tpu.vector_store %arg21[%c3_222, %c0_223, %c0_224], %522 {strides = array<i32>} : memref<8x8x128xf32, #tpu.memory_space<vmem>>, vector<1x8x128xf32>,
    %c4 = arith.constant 4 : index
    %c0_225 = arith.constant 0 : index
    %c0_226 = arith.constant 0 : index
    %523 = vector.load %arg3[%c4, %c0_225, %c0_226] : memref<8x8x128xf32, #tpu.memory_space<vmem>>, vector<1x8x128xf32>
    %524 = vector.shape_cast %523 : vector<1x8x128xf32> to vector<8x128xf32>
    %c4_227 = arith.constant 4 : index
    %c0_228 = arith.constant 0 : index
    %c0_229 = arith.constant 0 : index
    %525 = vector.load %arg4[%c4_227, %c0_228, %c0_229] : memref<8x8x128xf32, #tpu.memory_space<vmem>>, vector<1x8x128xf32>
    %526 = vector.shape_cast %525 : vector<1x8x128xf32> to vector<8x128xf32>
    %c4_230 = arith.constant 4 : index
    %c0_231 = arith.constant 0 : index
    %c0_232 = arith.constant 0 : index
    %527 = vector.load %arg10[%c4_230, %c0_231, %c0_232] : memref<8x3x128xf32, #tpu.memory_space<vmem>>, vector<1x3x128xf32>
    %528 = vector.shape_cast %527 : vector<1x3x128xf32> to vector<3x128xf32>
    %c4_233 = arith.constant 4 : index
    %c0_234 = arith.constant 0 : index
    %c0_235 = arith.constant 0 : index
    %529 = vector.load %arg11[%c4_233, %c0_234, %c0_235] : memref<8x3x128xf32, #tpu.memory_space<vmem>>, vector<1x3x128xf32>
    %530 = vector.shape_cast %529 : vector<1x3x128xf32> to vector<3x128xf32>
    %c4_236 = arith.constant 4 : index
    %c0_237 = arith.constant 0 : index
    %c0_238 = arith.constant 0 : index
    %531 = vector.load %arg12[%c4_236, %c0_237, %c0_238] : memref<8x2x512xf32, #tpu.memory_space<vmem>>, vector<1x2x512xf32>
    %532 = vector.shape_cast %531 : vector<1x2x512xf32> to vector<2x512xf32>
    %c4_239 = arith.constant 4 : index
    %c0_240 = arith.constant 0 : index
    %c0_241 = arith.constant 0 : index
    %533 = vector.load %arg5[%c4_239, %c0_240, %c0_241] : memref<8x128x128xbf16, #tpu.memory_space<vmem>>, vector<1x128x128xbf16>
    %534 = vector.shape_cast %533 : vector<1x128x128xbf16> to vector<128x128xbf16>
    %535 = arith.truncf %516 : vector<8x128xf32> to vector<8x128xbf16>
    %cst_242 = arith.constant dense<0.000000e+00> : vector<8x128xf32>
    %536 = tpu.matmul %535, %534, %cst_242 {dimension_numbers = #tpu.dot_dimension_numbers<[1], [0], [0], [1], [0, 0, 1, 1], [], []>} : vector<8x128xbf16>, vector<128x128xbf16>, vector<8x128xf32> -> vector<8x128xf32>
    %c4_243 = arith.constant 4 : index
    %c0_244 = arith.constant 0 : index
    %c0_245 = arith.constant 0 : index
    %537 = vector.load %arg6[%c4_243, %c0_244, %c0_245] : memref<8x128x128xbf16, #tpu.memory_space<vmem>>, vector<1x128x128xbf16>
    %538 = vector.shape_cast %537 : vector<1x128x128xbf16> to vector<128x128xbf16>
    %539 = arith.truncf %524 : vector<8x128xf32> to vector<8x128xbf16>
    %cst_246 = arith.constant dense<0.000000e+00> : vector<8x128xf32>
    %540 = tpu.matmul %539, %538, %cst_246 {dimension_numbers = #tpu.dot_dimension_numbers<[1], [0], [0], [1], [0, 0, 1, 1], [], []>} : vector<8x128xbf16>, vector<128x128xbf16>, vector<8x128xf32> -> vector<8x128xf32>
    %541 = arith.addf %536, %540 : vector<8x128xf32>
    %542 = vector.extract_strided_slice %528 {offsets = [0, 0], sizes = [1, 128], strides = [1, 1]} : vector<3x128xf32> to vector<1x128xf32>
    %543 = vector.broadcast %542 : vector<1x128xf32> to vector<8x128xf32>
    %544 = arith.addf %541, %543 : vector<8x128xf32>
    %545 = vector.extract_strided_slice %528 {offsets = [1, 0], sizes = [1, 128], strides = [1, 1]} : vector<3x128xf32> to vector<1x128xf32>
    %546 = vector.extract_strided_slice %528 {offsets = [2, 0], sizes = [1, 128], strides = [1, 1]} : vector<3x128xf32> to vector<1x128xf32>
    %cst_247 = arith.constant dense<0.000000e+00> : vector<8xf32>
    %547 = vector.multi_reduction <add>, %544, %cst_247 [1] : vector<8x128xf32> to vector<8xf32>
    %548 = vector.shape_cast %547 : vector<8xf32> to vector<8x1xf32>
    %cst_248 = arith.constant 1.280000e+02 : f32
    %549 = vector.broadcast %cst_248 : f32 to vector<8x1xf32>
    %550 = arith.divf %548, %549 : vector<8x1xf32>
    %551 = vector.broadcast %550 : vector<8x1xf32> to vector<8x128xf32>
    %552 = arith.subf %544, %551 : vector<8x128xf32>
    %553 = arith.mulf %552, %552 : vector<8x128xf32>
    %cst_249 = arith.constant dense<0.000000e+00> : vector<8xf32>
    %554 = vector.multi_reduction <add>, %553, %cst_249 [1] : vector<8x128xf32> to vector<8xf32>
    %555 = vector.shape_cast %554 : vector<8xf32> to vector<8x1xf32>
    %cst_250 = arith.constant 1.280000e+02 : f32
    %556 = vector.broadcast %cst_250 : f32 to vector<8x1xf32>
    %557 = arith.divf %555, %556 : vector<8x1xf32>
    %558 = vector.broadcast %550 : vector<8x1xf32> to vector<8x128xf32>
    %559 = arith.subf %544, %558 : vector<8x128xf32>
    %cst_251 = arith.constant 9.99999974E-6 : f32
    %560 = vector.broadcast %cst_251 : f32 to vector<8x1xf32>
    %561 = arith.addf %557, %560 : vector<8x1xf32>
    %562 = math.rsqrt %561 : vector<8x1xf32>
    %563 = vector.broadcast %562 : vector<8x1xf32> to vector<8x128xf32>
    %564 = arith.mulf %559, %563 : vector<8x128xf32>
    %565 = vector.broadcast %545 : vector<1x128xf32> to vector<8x128xf32>
    %566 = arith.mulf %564, %565 : vector<8x128xf32>
    %567 = vector.broadcast %546 : vector<1x128xf32> to vector<8x128xf32>
    %568 = arith.addf %566, %567 : vector<8x128xf32>
    %cst_252 = arith.constant 0.000000e+00 : f32
    %569 = vector.broadcast %cst_252 : f32 to vector<8x128xf32>
    %570 = arith.maximumf %568, %569 : vector<8x128xf32>
    %c4_253 = arith.constant 4 : index
    %c0_254 = arith.constant 0 : index
    %c0_255 = arith.constant 0 : index
    %571 = vector.load %arg7[%c4_253, %c0_254, %c0_255] : memref<8x128x128xbf16, #tpu.memory_space<vmem>>, vector<1x128x128xbf16>
    %572 = vector.shape_cast %571 : vector<1x128x128xbf16> to vector<128x128xbf16>
    %573 = arith.truncf %514 : vector<8x128xf32> to vector<8x128xbf16>
    %cst_256 = arith.constant dense<0.000000e+00> : vector<8x128xf32>
    %574 = tpu.matmul %573, %572, %cst_256 {dimension_numbers = #tpu.dot_dimension_numbers<[1], [0], [0], [1], [0, 0, 1, 1], [], []>} : vector<8x128xbf16>, vector<128x128xbf16>, vector<8x128xf32> -> vector<8x128xf32>
    %c4_257 = arith.constant 4 : index
    %c0_258 = arith.constant 0 : index
    %c0_259 = arith.constant 0 : index
    %575 = vector.load %arg8[%c4_257, %c0_258, %c0_259] : memref<8x128x128xbf16, #tpu.memory_space<vmem>>, vector<1x128x128xbf16>
    %576 = vector.shape_cast %575 : vector<1x128x128xbf16> to vector<128x128xbf16>
    %577 = arith.truncf %526 : vector<8x128xf32> to vector<8x128xbf16>
    %cst_260 = arith.constant dense<0.000000e+00> : vector<8x128xf32>
    %578 = tpu.matmul %577, %576, %cst_260 {dimension_numbers = #tpu.dot_dimension_numbers<[1], [0], [0], [1], [0, 0, 1, 1], [], []>} : vector<8x128xbf16>, vector<128x128xbf16>, vector<8x128xf32> -> vector<8x128xf32>
    %579 = arith.addf %574, %578 : vector<8x128xf32>
    %580 = vector.extract_strided_slice %530 {offsets = [0, 0], sizes = [1, 128], strides = [1, 1]} : vector<3x128xf32> to vector<1x128xf32>
    %581 = vector.broadcast %580 : vector<1x128xf32> to vector<8x128xf32>
    %582 = arith.addf %579, %581 : vector<8x128xf32>
    %583 = vector.extract_strided_slice %530 {offsets = [1, 0], sizes = [1, 128], strides = [1, 1]} : vector<3x128xf32> to vector<1x128xf32>
    %584 = vector.extract_strided_slice %530 {offsets = [2, 0], sizes = [1, 128], strides = [1, 1]} : vector<3x128xf32> to vector<1x128xf32>
    %cst_261 = arith.constant dense<0.000000e+00> : vector<8xf32>
    %585 = vector.multi_reduction <add>, %582, %cst_261 [1] : vector<8x128xf32> to vector<8xf32>
    %586 = vector.shape_cast %585 : vector<8xf32> to vector<8x1xf32>
    %cst_262 = arith.constant 1.280000e+02 : f32
    %587 = vector.broadcast %cst_262 : f32 to vector<8x1xf32>
    %588 = arith.divf %586, %587 : vector<8x1xf32>
    %589 = vector.broadcast %588 : vector<8x1xf32> to vector<8x128xf32>
    %590 = arith.subf %582, %589 : vector<8x128xf32>
    %591 = arith.mulf %590, %590 : vector<8x128xf32>
    %cst_263 = arith.constant dense<0.000000e+00> : vector<8xf32>
    %592 = vector.multi_reduction <add>, %591, %cst_263 [1] : vector<8x128xf32> to vector<8xf32>
    %593 = vector.shape_cast %592 : vector<8xf32> to vector<8x1xf32>
    %cst_264 = arith.constant 1.280000e+02 : f32
    %594 = vector.broadcast %cst_264 : f32 to vector<8x1xf32>
    %595 = arith.divf %593, %594 : vector<8x1xf32>
    %596 = vector.broadcast %588 : vector<8x1xf32> to vector<8x128xf32>
    %597 = arith.subf %582, %596 : vector<8x128xf32>
    %cst_265 = arith.constant 9.99999974E-6 : f32
    %598 = vector.broadcast %cst_265 : f32 to vector<8x1xf32>
    %599 = arith.addf %595, %598 : vector<8x1xf32>
    %600 = math.rsqrt %599 : vector<8x1xf32>
    %601 = vector.broadcast %600 : vector<8x1xf32> to vector<8x128xf32>
    %602 = arith.mulf %597, %601 : vector<8x128xf32>
    %603 = vector.broadcast %583 : vector<1x128xf32> to vector<8x128xf32>
    %604 = arith.mulf %602, %603 : vector<8x128xf32>
    %605 = vector.broadcast %584 : vector<1x128xf32> to vector<8x128xf32>
    %606 = arith.addf %604, %605 : vector<8x128xf32>
    %cst_266 = arith.constant 0.000000e+00 : f32
    %607 = vector.broadcast %cst_266 : f32 to vector<8x128xf32>
    %608 = arith.maximumf %606, %607 : vector<8x128xf32>
    %609 = vector.extract_strided_slice %0 {offsets = [0, 4], sizes = [8, 1], strides = [1, 1]} : vector<8x8xf32> to vector<8x1xf32>
    %610 = vector.extract_strided_slice %532 {offsets = [0, 0], sizes = [1, 512], strides = [1, 1]} : vector<2x512xf32> to vector<1x512xf32>
    %611 = vector.broadcast %609 : vector<8x1xf32> to vector<8x512xf32>
    %612 = vector.broadcast %610 : vector<1x512xf32> to vector<8x512xf32>
    %613 = arith.mulf %611, %612 : vector<8x512xf32>
    %614 = vector.extract_strided_slice %532 {offsets = [1, 0], sizes = [1, 512], strides = [1, 1]} : vector<2x512xf32> to vector<1x512xf32>
    %615 = vector.broadcast %614 : vector<1x512xf32> to vector<8x512xf32>
    %616 = arith.addf %613, %615 : vector<8x512xf32>
    %c4_267 = arith.constant 4 : index
    %c0_268 = arith.constant 0 : index
    %c0_269 = arith.constant 0 : index
    %617 = vector.load %arg9[%c4_267, %c0_268, %c0_269] : memref<8x128x512xbf16, #tpu.memory_space<vmem>>, vector<1x128x512xbf16>
    %618 = vector.shape_cast %617 : vector<1x128x512xbf16> to vector<128x512xbf16>
    %619 = arith.truncf %570 : vector<8x128xf32> to vector<8x128xbf16>
    %cst_270 = arith.constant dense<0.000000e+00> : vector<8x512xf32>
    %620 = tpu.matmul %619, %618, %cst_270 {dimension_numbers = #tpu.dot_dimension_numbers<[1], [0], [0], [1], [0, 0, 1, 1], [], []>} : vector<8x128xbf16>, vector<128x512xbf16>, vector<8x512xf32> -> vector<8x512xf32>
    %621 = arith.addf %616, %620 : vector<8x512xf32>
    %622 = vector.extract_strided_slice %621 {offsets = [0, 0], sizes = [8, 128], strides = [1, 1]} : vector<8x512xf32> to vector<8x128xf32>
    %623 = arith.negf %622 : vector<8x128xf32>
    %624 = math.exp %623 : vector<8x128xf32>
    %cst_271 = arith.constant 1.000000e+00 : f32
    %625 = vector.broadcast %cst_271 : f32 to vector<8x128xf32>
    %626 = arith.addf %625, %624 : vector<8x128xf32>
    %627 = arith.divf %625, %626 : vector<8x128xf32>
    %628 = vector.extract_strided_slice %621 {offsets = [0, 128], sizes = [8, 128], strides = [1, 1]} : vector<8x512xf32> to vector<8x128xf32>
    %629 = arith.negf %628 : vector<8x128xf32>
    %630 = math.exp %629 : vector<8x128xf32>
    %cst_272 = arith.constant 1.000000e+00 : f32
    %631 = vector.broadcast %cst_272 : f32 to vector<8x128xf32>
    %632 = arith.addf %631, %630 : vector<8x128xf32>
    %633 = arith.divf %631, %632 : vector<8x128xf32>
    %634 = vector.extract_strided_slice %621 {offsets = [0, 256], sizes = [8, 128], strides = [1, 1]} : vector<8x512xf32> to vector<8x128xf32>
    %635 = math.tanh %634 : vector<8x128xf32>
    %636 = vector.extract_strided_slice %621 {offsets = [0, 384], sizes = [8, 128], strides = [1, 1]} : vector<8x512xf32> to vector<8x128xf32>
    %637 = arith.negf %636 : vector<8x128xf32>
    %638 = math.exp %637 : vector<8x128xf32>
    %cst_273 = arith.constant 1.000000e+00 : f32
    %639 = vector.broadcast %cst_273 : f32 to vector<8x128xf32>
    %640 = arith.addf %639, %638 : vector<8x128xf32>
    %641 = arith.divf %639, %640 : vector<8x128xf32>
    %642 = arith.mulf %633, %608 : vector<8x128xf32>
    %643 = arith.mulf %627, %635 : vector<8x128xf32>
    %644 = arith.addf %642, %643 : vector<8x128xf32>
    %645 = math.tanh %644 : vector<8x128xf32>
    %646 = arith.mulf %641, %645 : vector<8x128xf32>
    %c4_274 = arith.constant 4 : index
    %c0_275 = arith.constant 0 : index
    %c0_276 = arith.constant 0 : index
    %647 = vector.load %arg20[%c4_274, %c0_275, %c0_276] : memref<8x8x128xf32, #tpu.memory_space<vmem>>, vector<1x8x128xf32>
    %648 = vector.shape_cast %647 : vector<1x8x128xf32> to vector<8x128xf32>
    %649 = vector.shape_cast %646 : vector<8x128xf32> to vector<1x8x128xf32>
    tpu.vector_store %arg20[%c4_274, %c0_275, %c0_276], %649 {strides = array<i32>} : memref<8x8x128xf32, #tpu.memory_space<vmem>>, vector<1x8x128xf32>,
    %c4_277 = arith.constant 4 : index
    %c0_278 = arith.constant 0 : index
    %c0_279 = arith.constant 0 : index
    %650 = vector.load %arg21[%c4_277, %c0_278, %c0_279] : memref<8x8x128xf32, #tpu.memory_space<vmem>>, vector<1x8x128xf32>
    %651 = vector.shape_cast %650 : vector<1x8x128xf32> to vector<8x128xf32>
    %652 = vector.shape_cast %644 : vector<8x128xf32> to vector<1x8x128xf32>
    tpu.vector_store %arg21[%c4_277, %c0_278, %c0_279], %652 {strides = array<i32>} : memref<8x8x128xf32, #tpu.memory_space<vmem>>, vector<1x8x128xf32>,
    %c5 = arith.constant 5 : index
    %c0_280 = arith.constant 0 : index
    %c0_281 = arith.constant 0 : index
    %653 = vector.load %arg3[%c5, %c0_280, %c0_281] : memref<8x8x128xf32, #tpu.memory_space<vmem>>, vector<1x8x128xf32>
    %654 = vector.shape_cast %653 : vector<1x8x128xf32> to vector<8x128xf32>
    %c5_282 = arith.constant 5 : index
    %c0_283 = arith.constant 0 : index
    %c0_284 = arith.constant 0 : index
    %655 = vector.load %arg4[%c5_282, %c0_283, %c0_284] : memref<8x8x128xf32, #tpu.memory_space<vmem>>, vector<1x8x128xf32>
    %656 = vector.shape_cast %655 : vector<1x8x128xf32> to vector<8x128xf32>
    %c5_285 = arith.constant 5 : index
    %c0_286 = arith.constant 0 : index
    %c0_287 = arith.constant 0 : index
    %657 = vector.load %arg10[%c5_285, %c0_286, %c0_287] : memref<8x3x128xf32, #tpu.memory_space<vmem>>, vector<1x3x128xf32>
    %658 = vector.shape_cast %657 : vector<1x3x128xf32> to vector<3x128xf32>
    %c5_288 = arith.constant 5 : index
    %c0_289 = arith.constant 0 : index
    %c0_290 = arith.constant 0 : index
    %659 = vector.load %arg11[%c5_288, %c0_289, %c0_290] : memref<8x3x128xf32, #tpu.memory_space<vmem>>, vector<1x3x128xf32>
    %660 = vector.shape_cast %659 : vector<1x3x128xf32> to vector<3x128xf32>
    %c5_291 = arith.constant 5 : index
    %c0_292 = arith.constant 0 : index
    %c0_293 = arith.constant 0 : index
    %661 = vector.load %arg12[%c5_291, %c0_292, %c0_293] : memref<8x2x512xf32, #tpu.memory_space<vmem>>, vector<1x2x512xf32>
    %662 = vector.shape_cast %661 : vector<1x2x512xf32> to vector<2x512xf32>
    %c5_294 = arith.constant 5 : index
    %c0_295 = arith.constant 0 : index
    %c0_296 = arith.constant 0 : index
    %663 = vector.load %arg5[%c5_294, %c0_295, %c0_296] : memref<8x128x128xbf16, #tpu.memory_space<vmem>>, vector<1x128x128xbf16>
    %664 = vector.shape_cast %663 : vector<1x128x128xbf16> to vector<128x128xbf16>
    %665 = arith.truncf %646 : vector<8x128xf32> to vector<8x128xbf16>
    %cst_297 = arith.constant dense<0.000000e+00> : vector<8x128xf32>
    %666 = tpu.matmul %665, %664, %cst_297 {dimension_numbers = #tpu.dot_dimension_numbers<[1], [0], [0], [1], [0, 0, 1, 1], [], []>} : vector<8x128xbf16>, vector<128x128xbf16>, vector<8x128xf32> -> vector<8x128xf32>
    %c5_298 = arith.constant 5 : index
    %c0_299 = arith.constant 0 : index
    %c0_300 = arith.constant 0 : index
    %667 = vector.load %arg6[%c5_298, %c0_299, %c0_300] : memref<8x128x128xbf16, #tpu.memory_space<vmem>>, vector<1x128x128xbf16>
    %668 = vector.shape_cast %667 : vector<1x128x128xbf16> to vector<128x128xbf16>
    %669 = arith.truncf %654 : vector<8x128xf32> to vector<8x128xbf16>
    %cst_301 = arith.constant dense<0.000000e+00> : vector<8x128xf32>
    %670 = tpu.matmul %669, %668, %cst_301 {dimension_numbers = #tpu.dot_dimension_numbers<[1], [0], [0], [1], [0, 0, 1, 1], [], []>} : vector<8x128xbf16>, vector<128x128xbf16>, vector<8x128xf32> -> vector<8x128xf32>
    %671 = arith.addf %666, %670 : vector<8x128xf32>
    %672 = vector.extract_strided_slice %658 {offsets = [0, 0], sizes = [1, 128], strides = [1, 1]} : vector<3x128xf32> to vector<1x128xf32>
    %673 = vector.broadcast %672 : vector<1x128xf32> to vector<8x128xf32>
    %674 = arith.addf %671, %673 : vector<8x128xf32>
    %675 = vector.extract_strided_slice %658 {offsets = [1, 0], sizes = [1, 128], strides = [1, 1]} : vector<3x128xf32> to vector<1x128xf32>
    %676 = vector.extract_strided_slice %658 {offsets = [2, 0], sizes = [1, 128], strides = [1, 1]} : vector<3x128xf32> to vector<1x128xf32>
    %cst_302 = arith.constant dense<0.000000e+00> : vector<8xf32>
    %677 = vector.multi_reduction <add>, %674, %cst_302 [1] : vector<8x128xf32> to vector<8xf32>
    %678 = vector.shape_cast %677 : vector<8xf32> to vector<8x1xf32>
    %cst_303 = arith.constant 1.280000e+02 : f32
    %679 = vector.broadcast %cst_303 : f32 to vector<8x1xf32>
    %680 = arith.divf %678, %679 : vector<8x1xf32>
    %681 = vector.broadcast %680 : vector<8x1xf32> to vector<8x128xf32>
    %682 = arith.subf %674, %681 : vector<8x128xf32>
    %683 = arith.mulf %682, %682 : vector<8x128xf32>
    %cst_304 = arith.constant dense<0.000000e+00> : vector<8xf32>
    %684 = vector.multi_reduction <add>, %683, %cst_304 [1] : vector<8x128xf32> to vector<8xf32>
    %685 = vector.shape_cast %684 : vector<8xf32> to vector<8x1xf32>
    %cst_305 = arith.constant 1.280000e+02 : f32
    %686 = vector.broadcast %cst_305 : f32 to vector<8x1xf32>
    %687 = arith.divf %685, %686 : vector<8x1xf32>
    %688 = vector.broadcast %680 : vector<8x1xf32> to vector<8x128xf32>
    %689 = arith.subf %674, %688 : vector<8x128xf32>
    %cst_306 = arith.constant 9.99999974E-6 : f32
    %690 = vector.broadcast %cst_306 : f32 to vector<8x1xf32>
    %691 = arith.addf %687, %690 : vector<8x1xf32>
    %692 = math.rsqrt %691 : vector<8x1xf32>
    %693 = vector.broadcast %692 : vector<8x1xf32> to vector<8x128xf32>
    %694 = arith.mulf %689, %693 : vector<8x128xf32>
    %695 = vector.broadcast %675 : vector<1x128xf32> to vector<8x128xf32>
    %696 = arith.mulf %694, %695 : vector<8x128xf32>
    %697 = vector.broadcast %676 : vector<1x128xf32> to vector<8x128xf32>
    %698 = arith.addf %696, %697 : vector<8x128xf32>
    %cst_307 = arith.constant 0.000000e+00 : f32
    %699 = vector.broadcast %cst_307 : f32 to vector<8x128xf32>
    %700 = arith.maximumf %698, %699 : vector<8x128xf32>
    %c5_308 = arith.constant 5 : index
    %c0_309 = arith.constant 0 : index
    %c0_310 = arith.constant 0 : index
    %701 = vector.load %arg7[%c5_308, %c0_309, %c0_310] : memref<8x128x128xbf16, #tpu.memory_space<vmem>>, vector<1x128x128xbf16>
    %702 = vector.shape_cast %701 : vector<1x128x128xbf16> to vector<128x128xbf16>
    %703 = arith.truncf %644 : vector<8x128xf32> to vector<8x128xbf16>
    %cst_311 = arith.constant dense<0.000000e+00> : vector<8x128xf32>
    %704 = tpu.matmul %703, %702, %cst_311 {dimension_numbers = #tpu.dot_dimension_numbers<[1], [0], [0], [1], [0, 0, 1, 1], [], []>} : vector<8x128xbf16>, vector<128x128xbf16>, vector<8x128xf32> -> vector<8x128xf32>
    %c5_312 = arith.constant 5 : index
    %c0_313 = arith.constant 0 : index
    %c0_314 = arith.constant 0 : index
    %705 = vector.load %arg8[%c5_312, %c0_313, %c0_314] : memref<8x128x128xbf16, #tpu.memory_space<vmem>>, vector<1x128x128xbf16>
    %706 = vector.shape_cast %705 : vector<1x128x128xbf16> to vector<128x128xbf16>
    %707 = arith.truncf %656 : vector<8x128xf32> to vector<8x128xbf16>
    %cst_315 = arith.constant dense<0.000000e+00> : vector<8x128xf32>
    %708 = tpu.matmul %707, %706, %cst_315 {dimension_numbers = #tpu.dot_dimension_numbers<[1], [0], [0], [1], [0, 0, 1, 1], [], []>} : vector<8x128xbf16>, vector<128x128xbf16>, vector<8x128xf32> -> vector<8x128xf32>
    %709 = arith.addf %704, %708 : vector<8x128xf32>
    %710 = vector.extract_strided_slice %660 {offsets = [0, 0], sizes = [1, 128], strides = [1, 1]} : vector<3x128xf32> to vector<1x128xf32>
    %711 = vector.broadcast %710 : vector<1x128xf32> to vector<8x128xf32>
    %712 = arith.addf %709, %711 : vector<8x128xf32>
    %713 = vector.extract_strided_slice %660 {offsets = [1, 0], sizes = [1, 128], strides = [1, 1]} : vector<3x128xf32> to vector<1x128xf32>
    %714 = vector.extract_strided_slice %660 {offsets = [2, 0], sizes = [1, 128], strides = [1, 1]} : vector<3x128xf32> to vector<1x128xf32>
    %cst_316 = arith.constant dense<0.000000e+00> : vector<8xf32>
    %715 = vector.multi_reduction <add>, %712, %cst_316 [1] : vector<8x128xf32> to vector<8xf32>
    %716 = vector.shape_cast %715 : vector<8xf32> to vector<8x1xf32>
    %cst_317 = arith.constant 1.280000e+02 : f32
    %717 = vector.broadcast %cst_317 : f32 to vector<8x1xf32>
    %718 = arith.divf %716, %717 : vector<8x1xf32>
    %719 = vector.broadcast %718 : vector<8x1xf32> to vector<8x128xf32>
    %720 = arith.subf %712, %719 : vector<8x128xf32>
    %721 = arith.mulf %720, %720 : vector<8x128xf32>
    %cst_318 = arith.constant dense<0.000000e+00> : vector<8xf32>
    %722 = vector.multi_reduction <add>, %721, %cst_318 [1] : vector<8x128xf32> to vector<8xf32>
    %723 = vector.shape_cast %722 : vector<8xf32> to vector<8x1xf32>
    %cst_319 = arith.constant 1.280000e+02 : f32
    %724 = vector.broadcast %cst_319 : f32 to vector<8x1xf32>
    %725 = arith.divf %723, %724 : vector<8x1xf32>
    %726 = vector.broadcast %718 : vector<8x1xf32> to vector<8x128xf32>
    %727 = arith.subf %712, %726 : vector<8x128xf32>
    %cst_320 = arith.constant 9.99999974E-6 : f32
    %728 = vector.broadcast %cst_320 : f32 to vector<8x1xf32>
    %729 = arith.addf %725, %728 : vector<8x1xf32>
    %730 = math.rsqrt %729 : vector<8x1xf32>
    %731 = vector.broadcast %730 : vector<8x1xf32> to vector<8x128xf32>
    %732 = arith.mulf %727, %731 : vector<8x128xf32>
    %733 = vector.broadcast %713 : vector<1x128xf32> to vector<8x128xf32>
    %734 = arith.mulf %732, %733 : vector<8x128xf32>
    %735 = vector.broadcast %714 : vector<1x128xf32> to vector<8x128xf32>
    %736 = arith.addf %734, %735 : vector<8x128xf32>
    %cst_321 = arith.constant 0.000000e+00 : f32
    %737 = vector.broadcast %cst_321 : f32 to vector<8x128xf32>
    %738 = arith.maximumf %736, %737 : vector<8x128xf32>
    %739 = vector.extract_strided_slice %0 {offsets = [0, 5], sizes = [8, 1], strides = [1, 1]} : vector<8x8xf32> to vector<8x1xf32>
    %740 = vector.extract_strided_slice %662 {offsets = [0, 0], sizes = [1, 512], strides = [1, 1]} : vector<2x512xf32> to vector<1x512xf32>
    %741 = vector.broadcast %739 : vector<8x1xf32> to vector<8x512xf32>
    %742 = vector.broadcast %740 : vector<1x512xf32> to vector<8x512xf32>
    %743 = arith.mulf %741, %742 : vector<8x512xf32>
    %744 = vector.extract_strided_slice %662 {offsets = [1, 0], sizes = [1, 512], strides = [1, 1]} : vector<2x512xf32> to vector<1x512xf32>
    %745 = vector.broadcast %744 : vector<1x512xf32> to vector<8x512xf32>
    %746 = arith.addf %743, %745 : vector<8x512xf32>
    %c5_322 = arith.constant 5 : index
    %c0_323 = arith.constant 0 : index
    %c0_324 = arith.constant 0 : index
    %747 = vector.load %arg9[%c5_322, %c0_323, %c0_324] : memref<8x128x512xbf16, #tpu.memory_space<vmem>>, vector<1x128x512xbf16>
    %748 = vector.shape_cast %747 : vector<1x128x512xbf16> to vector<128x512xbf16>
    %749 = arith.truncf %700 : vector<8x128xf32> to vector<8x128xbf16>
    %cst_325 = arith.constant dense<0.000000e+00> : vector<8x512xf32>
    %750 = tpu.matmul %749, %748, %cst_325 {dimension_numbers = #tpu.dot_dimension_numbers<[1], [0], [0], [1], [0, 0, 1, 1], [], []>} : vector<8x128xbf16>, vector<128x512xbf16>, vector<8x512xf32> -> vector<8x512xf32>
    %751 = arith.addf %746, %750 : vector<8x512xf32>
    %752 = vector.extract_strided_slice %751 {offsets = [0, 0], sizes = [8, 128], strides = [1, 1]} : vector<8x512xf32> to vector<8x128xf32>
    %753 = arith.negf %752 : vector<8x128xf32>
    %754 = math.exp %753 : vector<8x128xf32>
    %cst_326 = arith.constant 1.000000e+00 : f32
    %755 = vector.broadcast %cst_326 : f32 to vector<8x128xf32>
    %756 = arith.addf %755, %754 : vector<8x128xf32>
    %757 = arith.divf %755, %756 : vector<8x128xf32>
    %758 = vector.extract_strided_slice %751 {offsets = [0, 128], sizes = [8, 128], strides = [1, 1]} : vector<8x512xf32> to vector<8x128xf32>
    %759 = arith.negf %758 : vector<8x128xf32>
    %760 = math.exp %759 : vector<8x128xf32>
    %cst_327 = arith.constant 1.000000e+00 : f32
    %761 = vector.broadcast %cst_327 : f32 to vector<8x128xf32>
    %762 = arith.addf %761, %760 : vector<8x128xf32>
    %763 = arith.divf %761, %762 : vector<8x128xf32>
    %764 = vector.extract_strided_slice %751 {offsets = [0, 256], sizes = [8, 128], strides = [1, 1]} : vector<8x512xf32> to vector<8x128xf32>
    %765 = math.tanh %764 : vector<8x128xf32>
    %766 = vector.extract_strided_slice %751 {offsets = [0, 384], sizes = [8, 128], strides = [1, 1]} : vector<8x512xf32> to vector<8x128xf32>
    %767 = arith.negf %766 : vector<8x128xf32>
    %768 = math.exp %767 : vector<8x128xf32>
    %cst_328 = arith.constant 1.000000e+00 : f32
    %769 = vector.broadcast %cst_328 : f32 to vector<8x128xf32>
    %770 = arith.addf %769, %768 : vector<8x128xf32>
    %771 = arith.divf %769, %770 : vector<8x128xf32>
    %772 = arith.mulf %763, %738 : vector<8x128xf32>
    %773 = arith.mulf %757, %765 : vector<8x128xf32>
    %774 = arith.addf %772, %773 : vector<8x128xf32>
    %775 = math.tanh %774 : vector<8x128xf32>
    %776 = arith.mulf %771, %775 : vector<8x128xf32>
    %c5_329 = arith.constant 5 : index
    %c0_330 = arith.constant 0 : index
    %c0_331 = arith.constant 0 : index
    %777 = vector.load %arg20[%c5_329, %c0_330, %c0_331] : memref<8x8x128xf32, #tpu.memory_space<vmem>>, vector<1x8x128xf32>
    %778 = vector.shape_cast %777 : vector<1x8x128xf32> to vector<8x128xf32>
    %779 = vector.shape_cast %776 : vector<8x128xf32> to vector<1x8x128xf32>
    tpu.vector_store %arg20[%c5_329, %c0_330, %c0_331], %779 {strides = array<i32>} : memref<8x8x128xf32, #tpu.memory_space<vmem>>, vector<1x8x128xf32>,
    %c5_332 = arith.constant 5 : index
    %c0_333 = arith.constant 0 : index
    %c0_334 = arith.constant 0 : index
    %780 = vector.load %arg21[%c5_332, %c0_333, %c0_334] : memref<8x8x128xf32, #tpu.memory_space<vmem>>, vector<1x8x128xf32>
    %781 = vector.shape_cast %780 : vector<1x8x128xf32> to vector<8x128xf32>
    %782 = vector.shape_cast %774 : vector<8x128xf32> to vector<1x8x128xf32>
    tpu.vector_store %arg21[%c5_332, %c0_333, %c0_334], %782 {strides = array<i32>} : memref<8x8x128xf32, #tpu.memory_space<vmem>>, vector<1x8x128xf32>,
    %c6 = arith.constant 6 : index
    %c0_335 = arith.constant 0 : index
    %c0_336 = arith.constant 0 : index
    %783 = vector.load %arg3[%c6, %c0_335, %c0_336] : memref<8x8x128xf32, #tpu.memory_space<vmem>>, vector<1x8x128xf32>
    %784 = vector.shape_cast %783 : vector<1x8x128xf32> to vector<8x128xf32>
    %c6_337 = arith.constant 6 : index
    %c0_338 = arith.constant 0 : index
    %c0_339 = arith.constant 0 : index
    %785 = vector.load %arg4[%c6_337, %c0_338, %c0_339] : memref<8x8x128xf32, #tpu.memory_space<vmem>>, vector<1x8x128xf32>
    %786 = vector.shape_cast %785 : vector<1x8x128xf32> to vector<8x128xf32>
    %c6_340 = arith.constant 6 : index
    %c0_341 = arith.constant 0 : index
    %c0_342 = arith.constant 0 : index
    %787 = vector.load %arg10[%c6_340, %c0_341, %c0_342] : memref<8x3x128xf32, #tpu.memory_space<vmem>>, vector<1x3x128xf32>
    %788 = vector.shape_cast %787 : vector<1x3x128xf32> to vector<3x128xf32>
    %c6_343 = arith.constant 6 : index
    %c0_344 = arith.constant 0 : index
    %c0_345 = arith.constant 0 : index
    %789 = vector.load %arg11[%c6_343, %c0_344, %c0_345] : memref<8x3x128xf32, #tpu.memory_space<vmem>>, vector<1x3x128xf32>
    %790 = vector.shape_cast %789 : vector<1x3x128xf32> to vector<3x128xf32>
    %c6_346 = arith.constant 6 : index
    %c0_347 = arith.constant 0 : index
    %c0_348 = arith.constant 0 : index
    %791 = vector.load %arg12[%c6_346, %c0_347, %c0_348] : memref<8x2x512xf32, #tpu.memory_space<vmem>>, vector<1x2x512xf32>
    %792 = vector.shape_cast %791 : vector<1x2x512xf32> to vector<2x512xf32>
    %c6_349 = arith.constant 6 : index
    %c0_350 = arith.constant 0 : index
    %c0_351 = arith.constant 0 : index
    %793 = vector.load %arg5[%c6_349, %c0_350, %c0_351] : memref<8x128x128xbf16, #tpu.memory_space<vmem>>, vector<1x128x128xbf16>
    %794 = vector.shape_cast %793 : vector<1x128x128xbf16> to vector<128x128xbf16>
    %795 = arith.truncf %776 : vector<8x128xf32> to vector<8x128xbf16>
    %cst_352 = arith.constant dense<0.000000e+00> : vector<8x128xf32>
    %796 = tpu.matmul %795, %794, %cst_352 {dimension_numbers = #tpu.dot_dimension_numbers<[1], [0], [0], [1], [0, 0, 1, 1], [], []>} : vector<8x128xbf16>, vector<128x128xbf16>, vector<8x128xf32> -> vector<8x128xf32>
    %c6_353 = arith.constant 6 : index
    %c0_354 = arith.constant 0 : index
    %c0_355 = arith.constant 0 : index
    %797 = vector.load %arg6[%c6_353, %c0_354, %c0_355] : memref<8x128x128xbf16, #tpu.memory_space<vmem>>, vector<1x128x128xbf16>
    %798 = vector.shape_cast %797 : vector<1x128x128xbf16> to vector<128x128xbf16>
    %799 = arith.truncf %784 : vector<8x128xf32> to vector<8x128xbf16>
    %cst_356 = arith.constant dense<0.000000e+00> : vector<8x128xf32>
    %800 = tpu.matmul %799, %798, %cst_356 {dimension_numbers = #tpu.dot_dimension_numbers<[1], [0], [0], [1], [0, 0, 1, 1], [], []>} : vector<8x128xbf16>, vector<128x128xbf16>, vector<8x128xf32> -> vector<8x128xf32>
    %801 = arith.addf %796, %800 : vector<8x128xf32>
    %802 = vector.extract_strided_slice %788 {offsets = [0, 0], sizes = [1, 128], strides = [1, 1]} : vector<3x128xf32> to vector<1x128xf32>
    %803 = vector.broadcast %802 : vector<1x128xf32> to vector<8x128xf32>
    %804 = arith.addf %801, %803 : vector<8x128xf32>
    %805 = vector.extract_strided_slice %788 {offsets = [1, 0], sizes = [1, 128], strides = [1, 1]} : vector<3x128xf32> to vector<1x128xf32>
    %806 = vector.extract_strided_slice %788 {offsets = [2, 0], sizes = [1, 128], strides = [1, 1]} : vector<3x128xf32> to vector<1x128xf32>
    %cst_357 = arith.constant dense<0.000000e+00> : vector<8xf32>
    %807 = vector.multi_reduction <add>, %804, %cst_357 [1] : vector<8x128xf32> to vector<8xf32>
    %808 = vector.shape_cast %807 : vector<8xf32> to vector<8x1xf32>
    %cst_358 = arith.constant 1.280000e+02 : f32
    %809 = vector.broadcast %cst_358 : f32 to vector<8x1xf32>
    %810 = arith.divf %808, %809 : vector<8x1xf32>
    %811 = vector.broadcast %810 : vector<8x1xf32> to vector<8x128xf32>
    %812 = arith.subf %804, %811 : vector<8x128xf32>
    %813 = arith.mulf %812, %812 : vector<8x128xf32>
    %cst_359 = arith.constant dense<0.000000e+00> : vector<8xf32>
    %814 = vector.multi_reduction <add>, %813, %cst_359 [1] : vector<8x128xf32> to vector<8xf32>
    %815 = vector.shape_cast %814 : vector<8xf32> to vector<8x1xf32>
    %cst_360 = arith.constant 1.280000e+02 : f32
    %816 = vector.broadcast %cst_360 : f32 to vector<8x1xf32>
    %817 = arith.divf %815, %816 : vector<8x1xf32>
    %818 = vector.broadcast %810 : vector<8x1xf32> to vector<8x128xf32>
    %819 = arith.subf %804, %818 : vector<8x128xf32>
    %cst_361 = arith.constant 9.99999974E-6 : f32
    %820 = vector.broadcast %cst_361 : f32 to vector<8x1xf32>
    %821 = arith.addf %817, %820 : vector<8x1xf32>
    %822 = math.rsqrt %821 : vector<8x1xf32>
    %823 = vector.broadcast %822 : vector<8x1xf32> to vector<8x128xf32>
    %824 = arith.mulf %819, %823 : vector<8x128xf32>
    %825 = vector.broadcast %805 : vector<1x128xf32> to vector<8x128xf32>
    %826 = arith.mulf %824, %825 : vector<8x128xf32>
    %827 = vector.broadcast %806 : vector<1x128xf32> to vector<8x128xf32>
    %828 = arith.addf %826, %827 : vector<8x128xf32>
    %cst_362 = arith.constant 0.000000e+00 : f32
    %829 = vector.broadcast %cst_362 : f32 to vector<8x128xf32>
    %830 = arith.maximumf %828, %829 : vector<8x128xf32>
    %c6_363 = arith.constant 6 : index
    %c0_364 = arith.constant 0 : index
    %c0_365 = arith.constant 0 : index
    %831 = vector.load %arg7[%c6_363, %c0_364, %c0_365] : memref<8x128x128xbf16, #tpu.memory_space<vmem>>, vector<1x128x128xbf16>
    %832 = vector.shape_cast %831 : vector<1x128x128xbf16> to vector<128x128xbf16>
    %833 = arith.truncf %774 : vector<8x128xf32> to vector<8x128xbf16>
    %cst_366 = arith.constant dense<0.000000e+00> : vector<8x128xf32>
    %834 = tpu.matmul %833, %832, %cst_366 {dimension_numbers = #tpu.dot_dimension_numbers<[1], [0], [0], [1], [0, 0, 1, 1], [], []>} : vector<8x128xbf16>, vector<128x128xbf16>, vector<8x128xf32> -> vector<8x128xf32>
    %c6_367 = arith.constant 6 : index
    %c0_368 = arith.constant 0 : index
    %c0_369 = arith.constant 0 : index
    %835 = vector.load %arg8[%c6_367, %c0_368, %c0_369] : memref<8x128x128xbf16, #tpu.memory_space<vmem>>, vector<1x128x128xbf16>
    %836 = vector.shape_cast %835 : vector<1x128x128xbf16> to vector<128x128xbf16>
    %837 = arith.truncf %786 : vector<8x128xf32> to vector<8x128xbf16>
    %cst_370 = arith.constant dense<0.000000e+00> : vector<8x128xf32>
    %838 = tpu.matmul %837, %836, %cst_370 {dimension_numbers = #tpu.dot_dimension_numbers<[1], [0], [0], [1], [0, 0, 1, 1], [], []>} : vector<8x128xbf16>, vector<128x128xbf16>, vector<8x128xf32> -> vector<8x128xf32>
    %839 = arith.addf %834, %838 : vector<8x128xf32>
    %840 = vector.extract_strided_slice %790 {offsets = [0, 0], sizes = [1, 128], strides = [1, 1]} : vector<3x128xf32> to vector<1x128xf32>
    %841 = vector.broadcast %840 : vector<1x128xf32> to vector<8x128xf32>
    %842 = arith.addf %839, %841 : vector<8x128xf32>
    %843 = vector.extract_strided_slice %790 {offsets = [1, 0], sizes = [1, 128], strides = [1, 1]} : vector<3x128xf32> to vector<1x128xf32>
    %844 = vector.extract_strided_slice %790 {offsets = [2, 0], sizes = [1, 128], strides = [1, 1]} : vector<3x128xf32> to vector<1x128xf32>
    %cst_371 = arith.constant dense<0.000000e+00> : vector<8xf32>
    %845 = vector.multi_reduction <add>, %842, %cst_371 [1] : vector<8x128xf32> to vector<8xf32>
    %846 = vector.shape_cast %845 : vector<8xf32> to vector<8x1xf32>
    %cst_372 = arith.constant 1.280000e+02 : f32
    %847 = vector.broadcast %cst_372 : f32 to vector<8x1xf32>
    %848 = arith.divf %846, %847 : vector<8x1xf32>
    %849 = vector.broadcast %848 : vector<8x1xf32> to vector<8x128xf32>
    %850 = arith.subf %842, %849 : vector<8x128xf32>
    %851 = arith.mulf %850, %850 : vector<8x128xf32>
    %cst_373 = arith.constant dense<0.000000e+00> : vector<8xf32>
    %852 = vector.multi_reduction <add>, %851, %cst_373 [1] : vector<8x128xf32> to vector<8xf32>
    %853 = vector.shape_cast %852 : vector<8xf32> to vector<8x1xf32>
    %cst_374 = arith.constant 1.280000e+02 : f32
    %854 = vector.broadcast %cst_374 : f32 to vector<8x1xf32>
    %855 = arith.divf %853, %854 : vector<8x1xf32>
    %856 = vector.broadcast %848 : vector<8x1xf32> to vector<8x128xf32>
    %857 = arith.subf %842, %856 : vector<8x128xf32>
    %cst_375 = arith.constant 9.99999974E-6 : f32
    %858 = vector.broadcast %cst_375 : f32 to vector<8x1xf32>
    %859 = arith.addf %855, %858 : vector<8x1xf32>
    %860 = math.rsqrt %859 : vector<8x1xf32>
    %861 = vector.broadcast %860 : vector<8x1xf32> to vector<8x128xf32>
    %862 = arith.mulf %857, %861 : vector<8x128xf32>
    %863 = vector.broadcast %843 : vector<1x128xf32> to vector<8x128xf32>
    %864 = arith.mulf %862, %863 : vector<8x128xf32>
    %865 = vector.broadcast %844 : vector<1x128xf32> to vector<8x128xf32>
    %866 = arith.addf %864, %865 : vector<8x128xf32>
    %cst_376 = arith.constant 0.000000e+00 : f32
    %867 = vector.broadcast %cst_376 : f32 to vector<8x128xf32>
    %868 = arith.maximumf %866, %867 : vector<8x128xf32>
    %869 = vector.extract_strided_slice %0 {offsets = [0, 6], sizes = [8, 1], strides = [1, 1]} : vector<8x8xf32> to vector<8x1xf32>
    %870 = vector.extract_strided_slice %792 {offsets = [0, 0], sizes = [1, 512], strides = [1, 1]} : vector<2x512xf32> to vector<1x512xf32>
    %871 = vector.broadcast %869 : vector<8x1xf32> to vector<8x512xf32>
    %872 = vector.broadcast %870 : vector<1x512xf32> to vector<8x512xf32>
    %873 = arith.mulf %871, %872 : vector<8x512xf32>
    %874 = vector.extract_strided_slice %792 {offsets = [1, 0], sizes = [1, 512], strides = [1, 1]} : vector<2x512xf32> to vector<1x512xf32>
    %875 = vector.broadcast %874 : vector<1x512xf32> to vector<8x512xf32>
    %876 = arith.addf %873, %875 : vector<8x512xf32>
    %c6_377 = arith.constant 6 : index
    %c0_378 = arith.constant 0 : index
    %c0_379 = arith.constant 0 : index
    %877 = vector.load %arg9[%c6_377, %c0_378, %c0_379] : memref<8x128x512xbf16, #tpu.memory_space<vmem>>, vector<1x128x512xbf16>
    %878 = vector.shape_cast %877 : vector<1x128x512xbf16> to vector<128x512xbf16>
    %879 = arith.truncf %830 : vector<8x128xf32> to vector<8x128xbf16>
    %cst_380 = arith.constant dense<0.000000e+00> : vector<8x512xf32>
    %880 = tpu.matmul %879, %878, %cst_380 {dimension_numbers = #tpu.dot_dimension_numbers<[1], [0], [0], [1], [0, 0, 1, 1], [], []>} : vector<8x128xbf16>, vector<128x512xbf16>, vector<8x512xf32> -> vector<8x512xf32>
    %881 = arith.addf %876, %880 : vector<8x512xf32>
    %882 = vector.extract_strided_slice %881 {offsets = [0, 0], sizes = [8, 128], strides = [1, 1]} : vector<8x512xf32> to vector<8x128xf32>
    %883 = arith.negf %882 : vector<8x128xf32>
    %884 = math.exp %883 : vector<8x128xf32>
    %cst_381 = arith.constant 1.000000e+00 : f32
    %885 = vector.broadcast %cst_381 : f32 to vector<8x128xf32>
    %886 = arith.addf %885, %884 : vector<8x128xf32>
    %887 = arith.divf %885, %886 : vector<8x128xf32>
    %888 = vector.extract_strided_slice %881 {offsets = [0, 128], sizes = [8, 128], strides = [1, 1]} : vector<8x512xf32> to vector<8x128xf32>
    %889 = arith.negf %888 : vector<8x128xf32>
    %890 = math.exp %889 : vector<8x128xf32>
    %cst_382 = arith.constant 1.000000e+00 : f32
    %891 = vector.broadcast %cst_382 : f32 to vector<8x128xf32>
    %892 = arith.addf %891, %890 : vector<8x128xf32>
    %893 = arith.divf %891, %892 : vector<8x128xf32>
    %894 = vector.extract_strided_slice %881 {offsets = [0, 256], sizes = [8, 128], strides = [1, 1]} : vector<8x512xf32> to vector<8x128xf32>
    %895 = math.tanh %894 : vector<8x128xf32>
    %896 = vector.extract_strided_slice %881 {offsets = [0, 384], sizes = [8, 128], strides = [1, 1]} : vector<8x512xf32> to vector<8x128xf32>
    %897 = arith.negf %896 : vector<8x128xf32>
    %898 = math.exp %897 : vector<8x128xf32>
    %cst_383 = arith.constant 1.000000e+00 : f32
    %899 = vector.broadcast %cst_383 : f32 to vector<8x128xf32>
    %900 = arith.addf %899, %898 : vector<8x128xf32>
    %901 = arith.divf %899, %900 : vector<8x128xf32>
    %902 = arith.mulf %893, %868 : vector<8x128xf32>
    %903 = arith.mulf %887, %895 : vector<8x128xf32>
    %904 = arith.addf %902, %903 : vector<8x128xf32>
    %905 = math.tanh %904 : vector<8x128xf32>
    %906 = arith.mulf %901, %905 : vector<8x128xf32>
    %c6_384 = arith.constant 6 : index
    %c0_385 = arith.constant 0 : index
    %c0_386 = arith.constant 0 : index
    %907 = vector.load %arg20[%c6_384, %c0_385, %c0_386] : memref<8x8x128xf32, #tpu.memory_space<vmem>>, vector<1x8x128xf32>
    %908 = vector.shape_cast %907 : vector<1x8x128xf32> to vector<8x128xf32>
    %909 = vector.shape_cast %906 : vector<8x128xf32> to vector<1x8x128xf32>
    tpu.vector_store %arg20[%c6_384, %c0_385, %c0_386], %909 {strides = array<i32>} : memref<8x8x128xf32, #tpu.memory_space<vmem>>, vector<1x8x128xf32>,
    %c6_387 = arith.constant 6 : index
    %c0_388 = arith.constant 0 : index
    %c0_389 = arith.constant 0 : index
    %910 = vector.load %arg21[%c6_387, %c0_388, %c0_389] : memref<8x8x128xf32, #tpu.memory_space<vmem>>, vector<1x8x128xf32>
    %911 = vector.shape_cast %910 : vector<1x8x128xf32> to vector<8x128xf32>
    %912 = vector.shape_cast %904 : vector<8x128xf32> to vector<1x8x128xf32>
    tpu.vector_store %arg21[%c6_387, %c0_388, %c0_389], %912 {strides = array<i32>} : memref<8x8x128xf32, #tpu.memory_space<vmem>>, vector<1x8x128xf32>,
    %c7 = arith.constant 7 : index
    %c0_390 = arith.constant 0 : index
    %c0_391 = arith.constant 0 : index
    %913 = vector.load %arg3[%c7, %c0_390, %c0_391] : memref<8x8x128xf32, #tpu.memory_space<vmem>>, vector<1x8x128xf32>
    %914 = vector.shape_cast %913 : vector<1x8x128xf32> to vector<8x128xf32>
    %c7_392 = arith.constant 7 : index
    %c0_393 = arith.constant 0 : index
    %c0_394 = arith.constant 0 : index
    %915 = vector.load %arg4[%c7_392, %c0_393, %c0_394] : memref<8x8x128xf32, #tpu.memory_space<vmem>>, vector<1x8x128xf32>
    %916 = vector.shape_cast %915 : vector<1x8x128xf32> to vector<8x128xf32>
    %c7_395 = arith.constant 7 : index
    %c0_396 = arith.constant 0 : index
    %c0_397 = arith.constant 0 : index
    %917 = vector.load %arg10[%c7_395, %c0_396, %c0_397] : memref<8x3x128xf32, #tpu.memory_space<vmem>>, vector<1x3x128xf32>
    %918 = vector.shape_cast %917 : vector<1x3x128xf32> to vector<3x128xf32>
    %c7_398 = arith.constant 7 : index
    %c0_399 = arith.constant 0 : index
    %c0_400 = arith.constant 0 : index
    %919 = vector.load %arg11[%c7_398, %c0_399, %c0_400] : memref<8x3x128xf32, #tpu.memory_space<vmem>>, vector<1x3x128xf32>
    %920 = vector.shape_cast %919 : vector<1x3x128xf32> to vector<3x128xf32>
    %c7_401 = arith.constant 7 : index
    %c0_402 = arith.constant 0 : index
    %c0_403 = arith.constant 0 : index
    %921 = vector.load %arg12[%c7_401, %c0_402, %c0_403] : memref<8x2x512xf32, #tpu.memory_space<vmem>>, vector<1x2x512xf32>
    %922 = vector.shape_cast %921 : vector<1x2x512xf32> to vector<2x512xf32>
    %c7_404 = arith.constant 7 : index
    %c0_405 = arith.constant 0 : index
    %c0_406 = arith.constant 0 : index
    %923 = vector.load %arg5[%c7_404, %c0_405, %c0_406] : memref<8x128x128xbf16, #tpu.memory_space<vmem>>, vector<1x128x128xbf16>
    %924 = vector.shape_cast %923 : vector<1x128x128xbf16> to vector<128x128xbf16>
    %925 = arith.truncf %906 : vector<8x128xf32> to vector<8x128xbf16>
    %cst_407 = arith.constant dense<0.000000e+00> : vector<8x128xf32>
    %926 = tpu.matmul %925, %924, %cst_407 {dimension_numbers = #tpu.dot_dimension_numbers<[1], [0], [0], [1], [0, 0, 1, 1], [], []>} : vector<8x128xbf16>, vector<128x128xbf16>, vector<8x128xf32> -> vector<8x128xf32>
    %c7_408 = arith.constant 7 : index
    %c0_409 = arith.constant 0 : index
    %c0_410 = arith.constant 0 : index
    %927 = vector.load %arg6[%c7_408, %c0_409, %c0_410] : memref<8x128x128xbf16, #tpu.memory_space<vmem>>, vector<1x128x128xbf16>
    %928 = vector.shape_cast %927 : vector<1x128x128xbf16> to vector<128x128xbf16>
    %929 = arith.truncf %914 : vector<8x128xf32> to vector<8x128xbf16>
    %cst_411 = arith.constant dense<0.000000e+00> : vector<8x128xf32>
    %930 = tpu.matmul %929, %928, %cst_411 {dimension_numbers = #tpu.dot_dimension_numbers<[1], [0], [0], [1], [0, 0, 1, 1], [], []>} : vector<8x128xbf16>, vector<128x128xbf16>, vector<8x128xf32> -> vector<8x128xf32>
    %931 = arith.addf %926, %930 : vector<8x128xf32>
    %932 = vector.extract_strided_slice %918 {offsets = [0, 0], sizes = [1, 128], strides = [1, 1]} : vector<3x128xf32> to vector<1x128xf32>
    %933 = vector.broadcast %932 : vector<1x128xf32> to vector<8x128xf32>
    %934 = arith.addf %931, %933 : vector<8x128xf32>
    %935 = vector.extract_strided_slice %918 {offsets = [1, 0], sizes = [1, 128], strides = [1, 1]} : vector<3x128xf32> to vector<1x128xf32>
    %936 = vector.extract_strided_slice %918 {offsets = [2, 0], sizes = [1, 128], strides = [1, 1]} : vector<3x128xf32> to vector<1x128xf32>
    %cst_412 = arith.constant dense<0.000000e+00> : vector<8xf32>
    %937 = vector.multi_reduction <add>, %934, %cst_412 [1] : vector<8x128xf32> to vector<8xf32>
    %938 = vector.shape_cast %937 : vector<8xf32> to vector<8x1xf32>
    %cst_413 = arith.constant 1.280000e+02 : f32
    %939 = vector.broadcast %cst_413 : f32 to vector<8x1xf32>
    %940 = arith.divf %938, %939 : vector<8x1xf32>
    %941 = vector.broadcast %940 : vector<8x1xf32> to vector<8x128xf32>
    %942 = arith.subf %934, %941 : vector<8x128xf32>
    %943 = arith.mulf %942, %942 : vector<8x128xf32>
    %cst_414 = arith.constant dense<0.000000e+00> : vector<8xf32>
    %944 = vector.multi_reduction <add>, %943, %cst_414 [1] : vector<8x128xf32> to vector<8xf32>
    %945 = vector.shape_cast %944 : vector<8xf32> to vector<8x1xf32>
    %cst_415 = arith.constant 1.280000e+02 : f32
    %946 = vector.broadcast %cst_415 : f32 to vector<8x1xf32>
    %947 = arith.divf %945, %946 : vector<8x1xf32>
    %948 = vector.broadcast %940 : vector<8x1xf32> to vector<8x128xf32>
    %949 = arith.subf %934, %948 : vector<8x128xf32>
    %cst_416 = arith.constant 9.99999974E-6 : f32
    %950 = vector.broadcast %cst_416 : f32 to vector<8x1xf32>
    %951 = arith.addf %947, %950 : vector<8x1xf32>
    %952 = math.rsqrt %951 : vector<8x1xf32>
    %953 = vector.broadcast %952 : vector<8x1xf32> to vector<8x128xf32>
    %954 = arith.mulf %949, %953 : vector<8x128xf32>
    %955 = vector.broadcast %935 : vector<1x128xf32> to vector<8x128xf32>
    %956 = arith.mulf %954, %955 : vector<8x128xf32>
    %957 = vector.broadcast %936 : vector<1x128xf32> to vector<8x128xf32>
    %958 = arith.addf %956, %957 : vector<8x128xf32>
    %cst_417 = arith.constant 0.000000e+00 : f32
    %959 = vector.broadcast %cst_417 : f32 to vector<8x128xf32>
    %960 = arith.maximumf %958, %959 : vector<8x128xf32>
    %c7_418 = arith.constant 7 : index
    %c0_419 = arith.constant 0 : index
    %c0_420 = arith.constant 0 : index
    %961 = vector.load %arg7[%c7_418, %c0_419, %c0_420] : memref<8x128x128xbf16, #tpu.memory_space<vmem>>, vector<1x128x128xbf16>
    %962 = vector.shape_cast %961 : vector<1x128x128xbf16> to vector<128x128xbf16>
    %963 = arith.truncf %904 : vector<8x128xf32> to vector<8x128xbf16>
    %cst_421 = arith.constant dense<0.000000e+00> : vector<8x128xf32>
    %964 = tpu.matmul %963, %962, %cst_421 {dimension_numbers = #tpu.dot_dimension_numbers<[1], [0], [0], [1], [0, 0, 1, 1], [], []>} : vector<8x128xbf16>, vector<128x128xbf16>, vector<8x128xf32> -> vector<8x128xf32>
    %c7_422 = arith.constant 7 : index
    %c0_423 = arith.constant 0 : index
    %c0_424 = arith.constant 0 : index
    %965 = vector.load %arg8[%c7_422, %c0_423, %c0_424] : memref<8x128x128xbf16, #tpu.memory_space<vmem>>, vector<1x128x128xbf16>
    %966 = vector.shape_cast %965 : vector<1x128x128xbf16> to vector<128x128xbf16>
    %967 = arith.truncf %916 : vector<8x128xf32> to vector<8x128xbf16>
    %cst_425 = arith.constant dense<0.000000e+00> : vector<8x128xf32>
    %968 = tpu.matmul %967, %966, %cst_425 {dimension_numbers = #tpu.dot_dimension_numbers<[1], [0], [0], [1], [0, 0, 1, 1], [], []>} : vector<8x128xbf16>, vector<128x128xbf16>, vector<8x128xf32> -> vector<8x128xf32>
    %969 = arith.addf %964, %968 : vector<8x128xf32>
    %970 = vector.extract_strided_slice %920 {offsets = [0, 0], sizes = [1, 128], strides = [1, 1]} : vector<3x128xf32> to vector<1x128xf32>
    %971 = vector.broadcast %970 : vector<1x128xf32> to vector<8x128xf32>
    %972 = arith.addf %969, %971 : vector<8x128xf32>
    %973 = vector.extract_strided_slice %920 {offsets = [1, 0], sizes = [1, 128], strides = [1, 1]} : vector<3x128xf32> to vector<1x128xf32>
    %974 = vector.extract_strided_slice %920 {offsets = [2, 0], sizes = [1, 128], strides = [1, 1]} : vector<3x128xf32> to vector<1x128xf32>
    %cst_426 = arith.constant dense<0.000000e+00> : vector<8xf32>
    %975 = vector.multi_reduction <add>, %972, %cst_426 [1] : vector<8x128xf32> to vector<8xf32>
    %976 = vector.shape_cast %975 : vector<8xf32> to vector<8x1xf32>
    %cst_427 = arith.constant 1.280000e+02 : f32
    %977 = vector.broadcast %cst_427 : f32 to vector<8x1xf32>
    %978 = arith.divf %976, %977 : vector<8x1xf32>
    %979 = vector.broadcast %978 : vector<8x1xf32> to vector<8x128xf32>
    %980 = arith.subf %972, %979 : vector<8x128xf32>
    %981 = arith.mulf %980, %980 : vector<8x128xf32>
    %cst_428 = arith.constant dense<0.000000e+00> : vector<8xf32>
    %982 = vector.multi_reduction <add>, %981, %cst_428 [1] : vector<8x128xf32> to vector<8xf32>
    %983 = vector.shape_cast %982 : vector<8xf32> to vector<8x1xf32>
    %cst_429 = arith.constant 1.280000e+02 : f32
    %984 = vector.broadcast %cst_429 : f32 to vector<8x1xf32>
    %985 = arith.divf %983, %984 : vector<8x1xf32>
    %986 = vector.broadcast %978 : vector<8x1xf32> to vector<8x128xf32>
    %987 = arith.subf %972, %986 : vector<8x128xf32>
    %cst_430 = arith.constant 9.99999974E-6 : f32
    %988 = vector.broadcast %cst_430 : f32 to vector<8x1xf32>
    %989 = arith.addf %985, %988 : vector<8x1xf32>
    %990 = math.rsqrt %989 : vector<8x1xf32>
    %991 = vector.broadcast %990 : vector<8x1xf32> to vector<8x128xf32>
    %992 = arith.mulf %987, %991 : vector<8x128xf32>
    %993 = vector.broadcast %973 : vector<1x128xf32> to vector<8x128xf32>
    %994 = arith.mulf %992, %993 : vector<8x128xf32>
    %995 = vector.broadcast %974 : vector<1x128xf32> to vector<8x128xf32>
    %996 = arith.addf %994, %995 : vector<8x128xf32>
    %cst_431 = arith.constant 0.000000e+00 : f32
    %997 = vector.broadcast %cst_431 : f32 to vector<8x128xf32>
    %998 = arith.maximumf %996, %997 : vector<8x128xf32>
    %999 = vector.extract_strided_slice %0 {offsets = [0, 7], sizes = [8, 1], strides = [1, 1]} : vector<8x8xf32> to vector<8x1xf32>
    %1000 = vector.extract_strided_slice %922 {offsets = [0, 0], sizes = [1, 512], strides = [1, 1]} : vector<2x512xf32> to vector<1x512xf32>
    %1001 = vector.broadcast %999 : vector<8x1xf32> to vector<8x512xf32>
    %1002 = vector.broadcast %1000 : vector<1x512xf32> to vector<8x512xf32>
    %1003 = arith.mulf %1001, %1002 : vector<8x512xf32>
    %1004 = vector.extract_strided_slice %922 {offsets = [1, 0], sizes = [1, 512], strides = [1, 1]} : vector<2x512xf32> to vector<1x512xf32>
    %1005 = vector.broadcast %1004 : vector<1x512xf32> to vector<8x512xf32>
    %1006 = arith.addf %1003, %1005 : vector<8x512xf32>
    %c7_432 = arith.constant 7 : index
    %c0_433 = arith.constant 0 : index
    %c0_434 = arith.constant 0 : index
    %1007 = vector.load %arg9[%c7_432, %c0_433, %c0_434] : memref<8x128x512xbf16, #tpu.memory_space<vmem>>, vector<1x128x512xbf16>
    %1008 = vector.shape_cast %1007 : vector<1x128x512xbf16> to vector<128x512xbf16>
    %1009 = arith.truncf %960 : vector<8x128xf32> to vector<8x128xbf16>
    %cst_435 = arith.constant dense<0.000000e+00> : vector<8x512xf32>
    %1010 = tpu.matmul %1009, %1008, %cst_435 {dimension_numbers = #tpu.dot_dimension_numbers<[1], [0], [0], [1], [0, 0, 1, 1], [], []>} : vector<8x128xbf16>, vector<128x512xbf16>, vector<8x512xf32> -> vector<8x512xf32>
    %1011 = arith.addf %1006, %1010 : vector<8x512xf32>
    %1012 = vector.extract_strided_slice %1011 {offsets = [0, 0], sizes = [8, 128], strides = [1, 1]} : vector<8x512xf32> to vector<8x128xf32>
    %1013 = arith.negf %1012 : vector<8x128xf32>
    %1014 = math.exp %1013 : vector<8x128xf32>
    %cst_436 = arith.constant 1.000000e+00 : f32
    %1015 = vector.broadcast %cst_436 : f32 to vector<8x128xf32>
    %1016 = arith.addf %1015, %1014 : vector<8x128xf32>
    %1017 = arith.divf %1015, %1016 : vector<8x128xf32>
    %1018 = vector.extract_strided_slice %1011 {offsets = [0, 128], sizes = [8, 128], strides = [1, 1]} : vector<8x512xf32> to vector<8x128xf32>
    %1019 = arith.negf %1018 : vector<8x128xf32>
    %1020 = math.exp %1019 : vector<8x128xf32>
    %cst_437 = arith.constant 1.000000e+00 : f32
    %1021 = vector.broadcast %cst_437 : f32 to vector<8x128xf32>
    %1022 = arith.addf %1021, %1020 : vector<8x128xf32>
    %1023 = arith.divf %1021, %1022 : vector<8x128xf32>
    %1024 = vector.extract_strided_slice %1011 {offsets = [0, 256], sizes = [8, 128], strides = [1, 1]} : vector<8x512xf32> to vector<8x128xf32>
    %1025 = math.tanh %1024 : vector<8x128xf32>
    %1026 = vector.extract_strided_slice %1011 {offsets = [0, 384], sizes = [8, 128], strides = [1, 1]} : vector<8x512xf32> to vector<8x128xf32>
    %1027 = arith.negf %1026 : vector<8x128xf32>
    %1028 = math.exp %1027 : vector<8x128xf32>
    %cst_438 = arith.constant 1.000000e+00 : f32
    %1029 = vector.broadcast %cst_438 : f32 to vector<8x128xf32>
    %1030 = arith.addf %1029, %1028 : vector<8x128xf32>
    %1031 = arith.divf %1029, %1030 : vector<8x128xf32>
    %1032 = arith.mulf %1023, %998 : vector<8x128xf32>
    %1033 = arith.mulf %1017, %1025 : vector<8x128xf32>
    %1034 = arith.addf %1032, %1033 : vector<8x128xf32>
    %1035 = math.tanh %1034 : vector<8x128xf32>
    %1036 = arith.mulf %1031, %1035 : vector<8x128xf32>
    %c7_439 = arith.constant 7 : index
    %c0_440 = arith.constant 0 : index
    %c0_441 = arith.constant 0 : index
    %1037 = vector.load %arg20[%c7_439, %c0_440, %c0_441] : memref<8x8x128xf32, #tpu.memory_space<vmem>>, vector<1x8x128xf32>
    %1038 = vector.shape_cast %1037 : vector<1x8x128xf32> to vector<8x128xf32>
    %1039 = vector.shape_cast %1036 : vector<8x128xf32> to vector<1x8x128xf32>
    tpu.vector_store %arg20[%c7_439, %c0_440, %c0_441], %1039 {strides = array<i32>} : memref<8x8x128xf32, #tpu.memory_space<vmem>>, vector<1x8x128xf32>,
    %c7_442 = arith.constant 7 : index
    %c0_443 = arith.constant 0 : index
    %c0_444 = arith.constant 0 : index
    %1040 = vector.load %arg21[%c7_442, %c0_443, %c0_444] : memref<8x8x128xf32, #tpu.memory_space<vmem>>, vector<1x8x128xf32>
    %1041 = vector.shape_cast %1040 : vector<1x8x128xf32> to vector<8x128xf32>
    %1042 = vector.shape_cast %1034 : vector<8x128xf32> to vector<1x8x128xf32>
    tpu.vector_store %arg21[%c7_442, %c0_443, %c0_444], %1042 {strides = array<i32>} : memref<8x8x128xf32, #tpu.memory_space<vmem>>, vector<1x8x128xf32>,
    %c0_445 = arith.constant 0 : index
    %c0_446 = arith.constant 0 : index
    %1043 = vector.load %arg18[%c0_445, %c0_446] : memref<8x128xf32, #tpu.memory_space<vmem>>, vector<8x128xf32>
    tpu.vector_store %arg18[%c0_445, %c0_446], %1036 {strides = array<i32>} : memref<8x128xf32, #tpu.memory_space<vmem>>, vector<8x128xf32>,
    %c0_447 = arith.constant 0 : index
    %c0_448 = arith.constant 0 : index
    %1044 = vector.load %arg19[%c0_447, %c0_448] : memref<8x128xf32, #tpu.memory_space<vmem>>, vector<8x128xf32>
    tpu.vector_store %arg19[%c0_447, %c0_448], %1034 {strides = array<i32>} : memref<8x128xf32, #tpu.memory_space<vmem>>, vector<8x128xf32>,
    %c0_449 = arith.constant 0 : index
    %c0_450 = arith.constant 0 : index
    %1045 = vector.load %arg13[%c0_449, %c0_450] : memref<8x256xf32, #tpu.memory_space<vmem>>, vector<8x256xf32>
    %cst_451 = arith.constant dense<0.000000e+00> : vector<8x256xf32>
    %1046 = tpu.matmul %0, %1045, %cst_451 {dimension_numbers = #tpu.dot_dimension_numbers<[1], [0], [0], [1], [0, 0, 1, 1], [], []>} : vector<8x8xf32>, vector<8x256xf32>, vector<8x256xf32> -> vector<8x256xf32>
    %c0_452 = arith.constant 0 : index
    %c0_453 = arith.constant 0 : index
    %1047 = vector.load %arg14[%c0_452, %c0_453] : memref<1x256xf32, #tpu.memory_space<vmem>>, vector<1x256xf32>
    %1048 = vector.broadcast %1047 : vector<1x256xf32> to vector<8x256xf32>
    %1049 = arith.addf %1046, %1048 : vector<8x256xf32>
    %1050 = vector.extract_strided_slice %1049 {offsets = [0, 0], sizes = [8, 128], strides = [1, 1]} : vector<8x256xf32> to vector<8x128xf32>
    %1051 = arith.addf %1036, %1050 : vector<8x128xf32>
    %1052 = vector.extract_strided_slice %1049 {offsets = [0, 128], sizes = [8, 128], strides = [1, 1]} : vector<8x256xf32> to vector<8x128xf32>
    %1053 = arith.addf %1034, %1052 : vector<8x128xf32>
    %c0_454 = arith.constant 0 : index
    %c0_455 = arith.constant 0 : index
    %1054 = vector.load %arg15[%c0_454, %c0_455] : memref<256x16xf32, #tpu.memory_space<vmem>>, vector<128x16xf32>
    %cst_456 = arith.constant dense<0.000000e+00> : vector<8x16xf32>
    %1055 = tpu.matmul %1051, %1054, %cst_456 {dimension_numbers = #tpu.dot_dimension_numbers<[1], [0], [0], [1], [0, 0, 1, 1], [], []>} : vector<8x128xf32>, vector<128x16xf32>, vector<8x16xf32> -> vector<8x16xf32>
    %c128 = arith.constant 128 : index
    %c0_457 = arith.constant 0 : index
    %1056 = vector.load %arg15[%c128, %c0_457] : memref<256x16xf32, #tpu.memory_space<vmem>>, vector<128x16xf32>
    %cst_458 = arith.constant dense<0.000000e+00> : vector<8x16xf32>
    %1057 = tpu.matmul %1053, %1056, %cst_458 {dimension_numbers = #tpu.dot_dimension_numbers<[1], [0], [0], [1], [0, 0, 1, 1], [], []>} : vector<8x128xf32>, vector<128x16xf32>, vector<8x16xf32> -> vector<8x16xf32>
    %1058 = arith.addf %1055, %1057 : vector<8x16xf32>
    %c0_459 = arith.constant 0 : index
    %c0_460 = arith.constant 0 : index
    %1059 = vector.load %arg16[%c0_459, %c0_460] : memref<3x16xf32, #tpu.memory_space<vmem>>, vector<1x16xf32>
    %1060 = vector.broadcast %1059 : vector<1x16xf32> to vector<8x16xf32>
    %1061 = arith.addf %1058, %1060 : vector<8x16xf32>
    %c1_461 = arith.constant 1 : index
    %c0_462 = arith.constant 0 : index
    %1062 = vector.load %arg16[%c1_461, %c0_462] : memref<3x16xf32, #tpu.memory_space<vmem>>, vector<1x16xf32>
    %c2_463 = arith.constant 2 : index
    %c0_464 = arith.constant 0 : index
    %1063 = vector.load %arg16[%c2_463, %c0_464] : memref<3x16xf32, #tpu.memory_space<vmem>>, vector<1x16xf32>
    %cst_465 = arith.constant dense<0.000000e+00> : vector<8xf32>
    %1064 = vector.multi_reduction <add>, %1061, %cst_465 [1] : vector<8x16xf32> to vector<8xf32>
    %1065 = vector.shape_cast %1064 : vector<8xf32> to vector<8x1xf32>
    %cst_466 = arith.constant 1.600000e+01 : f32
    %1066 = vector.broadcast %cst_466 : f32 to vector<8x1xf32>
    %1067 = arith.divf %1065, %1066 : vector<8x1xf32>
    %1068 = vector.broadcast %1067 : vector<8x1xf32> to vector<8x16xf32>
    %1069 = arith.subf %1061, %1068 : vector<8x16xf32>
    %1070 = arith.mulf %1069, %1069 : vector<8x16xf32>
    %cst_467 = arith.constant dense<0.000000e+00> : vector<8xf32>
    %1071 = vector.multi_reduction <add>, %1070, %cst_467 [1] : vector<8x16xf32> to vector<8xf32>
    %1072 = vector.shape_cast %1071 : vector<8xf32> to vector<8x1xf32>
    %cst_468 = arith.constant 1.600000e+01 : f32
    %1073 = vector.broadcast %cst_468 : f32 to vector<8x1xf32>
    %1074 = arith.divf %1072, %1073 : vector<8x1xf32>
    %1075 = vector.broadcast %1067 : vector<8x1xf32> to vector<8x16xf32>
    %1076 = arith.subf %1061, %1075 : vector<8x16xf32>
    %cst_469 = arith.constant 9.99999974E-6 : f32
    %1077 = vector.broadcast %cst_469 : f32 to vector<8x1xf32>
    %1078 = arith.addf %1074, %1077 : vector<8x1xf32>
    %1079 = math.rsqrt %1078 : vector<8x1xf32>
    %1080 = vector.broadcast %1079 : vector<8x1xf32> to vector<8x16xf32>
    %1081 = arith.mulf %1076, %1080 : vector<8x16xf32>
    %1082 = vector.broadcast %1062 : vector<1x16xf32> to vector<8x16xf32>
    %1083 = arith.mulf %1081, %1082 : vector<8x16xf32>
    %1084 = vector.broadcast %1063 : vector<1x16xf32> to vector<8x16xf32>
    %1085 = arith.addf %1083, %1084 : vector<8x16xf32>
    %cst_470 = arith.constant 0.000000e+00 : f32
    %1086 = vector.broadcast %cst_470 : f32 to vector<8x16xf32>
    %1087 = arith.maximumf %1085, %1086 : vector<8x16xf32>
    %c0_471 = arith.constant 0 : index
    %c0_472 = arith.constant 0 : index
    %1088 = vector.load %arg17[%c0_471, %c0_472] : memref<8x16xf32, #tpu.memory_space<vmem>>, vector<8x16xf32>
    tpu.vector_store %arg17[%c0_471, %c0_472], %1087 {strides = array<i32>} : memref<8x16xf32, #tpu.memory_space<vmem>>, vector<8x16xf32>,
    return
  }
}

</mosaic_0001>

<llo_original>
// kernel: lattice_rnn_forward.1
$region0: #{lattice_rnn_forward.1}
  #allocation0 [shape = 'u32[]', space=smem, size = 0x4, offset = 0x4, fixed_abs, tag = 'smem constant byte address 0x4 - core index']
  #allocation1 [shape = 'u32[144,128]{1,0:T(1,128)}', space=vmem, size = 0x12000, scoped, tag = 'internal scratch']
  %s0 = inlined_call_operand.vmem [shape: f32[8,8], index: 0, kind: input, shape index: {}]
  %s1 = inlined_call_operand.vmem [shape: f32[8,128], index: 1, kind: input, shape index: {}]
  %s2 = inlined_call_operand.vmem [shape: f32[8,128], index: 2, kind: input, shape index: {}]
  %s3 = inlined_call_operand.vmem [shape: f32[8,8,128], index: 3, kind: input, shape index: {}]
  %s4 = inlined_call_operand.vmem [shape: f32[8,8,128], index: 4, kind: input, shape index: {}]
  %s5 = inlined_call_operand.hbm [shape: bf16[8,128,128], index: 5, kind: input, shape index: {}]
  %s6 = inlined_call_operand.hbm [shape: bf16[8,128,128], index: 6, kind: input, shape index: {}]
  %s7 = inlined_call_operand.hbm [shape: bf16[8,128,128], index: 7, kind: input, shape index: {}]
  %s8 = inlined_call_operand.hbm [shape: bf16[8,128,128], index: 8, kind: input, shape index: {}]
  %s9 = inlined_call_operand.hbm [shape: bf16[8,128,512], index: 9, kind: input, shape index: {}]
  %s10 = inlined_call_operand.vmem [shape: f32[8,3,128], index: 10, kind: input, shape index: {}]
  %s11 = inlined_call_operand.vmem [shape: f32[8,3,128], index: 11, kind: input, shape index: {}]
  %s12 = inlined_call_operand.vmem [shape: f32[8,2,512], index: 12, kind: input, shape index: {}]
  %s13 = inlined_call_operand.vmem [shape: f32[8,256], index: 13, kind: input, shape index: {}]
  %s14 = inlined_call_operand.vmem [shape: f32[1,256], index: 14, kind: input, shape index: {}]
  %s15 = inlined_call_operand.vmem [shape: f32[256,16], index: 15, kind: input, shape index: {}]
  %s16 = inlined_call_operand.vmem [shape: f32[3,16], index: 16, kind: input, shape index: {}]
  %s17 = inlined_call_operand.hbm [shape: f32[8,16], index: 17, kind: output, shape index: {0}]
  %s18 = inlined_call_operand.hbm [shape: f32[8,128], index: 18, kind: output, shape index: {1}]
  %s19 = inlined_call_operand.hbm [shape: f32[8,128], index: 19, kind: output, shape index: {2}]
  %s20 = inlined_call_operand.hbm [shape: f32[8,8,128], index: 20, kind: output, shape index: {3}]
  %s21 = inlined_call_operand.hbm [shape: f32[8,8,128], index: 21, kind: output, shape index: {4}]
  %22 = xla_tuple %s17, %s18, %s19, %s20, %s21
  %s23 = sld [smem:[#allocation0]]
  $region130: #{lattice_rnn_forward.1} parent=0
    _
  %s25 = ssub.s32 1, %s23
  %s26 = scalar_select 0, %s25, %s23
  $region1: #{lattice_rnn_forward.1} parent=0
    #allocation2 [shape = 'u8[262144]{0}', space=vmem, size = 0x40000, scoped, tag = 'input window, operand 5, single buffered']
    #allocation3 [shape = 's32[1]{0}', space=sflag, size = 0x4, scoped, tag = 'scoped memory for lattice_rnn_forward.1']
    #allocation4 [shape = 's32[1]{0}', space=sflag, size = 0x4, scoped, tag = 'scoped memory for lattice_rnn_forward.1']
    #allocation5 [shape = 'u8[262144]{0}', space=vmem, size = 0x40000, scoped, tag = 'input window, operand 6, single buffered']
    #allocation6 [shape = 's32[1]{0}', space=sflag, size = 0x4, scoped, tag = 'scoped memory for lattice_rnn_forward.1']
    #allocation7 [shape = 'u8[262144]{0}', space=vmem, size = 0x40000, scoped, tag = 'input window, operand 7, single buffered']
    #allocation8 [shape = 'u8[262144]{0}', space=vmem, size = 0x40000, scoped, tag = 'input window, operand 8, single buffered']
    #allocation9 [shape = 's32[1]{0}', space=sflag, size = 0x4, scoped, tag = 'scoped memory for lattice_rnn_forward.1']
    #allocation10 [shape = 'u8[1048576]{0}', space=vmem, size = 0x100000, scoped, tag = 'input window, operand 9, single buffered']
    #allocation11 [shape = 'u8[4096]{0}', space=vmem, size = 0x1000, scoped, tag = 'output window, operand 0, single buffered']
    #allocation12 [shape = 'u8[4096]{0}', space=vmem, size = 0x1000, scoped, tag = 'output window, operand 1, single buffered']
    #allocation13 [shape = 's32[1]{0}', space=sflag, size = 0x4, scoped, tag = 'scoped memory for lattice_rnn_forward.1']
    #allocation14 [shape = 'u8[4096]{0}', space=vmem, size = 0x1000, scoped, tag = 'output window, operand 2, single buffered']
    #allocation15 [shape = 'u8[32768]{0}', space=vmem, size = 0x8000, scoped, tag = 'output window, operand 3, single buffered']
    #allocation16 [shape = 's32[1]{0}', space=sflag, size = 0x4, scoped, tag = 'scoped memory for lattice_rnn_forward.1']
    #allocation17 [shape = 'u8[32768]{0}', space=vmem, size = 0x8000, scoped, tag = 'output window, operand 4, single buffered']
    %27 = vsyncpa [#allocation3], 0
    %28 = vsyncpa [#allocation6], 0
    %29 = vsyncpa [#allocation9], 0
    %30 = vsyncpa [#allocation4], 0
    %31 = vsyncpa [#allocation13], 0
    %32 = vsyncpa [#allocation16], 0
    // Predicated region
    $region2: #{lattice_rnn_forward.1} parent=1 // pred_check
      _
    $region3: #{lattice_rnn_forward.1} parent=1 // pred_check_branch
      %34 = sbr.rel (0) target = $region5
    $region4: #{lattice_rnn_forward.1} parent=1 // pred_region
      _
    $region5: #{lattice_rnn_forward.1} parent=1 // pred_fallthru
      _
    // Predicated region
    $region6: #{lattice_rnn_forward.1} parent=1 // pred_check
      _
    $region7: #{lattice_rnn_forward.1} parent=1 // pred_check_branch
      %36 = sbr.rel (0) target = $region9
    $region8: #{lattice_rnn_forward.1} parent=1 // pred_region
      _
    $region9: #{lattice_rnn_forward.1} parent=1 // pred_fallthru
      _
    // Predicated region
    $region10: #{lattice_rnn_forward.1} parent=1 // pred_check
      _
    $region11: #{lattice_rnn_forward.1} parent=1 // pred_check_branch
      %38 = sbr.rel (0) target = $region13
    $region12: #{lattice_rnn_forward.1} parent=1 // pred_region
      _
    $region13: #{lattice_rnn_forward.1} parent=1 // pred_fallthru
      _
    // Predicated region
    $region14: #{lattice_rnn_forward.1} parent=1 // pred_check
      _
    $region15: #{lattice_rnn_forward.1} parent=1 // pred_check_branch
      %40 = sbr.rel (0) target = $region17
    $region16: #{lattice_rnn_forward.1} parent=1 // pred_region
      _
    $region17: #{lattice_rnn_forward.1} parent=1 // pred_fallthru
      _
    // Predicated region
    $region18: #{lattice_rnn_forward.1} parent=1 // pred_check
      _
    $region19: #{lattice_rnn_forward.1} parent=1 // pred_check_branch
      %42 = sbr.rel (0) target = $region21
    $region20: #{lattice_rnn_forward.1} parent=1 // pred_region
      _
    $region21: #{lattice_rnn_forward.1} parent=1 // pred_fallthru
      _
    // Predicated region
    $region22: #{lattice_rnn_forward.1} parent=1 // pred_check
      _
    $region23: #{lattice_rnn_forward.1} parent=1 // pred_check_branch
      %44 = sbr.rel (0) target = $region25
    $region24: #{lattice_rnn_forward.1} parent=1 // pred_region
      %s46 = ssub.s32 8192, 8192
      %47 = vsyncadd [#allocation3], %s46
      %s48 = sshll.u32 [#allocation2], 4
      %s49 = int_to_ptr.vmem [resolvable:$true] %s48
      %54 = dma.hbm_to_vmem [thread:$0]  %s5, 8192, %s49, [#allocation3], 64, 64, 4
    $region25: #{lattice_rnn_forward.1} parent=1 // pred_fallthru
      _
    // Predicated region
    $region26: #{lattice_rnn_forward.1} parent=1 // pred_check
      _
    $region27: #{lattice_rnn_forward.1} parent=1 // pred_check_branch
      %56 = sbr.rel (0) target = $region29
    $region28: #{lattice_rnn_forward.1} parent=1 // pred_region
      %s58 = ssub.s32 8192, 8192
      %59 = vsyncadd [#allocation6], %s58
      %s60 = sshll.u32 [#allocation5], 4
      %s61 = int_to_ptr.vmem [resolvable:$true] %s60
      %66 = dma.hbm_to_vmem [thread:$0]  %s6, 8192, %s61, [#allocation6], 64, 64, 4
    $region29: #{lattice_rnn_forward.1} parent=1 // pred_fallthru
      _
    // Predicated region
    $region30: #{lattice_rnn_forward.1} parent=1 // pred_check
      _
    $region31: #{lattice_rnn_forward.1} parent=1 // pred_check_branch
      %68 = sbr.rel (0) target = $region33
    $region32: #{lattice_rnn_forward.1} parent=1 // pred_region
      %s70 = ssub.s32 8192, 8192
      %71 = vsyncadd [#allocation6], %s70
      %s72 = sshll.u32 [#allocation7], 4
      %s73 = int_to_ptr.vmem [resolvable:$true] %s72
      %78 = dma.hbm_to_vmem [thread:$0]  %s7, 8192, %s73, [#allocation6], 64, 64, 4
    $region33: #{lattice_rnn_forward.1} parent=1 // pred_fallthru
      _
    // Predicated region
    $region34: #{lattice_rnn_forward.1} parent=1 // pred_check
      _
    $region35: #{lattice_rnn_forward.1} parent=1 // pred_check_branch
      %80 = sbr.rel (0) target = $region37
    $region36: #{lattice_rnn_forward.1} parent=1 // pred_region
      %s82 = ssub.s32 8192, 8192
      %83 = vsyncadd [#allocation9], %s82
      %s84 = sshll.u32 [#allocation8], 4
      %s85 = int_to_ptr.vmem [resolvable:$true] %s84
      %90 = dma.hbm_to_vmem [thread:$0]  %s8, 8192, %s85, [#allocation9], 64, 64, 4
    $region37: #{lattice_rnn_forward.1} parent=1 // pred_fallthru
      _
    // Predicated region
    $region38: #{lattice_rnn_forward.1} parent=1 // pred_check
      _
    $region39: #{lattice_rnn_forward.1} parent=1 // pred_check_branch
      %92 = sbr.rel (0) target = $region41
    $region40: #{lattice_rnn_forward.1} parent=1 // pred_region
      %s94 = ssub.s32 32768, 32768
      %95 = vsyncadd [#allocation9], %s94
      %s96 = sshll.u32 [#allocation10], 4
      %s97 = int_to_ptr.vmem [resolvable:$true] %s96
      %102 = dma.hbm_to_vmem [thread:$0]  %s9, 32768, %s97, [#allocation9], 256, 256, 16
    $region41: #{lattice_rnn_forward.1} parent=1 // pred_fallthru
      _
    // Predicated region
    $region42: #{lattice_rnn_forward.1} parent=1 // pred_check
      _
    $region43: #{lattice_rnn_forward.1} parent=1 // pred_check_branch
      %104 = sbr.rel (0) target = $region45
    $region44: #{lattice_rnn_forward.1} parent=1 // pred_region
      _
    $region45: #{lattice_rnn_forward.1} parent=1 // pred_fallthru
      _
    // Predicated region
    $region46: #{lattice_rnn_forward.1} parent=1 // pred_check
      _
    $region47: #{lattice_rnn_forward.1} parent=1 // pred_check_branch
      %106 = sbr.rel (0) target = $region49
    $region48: #{lattice_rnn_forward.1} parent=1 // pred_region
      _
    $region49: #{lattice_rnn_forward.1} parent=1 // pred_fallthru
      _
    // Predicated region
    $region50: #{lattice_rnn_forward.1} parent=1 // pred_check
      _
    $region51: #{lattice_rnn_forward.1} parent=1 // pred_check_branch
      %108 = sbr.rel (0) target = $region53
    $region52: #{lattice_rnn_forward.1} parent=1 // pred_region
      _
    $region53: #{lattice_rnn_forward.1} parent=1 // pred_fallthru
      _
    // Predicated region
    $region54: #{lattice_rnn_forward.1} parent=1 // pred_check
      _
    $region55: #{lattice_rnn_forward.1} parent=1 // pred_check_branch
      %110 = sbr.rel (0) target = $region57
    $region56: #{lattice_rnn_forward.1} parent=1 // pred_region
      _
    $region57: #{lattice_rnn_forward.1} parent=1 // pred_fallthru
      _
    // Predicated region
    $region58: #{lattice_rnn_forward.1} parent=1 // pred_check
      _
    $region59: #{lattice_rnn_forward.1} parent=1 // pred_check_branch
      %112 = sbr.rel (0) target = $region61
    $region60: #{lattice_rnn_forward.1} parent=1 // pred_region
      _
    $region61: #{lattice_rnn_forward.1} parent=1 // pred_fallthru
      _
    // Predicated region
    $region62: #{lattice_rnn_forward.1} parent=1 // pred_check
      _
    $region63: #{lattice_rnn_forward.1} parent=1 // pred_check_branch
      %114 = sbr.rel (0) target = $region65
    $region64: #{lattice_rnn_forward.1} parent=1 // pred_region
      _
    $region65: #{lattice_rnn_forward.1} parent=1 // pred_fallthru
      _
    // Predicated region
    $region66: #{lattice_rnn_forward.1} parent=1 // pred_check
      _
    $region67: #{lattice_rnn_forward.1} parent=1 // pred_check_branch
      %116 = sbr.rel (0) target = $region69
    $region68: #{lattice_rnn_forward.1} parent=1 // pred_region
      _
    $region69: #{lattice_rnn_forward.1} parent=1 // pred_fallthru
      _
    // Predicated region
    $region70: #{lattice_rnn_forward.1} parent=1 // pred_check
      _
    $region71: #{lattice_rnn_forward.1} parent=1 // pred_check_branch
      %118 = sbr.rel (0) target = $region73
    $region72: #{lattice_rnn_forward.1} parent=1 // pred_region
      %119 = dma.done [#allocation3], 8192
    $region73: #{lattice_rnn_forward.1} parent=1 // pred_fallthru
      _
    // Predicated region
    $region74: #{lattice_rnn_forward.1} parent=1 // pred_check
      _
    $region75: #{lattice_rnn_forward.1} parent=1 // pred_check_branch
      %121 = sbr.rel (0) target = $region77
    $region76: #{lattice_rnn_forward.1} parent=1 // pred_region
      %122 = dma.done [#allocation6], 8192
    $region77: #{lattice_rnn_forward.1} parent=1 // pred_fallthru
      _
    // Predicated region
    $region78: #{lattice_rnn_forward.1} parent=1 // pred_check
      _
    $region79: #{lattice_rnn_forward.1} parent=1 // pred_check_branch
      %124 = sbr.rel (0) target = $region81
    $region80: #{lattice_rnn_forward.1} parent=1 // pred_region
      %125 = dma.done [#allocation6], 8192
    $region81: #{lattice_rnn_forward.1} parent=1 // pred_fallthru
      _
    // Predicated region
    $region82: #{lattice_rnn_forward.1} parent=1 // pred_check
      _
    $region83: #{lattice_rnn_forward.1} parent=1 // pred_check_branch
      %127 = sbr.rel (0) target = $region85
    $region84: #{lattice_rnn_forward.1} parent=1 // pred_region
      %128 = dma.done [#allocation9], 8192
    $region85: #{lattice_rnn_forward.1} parent=1 // pred_fallthru
      _
    // Predicated region
    $region86: #{lattice_rnn_forward.1} parent=1 // pred_check
      _
    $region87: #{lattice_rnn_forward.1} parent=1 // pred_check_branch
      %130 = sbr.rel (0) target = $region89
    $region88: #{lattice_rnn_forward.1} parent=1 // pred_region
      %131 = dma.done [#allocation9], 32768
    $region89: #{lattice_rnn_forward.1} parent=1 // pred_fallthru
      _
    %v133 = vld [vmem:[%s0] sm:$0xff]
    %v134 = vld [vmem:[%s1] sm:$0xff]
    %v135 = vld [vmem:[%s2] sm:$0xff]
    %v136 = vld [vmem:[%s3] sm:$0xff]
    %v137 = vld [vmem:[%s4] sm:$0xff]
    %v138 = vld [vmem:[%s10] sm:$0x7]
    %v139 = vld [vmem:[%s11] sm:$0x7]
    %v140 = vld [vmem:[%s12] sm:$0xff]
    %v141 = vld [vmem:[#allocation2] sm:$0xf]
    %v142 = vld [vmem:[#allocation2 + $0x4] sm:$0xf]
    %v143 = vld [vmem:[#allocation2 + $0x8] sm:$0xf]
    %v144 = vld [vmem:[#allocation2 + $0xc] sm:$0xf]
    %v145 = vld [vmem:[#allocation2 + $0x10] sm:$0xf]
    %v146 = vld [vmem:[#allocation2 + $0x14] sm:$0xf]
    %v147 = vld [vmem:[#allocation2 + $0x18] sm:$0xf]
    %v148 = vld [vmem:[#allocation2 + $0x1c] sm:$0xf]
    %v149 = vld [vmem:[#allocation2 + $0x20] sm:$0xf]
    %v150 = vld [vmem:[#allocation2 + $0x24] sm:$0xf]
    %v151 = vld [vmem:[#allocation2 + $0x28] sm:$0xf]
    %v152 = vld [vmem:[#allocation2 + $0x2c] sm:$0xf]
    %v153 = vld [vmem:[#allocation2 + $0x30] sm:$0xf]
    %v154 = vld [vmem:[#allocation2 + $0x34] sm:$0xf]
    %v155 = vld [vmem:[#allocation2 + $0x38] sm:$0xf]
    %v156 = vld [vmem:[#allocation2 + $0x3c] sm:$0xf]
    %v157 = vpack.c.bf16 %v134, %v134
    %v158 = vld [vmem:[#allocation5] sm:$0xf]
    %v159 = vld [vmem:[#allocation5 + $0x4] sm:$0xf]
    %v160 = vld [vmem:[#allocation5 + $0x8] sm:$0xf]
    %v161 = vld [vmem:[#allocation5 + $0xc] sm:$0xf]
    %v162 = vld [vmem:[#allocation5 + $0x10] sm:$0xf]
    %v163 = vld [vmem:[#allocation5 + $0x14] sm:$0xf]
    %v164 = vld [vmem:[#allocation5 + $0x18] sm:$0xf]
    %v165 = vld [vmem:[#allocation5 + $0x1c] sm:$0xf]
    %v166 = vld [vmem:[#allocation5 + $0x20] sm:$0xf]
    %v167 = vld [vmem:[#allocation5 + $0x24] sm:$0xf]
    %v168 = vld [vmem:[#allocation5 + $0x28] sm:$0xf]
    %v169 = vld [vmem:[#allocation5 + $0x2c] sm:$0xf]
    %v170 = vld [vmem:[#allocation5 + $0x30] sm:$0xf]
    %v171 = vld [vmem:[#allocation5 + $0x34] sm:$0xf]
    %v172 = vld [vmem:[#allocation5 + $0x38] sm:$0xf]
    %v173 = vld [vmem:[#allocation5 + $0x3c] sm:$0xf]
    %v174 = vpack.c.bf16 %v136, %v136
    %v191 = vunpack.c.l.b16 %v158
    %v192 = vunpack.c.l.b16 %v159
    %v193 = vunpack.c.l.b16 %v160
    %v194 = vunpack.c.l.b16 %v161
    %v195 = vunpack.c.l.b16 %v162
    %v196 = vunpack.c.l.b16 %v163
    %v197 = vunpack.c.l.b16 %v164
    %v198 = vunpack.c.l.b16 %v165
    %v199 = vunpack.c.l.b16 %v166
    %v200 = vunpack.c.l.b16 %v167
    %v201 = vunpack.c.l.b16 %v168
    %v202 = vunpack.c.l.b16 %v169
    %v203 = vunpack.c.l.b16 %v170
    %v204 = vunpack.c.l.b16 %v171
    %v205 = vunpack.c.l.b16 %v172
    %v206 = vunpack.c.l.b16 %v173
    %v207 = vpack.c.b16 %v192, %v191
    %v208 = vpack.c.b16 %v194, %v193
    %v209 = vpack.c.b16 %v196, %v195
    %v210 = vpack.c.b16 %v198, %v197
    %v211 = vpack.c.b16 %v200, %v199
    %v212 = vpack.c.b16 %v202, %v201
    %v213 = vpack.c.b16 %v204, %v203
    %v214 = vpack.c.b16 %v206, %v205
    %223 = vmatprep.subr.bf16.mxu0 0
    %224 = vmatpush1.bf16.msra.mxu0 %v207
    %225 = vmatprep.subr.bf16.mxu0 0
    %226 = vmatpush1.bf16.msra.mxu0 %v208
    %227 = vmatprep.subr.bf16.mxu0 0
    %228 = vmatpush1.bf16.msra.mxu0 %v209
    %229 = vmatprep.subr.bf16.mxu0 0
    %230 = vmatpush1.bf16.msra.mxu0 %v210
    %231 = vmatprep.subr.bf16.mxu0 0
    %232 = vmatpush1.bf16.msra.mxu0 %v211
    %233 = vmatprep.subr.bf16.mxu0 0
    %234 = vmatpush1.bf16.msra.mxu0 %v212
    %235 = vmatprep.subr.bf16.mxu0 0
    %236 = vmatpush1.bf16.msra.mxu0 %v213
    %237 = vmatprep.subr.bf16.mxu0 0
    %238 = vmatpush1.bf16.msra.mxu0 %v214
    %239 = vmatprep.subr.bf16.mxu0 0
    %240 = vmatpush1.bf16.msra.mxu0 0
    %241 = vmatprep.subr.bf16.mxu0 0
    %242 = vmatpush1.bf16.msra.mxu0 0
    %243 = vmatprep.subr.bf16.mxu0 0
    %244 = vmatpush1.bf16.msra.mxu0 0
    %245 = vmatprep.subr.bf16.mxu0 0
    %246 = vmatpush1.bf16.msra.mxu0 0
    %247 = vmatprep.subr.bf16.mxu0 0
    %248 = vmatpush1.bf16.msra.mxu0 0
    %249 = vmatprep.subr.bf16.mxu0 0
    %250 = vmatpush1.bf16.msra.mxu0 0
    %251 = vmatprep.subr.bf16.mxu0 0
    %252 = vmatpush1.bf16.msra.mxu0 0
    %253 = vmatprep.subr.bf16.mxu0 0
    %254 = vmatpush1.bf16.msra.mxu0 0
    %255 = vmatprep.mubr.bf16.mxu0 0
    %256 = vmatmul.mubr.bf16.gmra.mrb[0].mxu0 %v174
    %v257 = vpop.f32.mrb[0].mxu0
    %v258 = vadd.f32 0.0, %v257
    %v259 = vpop.f32.mrb[0].mxu0
    %v260 = vpop.f32.mrb[0].mxu0
    %v261 = vpop.f32.mrb[0].mxu0
    %262 = vdwg.mxu0
    %v279 = vunpack.c.l.b16 %v141
    %v280 = vunpack.c.l.b16 %v142
    %v281 = vunpack.c.l.b16 %v143
    %v282 = vunpack.c.l.b16 %v144
    %v283 = vunpack.c.l.b16 %v145
    %v284 = vunpack.c.l.b16 %v146
    %v285 = vunpack.c.l.b16 %v147
    %v286 = vunpack.c.l.b16 %v148
    %v287 = vunpack.c.l.b16 %v149
    %v288 = vunpack.c.l.b16 %v150
    %v289 = vunpack.c.l.b16 %v151
    %v290 = vunpack.c.l.b16 %v152
    %v291 = vunpack.c.l.b16 %v153
    %v292 = vunpack.c.l.b16 %v154
    %v293 = vunpack.c.l.b16 %v155
    %v294 = vunpack.c.l.b16 %v156
    %v295 = vpack.c.b16 %v280, %v279
    %v296 = vpack.c.b16 %v282, %v281
    %v297 = vpack.c.b16 %v284, %v283
    %v298 = vpack.c.b16 %v286, %v285
    %v299 = vpack.c.b16 %v288, %v287
    %v300 = vpack.c.b16 %v290, %v289
    %v301 = vpack.c.b16 %v292, %v291
    %v302 = vpack.c.b16 %v294, %v293
    %311 = vmatprep.subr.bf16.mxu0 0
    %312 = vmatpush1.bf16.msra.mxu0 %v295
    %313 = vmatprep.subr.bf16.mxu0 0
    %314 = vmatpush1.bf16.msra.mxu0 %v296
    %315 = vmatprep.subr.bf16.mxu0 0
    %316 = vmatpush1.bf16.msra.mxu0 %v297
    %317 = vmatprep.subr.bf16.mxu0 0
    %318 = vmatpush1.bf16.msra.mxu0 %v298
    %319 = vmatprep.subr.bf16.mxu0 0
    %320 = vmatpush1.bf16.msra.mxu0 %v299
    %321 = vmatprep.subr.bf16.mxu0 0
    %322 = vmatpush1.bf16.msra.mxu0 %v300
    %323 = vmatprep.subr.bf16.mxu0 0
    %324 = vmatpush1.bf16.msra.mxu0 %v301
    %325 = vmatprep.subr.bf16.mxu0 0
    %326 = vmatpush1.bf16.msra.mxu0 %v302
    %327 = vmatprep.subr.bf16.mxu0 0
    %328 = vmatpush1.bf16.msra.mxu0 0
    %329 = vmatprep.subr.bf16.mxu0 0
    %330 = vmatpush1.bf16.msra.mxu0 0
    %331 = vmatprep.subr.bf16.mxu0 0
    %332 = vmatpush1.bf16.msra.mxu0 0
    %333 = vmatprep.subr.bf16.mxu0 0
    %334 = vmatpush1.bf16.msra.mxu0 0
    %335 = vmatprep.subr.bf16.mxu0 0
    %336 = vmatpush1.bf16.msra.mxu0 0
    %337 = vmatprep.subr.bf16.mxu0 0
    %338 = vmatpush1.bf16.msra.mxu0 0
    %339 = vmatprep.subr.bf16.mxu0 0
    %340 = vmatpush1.bf16.msra.mxu0 0
    %341 = vmatprep.subr.bf16.mxu0 0
    %342 = vmatpush1.bf16.msra.mxu0 0
    %343 = vmatprep.mubr.bf16.mxu0 0
    %344 = vmatmul.mubr.bf16.gmra.mrb[0].mxu0 %v157
    %v345 = vpop.f32.mrb[0].mxu0
    %v346 = vadd.f32 %v258, %v345
    %v347 = vpop.f32.mrb[0].mxu0
    %v348 = vpop.f32.mrb[0].mxu0
    %v349 = vpop.f32.mrb[0].mxu0
    %350 = vdwg.mxu0
    %v351 = vlaneseq
    %v352 = vshrl.u32 %v351, 7
    %v353 = vsub.s32 0, %v352
    %v354 = vrot.slane %v138, %v353
    %v355 = vadd.f32 %v346, %v354
    %356 = vadd.xlane.f32.xlu0 %v355
    %v357 = vpop.xlane.xlu0 %356
    %v358 = vrcp.pop 128.0
    %v359 = vmul.f32 %v357, %v358
    %v360 = vsub.f32 %v355, %v359
    %v361 = vmul.f32 %v360, %v360
    %362 = vadd.xlane.f32.xlu0 %v361
    %v363 = vpop.xlane.xlu0 %362
    %v364 = vmul.f32 %v363, %v358
    %v365 = vadd.f32 %v364, 1e-05
    %v366 = vrsqrt.pop %v365
    %v367 = vmul.f32 %v360, %v366
    %v368 = vlaneseq
    %v369 = vshrl.u32 %v368, 7
    %v370 = vsub.s32 1, %v369
    %v371 = vrot.slane %v138, %v370
    %v372 = vmul.f32 %v367, %v371
    %v373 = vlaneseq
    %v374 = vshrl.u32 %v373, 7
    %v375 = vsub.s32 2, %v374
    %v376 = vrot.slane %v138, %v375
    %v377 = vadd.f32 %v372, %v376
    %v378 = vmax.f32 %v377, 0.0
    %v379 = vld [vmem:[#allocation7] sm:$0xf]
    %v380 = vld [vmem:[#allocation7 + $0x4] sm:$0xf]
    %v381 = vld [vmem:[#allocation7 + $0x8] sm:$0xf]
    %v382 = vld [vmem:[#allocation7 + $0xc] sm:$0xf]
    %v383 = vld [vmem:[#allocation7 + $0x10] sm:$0xf]
    %v384 = vld [vmem:[#allocation7 + $0x14] sm:$0xf]
    %v385 = vld [vmem:[#allocation7 + $0x18] sm:$0xf]
    %v386 = vld [vmem:[#allocation7 + $0x1c] sm:$0xf]
    %v387 = vld [vmem:[#allocation7 + $0x20] sm:$0xf]
    %v388 = vld [vmem:[#allocation7 + $0x24] sm:$0xf]
    %v389 = vld [vmem:[#allocation7 + $0x28] sm:$0xf]
    %v390 = vld [vmem:[#allocation7 + $0x2c] sm:$0xf]
    %v391 = vld [vmem:[#allocation7 + $0x30] sm:$0xf]
    %v392 = vld [vmem:[#allocation7 + $0x34] sm:$0xf]
    %v393 = vld [vmem:[#allocation7 + $0x38] sm:$0xf]
    %v394 = vld [vmem:[#allocation7 + $0x3c] sm:$0xf]
    %v395 = vpack.c.bf16 %v135, %v135
    %v396 = vld [vmem:[#allocation8] sm:$0xf]
    %v397 = vld [vmem:[#allocation8 + $0x4] sm:$0xf]
    %v398 = vld [vmem:[#allocation8 + $0x8] sm:$0xf]
    %v399 = vld [vmem:[#allocation8 + $0xc] sm:$0xf]
    %v400 = vld [vmem:[#allocation8 + $0x10] sm:$0xf]
    %v401 = vld [vmem:[#allocation8 + $0x14] sm:$0xf]
    %v402 = vld [vmem:[#allocation8 + $0x18] sm:$0xf]
    %v403 = vld [vmem:[#allocation8 + $0x1c] sm:$0xf]
    %v404 = vld [vmem:[#allocation8 + $0x20] sm:$0xf]
    %v405 = vld [vmem:[#allocation8 + $0x24] sm:$0xf]
    %v406 = vld [vmem:[#allocation8 + $0x28] sm:$0xf]
    %v407 = vld [vmem:[#allocation8 + $0x2c] sm:$0xf]
    %v408 = vld [vmem:[#allocation8 + $0x30] sm:$0xf]
    %v409 = vld [vmem:[#allocation8 + $0x34] sm:$0xf]
    %v410 = vld [vmem:[#allocation8 + $0x38] sm:$0xf]
    %v411 = vld [vmem:[#allocation8 + $0x3c] sm:$0xf]
    %v412 = vpack.c.bf16 %v137, %v137
    %v429 = vunpack.c.l.b16 %v396
    %v430 = vunpack.c.l.b16 %v397
    %v431 = vunpack.c.l.b16 %v398
    %v432 = vunpack.c.l.b16 %v399
    %v433 = vunpack.c.l.b16 %v400
    %v434 = vunpack.c.l.b16 %v401
    %v435 = vunpack.c.l.b16 %v402
    %v436 = vunpack.c.l.b16 %v403
    %v437 = vunpack.c.l.b16 %v404
    %v438 = vunpack.c.l.b16 %v405
    %v439 = vunpack.c.l.b16 %v406
    %v440 = vunpack.c.l.b16 %v407
    %v441 = vunpack.c.l.b16 %v408
    %v442 = vunpack.c.l.b16 %v409
    %v443 = vunpack.c.l.b16 %v410
    %v444 = vunpack.c.l.b16 %v411
    %v445 = vpack.c.b16 %v430, %v429
    %v446 = vpack.c.b16 %v432, %v431
    %v447 = vpack.c.b16 %v434, %v433
    %v448 = vpack.c.b16 %v436, %v435
    %v449 = vpack.c.b16 %v438, %v437
    %v450 = vpack.c.b16 %v440, %v439
    %v451 = vpack.c.b16 %v442, %v441
    %v452 = vpack.c.b16 %v444, %v443
    %461 = vmatprep.subr.bf16.mxu0 0
    %462 = vmatpush1.bf16.msra.mxu0 %v445
    %463 = vmatprep.subr.bf16.mxu0 0
    %464 = vmatpush1.bf16.msra.mxu0 %v446
    %465 = vmatprep.subr.bf16.mxu0 0
    %466 = vmatpush1.bf16.msra.mxu0 %v447
    %467 = vmatprep.subr.bf16.mxu0 0
    %468 = vmatpush1.bf16.msra.mxu0 %v448
    %469 = vmatprep.subr.bf16.mxu0 0
    %470 = vmatpush1.bf16.msra.mxu0 %v449
    %471 = vmatprep.subr.bf16.mxu0 0
    %472 = vmatpush1.bf16.msra.mxu0 %v450
    %473 = vmatprep.subr.bf16.mxu0 0
    %474 = vmatpush1.bf16.msra.mxu0 %v451
    %475 = vmatprep.subr.bf16.mxu0 0
    %476 = vmatpush1.bf16.msra.mxu0 %v452
    %477 = vmatprep.subr.bf16.mxu0 0
    %478 = vmatpush1.bf16.msra.mxu0 0
    %479 = vmatprep.subr.bf16.mxu0 0
    %480 = vmatpush1.bf16.msra.mxu0 0
    %481 = vmatprep.subr.bf16.mxu0 0
    %482 = vmatpush1.bf16.msra.mxu0 0
    %483 = vmatprep.subr.bf16.mxu0 0
    %484 = vmatpush1.bf16.msra.mxu0 0
    %485 = vmatprep.subr.bf16.mxu0 0
    %486 = vmatpush1.bf16.msra.mxu0 0
    %487 = vmatprep.subr.bf16.mxu0 0
    %488 = vmatpush1.bf16.msra.mxu0 0
    %489 = vmatprep.subr.bf16.mxu0 0
    %490 = vmatpush1.bf16.msra.mxu0 0
    %491 = vmatprep.subr.bf16.mxu0 0
    %492 = vmatpush1.bf16.msra.mxu0 0
    %493 = vmatprep.mubr.bf16.mxu0 0
    %494 = vmatmul.mubr.bf16.gmra.mrb[0].mxu0 %v412
    %v495 = vpop.f32.mrb[0].mxu0
    %v496 = vadd.f32 0.0, %v495
    %v497 = vpop.f32.mrb[0].mxu0
    %v498 = vpop.f32.mrb[0].mxu0
    %v499 = vpop.f32.mrb[0].mxu0
    %500 = vdwg.mxu0
    %v517 = vunpack.c.l.b16 %v379
    %v518 = vunpack.c.l.b16 %v380
    %v519 = vunpack.c.l.b16 %v381
    %v520 = vunpack.c.l.b16 %v382
    %v521 = vunpack.c.l.b16 %v383
    %v522 = vunpack.c.l.b16 %v384
    %v523 = vunpack.c.l.b16 %v385
    %v524 = vunpack.c.l.b16 %v386
    %v525 = vunpack.c.l.b16 %v387
    %v526 = vunpack.c.l.b16 %v388
    %v527 = vunpack.c.l.b16 %v389
    %v528 = vunpack.c.l.b16 %v390
    %v529 = vunpack.c.l.b16 %v391
    %v530 = vunpack.c.l.b16 %v392
    %v531 = vunpack.c.l.b16 %v393
    %v532 = vunpack.c.l.b16 %v394
    %v533 = vpack.c.b16 %v518, %v517
    %v534 = vpack.c.b16 %v520, %v519
    %v535 = vpack.c.b16 %v522, %v521
    %v536 = vpack.c.b16 %v524, %v523
    %v537 = vpack.c.b16 %v526, %v525
    %v538 = vpack.c.b16 %v528, %v527
    %v539 = vpack.c.b16 %v530, %v529
    %v540 = vpack.c.b16 %v532, %v531
    %549 = vmatprep.subr.bf16.mxu0 0
    %550 = vmatpush1.bf16.msra.mxu0 %v533
    %551 = vmatprep.subr.bf16.mxu0 0
    %552 = vmatpush1.bf16.msra.mxu0 %v534
    %553 = vmatprep.subr.bf16.mxu0 0
    %554 = vmatpush1.bf16.msra.mxu0 %v535
    %555 = vmatprep.subr.bf16.mxu0 0
    %556 = vmatpush1.bf16.msra.mxu0 %v536
    %557 = vmatprep.subr.bf16.mxu0 0
    %558 = vmatpush1.bf16.msra.mxu0 %v537
    %559 = vmatprep.subr.bf16.mxu0 0
    %560 = vmatpush1.bf16.msra.mxu0 %v538
    %561 = vmatprep.subr.bf16.mxu0 0
    %562 = vmatpush1.bf16.msra.mxu0 %v539
    %563 = vmatprep.subr.bf16.mxu0 0
    %564 = vmatpush1.bf16.msra.mxu0 %v540
    %565 = vmatprep.subr.bf16.mxu0 0
    %566 = vmatpush1.bf16.msra.mxu0 0
    %567 = vmatprep.subr.bf16.mxu0 0
    %568 = vmatpush1.bf16.msra.mxu0 0
    %569 = vmatprep.subr.bf16.mxu0 0
    %570 = vmatpush1.bf16.msra.mxu0 0
    %571 = vmatprep.subr.bf16.mxu0 0
    %572 = vmatpush1.bf16.msra.mxu0 0
    %573 = vmatprep.subr.bf16.mxu0 0
    %574 = vmatpush1.bf16.msra.mxu0 0
    %575 = vmatprep.subr.bf16.mxu0 0
    %576 = vmatpush1.bf16.msra.mxu0 0
    %577 = vmatprep.subr.bf16.mxu0 0
    %578 = vmatpush1.bf16.msra.mxu0 0
    %579 = vmatprep.subr.bf16.mxu0 0
    %580 = vmatpush1.bf16.msra.mxu0 0
    %581 = vmatprep.mubr.bf16.mxu0 0
    %582 = vmatmul.mubr.bf16.gmra.mrb[0].mxu0 %v395
    %v583 = vpop.f32.mrb[0].mxu0
    %v584 = vadd.f32 %v496, %v583
    %v585 = vpop.f32.mrb[0].mxu0
    %v586 = vpop.f32.mrb[0].mxu0
    %v587 = vpop.f32.mrb[0].mxu0
    %588 = vdwg.mxu0
    %v589 = vlaneseq
    %v590 = vshrl.u32 %v589, 7
    %v591 = vsub.s32 0, %v590
    %v592 = vrot.slane %v139, %v591
    %v593 = vadd.f32 %v584, %v592
    %594 = vadd.xlane.f32.xlu0 %v593
    %v595 = vpop.xlane.xlu0 %594
    %v596 = vmul.f32 %v595, %v358
    %v597 = vsub.f32 %v593, %v596
    %v598 = vmul.f32 %v597, %v597
    %599 = vadd.xlane.f32.xlu0 %v598
    %v600 = vpop.xlane.xlu0 %599
    %v601 = vmul.f32 %v600, %v358
    %v602 = vadd.f32 %v601, 1e-05
    %v603 = vrsqrt.pop %v602
    %v604 = vmul.f32 %v597, %v603
    %v605 = vlaneseq
    %v606 = vshrl.u32 %v605, 7
    %v607 = vsub.s32 1, %v606
    %v608 = vrot.slane %v139, %v607
    %v609 = vmul.f32 %v604, %v608
    %v610 = vlaneseq
    %v611 = vshrl.u32 %v610, 7
    %v612 = vsub.s32 2, %v611
    %v613 = vrot.slane %v139, %v612
    %v614 = vadd.f32 %v609, %v613
    %v615 = vmax.f32 %v614, 0.0
    %617 = vset.pattern.permute.xlu0 0
    %618 = vperm.xlu0 %617, %v133
    %v619 = vpop.permute.xlu0 %618
    %v622 = vlaneseq
    %v623 = vshrl.u32 %v622, 7
    %v624 = vsub.s32 0, %v623
    %v625 = vrot.slane %v140, %v624
    %v626 = vlaneseq
    %v627 = vshrl.u32 %v626, 7
    %v628 = vsub.s32 2, %v627
    %v629 = vrot.slane %v140, %v628
    %v630 = vlaneseq
    %v631 = vshrl.u32 %v630, 7
    %v632 = vsub.s32 4, %v631
    %v633 = vrot.slane %v140, %v632
    %v634 = vlaneseq
    %v635 = vshrl.u32 %v634, 7
    %v636 = vsub.s32 6, %v635
    %v637 = vrot.slane %v140, %v636
    %v642 = vlaneseq
    %v643 = vshrl.u32 %v642, 7
    %v644 = vsub.s32 0, %v643
    %v645 = vrot.slane %v625, %v644
    %v646 = vlaneseq
    %v647 = vshrl.u32 %v646, 7
    %v648 = vsub.s32 0, %v647
    %v649 = vrot.slane %v629, %v648
    %v650 = vlaneseq
    %v651 = vshrl.u32 %v650, 7
    %v652 = vsub.s32 0, %v651
    %v653 = vrot.slane %v633, %v652
    %v654 = vlaneseq
    %v655 = vshrl.u32 %v654, 7
    %v656 = vsub.s32 0, %v655
    %v657 = vrot.slane %v637, %v656
    %v658 = vmul.f32 %v619, %v645
    %v659 = vmul.f32 %v619, %v649
    %v660 = vmul.f32 %v619, %v653
    %v661 = vmul.f32 %v619, %v657
    %v662 = vlaneseq
    %v663 = vshrl.u32 %v662, 7
    %v664 = vsub.s32 1, %v663
    %v665 = vrot.slane %v140, %v664
    %v666 = vlaneseq
    %v667 = vshrl.u32 %v666, 7
    %v668 = vsub.s32 3, %v667
    %v669 = vrot.slane %v140, %v668
    %v670 = vlaneseq
    %v671 = vshrl.u32 %v670, 7
    %v672 = vsub.s32 5, %v671
    %v673 = vrot.slane %v140, %v672
    %v674 = vlaneseq
    %v675 = vshrl.u32 %v674, 7
    %v676 = vsub.s32 7, %v675
    %v677 = vrot.slane %v140, %v676
    %v682 = vlaneseq
    %v683 = vshrl.u32 %v682, 7
    %v684 = vsub.s32 1, %v683
    %v685 = vrot.slane %v665, %v684
    %v686 = vlaneseq
    %v687 = vshrl.u32 %v686, 7
    %v688 = vsub.s32 1, %v687
    %v689 = vrot.slane %v669, %v688
    %v690 = vlaneseq
    %v691 = vshrl.u32 %v690, 7
    %v692 = vsub.s32 1, %v691
    %v693 = vrot.slane %v673, %v692
    %v694 = vlaneseq
    %v695 = vshrl.u32 %v694, 7
    %v696 = vsub.s32 1, %v695
    %v697 = vrot.slane %v677, %v696
    %v698 = vadd.f32 %v658, %v685
    %v699 = vadd.f32 %v659, %v689
    %v700 = vadd.f32 %v660, %v693
    %v701 = vadd.f32 %v661, %v697
    %v702 = vld [vmem:[#allocation10] sm:$0xff]
    %v703 = vld [vmem:[#allocation10 + $0x8] sm:$0xff]
    %v704 = vld [vmem:[#allocation10 + $0x10] sm:$0xff]
    %v705 = vld [vmem:[#allocation10 + $0x18] sm:$0xff]
    %v706 = vld [vmem:[#allocation10 + $0x20] sm:$0xff]
    %v707 = vld [vmem:[#allocation10 + $0x28] sm:$0xff]
    %v708 = vld [vmem:[#allocation10 + $0x30] sm:$0xff]
    %v709 = vld [vmem:[#allocation10 + $0x38] sm:$0xff]
    %v710 = vld [vmem:[#allocation10 + $0x40] sm:$0xff]
    %v711 = vld [vmem:[#allocation10 + $0x48] sm:$0xff]
    %v712 = vld [vmem:[#allocation10 + $0x50] sm:$0xff]
    %v713 = vld [vmem:[#allocation10 + $0x58] sm:$0xff]
    %v714 = vld [vmem:[#allocation10 + $0x60] sm:$0xff]
    %v715 = vld [vmem:[#allocation10 + $0x68] sm:$0xff]
    %v716 = vld [vmem:[#allocation10 + $0x70] sm:$0xff]
    %v717 = vld [vmem:[#allocation10 + $0x78] sm:$0xff]
    %v718 = vld [vmem:[#allocation10 + $0x80] sm:$0xff]
    %v719 = vld [vmem:[#allocation10 + $0x88] sm:$0xff]
    %v720 = vld [vmem:[#allocation10 + $0x90] sm:$0xff]
    %v721 = vld [vmem:[#allocation10 + $0x98] sm:$0xff]
    %v722 = vld [vmem:[#allocation10 + $0xa0] sm:$0xff]
    %v723 = vld [vmem:[#allocation10 + $0xa8] sm:$0xff]
    %v724 = vld [vmem:[#allocation10 + $0xb0] sm:$0xff]
    %v725 = vld [vmem:[#allocation10 + $0xb8] sm:$0xff]
    %v726 = vld [vmem:[#allocation10 + $0xc0] sm:$0xff]
    %v727 = vld [vmem:[#allocation10 + $0xc8] sm:$0xff]
    %v728 = vld [vmem:[#allocation10 + $0xd0] sm:$0xff]
    %v729 = vld [vmem:[#allocation10 + $0xd8] sm:$0xff]
    %v730 = vld [vmem:[#allocation10 + $0xe0] sm:$0xff]
    %v731 = vld [vmem:[#allocation10 + $0xe8] sm:$0xff]
    %v732 = vld [vmem:[#allocation10 + $0xf0] sm:$0xff]
    %v733 = vld [vmem:[#allocation10 + $0xf8] sm:$0xff]
    %v734 = vpack.c.bf16 %v378, %v378
    %v767 = vunpack.c.l.b16 %v702
    %v768 = vunpack.c.h.b16 %v702
    %v769 = vunpack.c.l.b16 %v703
    %v770 = vunpack.c.h.b16 %v703
    %v771 = vunpack.c.l.b16 %v704
    %v772 = vunpack.c.h.b16 %v704
    %v773 = vunpack.c.l.b16 %v705
    %v774 = vunpack.c.h.b16 %v705
    %v775 = vunpack.c.l.b16 %v706
    %v776 = vunpack.c.h.b16 %v706
    %v777 = vunpack.c.l.b16 %v707
    %v778 = vunpack.c.h.b16 %v707
    %v779 = vunpack.c.l.b16 %v708
    %v780 = vunpack.c.h.b16 %v708
    %v781 = vunpack.c.l.b16 %v709
    %v782 = vunpack.c.h.b16 %v709
    %v783 = vunpack.c.l.b16 %v710
    %v784 = vunpack.c.h.b16 %v710
    %v785 = vunpack.c.l.b16 %v711
    %v786 = vunpack.c.h.b16 %v711
    %v787 = vunpack.c.l.b16 %v712
    %v788 = vunpack.c.h.b16 %v712
    %v789 = vunpack.c.l.b16 %v713
    %v790 = vunpack.c.h.b16 %v713
    %v791 = vunpack.c.l.b16 %v714
    %v792 = vunpack.c.h.b16 %v714
    %v793 = vunpack.c.l.b16 %v715
    %v794 = vunpack.c.h.b16 %v715
    %v795 = vunpack.c.l.b16 %v716
    %v796 = vunpack.c.h.b16 %v716
    %v797 = vunpack.c.l.b16 %v717
    %v798 = vunpack.c.h.b16 %v717
    %v799 = vunpack.c.l.b16 %v718
    %v800 = vunpack.c.h.b16 %v718
    %v801 = vunpack.c.l.b16 %v719
    %v802 = vunpack.c.h.b16 %v719
    %v803 = vunpack.c.l.b16 %v720
    %v804 = vunpack.c.h.b16 %v720
    %v805 = vunpack.c.l.b16 %v721
    %v806 = vunpack.c.h.b16 %v721
    %v807 = vunpack.c.l.b16 %v722
    %v808 = vunpack.c.h.b16 %v722
    %v809 = vunpack.c.l.b16 %v723
    %v810 = vunpack.c.h.b16 %v723
    %v811 = vunpack.c.l.b16 %v724
    %v812 = vunpack.c.h.b16 %v724
    %v813 = vunpack.c.l.b16 %v725
    %v814 = vunpack.c.h.b16 %v725
    %v815 = vunpack.c.l.b16 %v726
    %v816 = vunpack.c.h.b16 %v726
    %v817 = vunpack.c.l.b16 %v727
    %v818 = vunpack.c.h.b16 %v727
    %v819 = vunpack.c.l.b16 %v728
    %v820 = vunpack.c.h.b16 %v728
    %v821 = vunpack.c.l.b16 %v729
    %v822 = vunpack.c.h.b16 %v729
    %v823 = vunpack.c.l.b16 %v730
    %v824 = vunpack.c.h.b16 %v730
    %v825 = vunpack.c.l.b16 %v731
    %v826 = vunpack.c.h.b16 %v731
    %v827 = vunpack.c.l.b16 %v732
    %v828 = vunpack.c.h.b16 %v732
    %v829 = vunpack.c.l.b16 %v733
    %v830 = vunpack.c.h.b16 %v733
    %v831 = vpack.c.b16 %v771, %v767
    %v832 = vpack.c.b16 %v772, %v768
    %v833 = vpack.c.b16 %v773, %v769
    %v834 = vpack.c.b16 %v774, %v770
    %v835 = vpack.c.b16 %v779, %v775
    %v836 = vpack.c.b16 %v780, %v776
    %v837 = vpack.c.b16 %v781, %v777
    %v838 = vpack.c.b16 %v782, %v778
    %v839 = vpack.c.b16 %v787, %v783
    %v840 = vpack.c.b16 %v788, %v784
    %v841 = vpack.c.b16 %v789, %v785
    %v842 = vpack.c.b16 %v790, %v786
    %v843 = vpack.c.b16 %v795, %v791
    %v844 = vpack.c.b16 %v796, %v792
    %v845 = vpack.c.b16 %v797, %v793
    %v846 = vpack.c.b16 %v798, %v794
    %v847 = vpack.c.b16 %v803, %v799
    %v848 = vpack.c.b16 %v804, %v800
    %v849 = vpack.c.b16 %v805, %v801
    %v850 = vpack.c.b16 %v806, %v802
    %v851 = vpack.c.b16 %v811, %v807
    %v852 = vpack.c.b16 %v812, %v808
    %v853 = vpack.c.b16 %v813, %v809
    %v854 = vpack.c.b16 %v814, %v810
    %v855 = vpack.c.b16 %v819, %v815
    %v856 = vpack.c.b16 %v820, %v816
    %v857 = vpack.c.b16 %v821, %v817
    %v858 = vpack.c.b16 %v822, %v818
    %v859 = vpack.c.b16 %v827, %v823
    %v860 = vpack.c.b16 %v828, %v824
    %v861 = vpack.c.b16 %v829, %v825
    %v862 = vpack.c.b16 %v830, %v826
    %895 = vmatprep.subr.bf16.mxu0 %v832
    %896 = vmatpush1.bf16.msra.mxu0 %v831
    %897 = vmatprep.subr.bf16.mxu0 %v836
    %898 = vmatpush1.bf16.msra.mxu0 %v835
    %899 = vmatprep.subr.bf16.mxu0 %v840
    %900 = vmatpush1.bf16.msra.mxu0 %v839
    %901 = vmatprep.subr.bf16.mxu0 %v844
    %902 = vmatpush1.bf16.msra.mxu0 %v843
    %903 = vmatprep.subr.bf16.mxu0 %v848
    %904 = vmatpush1.bf16.msra.mxu0 %v847
    %905 = vmatprep.subr.bf16.mxu0 %v852
    %906 = vmatpush1.bf16.msra.mxu0 %v851
    %907 = vmatprep.subr.bf16.mxu0 %v856
    %908 = vmatpush1.bf16.msra.mxu0 %v855
    %909 = vmatprep.subr.bf16.mxu0 %v860
    %910 = vmatpush1.bf16.msra.mxu0 %v859
    %911 = vmatprep.subr.bf16.mxu0 0
    %912 = vmatpush1.bf16.msra.mxu0 0
    %913 = vmatprep.subr.bf16.mxu0 0
    %914 = vmatpush1.bf16.msra.mxu0 0
    %915 = vmatprep.subr.bf16.mxu0 0
    %916 = vmatpush1.bf16.msra.mxu0 0
    %917 = vmatprep.subr.bf16.mxu0 0
    %918 = vmatpush1.bf16.msra.mxu0 0
    %919 = vmatprep.subr.bf16.mxu0 0
    %920 = vmatpush1.bf16.msra.mxu0 0
    %921 = vmatprep.subr.bf16.mxu0 0
    %922 = vmatpush1.bf16.msra.mxu0 0
    %923 = vmatprep.subr.bf16.mxu0 0
    %924 = vmatpush1.bf16.msra.mxu0 0
    %925 = vmatprep.subr.bf16.mxu0 0
    %926 = vmatpush1.bf16.msra.mxu0 0
    %927 = vmatprep.mubr.bf16.mxu0 0
    %928 = vmatmul.mubr.bf16.gmra.mrb[0].mxu0 %v734
    %v929 = vpop.f32.mrb[0].mxu0
    %v930 = vadd.f32 0.0, %v929
    %v931 = vpop.f32.mrb[0].mxu0
    %v932 = vadd.f32 0.0, %v931
    %v933 = vpop.f32.mrb[0].mxu0
    %v934 = vpop.f32.mrb[0].mxu0
    %935 = vdwg.mxu0
    %936 = vmatprep.subr.bf16.mxu0 %v834
    %937 = vmatpush1.bf16.msra.mxu0 %v833
    %938 = vmatprep.subr.bf16.mxu0 %v838
    %939 = vmatpush1.bf16.msra.mxu0 %v837
    %940 = vmatprep.subr.bf16.mxu0 %v842
    %941 = vmatpush1.bf16.msra.mxu0 %v841
    %942 = vmatprep.subr.bf16.mxu0 %v846
    %943 = vmatpush1.bf16.msra.mxu0 %v845
    %944 = vmatprep.subr.bf16.mxu0 %v850
    %945 = vmatpush1.bf16.msra.mxu0 %v849
    %946 = vmatprep.subr.bf16.mxu0 %v854
    %947 = vmatpush1.bf16.msra.mxu0 %v853
    %948 = vmatprep.subr.bf16.mxu0 %v858
    %949 = vmatpush1.bf16.msra.mxu0 %v857
    %950 = vmatprep.subr.bf16.mxu0 %v862
    %951 = vmatpush1.bf16.msra.mxu0 %v861
    %952 = vmatprep.subr.bf16.mxu0 0
    %953 = vmatpush1.bf16.msra.mxu0 0
    %954 = vmatprep.subr.bf16.mxu0 0
    %955 = vmatpush1.bf16.msra.mxu0 0
    %956 = vmatprep.subr.bf16.mxu0 0
    %957 = vmatpush1.bf16.msra.mxu0 0
    %958 = vmatprep.subr.bf16.mxu0 0
    %959 = vmatpush1.bf16.msra.mxu0 0
    %960 = vmatprep.subr.bf16.mxu0 0
    %961 = vmatpush1.bf16.msra.mxu0 0
    %962 = vmatprep.subr.bf16.mxu0 0
    %963 = vmatpush1.bf16.msra.mxu0 0
    %964 = vmatprep.subr.bf16.mxu0 0
    %965 = vmatpush1.bf16.msra.mxu0 0
    %966 = vmatprep.subr.bf16.mxu0 0
    %967 = vmatpush1.bf16.msra.mxu0 0
    %968 = vmatprep.mubr.bf16.mxu0 0
    %969 = vmatmul.mubr.bf16.gmra.mrb[0].mxu0 %v734
    %v970 = vpop.f32.mrb[0].mxu0
    %v971 = vadd.f32 0.0, %v970
    %v972 = vpop.f32.mrb[0].mxu0
    %v973 = vadd.f32 0.0, %v972
    %v974 = vpop.f32.mrb[0].mxu0
    %v975 = vpop.f32.mrb[0].mxu0
    %976 = vdwg.mxu0
    %v977 = vadd.f32 %v698, %v930
    %v978 = vadd.f32 %v699, %v932
    %v979 = vadd.f32 %v700, %v971
    %v980 = vadd.f32 %v701, %v973
    %v981 = vxor.u32 %v977, 2147483648
    %v982 = vmul.f32 %v981, 1.442695
    %v983 = vpow.pop %v982
    %v984 = vadd.f32 %v983, 1.0
    %v985 = vrcp.pop %v984
    %v986 = vmul.f32 1.0, %v985
    %v987 = vxor.u32 %v978, 2147483648
    %v988 = vmul.f32 %v987, 1.442695
    %v989 = vpow.pop %v988
    %v990 = vadd.f32 %v989, 1.0
    %v991 = vrcp.pop %v990
    %v992 = vmul.f32 1.0, %v991
    %v993 = vtanh.pop %v979
    %v994 = vxor.u32 %v980, 2147483648
    %v995 = vmul.f32 %v994, 1.442695
    %v996 = vpow.pop %v995
    %v997 = vadd.f32 %v996, 1.0
    %v998 = vrcp.pop %v997
    %v999 = vmul.f32 1.0, %v998
    %v1000 = vmul.f32 %v992, %v615
    %v1001 = vmul.f32 %v986, %v993
    %v1002 = vadd.f32 %v1000, %v1001
    %v1003 = vtanh.pop %v1002
    %v1004 = vmul.f32 %v999, %v1003
    %1005 = vst [vmem:[#allocation15] sm:$0xff] %v1004
    %1006 = vst [vmem:[#allocation17] sm:$0xff] %v1002
    %s1007 = scalar_lea.vmem %s3, 8
    %v1008 = vld [vmem:[%s1007] sm:$0xff]
    %s1009 = scalar_lea.vmem %s4, 8
    %v1010 = vld [vmem:[%s1009] sm:$0xff]
    %s1011 = scalar_lea.vmem %s10, 4
    %v1012 = vld [vmem:[%s1011] sm:$0x7]
    %s1013 = scalar_lea.vmem %s11, 4
    %v1014 = vld [vmem:[%s1013] sm:$0x7]
    %s1015 = scalar_lea.vmem %s12, 8
    %v1016 = vld [vmem:[%s1015] sm:$0xff]
    %s1017 = scalar_lea.vmem [#allocation2], 64
    %v1018 = vld [vmem:[%s1017] sm:$0xf]
    %v1019 = vld [vmem:[%s1017 + $0x4] sm:$0xf]
    %v1020 = vld [vmem:[%s1017 + $0x8] sm:$0xf]
    %v1021 = vld [vmem:[%s1017 + $0xc] sm:$0xf]
    %v1022 = vld [vmem:[%s1017 + $0x10] sm:$0xf]
    %v1023 = vld [vmem:[%s1017 + $0x14] sm:$0xf]
    %v1024 = vld [vmem:[%s1017 + $0x18] sm:$0xf]
    %v1025 = vld [vmem:[%s1017 + $0x1c] sm:$0xf]
    %v1026 = vld [vmem:[%s1017 + $0x20] sm:$0xf]
    %v1027 = vld [vmem:[%s1017 + $0x24] sm:$0xf]
    %v1028 = vld [vmem:[%s1017 + $0x28] sm:$0xf]
    %v1029 = vld [vmem:[%s1017 + $0x2c] sm:$0xf]
    %v1030 = vld [vmem:[%s1017 + $0x30] sm:$0xf]
    %v1031 = vld [vmem:[%s1017 + $0x34] sm:$0xf]
    %v1032 = vld [vmem:[%s1017 + $0x38] sm:$0xf]
    %v1033 = vld [vmem:[%s1017 + $0x3c] sm:$0xf]
    %v1034 = vpack.c.bf16 %v1004, %v1004
    %s1035 = scalar_lea.vmem [#allocation5], 64
    %v1036 = vld [vmem:[%s1035] sm:$0xf]
    %v1037 = vld [vmem:[%s1035 + $0x4] sm:$0xf]
    %v1038 = vld [vmem:[%s1035 + $0x8] sm:$0xf]
    %v1039 = vld [vmem:[%s1035 + $0xc] sm:$0xf]
    %v1040 = vld [vmem:[%s1035 + $0x10] sm:$0xf]
    %v1041 = vld [vmem:[%s1035 + $0x14] sm:$0xf]
    %v1042 = vld [vmem:[%s1035 + $0x18] sm:$0xf]
    %v1043 = vld [vmem:[%s1035 + $0x1c] sm:$0xf]
    %v1044 = vld [vmem:[%s1035 + $0x20] sm:$0xf]
    %v1045 = vld [vmem:[%s1035 + $0x24] sm:$0xf]
    %v1046 = vld [vmem:[%s1035 + $0x28] sm:$0xf]
    %v1047 = vld [vmem:[%s1035 + $0x2c] sm:$0xf]
    %v1048 = vld [vmem:[%s1035 + $0x30] sm:$0xf]
    %v1049 = vld [vmem:[%s1035 + $0x34] sm:$0xf]
    %v1050 = vld [vmem:[%s1035 + $0x38] sm:$0xf]
    %v1051 = vld [vmem:[%s1035 + $0x3c] sm:$0xf]
    %v1052 = vpack.c.bf16 %v1008, %v1008
    %v1069 = vunpack.c.l.b16 %v1036
    %v1070 = vunpack.c.l.b16 %v1037
    %v1071 = vunpack.c.l.b16 %v1038
    %v1072 = vunpack.c.l.b16 %v1039
    %v1073 = vunpack.c.l.b16 %v1040
    %v1074 = vunpack.c.l.b16 %v1041
    %v1075 = vunpack.c.l.b16 %v1042
    %v1076 = vunpack.c.l.b16 %v1043
    %v1077 = vunpack.c.l.b16 %v1044
    %v1078 = vunpack.c.l.b16 %v1045
    %v1079 = vunpack.c.l.b16 %v1046
    %v1080 = vunpack.c.l.b16 %v1047
    %v1081 = vunpack.c.l.b16 %v1048
    %v1082 = vunpack.c.l.b16 %v1049
    %v1083 = vunpack.c.l.b16 %v1050
    %v1084 = vunpack.c.l.b16 %v1051
    %v1085 = vpack.c.b16 %v1070, %v1069
    %v1086 = vpack.c.b16 %v1072, %v1071
    %v1087 = vpack.c.b16 %v1074, %v1073
    %v1088 = vpack.c.b16 %v1076, %v1075
    %v1089 = vpack.c.b16 %v1078, %v1077
    %v1090 = vpack.c.b16 %v1080, %v1079
    %v1091 = vpack.c.b16 %v1082, %v1081
    %v1092 = vpack.c.b16 %v1084, %v1083
    %1101 = vmatprep.subr.bf16.mxu0 0
    %1102 = vmatpush1.bf16.msra.mxu0 %v1085
    %1103 = vmatprep.subr.bf16.mxu0 0
    %1104 = vmatpush1.bf16.msra.mxu0 %v1086
    %1105 = vmatprep.subr.bf16.mxu0 0
    %1106 = vmatpush1.bf16.msra.mxu0 %v1087
    %1107 = vmatprep.subr.bf16.mxu0 0
    %1108 = vmatpush1.bf16.msra.mxu0 %v1088
    %1109 = vmatprep.subr.bf16.mxu0 0
    %1110 = vmatpush1.bf16.msra.mxu0 %v1089
    %1111 = vmatprep.subr.bf16.mxu0 0
    %1112 = vmatpush1.bf16.msra.mxu0 %v1090
    %1113 = vmatprep.subr.bf16.mxu0 0
    %1114 = vmatpush1.bf16.msra.mxu0 %v1091
    %1115 = vmatprep.subr.bf16.mxu0 0
    %1116 = vmatpush1.bf16.msra.mxu0 %v1092
    %1117 = vmatprep.subr.bf16.mxu0 0
    %1118 = vmatpush1.bf16.msra.mxu0 0
    %1119 = vmatprep.subr.bf16.mxu0 0
    %1120 = vmatpush1.bf16.msra.mxu0 0
    %1121 = vmatprep.subr.bf16.mxu0 0
    %1122 = vmatpush1.bf16.msra.mxu0 0
    %1123 = vmatprep.subr.bf16.mxu0 0
    %1124 = vmatpush1.bf16.msra.mxu0 0
    %1125 = vmatprep.subr.bf16.mxu0 0
    %1126 = vmatpush1.bf16.msra.mxu0 0
    %1127 = vmatprep.subr.bf16.mxu0 0
    %1128 = vmatpush1.bf16.msra.mxu0 0
    %1129 = vmatprep.subr.bf16.mxu0 0
    %1130 = vmatpush1.bf16.msra.mxu0 0
    %1131 = vmatprep.subr.bf16.mxu0 0
    %1132 = vmatpush1.bf16.msra.mxu0 0
    %1133 = vmatprep.mubr.bf16.mxu0 0
    %1134 = vmatmul.mubr.bf16.gmra.mrb[0].mxu0 %v1052
    %v1135 = vpop.f32.mrb[0].mxu0
    %v1136 = vadd.f32 0.0, %v1135
    %v1137 = vpop.f32.mrb[0].mxu0
    %v1138 = vpop.f32.mrb[0].mxu0
    %v1139 = vpop.f32.mrb[0].mxu0
    %1140 = vdwg.mxu0
    %v1157 = vunpack.c.l.b16 %v1018
    %v1158 = vunpack.c.l.b16 %v1019
    %v1159 = vunpack.c.l.b16 %v1020
    %v1160 = vunpack.c.l.b16 %v1021
    %v1161 = vunpack.c.l.b16 %v1022
    %v1162 = vunpack.c.l.b16 %v1023
    %v1163 = vunpack.c.l.b16 %v1024
    %v1164 = vunpack.c.l.b16 %v1025
    %v1165 = vunpack.c.l.b16 %v1026
    %v1166 = vunpack.c.l.b16 %v1027
    %v1167 = vunpack.c.l.b16 %v1028
    %v1168 = vunpack.c.l.b16 %v1029
    %v1169 = vunpack.c.l.b16 %v1030
    %v1170 = vunpack.c.l.b16 %v1031
    %v1171 = vunpack.c.l.b16 %v1032
    %v1172 = vunpack.c.l.b16 %v1033
    %v1173 = vpack.c.b16 %v1158, %v1157
    %v1174 = vpack.c.b16 %v1160, %v1159
    %v1175 = vpack.c.b16 %v1162, %v1161
    %v1176 = vpack.c.b16 %v1164, %v1163
    %v1177 = vpack.c.b16 %v1166, %v1165
    %v1178 = vpack.c.b16 %v1168, %v1167
    %v1179 = vpack.c.b16 %v1170, %v1169
    %v1180 = vpack.c.b16 %v1172, %v1171
    %1189 = vmatprep.subr.bf16.mxu0 0
    %1190 = vmatpush1.bf16.msra.mxu0 %v1173
    %1191 = vmatprep.subr.bf16.mxu0 0
    %1192 = vmatpush1.bf16.msra.mxu0 %v1174
    %1193 = vmatprep.subr.bf16.mxu0 0
    %1194 = vmatpush1.bf16.msra.mxu0 %v1175
    %1195 = vmatprep.subr.bf16.mxu0 0
    %1196 = vmatpush1.bf16.msra.mxu0 %v1176
    %1197 = vmatprep.subr.bf16.mxu0 0
    %1198 = vmatpush1.bf16.msra.mxu0 %v1177
    %1199 = vmatprep.subr.bf16.mxu0 0
    %1200 = vmatpush1.bf16.msra.mxu0 %v1178
    %1201 = vmatprep.subr.bf16.mxu0 0
    %1202 = vmatpush1.bf16.msra.mxu0 %v1179
    %1203 = vmatprep.subr.bf16.mxu0 0
    %1204 = vmatpush1.bf16.msra.mxu0 %v1180
    %1205 = vmatprep.subr.bf16.mxu0 0
    %1206 = vmatpush1.bf16.msra.mxu0 0
    %1207 = vmatprep.subr.bf16.mxu0 0
    %1208 = vmatpush1.bf16.msra.mxu0 0
    %1209 = vmatprep.subr.bf16.mxu0 0
    %1210 = vmatpush1.bf16.msra.mxu0 0
    %1211 = vmatprep.subr.bf16.mxu0 0
    %1212 = vmatpush1.bf16.msra.mxu0 0
    %1213 = vmatprep.subr.bf16.mxu0 0
    %1214 = vmatpush1.bf16.msra.mxu0 0
    %1215 = vmatprep.subr.bf16.mxu0 0
    %1216 = vmatpush1.bf16.msra.mxu0 0
    %1217 = vmatprep.subr.bf16.mxu0 0
    %1218 = vmatpush1.bf16.msra.mxu0 0
    %1219 = vmatprep.subr.bf16.mxu0 0
    %1220 = vmatpush1.bf16.msra.mxu0 0
    %1221 = vmatprep.mubr.bf16.mxu0 0
    %1222 = vmatmul.mubr.bf16.gmra.mrb[0].mxu0 %v1034
    %v1223 = vpop.f32.mrb[0].mxu0
    %v1224 = vadd.f32 %v1136, %v1223
    %v1225 = vpop.f32.mrb[0].mxu0
    %v1226 = vpop.f32.mrb[0].mxu0
    %v1227 = vpop.f32.mrb[0].mxu0
    %1228 = vdwg.mxu0
    %v1229 = vlaneseq
    %v1230 = vshrl.u32 %v1229, 7
    %v1231 = vsub.s32 0, %v1230
    %v1232 = vrot.slane %v1012, %v1231
    %v1233 = vadd.f32 %v1224, %v1232
    %1234 = vadd.xlane.f32.xlu0 %v1233
    %v1235 = vpop.xlane.xlu0 %1234
    %v1236 = vmul.f32 %v1235, %v358
    %v1237 = vsub.f32 %v1233, %v1236
    %v1238 = vmul.f32 %v1237, %v1237
    %1239 = vadd.xlane.f32.xlu0 %v1238
    %v1240 = vpop.xlane.xlu0 %1239
    %v1241 = vmul.f32 %v1240, %v358
    %v1242 = vadd.f32 %v1241, 1e-05
    %v1243 = vrsqrt.pop %v1242
    %v1244 = vmul.f32 %v1237, %v1243
    %v1245 = vlaneseq
    %v1246 = vshrl.u32 %v1245, 7
    %v1247 = vsub.s32 1, %v1246
    %v1248 = vrot.slane %v1012, %v1247
    %v1249 = vmul.f32 %v1244, %v1248
    %v1250 = vlaneseq
    %v1251 = vshrl.u32 %v1250, 7
    %v1252 = vsub.s32 2, %v1251
    %v1253 = vrot.slane %v1012, %v1252
    %v1254 = vadd.f32 %v1249, %v1253
    %v1255 = vmax.f32 %v1254, 0.0
    %s1256 = scalar_lea.vmem [#allocation7], 64
    %v1257 = vld [vmem:[%s1256] sm:$0xf]
    %v1258 = vld [vmem:[%s1256 + $0x4] sm:$0xf]
    %v1259 = vld [vmem:[%s1256 + $0x8] sm:$0xf]
    %v1260 = vld [vmem:[%s1256 + $0xc] sm:$0xf]
    %v1261 = vld [vmem:[%s1256 + $0x10] sm:$0xf]
    %v1262 = vld [vmem:[%s1256 + $0x14] sm:$0xf]
    %v1263 = vld [vmem:[%s1256 + $0x18] sm:$0xf]
    %v1264 = vld [vmem:[%s1256 + $0x1c] sm:$0xf]
    %v1265 = vld [vmem:[%s1256 + $0x20] sm:$0xf]
    %v1266 = vld [vmem:[%s1256 + $0x24] sm:$0xf]
    %v1267 = vld [vmem:[%s1256 + $0x28] sm:$0xf]
    %v1268 = vld [vmem:[%s1256 + $0x2c] sm:$0xf]
    %v1269 = vld [vmem:[%s1256 + $0x30] sm:$0xf]
    %v1270 = vld [vmem:[%s1256 + $0x34] sm:$0xf]
    %v1271 = vld [vmem:[%s1256 + $0x38] sm:$0xf]
    %v1272 = vld [vmem:[%s1256 + $0x3c] sm:$0xf]
    %v1273 = vpack.c.bf16 %v1002, %v1002
    %s1274 = scalar_lea.vmem [#allocation8], 64
    %v1275 = vld [vmem:[%s1274] sm:$0xf]
    %v1276 = vld [vmem:[%s1274 + $0x4] sm:$0xf]
    %v1277 = vld [vmem:[%s1274 + $0x8] sm:$0xf]
    %v1278 = vld [vmem:[%s1274 + $0xc] sm:$0xf]
    %v1279 = vld [vmem:[%s1274 + $0x10] sm:$0xf]
    %v1280 = vld [vmem:[%s1274 + $0x14] sm:$0xf]
    %v1281 = vld [vmem:[%s1274 + $0x18] sm:$0xf]
    %v1282 = vld [vmem:[%s1274 + $0x1c] sm:$0xf]
    %v1283 = vld [vmem:[%s1274 + $0x20] sm:$0xf]
    %v1284 = vld [vmem:[%s1274 + $0x24] sm:$0xf]
    %v1285 = vld [vmem:[%s1274 + $0x28] sm:$0xf]
    %v1286 = vld [vmem:[%s1274 + $0x2c] sm:$0xf]
    %v1287 = vld [vmem:[%s1274 + $0x30] sm:$0xf]
    %v1288 = vld [vmem:[%s1274 + $0x34] sm:$0xf]
    %v1289 = vld [vmem:[%s1274 + $0x38] sm:$0xf]
    %v1290 = vld [vmem:[%s1274 + $0x3c] sm:$0xf]
    %v1291 = vpack.c.bf16 %v1010, %v1010
    %v1308 = vunpack.c.l.b16 %v1275
    %v1309 = vunpack.c.l.b16 %v1276
    %v1310 = vunpack.c.l.b16 %v1277
    %v1311 = vunpack.c.l.b16 %v1278
    %v1312 = vunpack.c.l.b16 %v1279
    %v1313 = vunpack.c.l.b16 %v1280
    %v1314 = vunpack.c.l.b16 %v1281
    %v1315 = vunpack.c.l.b16 %v1282
    %v1316 = vunpack.c.l.b16 %v1283
    %v1317 = vunpack.c.l.b16 %v1284
    %v1318 = vunpack.c.l.b16 %v1285
    %v1319 = vunpack.c.l.b16 %v1286
    %v1320 = vunpack.c.l.b16 %v1287
    %v1321 = vunpack.c.l.b16 %v1288
    %v1322 = vunpack.c.l.b16 %v1289
    %v1323 = vunpack.c.l.b16 %v1290
    %v1324 = vpack.c.b16 %v1309, %v1308
    %v1325 = vpack.c.b16 %v1311, %v1310
    %v1326 = vpack.c.b16 %v1313, %v1312
    %v1327 = vpack.c.b16 %v1315, %v1314
    %v1328 = vpack.c.b16 %v1317, %v1316
    %v1329 = vpack.c.b16 %v1319, %v1318
    %v1330 = vpack.c.b16 %v1321, %v1320
    %v1331 = vpack.c.b16 %v1323, %v1322
    %1340 = vmatprep.subr.bf16.mxu0 0
    %1341 = vmatpush1.bf16.msra.mxu0 %v1324
    %1342 = vmatprep.subr.bf16.mxu0 0
    %1343 = vmatpush1.bf16.msra.mxu0 %v1325
    %1344 = vmatprep.subr.bf16.mxu0 0
    %1345 = vmatpush1.bf16.msra.mxu0 %v1326
    %1346 = vmatprep.subr.bf16.mxu0 0
    %1347 = vmatpush1.bf16.msra.mxu0 %v1327
    %1348 = vmatprep.subr.bf16.mxu0 0
    %1349 = vmatpush1.bf16.msra.mxu0 %v1328
    %1350 = vmatprep.subr.bf16.mxu0 0
    %1351 = vmatpush1.bf16.msra.mxu0 %v1329
    %1352 = vmatprep.subr.bf16.mxu0 0
    %1353 = vmatpush1.bf16.msra.mxu0 %v1330
    %1354 = vmatprep.subr.bf16.mxu0 0
    %1355 = vmatpush1.bf16.msra.mxu0 %v1331
    %1356 = vmatprep.subr.bf16.mxu0 0
    %1357 = vmatpush1.bf16.msra.mxu0 0
    %1358 = vmatprep.subr.bf16.mxu0 0
    %1359 = vmatpush1.bf16.msra.mxu0 0
    %1360 = vmatprep.subr.bf16.mxu0 0
    %1361 = vmatpush1.bf16.msra.mxu0 0
    %1362 = vmatprep.subr.bf16.mxu0 0
    %1363 = vmatpush1.bf16.msra.mxu0 0
    %1364 = vmatprep.subr.bf16.mxu0 0
    %1365 = vmatpush1.bf16.msra.mxu0 0
    %1366 = vmatprep.subr.bf16.mxu0 0
    %1367 = vmatpush1.bf16.msra.mxu0 0
    %1368 = vmatprep.subr.bf16.mxu0 0
    %1369 = vmatpush1.bf16.msra.mxu0 0
    %1370 = vmatprep.subr.bf16.mxu0 0
    %1371 = vmatpush1.bf16.msra.mxu0 0
    %1372 = vmatprep.mubr.bf16.mxu0 0
    %1373 = vmatmul.mubr.bf16.gmra.mrb[0].mxu0 %v1291
    %v1374 = vpop.f32.mrb[0].mxu0
    %v1375 = vadd.f32 0.0, %v1374
    %v1376 = vpop.f32.mrb[0].mxu0
    %v1377 = vpop.f32.mrb[0].mxu0
    %v1378 = vpop.f32.mrb[0].mxu0
    %1379 = vdwg.mxu0
    %v1396 = vunpack.c.l.b16 %v1257
    %v1397 = vunpack.c.l.b16 %v1258
    %v1398 = vunpack.c.l.b16 %v1259
    %v1399 = vunpack.c.l.b16 %v1260
    %v1400 = vunpack.c.l.b16 %v1261
    %v1401 = vunpack.c.l.b16 %v1262
    %v1402 = vunpack.c.l.b16 %v1263
    %v1403 = vunpack.c.l.b16 %v1264
    %v1404 = vunpack.c.l.b16 %v1265
    %v1405 = vunpack.c.l.b16 %v1266
    %v1406 = vunpack.c.l.b16 %v1267
    %v1407 = vunpack.c.l.b16 %v1268
    %v1408 = vunpack.c.l.b16 %v1269
    %v1409 = vunpack.c.l.b16 %v1270
    %v1410 = vunpack.c.l.b16 %v1271
    %v1411 = vunpack.c.l.b16 %v1272
    %v1412 = vpack.c.b16 %v1397, %v1396
    %v1413 = vpack.c.b16 %v1399, %v1398
    %v1414 = vpack.c.b16 %v1401, %v1400
    %v1415 = vpack.c.b16 %v1403, %v1402
    %v1416 = vpack.c.b16 %v1405, %v1404
    %v1417 = vpack.c.b16 %v1407, %v1406
    %v1418 = vpack.c.b16 %v1409, %v1408
    %v1419 = vpack.c.b16 %v1411, %v1410
    %1428 = vmatprep.subr.bf16.mxu0 0
    %1429 = vmatpush1.bf16.msra.mxu0 %v1412
    %1430 = vmatprep.subr.bf16.mxu0 0
    %1431 = vmatpush1.bf16.msra.mxu0 %v1413
    %1432 = vmatprep.subr.bf16.mxu0 0
    %1433 = vmatpush1.bf16.msra.mxu0 %v1414
    %1434 = vmatprep.subr.bf16.mxu0 0
    %1435 = vmatpush1.bf16.msra.mxu0 %v1415
    %1436 = vmatprep.subr.bf16.mxu0 0
    %1437 = vmatpush1.bf16.msra.mxu0 %v1416
    %1438 = vmatprep.subr.bf16.mxu0 0
    %1439 = vmatpush1.bf16.msra.mxu0 %v1417
    %1440 = vmatprep.subr.bf16.mxu0 0
    %1441 = vmatpush1.bf16.msra.mxu0 %v1418
    %1442 = vmatprep.subr.bf16.mxu0 0
    %1443 = vmatpush1.bf16.msra.mxu0 %v1419
    %1444 = vmatprep.subr.bf16.mxu0 0
    %1445 = vmatpush1.bf16.msra.mxu0 0
    %1446 = vmatprep.subr.bf16.mxu0 0
    %1447 = vmatpush1.bf16.msra.mxu0 0
    %1448 = vmatprep.subr.bf16.mxu0 0
    %1449 = vmatpush1.bf16.msra.mxu0 0
    %1450 = vmatprep.subr.bf16.mxu0 0
    %1451 = vmatpush1.bf16.msra.mxu0 0
    %1452 = vmatprep.subr.bf16.mxu0 0
    %1453 = vmatpush1.bf16.msra.mxu0 0
    %1454 = vmatprep.subr.bf16.mxu0 0
    %1455 = vmatpush1.bf16.msra.mxu0 0
    %1456 = vmatprep.subr.bf16.mxu0 0
    %1457 = vmatpush1.bf16.msra.mxu0 0
    %1458 = vmatprep.subr.bf16.mxu0 0
    %1459 = vmatpush1.bf16.msra.mxu0 0
    %1460 = vmatprep.mubr.bf16.mxu0 0
    %1461 = vmatmul.mubr.bf16.gmra.mrb[0].mxu0 %v1273
    %v1462 = vpop.f32.mrb[0].mxu0
    %v1463 = vadd.f32 %v1375, %v1462
    %v1464 = vpop.f32.mrb[0].mxu0
    %v1465 = vpop.f32.mrb[0].mxu0
    %v1466 = vpop.f32.mrb[0].mxu0
    %1467 = vdwg.mxu0
    %v1468 = vlaneseq
    %v1469 = vshrl.u32 %v1468, 7
    %v1470 = vsub.s32 0, %v1469
    %v1471 = vrot.slane %v1014, %v1470
    %v1472 = vadd.f32 %v1463, %v1471
    %1473 = vadd.xlane.f32.xlu0 %v1472
    %v1474 = vpop.xlane.xlu0 %1473
    %v1475 = vmul.f32 %v1474, %v358
    %v1476 = vsub.f32 %v1472, %v1475
    %v1477 = vmul.f32 %v1476, %v1476
    %1478 = vadd.xlane.f32.xlu0 %v1477
    %v1479 = vpop.xlane.xlu0 %1478
    %v1480 = vmul.f32 %v1479, %v358
    %v1481 = vadd.f32 %v1480, 1e-05
    %v1482 = vrsqrt.pop %v1481
    %v1483 = vmul.f32 %v1476, %v1482
    %v1484 = vlaneseq
    %v1485 = vshrl.u32 %v1484, 7
    %v1486 = vsub.s32 1, %v1485
    %v1487 = vrot.slane %v1014, %v1486
    %v1488 = vmul.f32 %v1483, %v1487
    %v1489 = vlaneseq
    %v1490 = vshrl.u32 %v1489, 7
    %v1491 = vsub.s32 2, %v1490
    %v1492 = vrot.slane %v1014, %v1491
    %v1493 = vadd.f32 %v1488, %v1492
    %v1494 = vmax.f32 %v1493, 0.0
    %1495 = vset.pattern.permute.xlu0 1
    %1496 = vperm.xlu0 %1495, %v133
    %v1497 = vpop.permute.xlu0 %1496
    %v1500 = vlaneseq
    %v1501 = vshrl.u32 %v1500, 7
    %v1502 = vsub.s32 0, %v1501
    %v1503 = vrot.slane %v1016, %v1502
    %v1504 = vlaneseq
    %v1505 = vshrl.u32 %v1504, 7
    %v1506 = vsub.s32 2, %v1505
    %v1507 = vrot.slane %v1016, %v1506
    %v1508 = vlaneseq
    %v1509 = vshrl.u32 %v1508, 7
    %v1510 = vsub.s32 4, %v1509
    %v1511 = vrot.slane %v1016, %v1510
    %v1512 = vlaneseq
    %v1513 = vshrl.u32 %v1512, 7
    %v1514 = vsub.s32 6, %v1513
    %v1515 = vrot.slane %v1016, %v1514
    %v1520 = vlaneseq
    %v1521 = vshrl.u32 %v1520, 7
    %v1522 = vsub.s32 0, %v1521
    %v1523 = vrot.slane %v1503, %v1522
    %v1524 = vlaneseq
    %v1525 = vshrl.u32 %v1524, 7
    %v1526 = vsub.s32 0, %v1525
    %v1527 = vrot.slane %v1507, %v1526
    %v1528 = vlaneseq
    %v1529 = vshrl.u32 %v1528, 7
    %v1530 = vsub.s32 0, %v1529
    %v1531 = vrot.slane %v1511, %v1530
    %v1532 = vlaneseq
    %v1533 = vshrl.u32 %v1532, 7
    %v1534 = vsub.s32 0, %v1533
    %v1535 = vrot.slane %v1515, %v1534
    %v1536 = vmul.f32 %v1497, %v1523
    %v1537 = vmul.f32 %v1497, %v1527
    %v1538 = vmul.f32 %v1497, %v1531
    %v1539 = vmul.f32 %v1497, %v1535
    %v1540 = vlaneseq
    %v1541 = vshrl.u32 %v1540, 7
    %v1542 = vsub.s32 1, %v1541
    %v1543 = vrot.slane %v1016, %v1542
    %v1544 = vlaneseq
    %v1545 = vshrl.u32 %v1544, 7
    %v1546 = vsub.s32 3, %v1545
    %v1547 = vrot.slane %v1016, %v1546
    %v1548 = vlaneseq
    %v1549 = vshrl.u32 %v1548, 7
    %v1550 = vsub.s32 5, %v1549
    %v1551 = vrot.slane %v1016, %v1550
    %v1552 = vlaneseq
    %v1553 = vshrl.u32 %v1552, 7
    %v1554 = vsub.s32 7, %v1553
    %v1555 = vrot.slane %v1016, %v1554
    %v1560 = vlaneseq
    %v1561 = vshrl.u32 %v1560, 7
    %v1562 = vsub.s32 1, %v1561
    %v1563 = vrot.slane %v1543, %v1562
    %v1564 = vlaneseq
    %v1565 = vshrl.u32 %v1564, 7
    %v1566 = vsub.s32 1, %v1565
    %v1567 = vrot.slane %v1547, %v1566
    %v1568 = vlaneseq
    %v1569 = vshrl.u32 %v1568, 7
    %v1570 = vsub.s32 1, %v1569
    %v1571 = vrot.slane %v1551, %v1570
    %v1572 = vlaneseq
    %v1573 = vshrl.u32 %v1572, 7
    %v1574 = vsub.s32 1, %v1573
    %v1575 = vrot.slane %v1555, %v1574
    %v1576 = vadd.f32 %v1536, %v1563
    %v1577 = vadd.f32 %v1537, %v1567
    %v1578 = vadd.f32 %v1538, %v1571
    %v1579 = vadd.f32 %v1539, %v1575
    %s1580 = scalar_lea.vmem [#allocation10], 256
    %v1581 = vld [vmem:[%s1580] sm:$0xff]
    %v1582 = vld [vmem:[%s1580 + $0x8] sm:$0xff]
    %v1583 = vld [vmem:[%s1580 + $0x10] sm:$0xff]
    %v1584 = vld [vmem:[%s1580 + $0x18] sm:$0xff]
    %v1585 = vld [vmem:[%s1580 + $0x20] sm:$0xff]
    %v1586 = vld [vmem:[%s1580 + $0x28] sm:$0xff]
    %v1587 = vld [vmem:[%s1580 + $0x30] sm:$0xff]
    %v1588 = vld [vmem:[%s1580 + $0x38] sm:$0xff]
    %v1589 = vld [vmem:[%s1580 + $0x40] sm:$0xff]
    %v1590 = vld [vmem:[%s1580 + $0x48] sm:$0xff]
    %v1591 = vld [vmem:[%s1580 + $0x50] sm:$0xff]
    %v1592 = vld [vmem:[%s1580 + $0x58] sm:$0xff]
    %v1593 = vld [vmem:[%s1580 + $0x60] sm:$0xff]
    %v1594 = vld [vmem:[%s1580 + $0x68] sm:$0xff]
    %v1595 = vld [vmem:[%s1580 + $0x70] sm:$0xff]
    %v1596 = vld [vmem:[%s1580 + $0x78] sm:$0xff]
    %v1597 = vld [vmem:[%s1580 + $0x80] sm:$0xff]
    %v1598 = vld [vmem:[%s1580 + $0x88] sm:$0xff]
    %v1599 = vld [vmem:[%s1580 + $0x90] sm:$0xff]
    %v1600 = vld [vmem:[%s1580 + $0x98] sm:$0xff]
    %v1601 = vld [vmem:[%s1580 + $0xa0] sm:$0xff]
    %v1602 = vld [vmem:[%s1580 + $0xa8] sm:$0xff]
    %v1603 = vld [vmem:[%s1580 + $0xb0] sm:$0xff]
    %v1604 = vld [vmem:[%s1580 + $0xb8] sm:$0xff]
    %v1605 = vld [vmem:[%s1580 + $0xc0] sm:$0xff]
    %v1606 = vld [vmem:[%s1580 + $0xc8] sm:$0xff]
    %v1607 = vld [vmem:[%s1580 + $0xd0] sm:$0xff]
    %v1608 = vld [vmem:[%s1580 + $0xd8] sm:$0xff]
    %v1609 = vld [vmem:[%s1580 + $0xe0] sm:$0xff]
    %v1610 = vld [vmem:[%s1580 + $0xe8] sm:$0xff]
    %v1611 = vld [vmem:[%s1580 + $0xf0] sm:$0xff]
    %v1612 = vld [vmem:[%s1580 + $0xf8] sm:$0xff]
    %v1613 = vpack.c.bf16 %v1255, %v1255
    %v1646 = vunpack.c.l.b16 %v1581
    %v1647 = vunpack.c.h.b16 %v1581
    %v1648 = vunpack.c.l.b16 %v1582
    %v1649 = vunpack.c.h.b16 %v1582
    %v1650 = vunpack.c.l.b16 %v1583
    %v1651 = vunpack.c.h.b16 %v1583
    %v1652 = vunpack.c.l.b16 %v1584
    %v1653 = vunpack.c.h.b16 %v1584
    %v1654 = vunpack.c.l.b16 %v1585
    %v1655 = vunpack.c.h.b16 %v1585
    %v1656 = vunpack.c.l.b16 %v1586
    %v1657 = vunpack.c.h.b16 %v1586
    %v1658 = vunpack.c.l.b16 %v1587
    %v1659 = vunpack.c.h.b16 %v1587
    %v1660 = vunpack.c.l.b16 %v1588
    %v1661 = vunpack.c.h.b16 %v1588
    %v1662 = vunpack.c.l.b16 %v1589
    %v1663 = vunpack.c.h.b16 %v1589
    %v1664 = vunpack.c.l.b16 %v1590
    %v1665 = vunpack.c.h.b16 %v1590
    %v1666 = vunpack.c.l.b16 %v1591
    %v1667 = vunpack.c.h.b16 %v1591
    %v1668 = vunpack.c.l.b16 %v1592
    %v1669 = vunpack.c.h.b16 %v1592
    %v1670 = vunpack.c.l.b16 %v1593
    %v1671 = vunpack.c.h.b16 %v1593
    %v1672 = vunpack.c.l.b16 %v1594
    %v1673 = vunpack.c.h.b16 %v1594
    %v1674 = vunpack.c.l.b16 %v1595
    %v1675 = vunpack.c.h.b16 %v1595
    %v1676 = vunpack.c.l.b16 %v1596
    %v1677 = vunpack.c.h.b16 %v1596
    %v1678 = vunpack.c.l.b16 %v1597
    %v1679 = vunpack.c.h.b16 %v1597
    %v1680 = vunpack.c.l.b16 %v1598
    %v1681 = vunpack.c.h.b16 %v1598
    %v1682 = vunpack.c.l.b16 %v1599
    %v1683 = vunpack.c.h.b16 %v1599
    %v1684 = vunpack.c.l.b16 %v1600
    %v1685 = vunpack.c.h.b16 %v1600
    %v1686 = vunpack.c.l.b16 %v1601
    %v1687 = vunpack.c.h.b16 %v1601
    %v1688 = vunpack.c.l.b16 %v1602
    %v1689 = vunpack.c.h.b16 %v1602
    %v1690 = vunpack.c.l.b16 %v1603
    %v1691 = vunpack.c.h.b16 %v1603
    %v1692 = vunpack.c.l.b16 %v1604
    %v1693 = vunpack.c.h.b16 %v1604
    %v1694 = vunpack.c.l.b16 %v1605
    %v1695 = vunpack.c.h.b16 %v1605
    %v1696 = vunpack.c.l.b16 %v1606
    %v1697 = vunpack.c.h.b16 %v1606
    %v1698 = vunpack.c.l.b16 %v1607
    %v1699 = vunpack.c.h.b16 %v1607
    %v1700 = vunpack.c.l.b16 %v1608
    %v1701 = vunpack.c.h.b16 %v1608
    %v1702 = vunpack.c.l.b16 %v1609
    %v1703 = vunpack.c.h.b16 %v1609
    %v1704 = vunpack.c.l.b16 %v1610
    %v1705 = vunpack.c.h.b16 %v1610
    %v1706 = vunpack.c.l.b16 %v1611
    %v1707 = vunpack.c.h.b16 %v1611
    %v1708 = vunpack.c.l.b16 %v1612
    %v1709 = vunpack.c.h.b16 %v1612
    %v1710 = vpack.c.b16 %v1650, %v1646
    %v1711 = vpack.c.b16 %v1651, %v1647
    %v1712 = vpack.c.b16 %v1652, %v1648
    %v1713 = vpack.c.b16 %v1653, %v1649
    %v1714 = vpack.c.b16 %v1658, %v1654
    %v1715 = vpack.c.b16 %v1659, %v1655
    %v1716 = vpack.c.b16 %v1660, %v1656
    %v1717 = vpack.c.b16 %v1661, %v1657
    %v1718 = vpack.c.b16 %v1666, %v1662
    %v1719 = vpack.c.b16 %v1667, %v1663
    %v1720 = vpack.c.b16 %v1668, %v1664
    %v1721 = vpack.c.b16 %v1669, %v1665
    %v1722 = vpack.c.b16 %v1674, %v1670
    %v1723 = vpack.c.b16 %v1675, %v1671
    %v1724 = vpack.c.b16 %v1676, %v1672
    %v1725 = vpack.c.b16 %v1677, %v1673
    %v1726 = vpack.c.b16 %v1682, %v1678
    %v1727 = vpack.c.b16 %v1683, %v1679
    %v1728 = vpack.c.b16 %v1684, %v1680
    %v1729 = vpack.c.b16 %v1685, %v1681
    %v1730 = vpack.c.b16 %v1690, %v1686
    %v1731 = vpack.c.b16 %v1691, %v1687
    %v1732 = vpack.c.b16 %v1692, %v1688
    %v1733 = vpack.c.b16 %v1693, %v1689
    %v1734 = vpack.c.b16 %v1698, %v1694
    %v1735 = vpack.c.b16 %v1699, %v1695
    %v1736 = vpack.c.b16 %v1700, %v1696
    %v1737 = vpack.c.b16 %v1701, %v1697
    %v1738 = vpack.c.b16 %v1706, %v1702
    %v1739 = vpack.c.b16 %v1707, %v1703
    %v1740 = vpack.c.b16 %v1708, %v1704
    %v1741 = vpack.c.b16 %v1709, %v1705
    %1774 = vmatprep.subr.bf16.mxu0 %v1711
    %1775 = vmatpush1.bf16.msra.mxu0 %v1710
    %1776 = vmatprep.subr.bf16.mxu0 %v1715
    %1777 = vmatpush1.bf16.msra.mxu0 %v1714
    %1778 = vmatprep.subr.bf16.mxu0 %v1719
    %1779 = vmatpush1.bf16.msra.mxu0 %v1718
    %1780 = vmatprep.subr.bf16.mxu0 %v1723
    %1781 = vmatpush1.bf16.msra.mxu0 %v1722
    %1782 = vmatprep.subr.bf16.mxu0 %v1727
    %1783 = vmatpush1.bf16.msra.mxu0 %v1726
    %1784 = vmatprep.subr.bf16.mxu0 %v1731
    %1785 = vmatpush1.bf16.msra.mxu0 %v1730
    %1786 = vmatprep.subr.bf16.mxu0 %v1735
    %1787 = vmatpush1.bf16.msra.mxu0 %v1734
    %1788 = vmatprep.subr.bf16.mxu0 %v1739
    %1789 = vmatpush1.bf16.msra.mxu0 %v1738
    %1790 = vmatprep.subr.bf16.mxu0 0
    %1791 = vmatpush1.bf16.msra.mxu0 0
    %1792 = vmatprep.subr.bf16.mxu0 0
    %1793 = vmatpush1.bf16.msra.mxu0 0
    %1794 = vmatprep.subr.bf16.mxu0 0
    %1795 = vmatpush1.bf16.msra.mxu0 0
    %1796 = vmatprep.subr.bf16.mxu0 0
    %1797 = vmatpush1.bf16.msra.mxu0 0
    %1798 = vmatprep.subr.bf16.mxu0 0
    %1799 = vmatpush1.bf16.msra.mxu0 0
    %1800 = vmatprep.subr.bf16.mxu0 0
    %1801 = vmatpush1.bf16.msra.mxu0 0
    %1802 = vmatprep.subr.bf16.mxu0 0
    %1803 = vmatpush1.bf16.msra.mxu0 0
    %1804 = vmatprep.subr.bf16.mxu0 0
    %1805 = vmatpush1.bf16.msra.mxu0 0
    %1806 = vmatprep.mubr.bf16.mxu0 0
    %1807 = vmatmul.mubr.bf16.gmra.mrb[0].mxu0 %v1613
    %v1808 = vpop.f32.mrb[0].mxu0
    %v1809 = vadd.f32 0.0, %v1808
    %v1810 = vpop.f32.mrb[0].mxu0
    %v1811 = vadd.f32 0.0, %v1810
    %v1812 = vpop.f32.mrb[0].mxu0
    %v1813 = vpop.f32.mrb[0].mxu0
    %1814 = vdwg.mxu0
    %1815 = vmatprep.subr.bf16.mxu0 %v1713
    %1816 = vmatpush1.bf16.msra.mxu0 %v1712
    %1817 = vmatprep.subr.bf16.mxu0 %v1717
    %1818 = vmatpush1.bf16.msra.mxu0 %v1716
    %1819 = vmatprep.subr.bf16.mxu0 %v1721
    %1820 = vmatpush1.bf16.msra.mxu0 %v1720
    %1821 = vmatprep.subr.bf16.mxu0 %v1725
    %1822 = vmatpush1.bf16.msra.mxu0 %v1724
    %1823 = vmatprep.subr.bf16.mxu0 %v1729
    %1824 = vmatpush1.bf16.msra.mxu0 %v1728
    %1825 = vmatprep.subr.bf16.mxu0 %v1733
    %1826 = vmatpush1.bf16.msra.mxu0 %v1732
    %1827 = vmatprep.subr.bf16.mxu0 %v1737
    %1828 = vmatpush1.bf16.msra.mxu0 %v1736
    %1829 = vmatprep.subr.bf16.mxu0 %v1741
    %1830 = vmatpush1.bf16.msra.mxu0 %v1740
    %1831 = vmatprep.subr.bf16.mxu0 0
    %1832 = vmatpush1.bf16.msra.mxu0 0
    %1833 = vmatprep.subr.bf16.mxu0 0
    %1834 = vmatpush1.bf16.msra.mxu0 0
    %1835 = vmatprep.subr.bf16.mxu0 0
    %1836 = vmatpush1.bf16.msra.mxu0 0
    %1837 = vmatprep.subr.bf16.mxu0 0
    %1838 = vmatpush1.bf16.msra.mxu0 0
    %1839 = vmatprep.subr.bf16.mxu0 0
    %1840 = vmatpush1.bf16.msra.mxu0 0
    %1841 = vmatprep.subr.bf16.mxu0 0
    %1842 = vmatpush1.bf16.msra.mxu0 0
    %1843 = vmatprep.subr.bf16.mxu0 0
    %1844 = vmatpush1.bf16.msra.mxu0 0
    %1845 = vmatprep.subr.bf16.mxu0 0
    %1846 = vmatpush1.bf16.msra.mxu0 0
    %1847 = vmatprep.mubr.bf16.mxu0 0
    %1848 = vmatmul.mubr.bf16.gmra.mrb[0].mxu0 %v1613
    %v1849 = vpop.f32.mrb[0].mxu0
    %v1850 = vadd.f32 0.0, %v1849
    %v1851 = vpop.f32.mrb[0].mxu0
    %v1852 = vadd.f32 0.0, %v1851
    %v1853 = vpop.f32.mrb[0].mxu0
    %v1854 = vpop.f32.mrb[0].mxu0
    %1855 = vdwg.mxu0
    %v1856 = vadd.f32 %v1576, %v1809
    %v1857 = vadd.f32 %v1577, %v1811
    %v1858 = vadd.f32 %v1578, %v1850
    %v1859 = vadd.f32 %v1579, %v1852
    %v1860 = vxor.u32 %v1856, 2147483648
    %v1861 = vmul.f32 %v1860, 1.442695
    %v1862 = vpow.pop %v1861
    %v1863 = vadd.f32 %v1862, 1.0
    %v1864 = vrcp.pop %v1863
    %v1865 = vmul.f32 1.0, %v1864
    %v1866 = vxor.u32 %v1857, 2147483648
    %v1867 = vmul.f32 %v1866, 1.442695
    %v1868 = vpow.pop %v1867
    %v1869 = vadd.f32 %v1868, 1.0
    %v1870 = vrcp.pop %v1869
    %v1871 = vmul.f32 1.0, %v1870
    %v1872 = vtanh.pop %v1858
    %v1873 = vxor.u32 %v1859, 2147483648
    %v1874 = vmul.f32 %v1873, 1.442695
    %v1875 = vpow.pop %v1874
    %v1876 = vadd.f32 %v1875, 1.0
    %v1877 = vrcp.pop %v1876
    %v1878 = vmul.f32 1.0, %v1877
    %v1879 = vmul.f32 %v1871, %v1494
    %v1880 = vmul.f32 %v1865, %v1872
    %v1881 = vadd.f32 %v1879, %v1880
    %v1882 = vtanh.pop %v1881
    %v1883 = vmul.f32 %v1878, %v1882
    %s1884 = scalar_lea.vmem [#allocation15], 8
    %1885 = vst [vmem:[%s1884] sm:$0xff] %v1883
    %s1886 = scalar_lea.vmem [#allocation17], 8
    %1887 = vst [vmem:[%s1886] sm:$0xff] %v1881
    %s1888 = scalar_lea.vmem %s3, 16
    %v1889 = vld [vmem:[%s1888] sm:$0xff]
    %s1890 = scalar_lea.vmem %s4, 16
    %v1891 = vld [vmem:[%s1890] sm:$0xff]
    %s1892 = scalar_lea.vmem %s10, 8
    %v1893 = vld [vmem:[%s1892] sm:$0x7]
    %s1894 = scalar_lea.vmem %s11, 8
    %v1895 = vld [vmem:[%s1894] sm:$0x7]
    %s1896 = scalar_lea.vmem %s12, 16
    %v1897 = vld [vmem:[%s1896] sm:$0xff]
    %s1898 = scalar_lea.vmem [#allocation2], 128
    %v1899 = vld [vmem:[%s1898] sm:$0xf]
    %v1900 = vld [vmem:[%s1898 + $0x4] sm:$0xf]
    %v1901 = vld [vmem:[%s1898 + $0x8] sm:$0xf]
    %v1902 = vld [vmem:[%s1898 + $0xc] sm:$0xf]
    %v1903 = vld [vmem:[%s1898 + $0x10] sm:$0xf]
    %v1904 = vld [vmem:[%s1898 + $0x14] sm:$0xf]
    %v1905 = vld [vmem:[%s1898 + $0x18] sm:$0xf]
    %v1906 = vld [vmem:[%s1898 + $0x1c] sm:$0xf]
    %v1907 = vld [vmem:[%s1898 + $0x20] sm:$0xf]
    %v1908 = vld [vmem:[%s1898 + $0x24] sm:$0xf]
    %v1909 = vld [vmem:[%s1898 + $0x28] sm:$0xf]
    %v1910 = vld [vmem:[%s1898 + $0x2c] sm:$0xf]
    %v1911 = vld [vmem:[%s1898 + $0x30] sm:$0xf]
    %v1912 = vld [vmem:[%s1898 + $0x34] sm:$0xf]
    %v1913 = vld [vmem:[%s1898 + $0x38] sm:$0xf]
    %v1914 = vld [vmem:[%s1898 + $0x3c] sm:$0xf]
    %v1915 = vpack.c.bf16 %v1883, %v1883
    %s1916 = scalar_lea.vmem [#allocation5], 128
    %v1917 = vld [vmem:[%s1916] sm:$0xf]
    %v1918 = vld [vmem:[%s1916 + $0x4] sm:$0xf]
    %v1919 = vld [vmem:[%s1916 + $0x8] sm:$0xf]
    %v1920 = vld [vmem:[%s1916 + $0xc] sm:$0xf]
    %v1921 = vld [vmem:[%s1916 + $0x10] sm:$0xf]
    %v1922 = vld [vmem:[%s1916 + $0x14] sm:$0xf]
    %v1923 = vld [vmem:[%s1916 + $0x18] sm:$0xf]
    %v1924 = vld [vmem:[%s1916 + $0x1c] sm:$0xf]
    %v1925 = vld [vmem:[%s1916 + $0x20] sm:$0xf]
    %v1926 = vld [vmem:[%s1916 + $0x24] sm:$0xf]
    %v1927 = vld [vmem:[%s1916 + $0x28] sm:$0xf]
    %v1928 = vld [vmem:[%s1916 + $0x2c] sm:$0xf]
    %v1929 = vld [vmem:[%s1916 + $0x30] sm:$0xf]
    %v1930 = vld [vmem:[%s1916 + $0x34] sm:$0xf]
    %v1931 = vld [vmem:[%s1916 + $0x38] sm:$0xf]
    %v1932 = vld [vmem:[%s1916 + $0x3c] sm:$0xf]
    %v1933 = vpack.c.bf16 %v1889, %v1889
    %v1950 = vunpack.c.l.b16 %v1917
    %v1951 = vunpack.c.l.b16 %v1918
    %v1952 = vunpack.c.l.b16 %v1919
    %v1953 = vunpack.c.l.b16 %v1920
    %v1954 = vunpack.c.l.b16 %v1921
    %v1955 = vunpack.c.l.b16 %v1922
    %v1956 = vunpack.c.l.b16 %v1923
    %v1957 = vunpack.c.l.b16 %v1924
    %v1958 = vunpack.c.l.b16 %v1925
    %v1959 = vunpack.c.l.b16 %v1926
    %v1960 = vunpack.c.l.b16 %v1927
    %v1961 = vunpack.c.l.b16 %v1928
    %v1962 = vunpack.c.l.b16 %v1929
    %v1963 = vunpack.c.l.b16 %v1930
    %v1964 = vunpack.c.l.b16 %v1931
    %v1965 = vunpack.c.l.b16 %v1932
    %v1966 = vpack.c.b16 %v1951, %v1950
    %v1967 = vpack.c.b16 %v1953, %v1952
    %v1968 = vpack.c.b16 %v1955, %v1954
    %v1969 = vpack.c.b16 %v1957, %v1956
    %v1970 = vpack.c.b16 %v1959, %v1958
    %v1971 = vpack.c.b16 %v1961, %v1960
    %v1972 = vpack.c.b16 %v1963, %v1962
    %v1973 = vpack.c.b16 %v1965, %v1964
    %1982 = vmatprep.subr.bf16.mxu0 0
    %1983 = vmatpush1.bf16.msra.mxu0 %v1966
    %1984 = vmatprep.subr.bf16.mxu0 0
    %1985 = vmatpush1.bf16.msra.mxu0 %v1967
    %1986 = vmatprep.subr.bf16.mxu0 0
    %1987 = vmatpush1.bf16.msra.mxu0 %v1968
    %1988 = vmatprep.subr.bf16.mxu0 0
    %1989 = vmatpush1.bf16.msra.mxu0 %v1969
    %1990 = vmatprep.subr.bf16.mxu0 0
    %1991 = vmatpush1.bf16.msra.mxu0 %v1970
    %1992 = vmatprep.subr.bf16.mxu0 0
    %1993 = vmatpush1.bf16.msra.mxu0 %v1971
    %1994 = vmatprep.subr.bf16.mxu0 0
    %1995 = vmatpush1.bf16.msra.mxu0 %v1972
    %1996 = vmatprep.subr.bf16.mxu0 0
    %1997 = vmatpush1.bf16.msra.mxu0 %v1973
    %1998 = vmatprep.subr.bf16.mxu0 0
    %1999 = vmatpush1.bf16.msra.mxu0 0
    %2000 = vmatprep.subr.bf16.mxu0 0
    %2001 = vmatpush1.bf16.msra.mxu0 0
    %2002 = vmatprep.subr.bf16.mxu0 0
    %2003 = vmatpush1.bf16.msra.mxu0 0
    %2004 = vmatprep.subr.bf16.mxu0 0
    %2005 = vmatpush1.bf16.msra.mxu0 0
    %2006 = vmatprep.subr.bf16.mxu0 0
    %2007 = vmatpush1.bf16.msra.mxu0 0
    %2008 = vmatprep.subr.bf16.mxu0 0
    %2009 = vmatpush1.bf16.msra.mxu0 0
    %2010 = vmatprep.subr.bf16.mxu0 0
    %2011 = vmatpush1.bf16.msra.mxu0 0
    %2012 = vmatprep.subr.bf16.mxu0 0
    %2013 = vmatpush1.bf16.msra.mxu0 0
    %2014 = vmatprep.mubr.bf16.mxu0 0
    %2015 = vmatmul.mubr.bf16.gmra.mrb[0].mxu0 %v1933
    %v2016 = vpop.f32.mrb[0].mxu0
    %v2017 = vadd.f32 0.0, %v2016
    %v2018 = vpop.f32.mrb[0].mxu0
    %v2019 = vpop.f32.mrb[0].mxu0
    %v2020 = vpop.f32.mrb[0].mxu0
    %2021 = vdwg.mxu0
    %v2038 = vunpack.c.l.b16 %v1899
    %v2039 = vunpack.c.l.b16 %v1900
    %v2040 = vunpack.c.l.b16 %v1901
    %v2041 = vunpack.c.l.b16 %v1902
    %v2042 = vunpack.c.l.b16 %v1903
    %v2043 = vunpack.c.l.b16 %v1904
    %v2044 = vunpack.c.l.b16 %v1905
    %v2045 = vunpack.c.l.b16 %v1906
    %v2046 = vunpack.c.l.b16 %v1907
    %v2047 = vunpack.c.l.b16 %v1908
    %v2048 = vunpack.c.l.b16 %v1909
    %v2049 = vunpack.c.l.b16 %v1910
    %v2050 = vunpack.c.l.b16 %v1911
    %v2051 = vunpack.c.l.b16 %v1912
    %v2052 = vunpack.c.l.b16 %v1913
    %v2053 = vunpack.c.l.b16 %v1914
    %v2054 = vpack.c.b16 %v2039, %v2038
    %v2055 = vpack.c.b16 %v2041, %v2040
    %v2056 = vpack.c.b16 %v2043, %v2042
    %v2057 = vpack.c.b16 %v2045, %v2044
    %v2058 = vpack.c.b16 %v2047, %v2046
    %v2059 = vpack.c.b16 %v2049, %v2048
    %v2060 = vpack.c.b16 %v2051, %v2050
    %v2061 = vpack.c.b16 %v2053, %v2052
    %2070 = vmatprep.subr.bf16.mxu0 0
    %2071 = vmatpush1.bf16.msra.mxu0 %v2054
    %2072 = vmatprep.subr.bf16.mxu0 0
    %2073 = vmatpush1.bf16.msra.mxu0 %v2055
    %2074 = vmatprep.subr.bf16.mxu0 0
    %2075 = vmatpush1.bf16.msra.mxu0 %v2056
    %2076 = vmatprep.subr.bf16.mxu0 0
    %2077 = vmatpush1.bf16.msra.mxu0 %v2057
    %2078 = vmatprep.subr.bf16.mxu0 0
    %2079 = vmatpush1.bf16.msra.mxu0 %v2058
    %2080 = vmatprep.subr.bf16.mxu0 0
    %2081 = vmatpush1.bf16.msra.mxu0 %v2059
    %2082 = vmatprep.subr.bf16.mxu0 0
    %2083 = vmatpush1.bf16.msra.mxu0 %v2060
    %2084 = vmatprep.subr.bf16.mxu0 0
    %2085 = vmatpush1.bf16.msra.mxu0 %v2061
    %2086 = vmatprep.subr.bf16.mxu0 0
    %2087 = vmatpush1.bf16.msra.mxu0 0
    %2088 = vmatprep.subr.bf16.mxu0 0
    %2089 = vmatpush1.bf16.msra.mxu0 0
    %2090 = vmatprep.subr.bf16.mxu0 0
    %2091 = vmatpush1.bf16.msra.mxu0 0
    %2092 = vmatprep.subr.bf16.mxu0 0
    %2093 = vmatpush1.bf16.msra.mxu0 0
    %2094 = vmatprep.subr.bf16.mxu0 0
    %2095 = vmatpush1.bf16.msra.mxu0 0
    %2096 = vmatprep.subr.bf16.mxu0 0
    %2097 = vmatpush1.bf16.msra.mxu0 0
    %2098 = vmatprep.subr.bf16.mxu0 0
    %2099 = vmatpush1.bf16.msra.mxu0 0
    %2100 = vmatprep.subr.bf16.mxu0 0
    %2101 = vmatpush1.bf16.msra.mxu0 0
    %2102 = vmatprep.mubr.bf16.mxu0 0
    %2103 = vmatmul.mubr.bf16.gmra.mrb[0].mxu0 %v1915
    %v2104 = vpop.f32.mrb[0].mxu0
    %v2105 = vadd.f32 %v2017, %v2104
    %v2106 = vpop.f32.mrb[0].mxu0
    %v2107 = vpop.f32.mrb[0].mxu0
    %v2108 = vpop.f32.mrb[0].mxu0
    %2109 = vdwg.mxu0
    %v2110 = vlaneseq
    %v2111 = vshrl.u32 %v2110, 7
    %v2112 = vsub.s32 0, %v2111
    %v2113 = vrot.slane %v1893, %v2112
    %v2114 = vadd.f32 %v2105, %v2113
    %2115 = vadd.xlane.f32.xlu0 %v2114
    %v2116 = vpop.xlane.xlu0 %2115
    %v2117 = vmul.f32 %v2116, %v358
    %v2118 = vsub.f32 %v2114, %v2117
    %v2119 = vmul.f32 %v2118, %v2118
    %2120 = vadd.xlane.f32.xlu0 %v2119
    %v2121 = vpop.xlane.xlu0 %2120
    %v2122 = vmul.f32 %v2121, %v358
    %v2123 = vadd.f32 %v2122, 1e-05
    %v2124 = vrsqrt.pop %v2123
    %v2125 = vmul.f32 %v2118, %v2124
    %v2126 = vlaneseq
    %v2127 = vshrl.u32 %v2126, 7
    %v2128 = vsub.s32 1, %v2127
    %v2129 = vrot.slane %v1893, %v2128
    %v2130 = vmul.f32 %v2125, %v2129
    %v2131 = vlaneseq
    %v2132 = vshrl.u32 %v2131, 7
    %v2133 = vsub.s32 2, %v2132
    %v2134 = vrot.slane %v1893, %v2133
    %v2135 = vadd.f32 %v2130, %v2134
    %v2136 = vmax.f32 %v2135, 0.0
    %s2137 = scalar_lea.vmem [#allocation7], 128
    %v2138 = vld [vmem:[%s2137] sm:$0xf]
    %v2139 = vld [vmem:[%s2137 + $0x4] sm:$0xf]
    %v2140 = vld [vmem:[%s2137 + $0x8] sm:$0xf]
    %v2141 = vld [vmem:[%s2137 + $0xc] sm:$0xf]
    %v2142 = vld [vmem:[%s2137 + $0x10] sm:$0xf]
    %v2143 = vld [vmem:[%s2137 + $0x14] sm:$0xf]
    %v2144 = vld [vmem:[%s2137 + $0x18] sm:$0xf]
    %v2145 = vld [vmem:[%s2137 + $0x1c] sm:$0xf]
    %v2146 = vld [vmem:[%s2137 + $0x20] sm:$0xf]
    %v2147 = vld [vmem:[%s2137 + $0x24] sm:$0xf]
    %v2148 = vld [vmem:[%s2137 + $0x28] sm:$0xf]
    %v2149 = vld [vmem:[%s2137 + $0x2c] sm:$0xf]
    %v2150 = vld [vmem:[%s2137 + $0x30] sm:$0xf]
    %v2151 = vld [vmem:[%s2137 + $0x34] sm:$0xf]
    %v2152 = vld [vmem:[%s2137 + $0x38] sm:$0xf]
    %v2153 = vld [vmem:[%s2137 + $0x3c] sm:$0xf]
    %v2154 = vpack.c.bf16 %v1881, %v1881
    %s2155 = scalar_lea.vmem [#allocation8], 128
    %v2156 = vld [vmem:[%s2155] sm:$0xf]
    %v2157 = vld [vmem:[%s2155 + $0x4] sm:$0xf]
    %v2158 = vld [vmem:[%s2155 + $0x8] sm:$0xf]
    %v2159 = vld [vmem:[%s2155 + $0xc] sm:$0xf]
    %v2160 = vld [vmem:[%s2155 + $0x10] sm:$0xf]
    %v2161 = vld [vmem:[%s2155 + $0x14] sm:$0xf]
    %v2162 = vld [vmem:[%s2155 + $0x18] sm:$0xf]
    %v2163 = vld [vmem:[%s2155 + $0x1c] sm:$0xf]
    %v2164 = vld [vmem:[%s2155 + $0x20] sm:$0xf]
    %v2165 = vld [vmem:[%s2155 + $0x24] sm:$0xf]
    %v2166 = vld [vmem:[%s2155 + $0x28] sm:$0xf]
    %v2167 = vld [vmem:[%s2155 + $0x2c] sm:$0xf]
    %v2168 = vld [vmem:[%s2155 + $0x30] sm:$0xf]
    %v2169 = vld [vmem:[%s2155 + $0x34] sm:$0xf]
    %v2170 = vld [vmem:[%s2155 + $0x38] sm:$0xf]
    %v2171 = vld [vmem:[%s2155 + $0x3c] sm:$0xf]
    %v2172 = vpack.c.bf16 %v1891, %v1891
    %v2189 = vunpack.c.l.b16 %v2156
    %v2190 = vunpack.c.l.b16 %v2157
    %v2191 = vunpack.c.l.b16 %v2158
    %v2192 = vunpack.c.l.b16 %v2159
    %v2193 = vunpack.c.l.b16 %v2160
    %v2194 = vunpack.c.l.b16 %v2161
    %v2195 = vunpack.c.l.b16 %v2162
    %v2196 = vunpack.c.l.b16 %v2163
    %v2197 = vunpack.c.l.b16 %v2164
    %v2198 = vunpack.c.l.b16 %v2165
    %v2199 = vunpack.c.l.b16 %v2166
    %v2200 = vunpack.c.l.b16 %v2167
    %v2201 = vunpack.c.l.b16 %v2168
    %v2202 = vunpack.c.l.b16 %v2169
    %v2203 = vunpack.c.l.b16 %v2170
    %v2204 = vunpack.c.l.b16 %v2171
    %v2205 = vpack.c.b16 %v2190, %v2189
    %v2206 = vpack.c.b16 %v2192, %v2191
    %v2207 = vpack.c.b16 %v2194, %v2193
    %v2208 = vpack.c.b16 %v2196, %v2195
    %v2209 = vpack.c.b16 %v2198, %v2197
    %v2210 = vpack.c.b16 %v2200, %v2199
    %v2211 = vpack.c.b16 %v2202, %v2201
    %v2212 = vpack.c.b16 %v2204, %v2203
    %2221 = vmatprep.subr.bf16.mxu0 0
    %2222 = vmatpush1.bf16.msra.mxu0 %v2205
    %2223 = vmatprep.subr.bf16.mxu0 0
    %2224 = vmatpush1.bf16.msra.mxu0 %v2206
    %2225 = vmatprep.subr.bf16.mxu0 0
    %2226 = vmatpush1.bf16.msra.mxu0 %v2207
    %2227 = vmatprep.subr.bf16.mxu0 0
    %2228 = vmatpush1.bf16.msra.mxu0 %v2208
    %2229 = vmatprep.subr.bf16.mxu0 0
    %2230 = vmatpush1.bf16.msra.mxu0 %v2209
    %2231 = vmatprep.subr.bf16.mxu0 0
    %2232 = vmatpush1.bf16.msra.mxu0 %v2210
    %2233 = vmatprep.subr.bf16.mxu0 0
    %2234 = vmatpush1.bf16.msra.mxu0 %v2211
    %2235 = vmatprep.subr.bf16.mxu0 0
    %2236 = vmatpush1.bf16.msra.mxu0 %v2212
    %2237 = vmatprep.subr.bf16.mxu0 0
    %2238 = vmatpush1.bf16.msra.mxu0 0
    %2239 = vmatprep.subr.bf16.mxu0 0
    %2240 = vmatpush1.bf16.msra.mxu0 0
    %2241 = vmatprep.subr.bf16.mxu0 0
    %2242 = vmatpush1.bf16.msra.mxu0 0
    %2243 = vmatprep.subr.bf16.mxu0 0
    %2244 = vmatpush1.bf16.msra.mxu0 0
    %2245 = vmatprep.subr.bf16.mxu0 0
    %2246 = vmatpush1.bf16.msra.mxu0 0
    %2247 = vmatprep.subr.bf16.mxu0 0
    %2248 = vmatpush1.bf16.msra.mxu0 0
    %2249 = vmatprep.subr.bf16.mxu0 0
    %2250 = vmatpush1.bf16.msra.mxu0 0
    %2251 = vmatprep.subr.bf16.mxu0 0
    %2252 = vmatpush1.bf16.msra.mxu0 0
    %2253 = vmatprep.mubr.bf16.mxu0 0
    %2254 = vmatmul.mubr.bf16.gmra.mrb[0].mxu0 %v2172
    %v2255 = vpop.f32.mrb[0].mxu0
    %v2256 = vadd.f32 0.0, %v2255
    %v2257 = vpop.f32.mrb[0].mxu0
    %v2258 = vpop.f32.mrb[0].mxu0
    %v2259 = vpop.f32.mrb[0].mxu0
    %2260 = vdwg.mxu0
    %v2277 = vunpack.c.l.b16 %v2138
    %v2278 = vunpack.c.l.b16 %v2139
    %v2279 = vunpack.c.l.b16 %v2140
    %v2280 = vunpack.c.l.b16 %v2141
    %v2281 = vunpack.c.l.b16 %v2142
    %v2282 = vunpack.c.l.b16 %v2143
    %v2283 = vunpack.c.l.b16 %v2144
    %v2284 = vunpack.c.l.b16 %v2145
    %v2285 = vunpack.c.l.b16 %v2146
    %v2286 = vunpack.c.l.b16 %v2147
    %v2287 = vunpack.c.l.b16 %v2148
    %v2288 = vunpack.c.l.b16 %v2149
    %v2289 = vunpack.c.l.b16 %v2150
    %v2290 = vunpack.c.l.b16 %v2151
    %v2291 = vunpack.c.l.b16 %v2152
    %v2292 = vunpack.c.l.b16 %v2153
    %v2293 = vpack.c.b16 %v2278, %v2277
    %v2294 = vpack.c.b16 %v2280, %v2279
    %v2295 = vpack.c.b16 %v2282, %v2281
    %v2296 = vpack.c.b16 %v2284, %v2283
    %v2297 = vpack.c.b16 %v2286, %v2285
    %v2298 = vpack.c.b16 %v2288, %v2287
    %v2299 = vpack.c.b16 %v2290, %v2289
    %v2300 = vpack.c.b16 %v2292, %v2291
    %2309 = vmatprep.subr.bf16.mxu0 0
    %2310 = vmatpush1.bf16.msra.mxu0 %v2293
    %2311 = vmatprep.subr.bf16.mxu0 0
    %2312 = vmatpush1.bf16.msra.mxu0 %v2294
    %2313 = vmatprep.subr.bf16.mxu0 0
    %2314 = vmatpush1.bf16.msra.mxu0 %v2295
    %2315 = vmatprep.subr.bf16.mxu0 0
    %2316 = vmatpush1.bf16.msra.mxu0 %v2296
    %2317 = vmatprep.subr.bf16.mxu0 0
    %2318 = vmatpush1.bf16.msra.mxu0 %v2297
    %2319 = vmatprep.subr.bf16.mxu0 0
    %2320 = vmatpush1.bf16.msra.mxu0 %v2298
    %2321 = vmatprep.subr.bf16.mxu0 0
    %2322 = vmatpush1.bf16.msra.mxu0 %v2299
    %2323 = vmatprep.subr.bf16.mxu0 0
    %2324 = vmatpush1.bf16.msra.mxu0 %v2300
    %2325 = vmatprep.subr.bf16.mxu0 0
    %2326 = vmatpush1.bf16.msra.mxu0 0
    %2327 = vmatprep.subr.bf16.mxu0 0
    %2328 = vmatpush1.bf16.msra.mxu0 0
    %2329 = vmatprep.subr.bf16.mxu0 0
    %2330 = vmatpush1.bf16.msra.mxu0 0
    %2331 = vmatprep.subr.bf16.mxu0 0
    %2332 = vmatpush1.bf16.msra.mxu0 0
    %2333 = vmatprep.subr.bf16.mxu0 0
    %2334 = vmatpush1.bf16.msra.mxu0 0
    %2335 = vmatprep.subr.bf16.mxu0 0
    %2336 = vmatpush1.bf16.msra.mxu0 0
    %2337 = vmatprep.subr.bf16.mxu0 0
    %2338 = vmatpush1.bf16.msra.mxu0 0
    %2339 = vmatprep.subr.bf16.mxu0 0
    %2340 = vmatpush1.bf16.msra.mxu0 0
    %2341 = vmatprep.mubr.bf16.mxu0 0
    %2342 = vmatmul.mubr.bf16.gmra.mrb[0].mxu0 %v2154
    %v2343 = vpop.f32.mrb[0].mxu0
    %v2344 = vadd.f32 %v2256, %v2343
    %v2345 = vpop.f32.mrb[0].mxu0
    %v2346 = vpop.f32.mrb[0].mxu0
    %v2347 = vpop.f32.mrb[0].mxu0
    %2348 = vdwg.mxu0
    %v2349 = vlaneseq
    %v2350 = vshrl.u32 %v2349, 7
    %v2351 = vsub.s32 0, %v2350
    %v2352 = vrot.slane %v1895, %v2351
    %v2353 = vadd.f32 %v2344, %v2352
    %2354 = vadd.xlane.f32.xlu0 %v2353
    %v2355 = vpop.xlane.xlu0 %2354
    %v2356 = vmul.f32 %v2355, %v358
    %v2357 = vsub.f32 %v2353, %v2356
    %v2358 = vmul.f32 %v2357, %v2357
    %2359 = vadd.xlane.f32.xlu0 %v2358
    %v2360 = vpop.xlane.xlu0 %2359
    %v2361 = vmul.f32 %v2360, %v358
    %v2362 = vadd.f32 %v2361, 1e-05
    %v2363 = vrsqrt.pop %v2362
    %v2364 = vmul.f32 %v2357, %v2363
    %v2365 = vlaneseq
    %v2366 = vshrl.u32 %v2365, 7
    %v2367 = vsub.s32 1, %v2366
    %v2368 = vrot.slane %v1895, %v2367
    %v2369 = vmul.f32 %v2364, %v2368
    %v2370 = vlaneseq
    %v2371 = vshrl.u32 %v2370, 7
    %v2372 = vsub.s32 2, %v2371
    %v2373 = vrot.slane %v1895, %v2372
    %v2374 = vadd.f32 %v2369, %v2373
    %v2375 = vmax.f32 %v2374, 0.0
    %2376 = vset.pattern.permute.xlu0 2
    %2377 = vperm.xlu0 %2376, %v133
    %v2378 = vpop.permute.xlu0 %2377
    %v2381 = vlaneseq
    %v2382 = vshrl.u32 %v2381, 7
    %v2383 = vsub.s32 0, %v2382
    %v2384 = vrot.slane %v1897, %v2383
    %v2385 = vlaneseq
    %v2386 = vshrl.u32 %v2385, 7
    %v2387 = vsub.s32 2, %v2386
    %v2388 = vrot.slane %v1897, %v2387
    %v2389 = vlaneseq
    %v2390 = vshrl.u32 %v2389, 7
    %v2391 = vsub.s32 4, %v2390
    %v2392 = vrot.slane %v1897, %v2391
    %v2393 = vlaneseq
    %v2394 = vshrl.u32 %v2393, 7
    %v2395 = vsub.s32 6, %v2394
    %v2396 = vrot.slane %v1897, %v2395
    %v2401 = vlaneseq
    %v2402 = vshrl.u32 %v2401, 7
    %v2403 = vsub.s32 0, %v2402
    %v2404 = vrot.slane %v2384, %v2403
    %v2405 = vlaneseq
    %v2406 = vshrl.u32 %v2405, 7
    %v2407 = vsub.s32 0, %v2406
    %v2408 = vrot.slane %v2388, %v2407
    %v2409 = vlaneseq
    %v2410 = vshrl.u32 %v2409, 7
    %v2411 = vsub.s32 0, %v2410
    %v2412 = vrot.slane %v2392, %v2411
    %v2413 = vlaneseq
    %v2414 = vshrl.u32 %v2413, 7
    %v2415 = vsub.s32 0, %v2414
    %v2416 = vrot.slane %v2396, %v2415
    %v2417 = vmul.f32 %v2378, %v2404
    %v2418 = vmul.f32 %v2378, %v2408
    %v2419 = vmul.f32 %v2378, %v2412
    %v2420 = vmul.f32 %v2378, %v2416
    %v2421 = vlaneseq
    %v2422 = vshrl.u32 %v2421, 7
    %v2423 = vsub.s32 1, %v2422
    %v2424 = vrot.slane %v1897, %v2423
    %v2425 = vlaneseq
    %v2426 = vshrl.u32 %v2425, 7
    %v2427 = vsub.s32 3, %v2426
    %v2428 = vrot.slane %v1897, %v2427
    %v2429 = vlaneseq
    %v2430 = vshrl.u32 %v2429, 7
    %v2431 = vsub.s32 5, %v2430
    %v2432 = vrot.slane %v1897, %v2431
    %v2433 = vlaneseq
    %v2434 = vshrl.u32 %v2433, 7
    %v2435 = vsub.s32 7, %v2434
    %v2436 = vrot.slane %v1897, %v2435
    %v2441 = vlaneseq
    %v2442 = vshrl.u32 %v2441, 7
    %v2443 = vsub.s32 1, %v2442
    %v2444 = vrot.slane %v2424, %v2443
    %v2445 = vlaneseq
    %v2446 = vshrl.u32 %v2445, 7
    %v2447 = vsub.s32 1, %v2446
    %v2448 = vrot.slane %v2428, %v2447
    %v2449 = vlaneseq
    %v2450 = vshrl.u32 %v2449, 7
    %v2451 = vsub.s32 1, %v2450
    %v2452 = vrot.slane %v2432, %v2451
    %v2453 = vlaneseq
    %v2454 = vshrl.u32 %v2453, 7
    %v2455 = vsub.s32 1, %v2454
    %v2456 = vrot.slane %v2436, %v2455
    %v2457 = vadd.f32 %v2417, %v2444
    %v2458 = vadd.f32 %v2418, %v2448
    %v2459 = vadd.f32 %v2419, %v2452
    %v2460 = vadd.f32 %v2420, %v2456
    %s2461 = scalar_lea.vmem [#allocation10], 512
    %v2462 = vld [vmem:[%s2461] sm:$0xff]
    %v2463 = vld [vmem:[%s2461 + $0x8] sm:$0xff]
    %v2464 = vld [vmem:[%s2461 + $0x10] sm:$0xff]
    %v2465 = vld [vmem:[%s2461 + $0x18] sm:$0xff]
    %v2466 = vld [vmem:[%s2461 + $0x20] sm:$0xff]
    %v2467 = vld [vmem:[%s2461 + $0x28] sm:$0xff]
    %v2468 = vld [vmem:[%s2461 + $0x30] sm:$0xff]
    %v2469 = vld [vmem:[%s2461 + $0x38] sm:$0xff]
    %v2470 = vld [vmem:[%s2461 + $0x40] sm:$0xff]
    %v2471 = vld [vmem:[%s2461 + $0x48] sm:$0xff]
    %v2472 = vld [vmem:[%s2461 + $0x50] sm:$0xff]
    %v2473 = vld [vmem:[%s2461 + $0x58] sm:$0xff]
    %v2474 = vld [vmem:[%s2461 + $0x60] sm:$0xff]
    %v2475 = vld [vmem:[%s2461 + $0x68] sm:$0xff]
    %v2476 = vld [vmem:[%s2461 + $0x70] sm:$0xff]
    %v2477 = vld [vmem:[%s2461 + $0x78] sm:$0xff]
    %v2478 = vld [vmem:[%s2461 + $0x80] sm:$0xff]
    %v2479 = vld [vmem:[%s2461 + $0x88] sm:$0xff]
    %v2480 = vld [vmem:[%s2461 + $0x90] sm:$0xff]
    %v2481 = vld [vmem:[%s2461 + $0x98] sm:$0xff]
    %v2482 = vld [vmem:[%s2461 + $0xa0] sm:$0xff]
    %v2483 = vld [vmem:[%s2461 + $0xa8] sm:$0xff]
    %v2484 = vld [vmem:[%s2461 + $0xb0] sm:$0xff]
    %v2485 = vld [vmem:[%s2461 + $0xb8] sm:$0xff]
    %v2486 = vld [vmem:[%s2461 + $0xc0] sm:$0xff]
    %v2487 = vld [vmem:[%s2461 + $0xc8] sm:$0xff]
    %v2488 = vld [vmem:[%s2461 + $0xd0] sm:$0xff]
    %v2489 = vld [vmem:[%s2461 + $0xd8] sm:$0xff]
    %v2490 = vld [vmem:[%s2461 + $0xe0] sm:$0xff]
    %v2491 = vld [vmem:[%s2461 + $0xe8] sm:$0xff]
    %v2492 = vld [vmem:[%s2461 + $0xf0] sm:$0xff]
    %v2493 = vld [vmem:[%s2461 + $0xf8] sm:$0xff]
    %v2494 = vpack.c.bf16 %v2136, %v2136
    %v2527 = vunpack.c.l.b16 %v2462
    %v2528 = vunpack.c.h.b16 %v2462
    %v2529 = vunpack.c.l.b16 %v2463
    %v2530 = vunpack.c.h.b16 %v2463
    %v2531 = vunpack.c.l.b16 %v2464
    %v2532 = vunpack.c.h.b16 %v2464
    %v2533 = vunpack.c.l.b16 %v2465
    %v2534 = vunpack.c.h.b16 %v2465
    %v2535 = vunpack.c.l.b16 %v2466
    %v2536 = vunpack.c.h.b16 %v2466
    %v2537 = vunpack.c.l.b16 %v2467
    %v2538 = vunpack.c.h.b16 %v2467
    %v2539 = vunpack.c.l.b16 %v2468
    %v2540 = vunpack.c.h.b16 %v2468
    %v2541 = vunpack.c.l.b16 %v2469
    %v2542 = vunpack.c.h.b16 %v2469
    %v2543 = vunpack.c.l.b16 %v2470
    %v2544 = vunpack.c.h.b16 %v2470
    %v2545 = vunpack.c.l.b16 %v2471
    %v2546 = vunpack.c.h.b16 %v2471
    %v2547 = vunpack.c.l.b16 %v2472
    %v2548 = vunpack.c.h.b16 %v2472
    %v2549 = vunpack.c.l.b16 %v2473
    %v2550 = vunpack.c.h.b16 %v2473
    %v2551 = vunpack.c.l.b16 %v2474
    %v2552 = vunpack.c.h.b16 %v2474
    %v2553 = vunpack.c.l.b16 %v2475
    %v2554 = vunpack.c.h.b16 %v2475
    %v2555 = vunpack.c.l.b16 %v2476
    %v2556 = vunpack.c.h.b16 %v2476
    %v2557 = vunpack.c.l.b16 %v2477
    %v2558 = vunpack.c.h.b16 %v2477
    %v2559 = vunpack.c.l.b16 %v2478
    %v2560 = vunpack.c.h.b16 %v2478
    %v2561 = vunpack.c.l.b16 %v2479
    %v2562 = vunpack.c.h.b16 %v2479
    %v2563 = vunpack.c.l.b16 %v2480
    %v2564 = vunpack.c.h.b16 %v2480
    %v2565 = vunpack.c.l.b16 %v2481
    %v2566 = vunpack.c.h.b16 %v2481
    %v2567 = vunpack.c.l.b16 %v2482
    %v2568 = vunpack.c.h.b16 %v2482
    %v2569 = vunpack.c.l.b16 %v2483
    %v2570 = vunpack.c.h.b16 %v2483
    %v2571 = vunpack.c.l.b16 %v2484
    %v2572 = vunpack.c.h.b16 %v2484
    %v2573 = vunpack.c.l.b16 %v2485
    %v2574 = vunpack.c.h.b16 %v2485
    %v2575 = vunpack.c.l.b16 %v2486
    %v2576 = vunpack.c.h.b16 %v2486
    %v2577 = vunpack.c.l.b16 %v2487
    %v2578 = vunpack.c.h.b16 %v2487
    %v2579 = vunpack.c.l.b16 %v2488
    %v2580 = vunpack.c.h.b16 %v2488
    %v2581 = vunpack.c.l.b16 %v2489
    %v2582 = vunpack.c.h.b16 %v2489
    %v2583 = vunpack.c.l.b16 %v2490
    %v2584 = vunpack.c.h.b16 %v2490
    %v2585 = vunpack.c.l.b16 %v2491
    %v2586 = vunpack.c.h.b16 %v2491
    %v2587 = vunpack.c.l.b16 %v2492
    %v2588 = vunpack.c.h.b16 %v2492
    %v2589 = vunpack.c.l.b16 %v2493
    %v2590 = vunpack.c.h.b16 %v2493
    %v2591 = vpack.c.b16 %v2531, %v2527
    %v2592 = vpack.c.b16 %v2532, %v2528
    %v2593 = vpack.c.b16 %v2533, %v2529
    %v2594 = vpack.c.b16 %v2534, %v2530
    %v2595 = vpack.c.b16 %v2539, %v2535
    %v2596 = vpack.c.b16 %v2540, %v2536
    %v2597 = vpack.c.b16 %v2541, %v2537
    %v2598 = vpack.c.b16 %v2542, %v2538
    %v2599 = vpack.c.b16 %v2547, %v2543
    %v2600 = vpack.c.b16 %v2548, %v2544
    %v2601 = vpack.c.b16 %v2549, %v2545
    %v2602 = vpack.c.b16 %v2550, %v2546
    %v2603 = vpack.c.b16 %v2555, %v2551
    %v2604 = vpack.c.b16 %v2556, %v2552
    %v2605 = vpack.c.b16 %v2557, %v2553
    %v2606 = vpack.c.b16 %v2558, %v2554
    %v2607 = vpack.c.b16 %v2563, %v2559
    %v2608 = vpack.c.b16 %v2564, %v2560
    %v2609 = vpack.c.b16 %v2565, %v2561
    %v2610 = vpack.c.b16 %v2566, %v2562
    %v2611 = vpack.c.b16 %v2571, %v2567
    %v2612 = vpack.c.b16 %v2572, %v2568
    %v2613 = vpack.c.b16 %v2573, %v2569
    %v2614 = vpack.c.b16 %v2574, %v2570
    %v2615 = vpack.c.b16 %v2579, %v2575
    %v2616 = vpack.c.b16 %v2580, %v2576
    %v2617 = vpack.c.b16 %v2581, %v2577
    %v2618 = vpack.c.b16 %v2582, %v2578
    %v2619 = vpack.c.b16 %v2587, %v2583
    %v2620 = vpack.c.b16 %v2588, %v2584
    %v2621 = vpack.c.b16 %v2589, %v2585
    %v2622 = vpack.c.b16 %v2590, %v2586
    %2655 = vmatprep.subr.bf16.mxu0 %v2592
    %2656 = vmatpush1.bf16.msra.mxu0 %v2591
    %2657 = vmatprep.subr.bf16.mxu0 %v2596
    %2658 = vmatpush1.bf16.msra.mxu0 %v2595
    %2659 = vmatprep.subr.bf16.mxu0 %v2600
    %2660 = vmatpush1.bf16.msra.mxu0 %v2599
    %2661 = vmatprep.subr.bf16.mxu0 %v2604
    %2662 = vmatpush1.bf16.msra.mxu0 %v2603
    %2663 = vmatprep.subr.bf16.mxu0 %v2608
    %2664 = vmatpush1.bf16.msra.mxu0 %v2607
    %2665 = vmatprep.subr.bf16.mxu0 %v2612
    %2666 = vmatpush1.bf16.msra.mxu0 %v2611
    %2667 = vmatprep.subr.bf16.mxu0 %v2616
    %2668 = vmatpush1.bf16.msra.mxu0 %v2615
    %2669 = vmatprep.subr.bf16.mxu0 %v2620
    %2670 = vmatpush1.bf16.msra.mxu0 %v2619
    %2671 = vmatprep.subr.bf16.mxu0 0
    %2672 = vmatpush1.bf16.msra.mxu0 0
    %2673 = vmatprep.subr.bf16.mxu0 0
    %2674 = vmatpush1.bf16.msra.mxu0 0
    %2675 = vmatprep.subr.bf16.mxu0 0
    %2676 = vmatpush1.bf16.msra.mxu0 0
    %2677 = vmatprep.subr.bf16.mxu0 0
    %2678 = vmatpush1.bf16.msra.mxu0 0
    %2679 = vmatprep.subr.bf16.mxu0 0
    %2680 = vmatpush1.bf16.msra.mxu0 0
    %2681 = vmatprep.subr.bf16.mxu0 0
    %2682 = vmatpush1.bf16.msra.mxu0 0
    %2683 = vmatprep.subr.bf16.mxu0 0
    %2684 = vmatpush1.bf16.msra.mxu0 0
    %2685 = vmatprep.subr.bf16.mxu0 0
    %2686 = vmatpush1.bf16.msra.mxu0 0
    %2687 = vmatprep.mubr.bf16.mxu0 0
    %2688 = vmatmul.mubr.bf16.gmra.mrb[0].mxu0 %v2494
    %v2689 = vpop.f32.mrb[0].mxu0
    %v2690 = vadd.f32 0.0, %v2689
    %v2691 = vpop.f32.mrb[0].mxu0
    %v2692 = vadd.f32 0.0, %v2691
    %v2693 = vpop.f32.mrb[0].mxu0
    %v2694 = vpop.f32.mrb[0].mxu0
    %2695 = vdwg.mxu0
    %2696 = vmatprep.subr.bf16.mxu0 %v2594
    %2697 = vmatpush1.bf16.msra.mxu0 %v2593
    %2698 = vmatprep.subr.bf16.mxu0 %v2598
    %2699 = vmatpush1.bf16.msra.mxu0 %v2597
    %2700 = vmatprep.subr.bf16.mxu0 %v2602
    %2701 = vmatpush1.bf16.msra.mxu0 %v2601
    %2702 = vmatprep.subr.bf16.mxu0 %v2606
    %2703 = vmatpush1.bf16.msra.mxu0 %v2605
    %2704 = vmatprep.subr.bf16.mxu0 %v2610
    %2705 = vmatpush1.bf16.msra.mxu0 %v2609
    %2706 = vmatprep.subr.bf16.mxu0 %v2614
    %2707 = vmatpush1.bf16.msra.mxu0 %v2613
    %2708 = vmatprep.subr.bf16.mxu0 %v2618
    %2709 = vmatpush1.bf16.msra.mxu0 %v2617
    %2710 = vmatprep.subr.bf16.mxu0 %v2622
    %2711 = vmatpush1.bf16.msra.mxu0 %v2621
    %2712 = vmatprep.subr.bf16.mxu0 0
    %2713 = vmatpush1.bf16.msra.mxu0 0
    %2714 = vmatprep.subr.bf16.mxu0 0
    %2715 = vmatpush1.bf16.msra.mxu0 0
    %2716 = vmatprep.subr.bf16.mxu0 0
    %2717 = vmatpush1.bf16.msra.mxu0 0
    %2718 = vmatprep.subr.bf16.mxu0 0
    %2719 = vmatpush1.bf16.msra.mxu0 0
    %2720 = vmatprep.subr.bf16.mxu0 0
    %2721 = vmatpush1.bf16.msra.mxu0 0
    %2722 = vmatprep.subr.bf16.mxu0 0
    %2723 = vmatpush1.bf16.msra.mxu0 0
    %2724 = vmatprep.subr.bf16.mxu0 0
    %2725 = vmatpush1.bf16.msra.mxu0 0
    %2726 = vmatprep.subr.bf16.mxu0 0
    %2727 = vmatpush1.bf16.msra.mxu0 0
    %2728 = vmatprep.mubr.bf16.mxu0 0
    %2729 = vmatmul.mubr.bf16.gmra.mrb[0].mxu0 %v2494
    %v2730 = vpop.f32.mrb[0].mxu0
    %v2731 = vadd.f32 0.0, %v2730
    %v2732 = vpop.f32.mrb[0].mxu0
    %v2733 = vadd.f32 0.0, %v2732
    %v2734 = vpop.f32.mrb[0].mxu0
    %v2735 = vpop.f32.mrb[0].mxu0
    %2736 = vdwg.mxu0
    %v2737 = vadd.f32 %v2457, %v2690
    %v2738 = vadd.f32 %v2458, %v2692
    %v2739 = vadd.f32 %v2459, %v2731
    %v2740 = vadd.f32 %v2460, %v2733
    %v2741 = vxor.u32 %v2737, 2147483648
    %v2742 = vmul.f32 %v2741, 1.442695
    %v2743 = vpow.pop %v2742
    %v2744 = vadd.f32 %v2743, 1.0
    %v2745 = vrcp.pop %v2744
    %v2746 = vmul.f32 1.0, %v2745
    %v2747 = vxor.u32 %v2738, 2147483648
    %v2748 = vmul.f32 %v2747, 1.442695
    %v2749 = vpow.pop %v2748
    %v2750 = vadd.f32 %v2749, 1.0
    %v2751 = vrcp.pop %v2750
    %v2752 = vmul.f32 1.0, %v2751
    %v2753 = vtanh.pop %v2739
    %v2754 = vxor.u32 %v2740, 2147483648
    %v2755 = vmul.f32 %v2754, 1.442695
    %v2756 = vpow.pop %v2755
    %v2757 = vadd.f32 %v2756, 1.0
    %v2758 = vrcp.pop %v2757
    %v2759 = vmul.f32 1.0, %v2758
    %v2760 = vmul.f32 %v2752, %v2375
    %v2761 = vmul.f32 %v2746, %v2753
    %v2762 = vadd.f32 %v2760, %v2761
    %v2763 = vtanh.pop %v2762
    %v2764 = vmul.f32 %v2759, %v2763
    %s2765 = scalar_lea.vmem [#allocation15], 16
    %2766 = vst [vmem:[%s2765] sm:$0xff] %v2764
    %s2767 = scalar_lea.vmem [#allocation17], 16
    %2768 = vst [vmem:[%s2767] sm:$0xff] %v2762
    %s2769 = scalar_lea.vmem %s3, 24
    %v2770 = vld [vmem:[%s2769] sm:$0xff]
    %s2771 = scalar_lea.vmem %s4, 24
    %v2772 = vld [vmem:[%s2771] sm:$0xff]
    %s2773 = scalar_lea.vmem %s10, 12
    %v2774 = vld [vmem:[%s2773] sm:$0x7]
    %s2775 = scalar_lea.vmem %s11, 12
    %v2776 = vld [vmem:[%s2775] sm:$0x7]
    %s2777 = scalar_lea.vmem %s12, 24
    %v2778 = vld [vmem:[%s2777] sm:$0xff]
    %s2779 = scalar_lea.vmem [#allocation2], 192
    %v2780 = vld [vmem:[%s2779] sm:$0xf]
    %v2781 = vld [vmem:[%s2779 + $0x4] sm:$0xf]
    %v2782 = vld [vmem:[%s2779 + $0x8] sm:$0xf]
    %v2783 = vld [vmem:[%s2779 + $0xc] sm:$0xf]
    %v2784 = vld [vmem:[%s2779 + $0x10] sm:$0xf]
    %v2785 = vld [vmem:[%s2779 + $0x14] sm:$0xf]
    %v2786 = vld [vmem:[%s2779 + $0x18] sm:$0xf]
    %v2787 = vld [vmem:[%s2779 + $0x1c] sm:$0xf]
    %v2788 = vld [vmem:[%s2779 + $0x20] sm:$0xf]
    %v2789 = vld [vmem:[%s2779 + $0x24] sm:$0xf]
    %v2790 = vld [vmem:[%s2779 + $0x28] sm:$0xf]
    %v2791 = vld [vmem:[%s2779 + $0x2c] sm:$0xf]
    %v2792 = vld [vmem:[%s2779 + $0x30] sm:$0xf]
    %v2793 = vld [vmem:[%s2779 + $0x34] sm:$0xf]
    %v2794 = vld [vmem:[%s2779 + $0x38] sm:$0xf]
    %v2795 = vld [vmem:[%s2779 + $0x3c] sm:$0xf]
    %v2796 = vpack.c.bf16 %v2764, %v2764
    %s2797 = scalar_lea.vmem [#allocation5], 192
    %v2798 = vld [vmem:[%s2797] sm:$0xf]
    %v2799 = vld [vmem:[%s2797 + $0x4] sm:$0xf]
    %v2800 = vld [vmem:[%s2797 + $0x8] sm:$0xf]
    %v2801 = vld [vmem:[%s2797 + $0xc] sm:$0xf]
    %v2802 = vld [vmem:[%s2797 + $0x10] sm:$0xf]
    %v2803 = vld [vmem:[%s2797 + $0x14] sm:$0xf]
    %v2804 = vld [vmem:[%s2797 + $0x18] sm:$0xf]
    %v2805 = vld [vmem:[%s2797 + $0x1c] sm:$0xf]
    %v2806 = vld [vmem:[%s2797 + $0x20] sm:$0xf]
    %v2807 = vld [vmem:[%s2797 + $0x24] sm:$0xf]
    %v2808 = vld [vmem:[%s2797 + $0x28] sm:$0xf]
    %v2809 = vld [vmem:[%s2797 + $0x2c] sm:$0xf]
    %v2810 = vld [vmem:[%s2797 + $0x30] sm:$0xf]
    %v2811 = vld [vmem:[%s2797 + $0x34] sm:$0xf]
    %v2812 = vld [vmem:[%s2797 + $0x38] sm:$0xf]
    %v2813 = vld [vmem:[%s2797 + $0x3c] sm:$0xf]
    %v2814 = vpack.c.bf16 %v2770, %v2770
    %v2831 = vunpack.c.l.b16 %v2798
    %v2832 = vunpack.c.l.b16 %v2799
    %v2833 = vunpack.c.l.b16 %v2800
    %v2834 = vunpack.c.l.b16 %v2801
    %v2835 = vunpack.c.l.b16 %v2802
    %v2836 = vunpack.c.l.b16 %v2803
    %v2837 = vunpack.c.l.b16 %v2804
    %v2838 = vunpack.c.l.b16 %v2805
    %v2839 = vunpack.c.l.b16 %v2806
    %v2840 = vunpack.c.l.b16 %v2807
    %v2841 = vunpack.c.l.b16 %v2808
    %v2842 = vunpack.c.l.b16 %v2809
    %v2843 = vunpack.c.l.b16 %v2810
    %v2844 = vunpack.c.l.b16 %v2811
    %v2845 = vunpack.c.l.b16 %v2812
    %v2846 = vunpack.c.l.b16 %v2813
    %v2847 = vpack.c.b16 %v2832, %v2831
    %v2848 = vpack.c.b16 %v2834, %v2833
    %v2849 = vpack.c.b16 %v2836, %v2835
    %v2850 = vpack.c.b16 %v2838, %v2837
    %v2851 = vpack.c.b16 %v2840, %v2839
    %v2852 = vpack.c.b16 %v2842, %v2841
    %v2853 = vpack.c.b16 %v2844, %v2843
    %v2854 = vpack.c.b16 %v2846, %v2845
    %2863 = vmatprep.subr.bf16.mxu0 0
    %2864 = vmatpush1.bf16.msra.mxu0 %v2847
    %2865 = vmatprep.subr.bf16.mxu0 0
    %2866 = vmatpush1.bf16.msra.mxu0 %v2848
    %2867 = vmatprep.subr.bf16.mxu0 0
    %2868 = vmatpush1.bf16.msra.mxu0 %v2849
    %2869 = vmatprep.subr.bf16.mxu0 0
    %2870 = vmatpush1.bf16.msra.mxu0 %v2850
    %2871 = vmatprep.subr.bf16.mxu0 0
    %2872 = vmatpush1.bf16.msra.mxu0 %v2851
    %2873 = vmatprep.subr.bf16.mxu0 0
    %2874 = vmatpush1.bf16.msra.mxu0 %v2852
    %2875 = vmatprep.subr.bf16.mxu0 0
    %2876 = vmatpush1.bf16.msra.mxu0 %v2853
    %2877 = vmatprep.subr.bf16.mxu0 0
    %2878 = vmatpush1.bf16.msra.mxu0 %v2854
    %2879 = vmatprep.subr.bf16.mxu0 0
    %2880 = vmatpush1.bf16.msra.mxu0 0
    %2881 = vmatprep.subr.bf16.mxu0 0
    %2882 = vmatpush1.bf16.msra.mxu0 0
    %2883 = vmatprep.subr.bf16.mxu0 0
    %2884 = vmatpush1.bf16.msra.mxu0 0
    %2885 = vmatprep.subr.bf16.mxu0 0
    %2886 = vmatpush1.bf16.msra.mxu0 0
    %2887 = vmatprep.subr.bf16.mxu0 0
    %2888 = vmatpush1.bf16.msra.mxu0 0
    %2889 = vmatprep.subr.bf16.mxu0 0
    %2890 = vmatpush1.bf16.msra.mxu0 0
    %2891 = vmatprep.subr.bf16.mxu0 0
    %2892 = vmatpush1.bf16.msra.mxu0 0
    %2893 = vmatprep.subr.bf16.mxu0 0
    %2894 = vmatpush1.bf16.msra.mxu0 0
    %2895 = vmatprep.mubr.bf16.mxu0 0
    %2896 = vmatmul.mubr.bf16.gmra.mrb[0].mxu0 %v2814
    %v2897 = vpop.f32.mrb[0].mxu0
    %v2898 = vadd.f32 0.0, %v2897
    %v2899 = vpop.f32.mrb[0].mxu0
    %v2900 = vpop.f32.mrb[0].mxu0
    %v2901 = vpop.f32.mrb[0].mxu0
    %2902 = vdwg.mxu0
    %v2919 = vunpack.c.l.b16 %v2780
    %v2920 = vunpack.c.l.b16 %v2781
    %v2921 = vunpack.c.l.b16 %v2782
    %v2922 = vunpack.c.l.b16 %v2783
    %v2923 = vunpack.c.l.b16 %v2784
    %v2924 = vunpack.c.l.b16 %v2785
    %v2925 = vunpack.c.l.b16 %v2786
    %v2926 = vunpack.c.l.b16 %v2787
    %v2927 = vunpack.c.l.b16 %v2788
    %v2928 = vunpack.c.l.b16 %v2789
    %v2929 = vunpack.c.l.b16 %v2790
    %v2930 = vunpack.c.l.b16 %v2791
    %v2931 = vunpack.c.l.b16 %v2792
    %v2932 = vunpack.c.l.b16 %v2793
    %v2933 = vunpack.c.l.b16 %v2794
    %v2934 = vunpack.c.l.b16 %v2795
    %v2935 = vpack.c.b16 %v2920, %v2919
    %v2936 = vpack.c.b16 %v2922, %v2921
    %v2937 = vpack.c.b16 %v2924, %v2923
    %v2938 = vpack.c.b16 %v2926, %v2925
    %v2939 = vpack.c.b16 %v2928, %v2927
    %v2940 = vpack.c.b16 %v2930, %v2929
    %v2941 = vpack.c.b16 %v2932, %v2931
    %v2942 = vpack.c.b16 %v2934, %v2933
    %2951 = vmatprep.subr.bf16.mxu0 0
    %2952 = vmatpush1.bf16.msra.mxu0 %v2935
    %2953 = vmatprep.subr.bf16.mxu0 0
    %2954 = vmatpush1.bf16.msra.mxu0 %v2936
    %2955 = vmatprep.subr.bf16.mxu0 0
    %2956 = vmatpush1.bf16.msra.mxu0 %v2937
    %2957 = vmatprep.subr.bf16.mxu0 0
    %2958 = vmatpush1.bf16.msra.mxu0 %v2938
    %2959 = vmatprep.subr.bf16.mxu0 0
    %2960 = vmatpush1.bf16.msra.mxu0 %v2939
    %2961 = vmatprep.subr.bf16.mxu0 0
    %2962 = vmatpush1.bf16.msra.mxu0 %v2940
    %2963 = vmatprep.subr.bf16.mxu0 0
    %2964 = vmatpush1.bf16.msra.mxu0 %v2941
    %2965 = vmatprep.subr.bf16.mxu0 0
    %2966 = vmatpush1.bf16.msra.mxu0 %v2942
    %2967 = vmatprep.subr.bf16.mxu0 0
    %2968 = vmatpush1.bf16.msra.mxu0 0
    %2969 = vmatprep.subr.bf16.mxu0 0
    %2970 = vmatpush1.bf16.msra.mxu0 0
    %2971 = vmatprep.subr.bf16.mxu0 0
    %2972 = vmatpush1.bf16.msra.mxu0 0
    %2973 = vmatprep.subr.bf16.mxu0 0
    %2974 = vmatpush1.bf16.msra.mxu0 0
    %2975 = vmatprep.subr.bf16.mxu0 0
    %2976 = vmatpush1.bf16.msra.mxu0 0
    %2977 = vmatprep.subr.bf16.mxu0 0
    %2978 = vmatpush1.bf16.msra.mxu0 0
    %2979 = vmatprep.subr.bf16.mxu0 0
    %2980 = vmatpush1.bf16.msra.mxu0 0
    %2981 = vmatprep.subr.bf16.mxu0 0
    %2982 = vmatpush1.bf16.msra.mxu0 0
    %2983 = vmatprep.mubr.bf16.mxu0 0
    %2984 = vmatmul.mubr.bf16.gmra.mrb[0].mxu0 %v2796
    %v2985 = vpop.f32.mrb[0].mxu0
    %v2986 = vadd.f32 %v2898, %v2985
    %v2987 = vpop.f32.mrb[0].mxu0
    %v2988 = vpop.f32.mrb[0].mxu0
    %v2989 = vpop.f32.mrb[0].mxu0
    %2990 = vdwg.mxu0
    %v2991 = vlaneseq
    %v2992 = vshrl.u32 %v2991, 7
    %v2993 = vsub.s32 0, %v2992
    %v2994 = vrot.slane %v2774, %v2993
    %v2995 = vadd.f32 %v2986, %v2994
    %2996 = vadd.xlane.f32.xlu0 %v2995
    %v2997 = vpop.xlane.xlu0 %2996
    %v2998 = vmul.f32 %v2997, %v358
    %v2999 = vsub.f32 %v2995, %v2998
    %v3000 = vmul.f32 %v2999, %v2999
    %3001 = vadd.xlane.f32.xlu0 %v3000
    %v3002 = vpop.xlane.xlu0 %3001
    %v3003 = vmul.f32 %v3002, %v358
    %v3004 = vadd.f32 %v3003, 1e-05
    %v3005 = vrsqrt.pop %v3004
    %v3006 = vmul.f32 %v2999, %v3005
    %v3007 = vlaneseq
    %v3008 = vshrl.u32 %v3007, 7
    %v3009 = vsub.s32 1, %v3008
    %v3010 = vrot.slane %v2774, %v3009
    %v3011 = vmul.f32 %v3006, %v3010
    %v3012 = vlaneseq
    %v3013 = vshrl.u32 %v3012, 7
    %v3014 = vsub.s32 2, %v3013
    %v3015 = vrot.slane %v2774, %v3014
    %v3016 = vadd.f32 %v3011, %v3015
    %v3017 = vmax.f32 %v3016, 0.0
    %s3018 = scalar_lea.vmem [#allocation7], 192
    %v3019 = vld [vmem:[%s3018] sm:$0xf]
    %v3020 = vld [vmem:[%s3018 + $0x4] sm:$0xf]
    %v3021 = vld [vmem:[%s3018 + $0x8] sm:$0xf]
    %v3022 = vld [vmem:[%s3018 + $0xc] sm:$0xf]
    %v3023 = vld [vmem:[%s3018 + $0x10] sm:$0xf]
    %v3024 = vld [vmem:[%s3018 + $0x14] sm:$0xf]
    %v3025 = vld [vmem:[%s3018 + $0x18] sm:$0xf]
    %v3026 = vld [vmem:[%s3018 + $0x1c] sm:$0xf]
    %v3027 = vld [vmem:[%s3018 + $0x20] sm:$0xf]
    %v3028 = vld [vmem:[%s3018 + $0x24] sm:$0xf]
    %v3029 = vld [vmem:[%s3018 + $0x28] sm:$0xf]
    %v3030 = vld [vmem:[%s3018 + $0x2c] sm:$0xf]
    %v3031 = vld [vmem:[%s3018 + $0x30] sm:$0xf]
    %v3032 = vld [vmem:[%s3018 + $0x34] sm:$0xf]
    %v3033 = vld [vmem:[%s3018 + $0x38] sm:$0xf]
    %v3034 = vld [vmem:[%s3018 + $0x3c] sm:$0xf]
    %v3035 = vpack.c.bf16 %v2762, %v2762
    %s3036 = scalar_lea.vmem [#allocation8], 192
    %v3037 = vld [vmem:[%s3036] sm:$0xf]
    %v3038 = vld [vmem:[%s3036 + $0x4] sm:$0xf]
    %v3039 = vld [vmem:[%s3036 + $0x8] sm:$0xf]
    %v3040 = vld [vmem:[%s3036 + $0xc] sm:$0xf]
    %v3041 = vld [vmem:[%s3036 + $0x10] sm:$0xf]
    %v3042 = vld [vmem:[%s3036 + $0x14] sm:$0xf]
    %v3043 = vld [vmem:[%s3036 + $0x18] sm:$0xf]
    %v3044 = vld [vmem:[%s3036 + $0x1c] sm:$0xf]
    %v3045 = vld [vmem:[%s3036 + $0x20] sm:$0xf]
    %v3046 = vld [vmem:[%s3036 + $0x24] sm:$0xf]
    %v3047 = vld [vmem:[%s3036 + $0x28] sm:$0xf]
    %v3048 = vld [vmem:[%s3036 + $0x2c] sm:$0xf]
    %v3049 = vld [vmem:[%s3036 + $0x30] sm:$0xf]
    %v3050 = vld [vmem:[%s3036 + $0x34] sm:$0xf]
    %v3051 = vld [vmem:[%s3036 + $0x38] sm:$0xf]
    %v3052 = vld [vmem:[%s3036 + $0x3c] sm:$0xf]
    %v3053 = vpack.c.bf16 %v2772, %v2772
    %v3070 = vunpack.c.l.b16 %v3037
    %v3071 = vunpack.c.l.b16 %v3038
    %v3072 = vunpack.c.l.b16 %v3039
    %v3073 = vunpack.c.l.b16 %v3040
    %v3074 = vunpack.c.l.b16 %v3041
    %v3075 = vunpack.c.l.b16 %v3042
    %v3076 = vunpack.c.l.b16 %v3043
    %v3077 = vunpack.c.l.b16 %v3044
    %v3078 = vunpack.c.l.b16 %v3045
    %v3079 = vunpack.c.l.b16 %v3046
    %v3080 = vunpack.c.l.b16 %v3047
    %v3081 = vunpack.c.l.b16 %v3048
    %v3082 = vunpack.c.l.b16 %v3049
    %v3083 = vunpack.c.l.b16 %v3050
    %v3084 = vunpack.c.l.b16 %v3051
    %v3085 = vunpack.c.l.b16 %v3052
    %v3086 = vpack.c.b16 %v3071, %v3070
    %v3087 = vpack.c.b16 %v3073, %v3072
    %v3088 = vpack.c.b16 %v3075, %v3074
    %v3089 = vpack.c.b16 %v3077, %v3076
    %v3090 = vpack.c.b16 %v3079, %v3078
    %v3091 = vpack.c.b16 %v3081, %v3080
    %v3092 = vpack.c.b16 %v3083, %v3082
    %v3093 = vpack.c.b16 %v3085, %v3084
    %3102 = vmatprep.subr.bf16.mxu0 0
    %3103 = vmatpush1.bf16.msra.mxu0 %v3086
    %3104 = vmatprep.subr.bf16.mxu0 0
    %3105 = vmatpush1.bf16.msra.mxu0 %v3087
    %3106 = vmatprep.subr.bf16.mxu0 0
    %3107 = vmatpush1.bf16.msra.mxu0 %v3088
    %3108 = vmatprep.subr.bf16.mxu0 0
    %3109 = vmatpush1.bf16.msra.mxu0 %v3089
    %3110 = vmatprep.subr.bf16.mxu0 0
    %3111 = vmatpush1.bf16.msra.mxu0 %v3090
    %3112 = vmatprep.subr.bf16.mxu0 0
    %3113 = vmatpush1.bf16.msra.mxu0 %v3091
    %3114 = vmatprep.subr.bf16.mxu0 0
    %3115 = vmatpush1.bf16.msra.mxu0 %v3092
    %3116 = vmatprep.subr.bf16.mxu0 0
    %3117 = vmatpush1.bf16.msra.mxu0 %v3093
    %3118 = vmatprep.subr.bf16.mxu0 0
    %3119 = vmatpush1.bf16.msra.mxu0 0
    %3120 = vmatprep.subr.bf16.mxu0 0
    %3121 = vmatpush1.bf16.msra.mxu0 0
    %3122 = vmatprep.subr.bf16.mxu0 0
    %3123 = vmatpush1.bf16.msra.mxu0 0
    %3124 = vmatprep.subr.bf16.mxu0 0
    %3125 = vmatpush1.bf16.msra.mxu0 0
    %3126 = vmatprep.subr.bf16.mxu0 0
    %3127 = vmatpush1.bf16.msra.mxu0 0
    %3128 = vmatprep.subr.bf16.mxu0 0
    %3129 = vmatpush1.bf16.msra.mxu0 0
    %3130 = vmatprep.subr.bf16.mxu0 0
    %3131 = vmatpush1.bf16.msra.mxu0 0
    %3132 = vmatprep.subr.bf16.mxu0 0
    %3133 = vmatpush1.bf16.msra.mxu0 0
    %3134 = vmatprep.mubr.bf16.mxu0 0
    %3135 = vmatmul.mubr.bf16.gmra.mrb[0].mxu0 %v3053
    %v3136 = vpop.f32.mrb[0].mxu0
    %v3137 = vadd.f32 0.0, %v3136
    %v3138 = vpop.f32.mrb[0].mxu0
    %v3139 = vpop.f32.mrb[0].mxu0
    %v3140 = vpop.f32.mrb[0].mxu0
    %3141 = vdwg.mxu0
    %v3158 = vunpack.c.l.b16 %v3019
    %v3159 = vunpack.c.l.b16 %v3020
    %v3160 = vunpack.c.l.b16 %v3021
    %v3161 = vunpack.c.l.b16 %v3022
    %v3162 = vunpack.c.l.b16 %v3023
    %v3163 = vunpack.c.l.b16 %v3024
    %v3164 = vunpack.c.l.b16 %v3025
    %v3165 = vunpack.c.l.b16 %v3026
    %v3166 = vunpack.c.l.b16 %v3027
    %v3167 = vunpack.c.l.b16 %v3028
    %v3168 = vunpack.c.l.b16 %v3029
    %v3169 = vunpack.c.l.b16 %v3030
    %v3170 = vunpack.c.l.b16 %v3031
    %v3171 = vunpack.c.l.b16 %v3032
    %v3172 = vunpack.c.l.b16 %v3033
    %v3173 = vunpack.c.l.b16 %v3034
    %v3174 = vpack.c.b16 %v3159, %v3158
    %v3175 = vpack.c.b16 %v3161, %v3160
    %v3176 = vpack.c.b16 %v3163, %v3162
    %v3177 = vpack.c.b16 %v3165, %v3164
    %v3178 = vpack.c.b16 %v3167, %v3166
    %v3179 = vpack.c.b16 %v3169, %v3168
    %v3180 = vpack.c.b16 %v3171, %v3170
    %v3181 = vpack.c.b16 %v3173, %v3172
    %3190 = vmatprep.subr.bf16.mxu0 0
    %3191 = vmatpush1.bf16.msra.mxu0 %v3174
    %3192 = vmatprep.subr.bf16.mxu0 0
    %3193 = vmatpush1.bf16.msra.mxu0 %v3175
    %3194 = vmatprep.subr.bf16.mxu0 0
    %3195 = vmatpush1.bf16.msra.mxu0 %v3176
    %3196 = vmatprep.subr.bf16.mxu0 0
    %3197 = vmatpush1.bf16.msra.mxu0 %v3177
    %3198 = vmatprep.subr.bf16.mxu0 0
    %3199 = vmatpush1.bf16.msra.mxu0 %v3178
    %3200 = vmatprep.subr.bf16.mxu0 0
    %3201 = vmatpush1.bf16.msra.mxu0 %v3179
    %3202 = vmatprep.subr.bf16.mxu0 0
    %3203 = vmatpush1.bf16.msra.mxu0 %v3180
    %3204 = vmatprep.subr.bf16.mxu0 0
    %3205 = vmatpush1.bf16.msra.mxu0 %v3181
    %3206 = vmatprep.subr.bf16.mxu0 0
    %3207 = vmatpush1.bf16.msra.mxu0 0
    %3208 = vmatprep.subr.bf16.mxu0 0
    %3209 = vmatpush1.bf16.msra.mxu0 0
    %3210 = vmatprep.subr.bf16.mxu0 0
    %3211 = vmatpush1.bf16.msra.mxu0 0
    %3212 = vmatprep.subr.bf16.mxu0 0
    %3213 = vmatpush1.bf16.msra.mxu0 0
    %3214 = vmatprep.subr.bf16.mxu0 0
    %3215 = vmatpush1.bf16.msra.mxu0 0
    %3216 = vmatprep.subr.bf16.mxu0 0
    %3217 = vmatpush1.bf16.msra.mxu0 0
    %3218 = vmatprep.subr.bf16.mxu0 0
    %3219 = vmatpush1.bf16.msra.mxu0 0
    %3220 = vmatprep.subr.bf16.mxu0 0
    %3221 = vmatpush1.bf16.msra.mxu0 0
    %3222 = vmatprep.mubr.bf16.mxu0 0
    %3223 = vmatmul.mubr.bf16.gmra.mrb[0].mxu0 %v3035
    %v3224 = vpop.f32.mrb[0].mxu0
    %v3225 = vadd.f32 %v3137, %v3224
    %v3226 = vpop.f32.mrb[0].mxu0
    %v3227 = vpop.f32.mrb[0].mxu0
    %v3228 = vpop.f32.mrb[0].mxu0
    %3229 = vdwg.mxu0
    %v3230 = vlaneseq
    %v3231 = vshrl.u32 %v3230, 7
    %v3232 = vsub.s32 0, %v3231
    %v3233 = vrot.slane %v2776, %v3232
    %v3234 = vadd.f32 %v3225, %v3233
    %3235 = vadd.xlane.f32.xlu0 %v3234
    %v3236 = vpop.xlane.xlu0 %3235
    %v3237 = vmul.f32 %v3236, %v358
    %v3238 = vsub.f32 %v3234, %v3237
    %v3239 = vmul.f32 %v3238, %v3238
    %3240 = vadd.xlane.f32.xlu0 %v3239
    %v3241 = vpop.xlane.xlu0 %3240
    %v3242 = vmul.f32 %v3241, %v358
    %v3243 = vadd.f32 %v3242, 1e-05
    %v3244 = vrsqrt.pop %v3243
    %v3245 = vmul.f32 %v3238, %v3244
    %v3246 = vlaneseq
    %v3247 = vshrl.u32 %v3246, 7
    %v3248 = vsub.s32 1, %v3247
    %v3249 = vrot.slane %v2776, %v3248
    %v3250 = vmul.f32 %v3245, %v3249
    %v3251 = vlaneseq
    %v3252 = vshrl.u32 %v3251, 7
    %v3253 = vsub.s32 2, %v3252
    %v3254 = vrot.slane %v2776, %v3253
    %v3255 = vadd.f32 %v3250, %v3254
    %v3256 = vmax.f32 %v3255, 0.0
    %3257 = vset.pattern.permute.xlu0 3
    %3258 = vperm.xlu0 %3257, %v133
    %v3259 = vpop.permute.xlu0 %3258
    %v3262 = vlaneseq
    %v3263 = vshrl.u32 %v3262, 7
    %v3264 = vsub.s32 0, %v3263
    %v3265 = vrot.slane %v2778, %v3264
    %v3266 = vlaneseq
    %v3267 = vshrl.u32 %v3266, 7
    %v3268 = vsub.s32 2, %v3267
    %v3269 = vrot.slane %v2778, %v3268
    %v3270 = vlaneseq
    %v3271 = vshrl.u32 %v3270, 7
    %v3272 = vsub.s32 4, %v3271
    %v3273 = vrot.slane %v2778, %v3272
    %v3274 = vlaneseq
    %v3275 = vshrl.u32 %v3274, 7
    %v3276 = vsub.s32 6, %v3275
    %v3277 = vrot.slane %v2778, %v3276
    %v3282 = vlaneseq
    %v3283 = vshrl.u32 %v3282, 7
    %v3284 = vsub.s32 0, %v3283
    %v3285 = vrot.slane %v3265, %v3284
    %v3286 = vlaneseq
    %v3287 = vshrl.u32 %v3286, 7
    %v3288 = vsub.s32 0, %v3287
    %v3289 = vrot.slane %v3269, %v3288
    %v3290 = vlaneseq
    %v3291 = vshrl.u32 %v3290, 7
    %v3292 = vsub.s32 0, %v3291
    %v3293 = vrot.slane %v3273, %v3292
    %v3294 = vlaneseq
    %v3295 = vshrl.u32 %v3294, 7
    %v3296 = vsub.s32 0, %v3295
    %v3297 = vrot.slane %v3277, %v3296
    %v3298 = vmul.f32 %v3259, %v3285
    %v3299 = vmul.f32 %v3259, %v3289
    %v3300 = vmul.f32 %v3259, %v3293
    %v3301 = vmul.f32 %v3259, %v3297
    %v3302 = vlaneseq
    %v3303 = vshrl.u32 %v3302, 7
    %v3304 = vsub.s32 1, %v3303
    %v3305 = vrot.slane %v2778, %v3304
    %v3306 = vlaneseq
    %v3307 = vshrl.u32 %v3306, 7
    %v3308 = vsub.s32 3, %v3307
    %v3309 = vrot.slane %v2778, %v3308
    %v3310 = vlaneseq
    %v3311 = vshrl.u32 %v3310, 7
    %v3312 = vsub.s32 5, %v3311
    %v3313 = vrot.slane %v2778, %v3312
    %v3314 = vlaneseq
    %v3315 = vshrl.u32 %v3314, 7
    %v3316 = vsub.s32 7, %v3315
    %v3317 = vrot.slane %v2778, %v3316
    %v3322 = vlaneseq
    %v3323 = vshrl.u32 %v3322, 7
    %v3324 = vsub.s32 1, %v3323
    %v3325 = vrot.slane %v3305, %v3324
    %v3326 = vlaneseq
    %v3327 = vshrl.u32 %v3326, 7
    %v3328 = vsub.s32 1, %v3327
    %v3329 = vrot.slane %v3309, %v3328
    %v3330 = vlaneseq
    %v3331 = vshrl.u32 %v3330, 7
    %v3332 = vsub.s32 1, %v3331
    %v3333 = vrot.slane %v3313, %v3332
    %v3334 = vlaneseq
    %v3335 = vshrl.u32 %v3334, 7
    %v3336 = vsub.s32 1, %v3335
    %v3337 = vrot.slane %v3317, %v3336
    %v3338 = vadd.f32 %v3298, %v3325
    %v3339 = vadd.f32 %v3299, %v3329
    %v3340 = vadd.f32 %v3300, %v3333
    %v3341 = vadd.f32 %v3301, %v3337
    %s3342 = scalar_lea.vmem [#allocation10], 768
    %v3343 = vld [vmem:[%s3342] sm:$0xff]
    %v3344 = vld [vmem:[%s3342 + $0x8] sm:$0xff]
    %v3345 = vld [vmem:[%s3342 + $0x10] sm:$0xff]
    %v3346 = vld [vmem:[%s3342 + $0x18] sm:$0xff]
    %v3347 = vld [vmem:[%s3342 + $0x20] sm:$0xff]
    %v3348 = vld [vmem:[%s3342 + $0x28] sm:$0xff]
    %v3349 = vld [vmem:[%s3342 + $0x30] sm:$0xff]
    %v3350 = vld [vmem:[%s3342 + $0x38] sm:$0xff]
    %v3351 = vld [vmem:[%s3342 + $0x40] sm:$0xff]
    %v3352 = vld [vmem:[%s3342 + $0x48] sm:$0xff]
    %v3353 = vld [vmem:[%s3342 + $0x50] sm:$0xff]
    %v3354 = vld [vmem:[%s3342 + $0x58] sm:$0xff]
    %v3355 = vld [vmem:[%s3342 + $0x60] sm:$0xff]
    %v3356 = vld [vmem:[%s3342 + $0x68] sm:$0xff]
    %v3357 = vld [vmem:[%s3342 + $0x70] sm:$0xff]
    %v3358 = vld [vmem:[%s3342 + $0x78] sm:$0xff]
    %v3359 = vld [vmem:[%s3342 + $0x80] sm:$0xff]
    %v3360 = vld [vmem:[%s3342 + $0x88] sm:$0xff]
    %v3361 = vld [vmem:[%s3342 + $0x90] sm:$0xff]
    %v3362 = vld [vmem:[%s3342 + $0x98] sm:$0xff]
    %v3363 = vld [vmem:[%s3342 + $0xa0] sm:$0xff]
    %v3364 = vld [vmem:[%s3342 + $0xa8] sm:$0xff]
    %v3365 = vld [vmem:[%s3342 + $0xb0] sm:$0xff]
    %v3366 = vld [vmem:[%s3342 + $0xb8] sm:$0xff]
    %v3367 = vld [vmem:[%s3342 + $0xc0] sm:$0xff]
    %v3368 = vld [vmem:[%s3342 + $0xc8] sm:$0xff]
    %v3369 = vld [vmem:[%s3342 + $0xd0] sm:$0xff]
    %v3370 = vld [vmem:[%s3342 + $0xd8] sm:$0xff]
    %v3371 = vld [vmem:[%s3342 + $0xe0] sm:$0xff]
    %v3372 = vld [vmem:[%s3342 + $0xe8] sm:$0xff]
    %v3373 = vld [vmem:[%s3342 + $0xf0] sm:$0xff]
    %v3374 = vld [vmem:[%s3342 + $0xf8] sm:$0xff]
    %v3375 = vpack.c.bf16 %v3017, %v3017
    %v3408 = vunpack.c.l.b16 %v3343
    %v3409 = vunpack.c.h.b16 %v3343
    %v3410 = vunpack.c.l.b16 %v3344
    %v3411 = vunpack.c.h.b16 %v3344
    %v3412 = vunpack.c.l.b16 %v3345
    %v3413 = vunpack.c.h.b16 %v3345
    %v3414 = vunpack.c.l.b16 %v3346
    %v3415 = vunpack.c.h.b16 %v3346
    %v3416 = vunpack.c.l.b16 %v3347
    %v3417 = vunpack.c.h.b16 %v3347
    %v3418 = vunpack.c.l.b16 %v3348
    %v3419 = vunpack.c.h.b16 %v3348
    %v3420 = vunpack.c.l.b16 %v3349
    %v3421 = vunpack.c.h.b16 %v3349
    %v3422 = vunpack.c.l.b16 %v3350
    %v3423 = vunpack.c.h.b16 %v3350
    %v3424 = vunpack.c.l.b16 %v3351
    %v3425 = vunpack.c.h.b16 %v3351
    %v3426 = vunpack.c.l.b16 %v3352
    %v3427 = vunpack.c.h.b16 %v3352
    %v3428 = vunpack.c.l.b16 %v3353
    %v3429 = vunpack.c.h.b16 %v3353
    %v3430 = vunpack.c.l.b16 %v3354
    %v3431 = vunpack.c.h.b16 %v3354
    %v3432 = vunpack.c.l.b16 %v3355
    %v3433 = vunpack.c.h.b16 %v3355
    %v3434 = vunpack.c.l.b16 %v3356
    %v3435 = vunpack.c.h.b16 %v3356
    %v3436 = vunpack.c.l.b16 %v3357
    %v3437 = vunpack.c.h.b16 %v3357
    %v3438 = vunpack.c.l.b16 %v3358
    %v3439 = vunpack.c.h.b16 %v3358
    %v3440 = vunpack.c.l.b16 %v3359
    %v3441 = vunpack.c.h.b16 %v3359
    %v3442 = vunpack.c.l.b16 %v3360
    %v3443 = vunpack.c.h.b16 %v3360
    %v3444 = vunpack.c.l.b16 %v3361
    %v3445 = vunpack.c.h.b16 %v3361
    %v3446 = vunpack.c.l.b16 %v3362
    %v3447 = vunpack.c.h.b16 %v3362
    %v3448 = vunpack.c.l.b16 %v3363
    %v3449 = vunpack.c.h.b16 %v3363
    %v3450 = vunpack.c.l.b16 %v3364
    %v3451 = vunpack.c.h.b16 %v3364
    %v3452 = vunpack.c.l.b16 %v3365
    %v3453 = vunpack.c.h.b16 %v3365
    %v3454 = vunpack.c.l.b16 %v3366
    %v3455 = vunpack.c.h.b16 %v3366
    %v3456 = vunpack.c.l.b16 %v3367
    %v3457 = vunpack.c.h.b16 %v3367
    %v3458 = vunpack.c.l.b16 %v3368
    %v3459 = vunpack.c.h.b16 %v3368
    %v3460 = vunpack.c.l.b16 %v3369
    %v3461 = vunpack.c.h.b16 %v3369
    %v3462 = vunpack.c.l.b16 %v3370
    %v3463 = vunpack.c.h.b16 %v3370
    %v3464 = vunpack.c.l.b16 %v3371
    %v3465 = vunpack.c.h.b16 %v3371
    %v3466 = vunpack.c.l.b16 %v3372
    %v3467 = vunpack.c.h.b16 %v3372
    %v3468 = vunpack.c.l.b16 %v3373
    %v3469 = vunpack.c.h.b16 %v3373
    %v3470 = vunpack.c.l.b16 %v3374
    %v3471 = vunpack.c.h.b16 %v3374
    %v3472 = vpack.c.b16 %v3412, %v3408
    %v3473 = vpack.c.b16 %v3413, %v3409
    %v3474 = vpack.c.b16 %v3414, %v3410
    %v3475 = vpack.c.b16 %v3415, %v3411
    %v3476 = vpack.c.b16 %v3420, %v3416
    %v3477 = vpack.c.b16 %v3421, %v3417
    %v3478 = vpack.c.b16 %v3422, %v3418
    %v3479 = vpack.c.b16 %v3423, %v3419
    %v3480 = vpack.c.b16 %v3428, %v3424
    %v3481 = vpack.c.b16 %v3429, %v3425
    %v3482 = vpack.c.b16 %v3430, %v3426
    %v3483 = vpack.c.b16 %v3431, %v3427
    %v3484 = vpack.c.b16 %v3436, %v3432
    %v3485 = vpack.c.b16 %v3437, %v3433
    %v3486 = vpack.c.b16 %v3438, %v3434
    %v3487 = vpack.c.b16 %v3439, %v3435
    %v3488 = vpack.c.b16 %v3444, %v3440
    %v3489 = vpack.c.b16 %v3445, %v3441
    %v3490 = vpack.c.b16 %v3446, %v3442
    %v3491 = vpack.c.b16 %v3447, %v3443
    %v3492 = vpack.c.b16 %v3452, %v3448
    %v3493 = vpack.c.b16 %v3453, %v3449
    %v3494 = vpack.c.b16 %v3454, %v3450
    %v3495 = vpack.c.b16 %v3455, %v3451
    %v3496 = vpack.c.b16 %v3460, %v3456
    %v3497 = vpack.c.b16 %v3461, %v3457
    %v3498 = vpack.c.b16 %v3462, %v3458
    %v3499 = vpack.c.b16 %v3463, %v3459
    %v3500 = vpack.c.b16 %v3468, %v3464
    %v3501 = vpack.c.b16 %v3469, %v3465
    %v3502 = vpack.c.b16 %v3470, %v3466
    %v3503 = vpack.c.b16 %v3471, %v3467
    %3536 = vmatprep.subr.bf16.mxu0 %v3473
    %3537 = vmatpush1.bf16.msra.mxu0 %v3472
    %3538 = vmatprep.subr.bf16.mxu0 %v3477
    %3539 = vmatpush1.bf16.msra.mxu0 %v3476
    %3540 = vmatprep.subr.bf16.mxu0 %v3481
    %3541 = vmatpush1.bf16.msra.mxu0 %v3480
    %3542 = vmatprep.subr.bf16.mxu0 %v3485
    %3543 = vmatpush1.bf16.msra.mxu0 %v3484
    %3544 = vmatprep.subr.bf16.mxu0 %v3489
    %3545 = vmatpush1.bf16.msra.mxu0 %v3488
    %3546 = vmatprep.subr.bf16.mxu0 %v3493
    %3547 = vmatpush1.bf16.msra.mxu0 %v3492
    %3548 = vmatprep.subr.bf16.mxu0 %v3497
    %3549 = vmatpush1.bf16.msra.mxu0 %v3496
    %3550 = vmatprep.subr.bf16.mxu0 %v3501
    %3551 = vmatpush1.bf16.msra.mxu0 %v3500
    %3552 = vmatprep.subr.bf16.mxu0 0
    %3553 = vmatpush1.bf16.msra.mxu0 0
    %3554 = vmatprep.subr.bf16.mxu0 0
    %3555 = vmatpush1.bf16.msra.mxu0 0
    %3556 = vmatprep.subr.bf16.mxu0 0
    %3557 = vmatpush1.bf16.msra.mxu0 0
    %3558 = vmatprep.subr.bf16.mxu0 0
    %3559 = vmatpush1.bf16.msra.mxu0 0
    %3560 = vmatprep.subr.bf16.mxu0 0
    %3561 = vmatpush1.bf16.msra.mxu0 0
    %3562 = vmatprep.subr.bf16.mxu0 0
    %3563 = vmatpush1.bf16.msra.mxu0 0
    %3564 = vmatprep.subr.bf16.mxu0 0
    %3565 = vmatpush1.bf16.msra.mxu0 0
    %3566 = vmatprep.subr.bf16.mxu0 0
    %3567 = vmatpush1.bf16.msra.mxu0 0
    %3568 = vmatprep.mubr.bf16.mxu0 0
    %3569 = vmatmul.mubr.bf16.gmra.mrb[0].mxu0 %v3375
    %v3570 = vpop.f32.mrb[0].mxu0
    %v3571 = vadd.f32 0.0, %v3570
    %v3572 = vpop.f32.mrb[0].mxu0
    %v3573 = vadd.f32 0.0, %v3572
    %v3574 = vpop.f32.mrb[0].mxu0
    %v3575 = vpop.f32.mrb[0].mxu0
    %3576 = vdwg.mxu0
    %3577 = vmatprep.subr.bf16.mxu0 %v3475
    %3578 = vmatpush1.bf16.msra.mxu0 %v3474
    %3579 = vmatprep.subr.bf16.mxu0 %v3479
    %3580 = vmatpush1.bf16.msra.mxu0 %v3478
    %3581 = vmatprep.subr.bf16.mxu0 %v3483
    %3582 = vmatpush1.bf16.msra.mxu0 %v3482
    %3583 = vmatprep.subr.bf16.mxu0 %v3487
    %3584 = vmatpush1.bf16.msra.mxu0 %v3486
    %3585 = vmatprep.subr.bf16.mxu0 %v3491
    %3586 = vmatpush1.bf16.msra.mxu0 %v3490
    %3587 = vmatprep.subr.bf16.mxu0 %v3495
    %3588 = vmatpush1.bf16.msra.mxu0 %v3494
    %3589 = vmatprep.subr.bf16.mxu0 %v3499
    %3590 = vmatpush1.bf16.msra.mxu0 %v3498
    %3591 = vmatprep.subr.bf16.mxu0 %v3503
    %3592 = vmatpush1.bf16.msra.mxu0 %v3502
    %3593 = vmatprep.subr.bf16.mxu0 0
    %3594 = vmatpush1.bf16.msra.mxu0 0
    %3595 = vmatprep.subr.bf16.mxu0 0
    %3596 = vmatpush1.bf16.msra.mxu0 0
    %3597 = vmatprep.subr.bf16.mxu0 0
    %3598 = vmatpush1.bf16.msra.mxu0 0
    %3599 = vmatprep.subr.bf16.mxu0 0
    %3600 = vmatpush1.bf16.msra.mxu0 0
    %3601 = vmatprep.subr.bf16.mxu0 0
    %3602 = vmatpush1.bf16.msra.mxu0 0
    %3603 = vmatprep.subr.bf16.mxu0 0
    %3604 = vmatpush1.bf16.msra.mxu0 0
    %3605 = vmatprep.subr.bf16.mxu0 0
    %3606 = vmatpush1.bf16.msra.mxu0 0
    %3607 = vmatprep.subr.bf16.mxu0 0
    %3608 = vmatpush1.bf16.msra.mxu0 0
    %3609 = vmatprep.mubr.bf16.mxu0 0
    %3610 = vmatmul.mubr.bf16.gmra.mrb[0].mxu0 %v3375
    %v3611 = vpop.f32.mrb[0].mxu0
    %v3612 = vadd.f32 0.0, %v3611
    %v3613 = vpop.f32.mrb[0].mxu0
    %v3614 = vadd.f32 0.0, %v3613
    %v3615 = vpop.f32.mrb[0].mxu0
    %v3616 = vpop.f32.mrb[0].mxu0
    %3617 = vdwg.mxu0
    %v3618 = vadd.f32 %v3338, %v3571
    %v3619 = vadd.f32 %v3339, %v3573
    %v3620 = vadd.f32 %v3340, %v3612
    %v3621 = vadd.f32 %v3341, %v3614
    %v3622 = vxor.u32 %v3618, 2147483648
    %v3623 = vmul.f32 %v3622, 1.442695
    %v3624 = vpow.pop %v3623
    %v3625 = vadd.f32 %v3624, 1.0
    %v3626 = vrcp.pop %v3625
    %v3627 = vmul.f32 1.0, %v3626
    %v3628 = vxor.u32 %v3619, 2147483648
    %v3629 = vmul.f32 %v3628, 1.442695
    %v3630 = vpow.pop %v3629
    %v3631 = vadd.f32 %v3630, 1.0
    %v3632 = vrcp.pop %v3631
    %v3633 = vmul.f32 1.0, %v3632
    %v3634 = vtanh.pop %v3620
    %v3635 = vxor.u32 %v3621, 2147483648
    %v3636 = vmul.f32 %v3635, 1.442695
    %v3637 = vpow.pop %v3636
    %v3638 = vadd.f32 %v3637, 1.0
    %v3639 = vrcp.pop %v3638
    %v3640 = vmul.f32 1.0, %v3639
    %v3641 = vmul.f32 %v3633, %v3256
    %v3642 = vmul.f32 %v3627, %v3634
    %v3643 = vadd.f32 %v3641, %v3642
    %v3644 = vtanh.pop %v3643
    %v3645 = vmul.f32 %v3640, %v3644
    %s3646 = scalar_lea.vmem [#allocation15], 24
    %3647 = vst [vmem:[%s3646] sm:$0xff] %v3645
    %s3648 = scalar_lea.vmem [#allocation17], 24
    %3649 = vst [vmem:[%s3648] sm:$0xff] %v3643
    %s3650 = scalar_lea.vmem %s3, 32
    %v3651 = vld [vmem:[%s3650] sm:$0xff]
    %s3652 = scalar_lea.vmem %s4, 32
    %v3653 = vld [vmem:[%s3652] sm:$0xff]
    %s3654 = scalar_lea.vmem %s10, 16
    %v3655 = vld [vmem:[%s3654] sm:$0x7]
    %s3656 = scalar_lea.vmem %s11, 16
    %v3657 = vld [vmem:[%s3656] sm:$0x7]
    %s3658 = scalar_lea.vmem %s12, 32
    %v3659 = vld [vmem:[%s3658] sm:$0xff]
    %s3660 = scalar_lea.vmem [#allocation2], 256
    %v3661 = vld [vmem:[%s3660] sm:$0xf]
    %v3662 = vld [vmem:[%s3660 + $0x4] sm:$0xf]
    %v3663 = vld [vmem:[%s3660 + $0x8] sm:$0xf]
    %v3664 = vld [vmem:[%s3660 + $0xc] sm:$0xf]
    %v3665 = vld [vmem:[%s3660 + $0x10] sm:$0xf]
    %v3666 = vld [vmem:[%s3660 + $0x14] sm:$0xf]
    %v3667 = vld [vmem:[%s3660 + $0x18] sm:$0xf]
    %v3668 = vld [vmem:[%s3660 + $0x1c] sm:$0xf]
    %v3669 = vld [vmem:[%s3660 + $0x20] sm:$0xf]
    %v3670 = vld [vmem:[%s3660 + $0x24] sm:$0xf]
    %v3671 = vld [vmem:[%s3660 + $0x28] sm:$0xf]
    %v3672 = vld [vmem:[%s3660 + $0x2c] sm:$0xf]
    %v3673 = vld [vmem:[%s3660 + $0x30] sm:$0xf]
    %v3674 = vld [vmem:[%s3660 + $0x34] sm:$0xf]
    %v3675 = vld [vmem:[%s3660 + $0x38] sm:$0xf]
    %v3676 = vld [vmem:[%s3660 + $0x3c] sm:$0xf]
    %v3677 = vpack.c.bf16 %v3645, %v3645
    %s3678 = scalar_lea.vmem [#allocation5], 256
    %v3679 = vld [vmem:[%s3678] sm:$0xf]
    %v3680 = vld [vmem:[%s3678 + $0x4] sm:$0xf]
    %v3681 = vld [vmem:[%s3678 + $0x8] sm:$0xf]
    %v3682 = vld [vmem:[%s3678 + $0xc] sm:$0xf]
    %v3683 = vld [vmem:[%s3678 + $0x10] sm:$0xf]
    %v3684 = vld [vmem:[%s3678 + $0x14] sm:$0xf]
    %v3685 = vld [vmem:[%s3678 + $0x18] sm:$0xf]
    %v3686 = vld [vmem:[%s3678 + $0x1c] sm:$0xf]
    %v3687 = vld [vmem:[%s3678 + $0x20] sm:$0xf]
    %v3688 = vld [vmem:[%s3678 + $0x24] sm:$0xf]
    %v3689 = vld [vmem:[%s3678 + $0x28] sm:$0xf]
    %v3690 = vld [vmem:[%s3678 + $0x2c] sm:$0xf]
    %v3691 = vld [vmem:[%s3678 + $0x30] sm:$0xf]
    %v3692 = vld [vmem:[%s3678 + $0x34] sm:$0xf]
    %v3693 = vld [vmem:[%s3678 + $0x38] sm:$0xf]
    %v3694 = vld [vmem:[%s3678 + $0x3c] sm:$0xf]
    %v3695 = vpack.c.bf16 %v3651, %v3651
    %v3712 = vunpack.c.l.b16 %v3679
    %v3713 = vunpack.c.l.b16 %v3680
    %v3714 = vunpack.c.l.b16 %v3681
    %v3715 = vunpack.c.l.b16 %v3682
    %v3716 = vunpack.c.l.b16 %v3683
    %v3717 = vunpack.c.l.b16 %v3684
    %v3718 = vunpack.c.l.b16 %v3685
    %v3719 = vunpack.c.l.b16 %v3686
    %v3720 = vunpack.c.l.b16 %v3687
    %v3721 = vunpack.c.l.b16 %v3688
    %v3722 = vunpack.c.l.b16 %v3689
    %v3723 = vunpack.c.l.b16 %v3690
    %v3724 = vunpack.c.l.b16 %v3691
    %v3725 = vunpack.c.l.b16 %v3692
    %v3726 = vunpack.c.l.b16 %v3693
    %v3727 = vunpack.c.l.b16 %v3694
    %v3728 = vpack.c.b16 %v3713, %v3712
    %v3729 = vpack.c.b16 %v3715, %v3714
    %v3730 = vpack.c.b16 %v3717, %v3716
    %v3731 = vpack.c.b16 %v3719, %v3718
    %v3732 = vpack.c.b16 %v3721, %v3720
    %v3733 = vpack.c.b16 %v3723, %v3722
    %v3734 = vpack.c.b16 %v3725, %v3724
    %v3735 = vpack.c.b16 %v3727, %v3726
    %3744 = vmatprep.subr.bf16.mxu0 0
    %3745 = vmatpush1.bf16.msra.mxu0 %v3728
    %3746 = vmatprep.subr.bf16.mxu0 0
    %3747 = vmatpush1.bf16.msra.mxu0 %v3729
    %3748 = vmatprep.subr.bf16.mxu0 0
    %3749 = vmatpush1.bf16.msra.mxu0 %v3730
    %3750 = vmatprep.subr.bf16.mxu0 0
    %3751 = vmatpush1.bf16.msra.mxu0 %v3731
    %3752 = vmatprep.subr.bf16.mxu0 0
    %3753 = vmatpush1.bf16.msra.mxu0 %v3732
    %3754 = vmatprep.subr.bf16.mxu0 0
    %3755 = vmatpush1.bf16.msra.mxu0 %v3733
    %3756 = vmatprep.subr.bf16.mxu0 0
    %3757 = vmatpush1.bf16.msra.mxu0 %v3734
    %3758 = vmatprep.subr.bf16.mxu0 0
    %3759 = vmatpush1.bf16.msra.mxu0 %v3735
    %3760 = vmatprep.subr.bf16.mxu0 0
    %3761 = vmatpush1.bf16.msra.mxu0 0
    %3762 = vmatprep.subr.bf16.mxu0 0
    %3763 = vmatpush1.bf16.msra.mxu0 0
    %3764 = vmatprep.subr.bf16.mxu0 0
    %3765 = vmatpush1.bf16.msra.mxu0 0
    %3766 = vmatprep.subr.bf16.mxu0 0
    %3767 = vmatpush1.bf16.msra.mxu0 0
    %3768 = vmatprep.subr.bf16.mxu0 0
    %3769 = vmatpush1.bf16.msra.mxu0 0
    %3770 = vmatprep.subr.bf16.mxu0 0
    %3771 = vmatpush1.bf16.msra.mxu0 0
    %3772 = vmatprep.subr.bf16.mxu0 0
    %3773 = vmatpush1.bf16.msra.mxu0 0
    %3774 = vmatprep.subr.bf16.mxu0 0
    %3775 = vmatpush1.bf16.msra.mxu0 0
    %3776 = vmatprep.mubr.bf16.mxu0 0
    %3777 = vmatmul.mubr.bf16.gmra.mrb[0].mxu0 %v3695
    %v3778 = vpop.f32.mrb[0].mxu0
    %v3779 = vadd.f32 0.0, %v3778
    %v3780 = vpop.f32.mrb[0].mxu0
    %v3781 = vpop.f32.mrb[0].mxu0
    %v3782 = vpop.f32.mrb[0].mxu0
    %3783 = vdwg.mxu0
    %v3800 = vunpack.c.l.b16 %v3661
    %v3801 = vunpack.c.l.b16 %v3662
    %v3802 = vunpack.c.l.b16 %v3663
    %v3803 = vunpack.c.l.b16 %v3664
    %v3804 = vunpack.c.l.b16 %v3665
    %v3805 = vunpack.c.l.b16 %v3666
    %v3806 = vunpack.c.l.b16 %v3667
    %v3807 = vunpack.c.l.b16 %v3668
    %v3808 = vunpack.c.l.b16 %v3669
    %v3809 = vunpack.c.l.b16 %v3670
    %v3810 = vunpack.c.l.b16 %v3671
    %v3811 = vunpack.c.l.b16 %v3672
    %v3812 = vunpack.c.l.b16 %v3673
    %v3813 = vunpack.c.l.b16 %v3674
    %v3814 = vunpack.c.l.b16 %v3675
    %v3815 = vunpack.c.l.b16 %v3676
    %v3816 = vpack.c.b16 %v3801, %v3800
    %v3817 = vpack.c.b16 %v3803, %v3802
    %v3818 = vpack.c.b16 %v3805, %v3804
    %v3819 = vpack.c.b16 %v3807, %v3806
    %v3820 = vpack.c.b16 %v3809, %v3808
    %v3821 = vpack.c.b16 %v3811, %v3810
    %v3822 = vpack.c.b16 %v3813, %v3812
    %v3823 = vpack.c.b16 %v3815, %v3814
    %3832 = vmatprep.subr.bf16.mxu0 0
    %3833 = vmatpush1.bf16.msra.mxu0 %v3816
    %3834 = vmatprep.subr.bf16.mxu0 0
    %3835 = vmatpush1.bf16.msra.mxu0 %v3817
    %3836 = vmatprep.subr.bf16.mxu0 0
    %3837 = vmatpush1.bf16.msra.mxu0 %v3818
    %3838 = vmatprep.subr.bf16.mxu0 0
    %3839 = vmatpush1.bf16.msra.mxu0 %v3819
    %3840 = vmatprep.subr.bf16.mxu0 0
    %3841 = vmatpush1.bf16.msra.mxu0 %v3820
    %3842 = vmatprep.subr.bf16.mxu0 0
    %3843 = vmatpush1.bf16.msra.mxu0 %v3821
    %3844 = vmatprep.subr.bf16.mxu0 0
    %3845 = vmatpush1.bf16.msra.mxu0 %v3822
    %3846 = vmatprep.subr.bf16.mxu0 0
    %3847 = vmatpush1.bf16.msra.mxu0 %v3823
    %3848 = vmatprep.subr.bf16.mxu0 0
    %3849 = vmatpush1.bf16.msra.mxu0 0
    %3850 = vmatprep.subr.bf16.mxu0 0
    %3851 = vmatpush1.bf16.msra.mxu0 0
    %3852 = vmatprep.subr.bf16.mxu0 0
    %3853 = vmatpush1.bf16.msra.mxu0 0
    %3854 = vmatprep.subr.bf16.mxu0 0
    %3855 = vmatpush1.bf16.msra.mxu0 0
    %3856 = vmatprep.subr.bf16.mxu0 0
    %3857 = vmatpush1.bf16.msra.mxu0 0
    %3858 = vmatprep.subr.bf16.mxu0 0
    %3859 = vmatpush1.bf16.msra.mxu0 0
    %3860 = vmatprep.subr.bf16.mxu0 0
    %3861 = vmatpush1.bf16.msra.mxu0 0
    %3862 = vmatprep.subr.bf16.mxu0 0
    %3863 = vmatpush1.bf16.msra.mxu0 0
    %3864 = vmatprep.mubr.bf16.mxu0 0
    %3865 = vmatmul.mubr.bf16.gmra.mrb[0].mxu0 %v3677
    %v3866 = vpop.f32.mrb[0].mxu0
    %v3867 = vadd.f32 %v3779, %v3866
    %v3868 = vpop.f32.mrb[0].mxu0
    %v3869 = vpop.f32.mrb[0].mxu0
    %v3870 = vpop.f32.mrb[0].mxu0
    %3871 = vdwg.mxu0
    %v3872 = vlaneseq
    %v3873 = vshrl.u32 %v3872, 7
    %v3874 = vsub.s32 0, %v3873
    %v3875 = vrot.slane %v3655, %v3874
    %v3876 = vadd.f32 %v3867, %v3875
    %3877 = vadd.xlane.f32.xlu0 %v3876
    %v3878 = vpop.xlane.xlu0 %3877
    %v3879 = vmul.f32 %v3878, %v358
    %v3880 = vsub.f32 %v3876, %v3879
    %v3881 = vmul.f32 %v3880, %v3880
    %3882 = vadd.xlane.f32.xlu0 %v3881
    %v3883 = vpop.xlane.xlu0 %3882
    %v3884 = vmul.f32 %v3883, %v358
    %v3885 = vadd.f32 %v3884, 1e-05
    %v3886 = vrsqrt.pop %v3885
    %v3887 = vmul.f32 %v3880, %v3886
    %v3888 = vlaneseq
    %v3889 = vshrl.u32 %v3888, 7
    %v3890 = vsub.s32 1, %v3889
    %v3891 = vrot.slane %v3655, %v3890
    %v3892 = vmul.f32 %v3887, %v3891
    %v3893 = vlaneseq
    %v3894 = vshrl.u32 %v3893, 7
    %v3895 = vsub.s32 2, %v3894
    %v3896 = vrot.slane %v3655, %v3895
    %v3897 = vadd.f32 %v3892, %v3896
    %v3898 = vmax.f32 %v3897, 0.0
    %s3899 = scalar_lea.vmem [#allocation7], 256
    %v3900 = vld [vmem:[%s3899] sm:$0xf]
    %v3901 = vld [vmem:[%s3899 + $0x4] sm:$0xf]
    %v3902 = vld [vmem:[%s3899 + $0x8] sm:$0xf]
    %v3903 = vld [vmem:[%s3899 + $0xc] sm:$0xf]
    %v3904 = vld [vmem:[%s3899 + $0x10] sm:$0xf]
    %v3905 = vld [vmem:[%s3899 + $0x14] sm:$0xf]
    %v3906 = vld [vmem:[%s3899 + $0x18] sm:$0xf]
    %v3907 = vld [vmem:[%s3899 + $0x1c] sm:$0xf]
    %v3908 = vld [vmem:[%s3899 + $0x20] sm:$0xf]
    %v3909 = vld [vmem:[%s3899 + $0x24] sm:$0xf]
    %v3910 = vld [vmem:[%s3899 + $0x28] sm:$0xf]
    %v3911 = vld [vmem:[%s3899 + $0x2c] sm:$0xf]
    %v3912 = vld [vmem:[%s3899 + $0x30] sm:$0xf]
    %v3913 = vld [vmem:[%s3899 + $0x34] sm:$0xf]
    %v3914 = vld [vmem:[%s3899 + $0x38] sm:$0xf]
    %v3915 = vld [vmem:[%s3899 + $0x3c] sm:$0xf]
    %v3916 = vpack.c.bf16 %v3643, %v3643
    %s3917 = scalar_lea.vmem [#allocation8], 256
    %v3918 = vld [vmem:[%s3917] sm:$0xf]
    %v3919 = vld [vmem:[%s3917 + $0x4] sm:$0xf]
    %v3920 = vld [vmem:[%s3917 + $0x8] sm:$0xf]
    %v3921 = vld [vmem:[%s3917 + $0xc] sm:$0xf]
    %v3922 = vld [vmem:[%s3917 + $0x10] sm:$0xf]
    %v3923 = vld [vmem:[%s3917 + $0x14] sm:$0xf]
    %v3924 = vld [vmem:[%s3917 + $0x18] sm:$0xf]
    %v3925 = vld [vmem:[%s3917 + $0x1c] sm:$0xf]
    %v3926 = vld [vmem:[%s3917 + $0x20] sm:$0xf]
    %v3927 = vld [vmem:[%s3917 + $0x24] sm:$0xf]
    %v3928 = vld [vmem:[%s3917 + $0x28] sm:$0xf]
    %v3929 = vld [vmem:[%s3917 + $0x2c] sm:$0xf]
    %v3930 = vld [vmem:[%s3917 + $0x30] sm:$0xf]
    %v3931 = vld [vmem:[%s3917 + $0x34] sm:$0xf]
    %v3932 = vld [vmem:[%s3917 + $0x38] sm:$0xf]
    %v3933 = vld [vmem:[%s3917 + $0x3c] sm:$0xf]
    %v3934 = vpack.c.bf16 %v3653, %v3653
    %v3951 = vunpack.c.l.b16 %v3918
    %v3952 = vunpack.c.l.b16 %v3919
    %v3953 = vunpack.c.l.b16 %v3920
    %v3954 = vunpack.c.l.b16 %v3921
    %v3955 = vunpack.c.l.b16 %v3922
    %v3956 = vunpack.c.l.b16 %v3923
    %v3957 = vunpack.c.l.b16 %v3924
    %v3958 = vunpack.c.l.b16 %v3925
    %v3959 = vunpack.c.l.b16 %v3926
    %v3960 = vunpack.c.l.b16 %v3927
    %v3961 = vunpack.c.l.b16 %v3928
    %v3962 = vunpack.c.l.b16 %v3929
    %v3963 = vunpack.c.l.b16 %v3930
    %v3964 = vunpack.c.l.b16 %v3931
    %v3965 = vunpack.c.l.b16 %v3932
    %v3966 = vunpack.c.l.b16 %v3933
    %v3967 = vpack.c.b16 %v3952, %v3951
    %v3968 = vpack.c.b16 %v3954, %v3953
    %v3969 = vpack.c.b16 %v3956, %v3955
    %v3970 = vpack.c.b16 %v3958, %v3957
    %v3971 = vpack.c.b16 %v3960, %v3959
    %v3972 = vpack.c.b16 %v3962, %v3961
    %v3973 = vpack.c.b16 %v3964, %v3963
    %v3974 = vpack.c.b16 %v3966, %v3965
    %3983 = vmatprep.subr.bf16.mxu0 0
    %3984 = vmatpush1.bf16.msra.mxu0 %v3967
    %3985 = vmatprep.subr.bf16.mxu0 0
    %3986 = vmatpush1.bf16.msra.mxu0 %v3968
    %3987 = vmatprep.subr.bf16.mxu0 0
    %3988 = vmatpush1.bf16.msra.mxu0 %v3969
    %3989 = vmatprep.subr.bf16.mxu0 0
    %3990 = vmatpush1.bf16.msra.mxu0 %v3970
    %3991 = vmatprep.subr.bf16.mxu0 0
    %3992 = vmatpush1.bf16.msra.mxu0 %v3971
    %3993 = vmatprep.subr.bf16.mxu0 0
    %3994 = vmatpush1.bf16.msra.mxu0 %v3972
    %3995 = vmatprep.subr.bf16.mxu0 0
    %3996 = vmatpush1.bf16.msra.mxu0 %v3973
    %3997 = vmatprep.subr.bf16.mxu0 0
    %3998 = vmatpush1.bf16.msra.mxu0 %v3974
    %3999 = vmatprep.subr.bf16.mxu0 0
    %4000 = vmatpush1.bf16.msra.mxu0 0
    %4001 = vmatprep.subr.bf16.mxu0 0
    %4002 = vmatpush1.bf16.msra.mxu0 0
    %4003 = vmatprep.subr.bf16.mxu0 0
    %4004 = vmatpush1.bf16.msra.mxu0 0
    %4005 = vmatprep.subr.bf16.mxu0 0
    %4006 = vmatpush1.bf16.msra.mxu0 0
    %4007 = vmatprep.subr.bf16.mxu0 0
    %4008 = vmatpush1.bf16.msra.mxu0 0
    %4009 = vmatprep.subr.bf16.mxu0 0
    %4010 = vmatpush1.bf16.msra.mxu0 0
    %4011 = vmatprep.subr.bf16.mxu0 0
    %4012 = vmatpush1.bf16.msra.mxu0 0
    %4013 = vmatprep.subr.bf16.mxu0 0
    %4014 = vmatpush1.bf16.msra.mxu0 0
    %4015 = vmatprep.mubr.bf16.mxu0 0
    %4016 = vmatmul.mubr.bf16.gmra.mrb[0].mxu0 %v3934
    %v4017 = vpop.f32.mrb[0].mxu0
    %v4018 = vadd.f32 0.0, %v4017
    %v4019 = vpop.f32.mrb[0].mxu0
    %v4020 = vpop.f32.mrb[0].mxu0
    %v4021 = vpop.f32.mrb[0].mxu0
    %4022 = vdwg.mxu0
    %v4039 = vunpack.c.l.b16 %v3900
    %v4040 = vunpack.c.l.b16 %v3901
    %v4041 = vunpack.c.l.b16 %v3902
    %v4042 = vunpack.c.l.b16 %v3903
    %v4043 = vunpack.c.l.b16 %v3904
    %v4044 = vunpack.c.l.b16 %v3905
    %v4045 = vunpack.c.l.b16 %v3906
    %v4046 = vunpack.c.l.b16 %v3907
    %v4047 = vunpack.c.l.b16 %v3908
    %v4048 = vunpack.c.l.b16 %v3909
    %v4049 = vunpack.c.l.b16 %v3910
    %v4050 = vunpack.c.l.b16 %v3911
    %v4051 = vunpack.c.l.b16 %v3912
    %v4052 = vunpack.c.l.b16 %v3913
    %v4053 = vunpack.c.l.b16 %v3914
    %v4054 = vunpack.c.l.b16 %v3915
    %v4055 = vpack.c.b16 %v4040, %v4039
    %v4056 = vpack.c.b16 %v4042, %v4041
    %v4057 = vpack.c.b16 %v4044, %v4043
    %v4058 = vpack.c.b16 %v4046, %v4045
    %v4059 = vpack.c.b16 %v4048, %v4047
    %v4060 = vpack.c.b16 %v4050, %v4049
    %v4061 = vpack.c.b16 %v4052, %v4051
    %v4062 = vpack.c.b16 %v4054, %v4053
    %4071 = vmatprep.subr.bf16.mxu0 0
    %4072 = vmatpush1.bf16.msra.mxu0 %v4055
    %4073 = vmatprep.subr.bf16.mxu0 0
    %4074 = vmatpush1.bf16.msra.mxu0 %v4056
    %4075 = vmatprep.subr.bf16.mxu0 0
    %4076 = vmatpush1.bf16.msra.mxu0 %v4057
    %4077 = vmatprep.subr.bf16.mxu0 0
    %4078 = vmatpush1.bf16.msra.mxu0 %v4058
    %4079 = vmatprep.subr.bf16.mxu0 0
    %4080 = vmatpush1.bf16.msra.mxu0 %v4059
    %4081 = vmatprep.subr.bf16.mxu0 0
    %4082 = vmatpush1.bf16.msra.mxu0 %v4060
    %4083 = vmatprep.subr.bf16.mxu0 0
    %4084 = vmatpush1.bf16.msra.mxu0 %v4061
    %4085 = vmatprep.subr.bf16.mxu0 0
    %4086 = vmatpush1.bf16.msra.mxu0 %v4062
    %4087 = vmatprep.subr.bf16.mxu0 0
    %4088 = vmatpush1.bf16.msra.mxu0 0
    %4089 = vmatprep.subr.bf16.mxu0 0
    %4090 = vmatpush1.bf16.msra.mxu0 0
    %4091 = vmatprep.subr.bf16.mxu0 0
    %4092 = vmatpush1.bf16.msra.mxu0 0
    %4093 = vmatprep.subr.bf16.mxu0 0
    %4094 = vmatpush1.bf16.msra.mxu0 0
    %4095 = vmatprep.subr.bf16.mxu0 0
    %4096 = vmatpush1.bf16.msra.mxu0 0
    %4097 = vmatprep.subr.bf16.mxu0 0
    %4098 = vmatpush1.bf16.msra.mxu0 0
    %4099 = vmatprep.subr.bf16.mxu0 0
    %4100 = vmatpush1.bf16.msra.mxu0 0
    %4101 = vmatprep.subr.bf16.mxu0 0
    %4102 = vmatpush1.bf16.msra.mxu0 0
    %4103 = vmatprep.mubr.bf16.mxu0 0
    %4104 = vmatmul.mubr.bf16.gmra.mrb[0].mxu0 %v3916
    %v4105 = vpop.f32.mrb[0].mxu0
    %v4106 = vadd.f32 %v4018, %v4105
    %v4107 = vpop.f32.mrb[0].mxu0
    %v4108 = vpop.f32.mrb[0].mxu0
    %v4109 = vpop.f32.mrb[0].mxu0
    %4110 = vdwg.mxu0
    %v4111 = vlaneseq
    %v4112 = vshrl.u32 %v4111, 7
    %v4113 = vsub.s32 0, %v4112
    %v4114 = vrot.slane %v3657, %v4113
    %v4115 = vadd.f32 %v4106, %v4114
    %4116 = vadd.xlane.f32.xlu0 %v4115
    %v4117 = vpop.xlane.xlu0 %4116
    %v4118 = vmul.f32 %v4117, %v358
    %v4119 = vsub.f32 %v4115, %v4118
    %v4120 = vmul.f32 %v4119, %v4119
    %4121 = vadd.xlane.f32.xlu0 %v4120
    %v4122 = vpop.xlane.xlu0 %4121
    %v4123 = vmul.f32 %v4122, %v358
    %v4124 = vadd.f32 %v4123, 1e-05
    %v4125 = vrsqrt.pop %v4124
    %v4126 = vmul.f32 %v4119, %v4125
    %v4127 = vlaneseq
    %v4128 = vshrl.u32 %v4127, 7
    %v4129 = vsub.s32 1, %v4128
    %v4130 = vrot.slane %v3657, %v4129
    %v4131 = vmul.f32 %v4126, %v4130
    %v4132 = vlaneseq
    %v4133 = vshrl.u32 %v4132, 7
    %v4134 = vsub.s32 2, %v4133
    %v4135 = vrot.slane %v3657, %v4134
    %v4136 = vadd.f32 %v4131, %v4135
    %v4137 = vmax.f32 %v4136, 0.0
    %4138 = vset.pattern.permute.xlu0 4
    %4139 = vperm.xlu0 %4138, %v133
    %v4140 = vpop.permute.xlu0 %4139
    %v4143 = vlaneseq
    %v4144 = vshrl.u32 %v4143, 7
    %v4145 = vsub.s32 0, %v4144
    %v4146 = vrot.slane %v3659, %v4145
    %v4147 = vlaneseq
    %v4148 = vshrl.u32 %v4147, 7
    %v4149 = vsub.s32 2, %v4148
    %v4150 = vrot.slane %v3659, %v4149
    %v4151 = vlaneseq
    %v4152 = vshrl.u32 %v4151, 7
    %v4153 = vsub.s32 4, %v4152
    %v4154 = vrot.slane %v3659, %v4153
    %v4155 = vlaneseq
    %v4156 = vshrl.u32 %v4155, 7
    %v4157 = vsub.s32 6, %v4156
    %v4158 = vrot.slane %v3659, %v4157
    %v4163 = vlaneseq
    %v4164 = vshrl.u32 %v4163, 7
    %v4165 = vsub.s32 0, %v4164
    %v4166 = vrot.slane %v4146, %v4165
    %v4167 = vlaneseq
    %v4168 = vshrl.u32 %v4167, 7
    %v4169 = vsub.s32 0, %v4168
    %v4170 = vrot.slane %v4150, %v4169
    %v4171 = vlaneseq
    %v4172 = vshrl.u32 %v4171, 7
    %v4173 = vsub.s32 0, %v4172
    %v4174 = vrot.slane %v4154, %v4173
    %v4175 = vlaneseq
    %v4176 = vshrl.u32 %v4175, 7
    %v4177 = vsub.s32 0, %v4176
    %v4178 = vrot.slane %v4158, %v4177
    %v4179 = vmul.f32 %v4140, %v4166
    %v4180 = vmul.f32 %v4140, %v4170
    %v4181 = vmul.f32 %v4140, %v4174
    %v4182 = vmul.f32 %v4140, %v4178
    %v4183 = vlaneseq
    %v4184 = vshrl.u32 %v4183, 7
    %v4185 = vsub.s32 1, %v4184
    %v4186 = vrot.slane %v3659, %v4185
    %v4187 = vlaneseq
    %v4188 = vshrl.u32 %v4187, 7
    %v4189 = vsub.s32 3, %v4188
    %v4190 = vrot.slane %v3659, %v4189
    %v4191 = vlaneseq
    %v4192 = vshrl.u32 %v4191, 7
    %v4193 = vsub.s32 5, %v4192
    %v4194 = vrot.slane %v3659, %v4193
    %v4195 = vlaneseq
    %v4196 = vshrl.u32 %v4195, 7
    %v4197 = vsub.s32 7, %v4196
    %v4198 = vrot.slane %v3659, %v4197
    %v4203 = vlaneseq
    %v4204 = vshrl.u32 %v4203, 7
    %v4205 = vsub.s32 1, %v4204
    %v4206 = vrot.slane %v4186, %v4205
    %v4207 = vlaneseq
    %v4208 = vshrl.u32 %v4207, 7
    %v4209 = vsub.s32 1, %v4208
    %v4210 = vrot.slane %v4190, %v4209
    %v4211 = vlaneseq
    %v4212 = vshrl.u32 %v4211, 7
    %v4213 = vsub.s32 1, %v4212
    %v4214 = vrot.slane %v4194, %v4213
    %v4215 = vlaneseq
    %v4216 = vshrl.u32 %v4215, 7
    %v4217 = vsub.s32 1, %v4216
    %v4218 = vrot.slane %v4198, %v4217
    %v4219 = vadd.f32 %v4179, %v4206
    %v4220 = vadd.f32 %v4180, %v4210
    %v4221 = vadd.f32 %v4181, %v4214
    %v4222 = vadd.f32 %v4182, %v4218
    %s4223 = scalar_lea.vmem [#allocation10], 1024
    %v4224 = vld [vmem:[%s4223] sm:$0xff]
    %v4225 = vld [vmem:[%s4223 + $0x8] sm:$0xff]
    %v4226 = vld [vmem:[%s4223 + $0x10] sm:$0xff]
    %v4227 = vld [vmem:[%s4223 + $0x18] sm:$0xff]
    %v4228 = vld [vmem:[%s4223 + $0x20] sm:$0xff]
    %v4229 = vld [vmem:[%s4223 + $0x28] sm:$0xff]
    %v4230 = vld [vmem:[%s4223 + $0x30] sm:$0xff]
    %v4231 = vld [vmem:[%s4223 + $0x38] sm:$0xff]
    %v4232 = vld [vmem:[%s4223 + $0x40] sm:$0xff]
    %v4233 = vld [vmem:[%s4223 + $0x48] sm:$0xff]
    %v4234 = vld [vmem:[%s4223 + $0x50] sm:$0xff]
    %v4235 = vld [vmem:[%s4223 + $0x58] sm:$0xff]
    %v4236 = vld [vmem:[%s4223 + $0x60] sm:$0xff]
    %v4237 = vld [vmem:[%s4223 + $0x68] sm:$0xff]
    %v4238 = vld [vmem:[%s4223 + $0x70] sm:$0xff]
    %v4239 = vld [vmem:[%s4223 + $0x78] sm:$0xff]
    %v4240 = vld [vmem:[%s4223 + $0x80] sm:$0xff]
    %v4241 = vld [vmem:[%s4223 + $0x88] sm:$0xff]
    %v4242 = vld [vmem:[%s4223 + $0x90] sm:$0xff]
    %v4243 = vld [vmem:[%s4223 + $0x98] sm:$0xff]
    %v4244 = vld [vmem:[%s4223 + $0xa0] sm:$0xff]
    %v4245 = vld [vmem:[%s4223 + $0xa8] sm:$0xff]
    %v4246 = vld [vmem:[%s4223 + $0xb0] sm:$0xff]
    %v4247 = vld [vmem:[%s4223 + $0xb8] sm:$0xff]
    %v4248 = vld [vmem:[%s4223 + $0xc0] sm:$0xff]
    %v4249 = vld [vmem:[%s4223 + $0xc8] sm:$0xff]
    %v4250 = vld [vmem:[%s4223 + $0xd0] sm:$0xff]
    %v4251 = vld [vmem:[%s4223 + $0xd8] sm:$0xff]
    %v4252 = vld [vmem:[%s4223 + $0xe0] sm:$0xff]
    %v4253 = vld [vmem:[%s4223 + $0xe8] sm:$0xff]
    %v4254 = vld [vmem:[%s4223 + $0xf0] sm:$0xff]
    %v4255 = vld [vmem:[%s4223 + $0xf8] sm:$0xff]
    %v4256 = vpack.c.bf16 %v3898, %v3898
    %v4289 = vunpack.c.l.b16 %v4224
    %v4290 = vunpack.c.h.b16 %v4224
    %v4291 = vunpack.c.l.b16 %v4225
    %v4292 = vunpack.c.h.b16 %v4225
    %v4293 = vunpack.c.l.b16 %v4226
    %v4294 = vunpack.c.h.b16 %v4226
    %v4295 = vunpack.c.l.b16 %v4227
    %v4296 = vunpack.c.h.b16 %v4227
    %v4297 = vunpack.c.l.b16 %v4228
    %v4298 = vunpack.c.h.b16 %v4228
    %v4299 = vunpack.c.l.b16 %v4229
    %v4300 = vunpack.c.h.b16 %v4229
    %v4301 = vunpack.c.l.b16 %v4230
    %v4302 = vunpack.c.h.b16 %v4230
    %v4303 = vunpack.c.l.b16 %v4231
    %v4304 = vunpack.c.h.b16 %v4231
    %v4305 = vunpack.c.l.b16 %v4232
    %v4306 = vunpack.c.h.b16 %v4232
    %v4307 = vunpack.c.l.b16 %v4233
    %v4308 = vunpack.c.h.b16 %v4233
    %v4309 = vunpack.c.l.b16 %v4234
    %v4310 = vunpack.c.h.b16 %v4234
    %v4311 = vunpack.c.l.b16 %v4235
    %v4312 = vunpack.c.h.b16 %v4235
    %v4313 = vunpack.c.l.b16 %v4236
    %v4314 = vunpack.c.h.b16 %v4236
    %v4315 = vunpack.c.l.b16 %v4237
    %v4316 = vunpack.c.h.b16 %v4237
    %v4317 = vunpack.c.l.b16 %v4238
    %v4318 = vunpack.c.h.b16 %v4238
    %v4319 = vunpack.c.l.b16 %v4239
    %v4320 = vunpack.c.h.b16 %v4239
    %v4321 = vunpack.c.l.b16 %v4240
    %v4322 = vunpack.c.h.b16 %v4240
    %v4323 = vunpack.c.l.b16 %v4241
    %v4324 = vunpack.c.h.b16 %v4241
    %v4325 = vunpack.c.l.b16 %v4242
    %v4326 = vunpack.c.h.b16 %v4242
    %v4327 = vunpack.c.l.b16 %v4243
    %v4328 = vunpack.c.h.b16 %v4243
    %v4329 = vunpack.c.l.b16 %v4244
    %v4330 = vunpack.c.h.b16 %v4244
    %v4331 = vunpack.c.l.b16 %v4245
    %v4332 = vunpack.c.h.b16 %v4245
    %v4333 = vunpack.c.l.b16 %v4246
    %v4334 = vunpack.c.h.b16 %v4246
    %v4335 = vunpack.c.l.b16 %v4247
    %v4336 = vunpack.c.h.b16 %v4247
    %v4337 = vunpack.c.l.b16 %v4248
    %v4338 = vunpack.c.h.b16 %v4248
    %v4339 = vunpack.c.l.b16 %v4249
    %v4340 = vunpack.c.h.b16 %v4249
    %v4341 = vunpack.c.l.b16 %v4250
    %v4342 = vunpack.c.h.b16 %v4250
    %v4343 = vunpack.c.l.b16 %v4251
    %v4344 = vunpack.c.h.b16 %v4251
    %v4345 = vunpack.c.l.b16 %v4252
    %v4346 = vunpack.c.h.b16 %v4252
    %v4347 = vunpack.c.l.b16 %v4253
    %v4348 = vunpack.c.h.b16 %v4253
    %v4349 = vunpack.c.l.b16 %v4254
    %v4350 = vunpack.c.h.b16 %v4254
    %v4351 = vunpack.c.l.b16 %v4255
    %v4352 = vunpack.c.h.b16 %v4255
    %v4353 = vpack.c.b16 %v4293, %v4289
    %v4354 = vpack.c.b16 %v4294, %v4290
    %v4355 = vpack.c.b16 %v4295, %v4291
    %v4356 = vpack.c.b16 %v4296, %v4292
    %v4357 = vpack.c.b16 %v4301, %v4297
    %v4358 = vpack.c.b16 %v4302, %v4298
    %v4359 = vpack.c.b16 %v4303, %v4299
    %v4360 = vpack.c.b16 %v4304, %v4300
    %v4361 = vpack.c.b16 %v4309, %v4305
    %v4362 = vpack.c.b16 %v4310, %v4306
    %v4363 = vpack.c.b16 %v4311, %v4307
    %v4364 = vpack.c.b16 %v4312, %v4308
    %v4365 = vpack.c.b16 %v4317, %v4313
    %v4366 = vpack.c.b16 %v4318, %v4314
    %v4367 = vpack.c.b16 %v4319, %v4315
    %v4368 = vpack.c.b16 %v4320, %v4316
    %v4369 = vpack.c.b16 %v4325, %v4321
    %v4370 = vpack.c.b16 %v4326, %v4322
    %v4371 = vpack.c.b16 %v4327, %v4323
    %v4372 = vpack.c.b16 %v4328, %v4324
    %v4373 = vpack.c.b16 %v4333, %v4329
    %v4374 = vpack.c.b16 %v4334, %v4330
    %v4375 = vpack.c.b16 %v4335, %v4331
    %v4376 = vpack.c.b16 %v4336, %v4332
    %v4377 = vpack.c.b16 %v4341, %v4337
    %v4378 = vpack.c.b16 %v4342, %v4338
    %v4379 = vpack.c.b16 %v4343, %v4339
    %v4380 = vpack.c.b16 %v4344, %v4340
    %v4381 = vpack.c.b16 %v4349, %v4345
    %v4382 = vpack.c.b16 %v4350, %v4346
    %v4383 = vpack.c.b16 %v4351, %v4347
    %v4384 = vpack.c.b16 %v4352, %v4348
    %4417 = vmatprep.subr.bf16.mxu0 %v4354
    %4418 = vmatpush1.bf16.msra.mxu0 %v4353
    %4419 = vmatprep.subr.bf16.mxu0 %v4358
    %4420 = vmatpush1.bf16.msra.mxu0 %v4357
    %4421 = vmatprep.subr.bf16.mxu0 %v4362
    %4422 = vmatpush1.bf16.msra.mxu0 %v4361
    %4423 = vmatprep.subr.bf16.mxu0 %v4366
    %4424 = vmatpush1.bf16.msra.mxu0 %v4365
    %4425 = vmatprep.subr.bf16.mxu0 %v4370
    %4426 = vmatpush1.bf16.msra.mxu0 %v4369
    %4427 = vmatprep.subr.bf16.mxu0 %v4374
    %4428 = vmatpush1.bf16.msra.mxu0 %v4373
    %4429 = vmatprep.subr.bf16.mxu0 %v4378
    %4430 = vmatpush1.bf16.msra.mxu0 %v4377
    %4431 = vmatprep.subr.bf16.mxu0 %v4382
    %4432 = vmatpush1.bf16.msra.mxu0 %v4381
    %4433 = vmatprep.subr.bf16.mxu0 0
    %4434 = vmatpush1.bf16.msra.mxu0 0
    %4435 = vmatprep.subr.bf16.mxu0 0
    %4436 = vmatpush1.bf16.msra.mxu0 0
    %4437 = vmatprep.subr.bf16.mxu0 0
    %4438 = vmatpush1.bf16.msra.mxu0 0
    %4439 = vmatprep.subr.bf16.mxu0 0
    %4440 = vmatpush1.bf16.msra.mxu0 0
    %4441 = vmatprep.subr.bf16.mxu0 0
    %4442 = vmatpush1.bf16.msra.mxu0 0
    %4443 = vmatprep.subr.bf16.mxu0 0
    %4444 = vmatpush1.bf16.msra.mxu0 0
    %4445 = vmatprep.subr.bf16.mxu0 0
    %4446 = vmatpush1.bf16.msra.mxu0 0
    %4447 = vmatprep.subr.bf16.mxu0 0
    %4448 = vmatpush1.bf16.msra.mxu0 0
    %4449 = vmatprep.mubr.bf16.mxu0 0
    %4450 = vmatmul.mubr.bf16.gmra.mrb[0].mxu0 %v4256
    %v4451 = vpop.f32.mrb[0].mxu0
    %v4452 = vadd.f32 0.0, %v4451
    %v4453 = vpop.f32.mrb[0].mxu0
    %v4454 = vadd.f32 0.0, %v4453
    %v4455 = vpop.f32.mrb[0].mxu0
    %v4456 = vpop.f32.mrb[0].mxu0
    %4457 = vdwg.mxu0
    %4458 = vmatprep.subr.bf16.mxu0 %v4356
    %4459 = vmatpush1.bf16.msra.mxu0 %v4355
    %4460 = vmatprep.subr.bf16.mxu0 %v4360
    %4461 = vmatpush1.bf16.msra.mxu0 %v4359
    %4462 = vmatprep.subr.bf16.mxu0 %v4364
    %4463 = vmatpush1.bf16.msra.mxu0 %v4363
    %4464 = vmatprep.subr.bf16.mxu0 %v4368
    %4465 = vmatpush1.bf16.msra.mxu0 %v4367
    %4466 = vmatprep.subr.bf16.mxu0 %v4372
    %4467 = vmatpush1.bf16.msra.mxu0 %v4371
    %4468 = vmatprep.subr.bf16.mxu0 %v4376
    %4469 = vmatpush1.bf16.msra.mxu0 %v4375
    %4470 = vmatprep.subr.bf16.mxu0 %v4380
    %4471 = vmatpush1.bf16.msra.mxu0 %v4379
    %4472 = vmatprep.subr.bf16.mxu0 %v4384
    %4473 = vmatpush1.bf16.msra.mxu0 %v4383
    %4474 = vmatprep.subr.bf16.mxu0 0
    %4475 = vmatpush1.bf16.msra.mxu0 0
    %4476 = vmatprep.subr.bf16.mxu0 0
    %4477 = vmatpush1.bf16.msra.mxu0 0
    %4478 = vmatprep.subr.bf16.mxu0 0
    %4479 = vmatpush1.bf16.msra.mxu0 0
    %4480 = vmatprep.subr.bf16.mxu0 0
    %4481 = vmatpush1.bf16.msra.mxu0 0
    %4482 = vmatprep.subr.bf16.mxu0 0
    %4483 = vmatpush1.bf16.msra.mxu0 0
    %4484 = vmatprep.subr.bf16.mxu0 0
    %4485 = vmatpush1.bf16.msra.mxu0 0
    %4486 = vmatprep.subr.bf16.mxu0 0
    %4487 = vmatpush1.bf16.msra.mxu0 0
    %4488 = vmatprep.subr.bf16.mxu0 0
    %4489 = vmatpush1.bf16.msra.mxu0 0
    %4490 = vmatprep.mubr.bf16.mxu0 0
    %4491 = vmatmul.mubr.bf16.gmra.mrb[0].mxu0 %v4256
    %v4492 = vpop.f32.mrb[0].mxu0
    %v4493 = vadd.f32 0.0, %v4492
    %v4494 = vpop.f32.mrb[0].mxu0
    %v4495 = vadd.f32 0.0, %v4494
    %v4496 = vpop.f32.mrb[0].mxu0
    %v4497 = vpop.f32.mrb[0].mxu0
    %4498 = vdwg.mxu0
    %v4499 = vadd.f32 %v4219, %v4452
    %v4500 = vadd.f32 %v4220, %v4454
    %v4501 = vadd.f32 %v4221, %v4493
    %v4502 = vadd.f32 %v4222, %v4495
    %v4503 = vxor.u32 %v4499, 2147483648
    %v4504 = vmul.f32 %v4503, 1.442695
    %v4505 = vpow.pop %v4504
    %v4506 = vadd.f32 %v4505, 1.0
    %v4507 = vrcp.pop %v4506
    %v4508 = vmul.f32 1.0, %v4507
    %v4509 = vxor.u32 %v4500, 2147483648
    %v4510 = vmul.f32 %v4509, 1.442695
    %v4511 = vpow.pop %v4510
    %v4512 = vadd.f32 %v4511, 1.0
    %v4513 = vrcp.pop %v4512
    %v4514 = vmul.f32 1.0, %v4513
    %v4515 = vtanh.pop %v4501
    %v4516 = vxor.u32 %v4502, 2147483648
    %v4517 = vmul.f32 %v4516, 1.442695
    %v4518 = vpow.pop %v4517
    %v4519 = vadd.f32 %v4518, 1.0
    %v4520 = vrcp.pop %v4519
    %v4521 = vmul.f32 1.0, %v4520
    %v4522 = vmul.f32 %v4514, %v4137
    %v4523 = vmul.f32 %v4508, %v4515
    %v4524 = vadd.f32 %v4522, %v4523
    %v4525 = vtanh.pop %v4524
    %v4526 = vmul.f32 %v4521, %v4525
    %s4527 = scalar_lea.vmem [#allocation15], 32
    %4528 = vst [vmem:[%s4527] sm:$0xff] %v4526
    %s4529 = scalar_lea.vmem [#allocation17], 32
    %4530 = vst [vmem:[%s4529] sm:$0xff] %v4524
    %s4531 = scalar_lea.vmem %s3, 40
    %v4532 = vld [vmem:[%s4531] sm:$0xff]
    %s4533 = scalar_lea.vmem %s4, 40
    %v4534 = vld [vmem:[%s4533] sm:$0xff]
    %s4535 = scalar_lea.vmem %s10, 20
    %v4536 = vld [vmem:[%s4535] sm:$0x7]
    %s4537 = scalar_lea.vmem %s11, 20
    %v4538 = vld [vmem:[%s4537] sm:$0x7]
    %s4539 = scalar_lea.vmem %s12, 40
    %v4540 = vld [vmem:[%s4539] sm:$0xff]
    %s4541 = scalar_lea.vmem [#allocation2], 320
    %v4542 = vld [vmem:[%s4541] sm:$0xf]
    %v4543 = vld [vmem:[%s4541 + $0x4] sm:$0xf]
    %v4544 = vld [vmem:[%s4541 + $0x8] sm:$0xf]
    %v4545 = vld [vmem:[%s4541 + $0xc] sm:$0xf]
    %v4546 = vld [vmem:[%s4541 + $0x10] sm:$0xf]
    %v4547 = vld [vmem:[%s4541 + $0x14] sm:$0xf]
    %v4548 = vld [vmem:[%s4541 + $0x18] sm:$0xf]
    %v4549 = vld [vmem:[%s4541 + $0x1c] sm:$0xf]
    %v4550 = vld [vmem:[%s4541 + $0x20] sm:$0xf]
    %v4551 = vld [vmem:[%s4541 + $0x24] sm:$0xf]
    %v4552 = vld [vmem:[%s4541 + $0x28] sm:$0xf]
    %v4553 = vld [vmem:[%s4541 + $0x2c] sm:$0xf]
    %v4554 = vld [vmem:[%s4541 + $0x30] sm:$0xf]
    %v4555 = vld [vmem:[%s4541 + $0x34] sm:$0xf]
    %v4556 = vld [vmem:[%s4541 + $0x38] sm:$0xf]
    %v4557 = vld [vmem:[%s4541 + $0x3c] sm:$0xf]
    %v4558 = vpack.c.bf16 %v4526, %v4526
    %s4559 = scalar_lea.vmem [#allocation5], 320
    %v4560 = vld [vmem:[%s4559] sm:$0xf]
    %v4561 = vld [vmem:[%s4559 + $0x4] sm:$0xf]
    %v4562 = vld [vmem:[%s4559 + $0x8] sm:$0xf]
    %v4563 = vld [vmem:[%s4559 + $0xc] sm:$0xf]
    %v4564 = vld [vmem:[%s4559 + $0x10] sm:$0xf]
    %v4565 = vld [vmem:[%s4559 + $0x14] sm:$0xf]
    %v4566 = vld [vmem:[%s4559 + $0x18] sm:$0xf]
    %v4567 = vld [vmem:[%s4559 + $0x1c] sm:$0xf]
    %v4568 = vld [vmem:[%s4559 + $0x20] sm:$0xf]
    %v4569 = vld [vmem:[%s4559 + $0x24] sm:$0xf]
    %v4570 = vld [vmem:[%s4559 + $0x28] sm:$0xf]
    %v4571 = vld [vmem:[%s4559 + $0x2c] sm:$0xf]
    %v4572 = vld [vmem:[%s4559 + $0x30] sm:$0xf]
    %v4573 = vld [vmem:[%s4559 + $0x34] sm:$0xf]
    %v4574 = vld [vmem:[%s4559 + $0x38] sm:$0xf]
    %v4575 = vld [vmem:[%s4559 + $0x3c] sm:$0xf]
    %v4576 = vpack.c.bf16 %v4532, %v4532
    %v4593 = vunpack.c.l.b16 %v4560
    %v4594 = vunpack.c.l.b16 %v4561
    %v4595 = vunpack.c.l.b16 %v4562
    %v4596 = vunpack.c.l.b16 %v4563
    %v4597 = vunpack.c.l.b16 %v4564
    %v4598 = vunpack.c.l.b16 %v4565
    %v4599 = vunpack.c.l.b16 %v4566
    %v4600 = vunpack.c.l.b16 %v4567
    %v4601 = vunpack.c.l.b16 %v4568
    %v4602 = vunpack.c.l.b16 %v4569
    %v4603 = vunpack.c.l.b16 %v4570
    %v4604 = vunpack.c.l.b16 %v4571
    %v4605 = vunpack.c.l.b16 %v4572
    %v4606 = vunpack.c.l.b16 %v4573
    %v4607 = vunpack.c.l.b16 %v4574
    %v4608 = vunpack.c.l.b16 %v4575
    %v4609 = vpack.c.b16 %v4594, %v4593
    %v4610 = vpack.c.b16 %v4596, %v4595
    %v4611 = vpack.c.b16 %v4598, %v4597
    %v4612 = vpack.c.b16 %v4600, %v4599
    %v4613 = vpack.c.b16 %v4602, %v4601
    %v4614 = vpack.c.b16 %v4604, %v4603
    %v4615 = vpack.c.b16 %v4606, %v4605
    %v4616 = vpack.c.b16 %v4608, %v4607
    %4625 = vmatprep.subr.bf16.mxu0 0
    %4626 = vmatpush1.bf16.msra.mxu0 %v4609
    %4627 = vmatprep.subr.bf16.mxu0 0
    %4628 = vmatpush1.bf16.msra.mxu0 %v4610
    %4629 = vmatprep.subr.bf16.mxu0 0
    %4630 = vmatpush1.bf16.msra.mxu0 %v4611
    %4631 = vmatprep.subr.bf16.mxu0 0
    %4632 = vmatpush1.bf16.msra.mxu0 %v4612
    %4633 = vmatprep.subr.bf16.mxu0 0
    %4634 = vmatpush1.bf16.msra.mxu0 %v4613
    %4635 = vmatprep.subr.bf16.mxu0 0
    %4636 = vmatpush1.bf16.msra.mxu0 %v4614
    %4637 = vmatprep.subr.bf16.mxu0 0
    %4638 = vmatpush1.bf16.msra.mxu0 %v4615
    %4639 = vmatprep.subr.bf16.mxu0 0
    %4640 = vmatpush1.bf16.msra.mxu0 %v4616
    %4641 = vmatprep.subr.bf16.mxu0 0
    %4642 = vmatpush1.bf16.msra.mxu0 0
    %4643 = vmatprep.subr.bf16.mxu0 0
    %4644 = vmatpush1.bf16.msra.mxu0 0
    %4645 = vmatprep.subr.bf16.mxu0 0
    %4646 = vmatpush1.bf16.msra.mxu0 0
    %4647 = vmatprep.subr.bf16.mxu0 0
    %4648 = vmatpush1.bf16.msra.mxu0 0
    %4649 = vmatprep.subr.bf16.mxu0 0
    %4650 = vmatpush1.bf16.msra.mxu0 0
    %4651 = vmatprep.subr.bf16.mxu0 0
    %4652 = vmatpush1.bf16.msra.mxu0 0
    %4653 = vmatprep.subr.bf16.mxu0 0
    %4654 = vmatpush1.bf16.msra.mxu0 0
    %4655 = vmatprep.subr.bf16.mxu0 0
    %4656 = vmatpush1.bf16.msra.mxu0 0
    %4657 = vmatprep.mubr.bf16.mxu0 0
    %4658 = vmatmul.mubr.bf16.gmra.mrb[0].mxu0 %v4576
    %v4659 = vpop.f32.mrb[0].mxu0
    %v4660 = vadd.f32 0.0, %v4659
    %v4661 = vpop.f32.mrb[0].mxu0
    %v4662 = vpop.f32.mrb[0].mxu0
    %v4663 = vpop.f32.mrb[0].mxu0
    %4664 = vdwg.mxu0
    %v4681 = vunpack.c.l.b16 %v4542
    %v4682 = vunpack.c.l.b16 %v4543
    %v4683 = vunpack.c.l.b16 %v4544
    %v4684 = vunpack.c.l.b16 %v4545
    %v4685 = vunpack.c.l.b16 %v4546
    %v4686 = vunpack.c.l.b16 %v4547
    %v4687 = vunpack.c.l.b16 %v4548
    %v4688 = vunpack.c.l.b16 %v4549
    %v4689 = vunpack.c.l.b16 %v4550
    %v4690 = vunpack.c.l.b16 %v4551
    %v4691 = vunpack.c.l.b16 %v4552
    %v4692 = vunpack.c.l.b16 %v4553
    %v4693 = vunpack.c.l.b16 %v4554
    %v4694 = vunpack.c.l.b16 %v4555
    %v4695 = vunpack.c.l.b16 %v4556
    %v4696 = vunpack.c.l.b16 %v4557
    %v4697 = vpack.c.b16 %v4682, %v4681
    %v4698 = vpack.c.b16 %v4684, %v4683
    %v4699 = vpack.c.b16 %v4686, %v4685
    %v4700 = vpack.c.b16 %v4688, %v4687
    %v4701 = vpack.c.b16 %v4690, %v4689
    %v4702 = vpack.c.b16 %v4692, %v4691
    %v4703 = vpack.c.b16 %v4694, %v4693
    %v4704 = vpack.c.b16 %v4696, %v4695
    %4713 = vmatprep.subr.bf16.mxu0 0
    %4714 = vmatpush1.bf16.msra.mxu0 %v4697
    %4715 = vmatprep.subr.bf16.mxu0 0
    %4716 = vmatpush1.bf16.msra.mxu0 %v4698
    %4717 = vmatprep.subr.bf16.mxu0 0
    %4718 = vmatpush1.bf16.msra.mxu0 %v4699
    %4719 = vmatprep.subr.bf16.mxu0 0
    %4720 = vmatpush1.bf16.msra.mxu0 %v4700
    %4721 = vmatprep.subr.bf16.mxu0 0
    %4722 = vmatpush1.bf16.msra.mxu0 %v4701
    %4723 = vmatprep.subr.bf16.mxu0 0
    %4724 = vmatpush1.bf16.msra.mxu0 %v4702
    %4725 = vmatprep.subr.bf16.mxu0 0
    %4726 = vmatpush1.bf16.msra.mxu0 %v4703
    %4727 = vmatprep.subr.bf16.mxu0 0
    %4728 = vmatpush1.bf16.msra.mxu0 %v4704
    %4729 = vmatprep.subr.bf16.mxu0 0
    %4730 = vmatpush1.bf16.msra.mxu0 0
    %4731 = vmatprep.subr.bf16.mxu0 0
    %4732 = vmatpush1.bf16.msra.mxu0 0
    %4733 = vmatprep.subr.bf16.mxu0 0
    %4734 = vmatpush1.bf16.msra.mxu0 0
    %4735 = vmatprep.subr.bf16.mxu0 0
    %4736 = vmatpush1.bf16.msra.mxu0 0
    %4737 = vmatprep.subr.bf16.mxu0 0
    %4738 = vmatpush1.bf16.msra.mxu0 0
    %4739 = vmatprep.subr.bf16.mxu0 0
    %4740 = vmatpush1.bf16.msra.mxu0 0
    %4741 = vmatprep.subr.bf16.mxu0 0
    %4742 = vmatpush1.bf16.msra.mxu0 0
    %4743 = vmatprep.subr.bf16.mxu0 0
    %4744 = vmatpush1.bf16.msra.mxu0 0
    %4745 = vmatprep.mubr.bf16.mxu0 0
    %4746 = vmatmul.mubr.bf16.gmra.mrb[0].mxu0 %v4558
    %v4747 = vpop.f32.mrb[0].mxu0
    %v4748 = vadd.f32 %v4660, %v4747
    %v4749 = vpop.f32.mrb[0].mxu0
    %v4750 = vpop.f32.mrb[0].mxu0
    %v4751 = vpop.f32.mrb[0].mxu0
    %4752 = vdwg.mxu0
    %v4753 = vlaneseq
    %v4754 = vshrl.u32 %v4753, 7
    %v4755 = vsub.s32 0, %v4754
    %v4756 = vrot.slane %v4536, %v4755
    %v4757 = vadd.f32 %v4748, %v4756
    %4758 = vadd.xlane.f32.xlu0 %v4757
    %v4759 = vpop.xlane.xlu0 %4758
    %v4760 = vmul.f32 %v4759, %v358
    %v4761 = vsub.f32 %v4757, %v4760
    %v4762 = vmul.f32 %v4761, %v4761
    %4763 = vadd.xlane.f32.xlu0 %v4762
    %v4764 = vpop.xlane.xlu0 %4763
    %v4765 = vmul.f32 %v4764, %v358
    %v4766 = vadd.f32 %v4765, 1e-05
    %v4767 = vrsqrt.pop %v4766
    %v4768 = vmul.f32 %v4761, %v4767
    %v4769 = vlaneseq
    %v4770 = vshrl.u32 %v4769, 7
    %v4771 = vsub.s32 1, %v4770
    %v4772 = vrot.slane %v4536, %v4771
    %v4773 = vmul.f32 %v4768, %v4772
    %v4774 = vlaneseq
    %v4775 = vshrl.u32 %v4774, 7
    %v4776 = vsub.s32 2, %v4775
    %v4777 = vrot.slane %v4536, %v4776
    %v4778 = vadd.f32 %v4773, %v4777
    %v4779 = vmax.f32 %v4778, 0.0
    %s4780 = scalar_lea.vmem [#allocation7], 320
    %v4781 = vld [vmem:[%s4780] sm:$0xf]
    %v4782 = vld [vmem:[%s4780 + $0x4] sm:$0xf]
    %v4783 = vld [vmem:[%s4780 + $0x8] sm:$0xf]
    %v4784 = vld [vmem:[%s4780 + $0xc] sm:$0xf]
    %v4785 = vld [vmem:[%s4780 + $0x10] sm:$0xf]
    %v4786 = vld [vmem:[%s4780 + $0x14] sm:$0xf]
    %v4787 = vld [vmem:[%s4780 + $0x18] sm:$0xf]
    %v4788 = vld [vmem:[%s4780 + $0x1c] sm:$0xf]
    %v4789 = vld [vmem:[%s4780 + $0x20] sm:$0xf]
    %v4790 = vld [vmem:[%s4780 + $0x24] sm:$0xf]
    %v4791 = vld [vmem:[%s4780 + $0x28] sm:$0xf]
    %v4792 = vld [vmem:[%s4780 + $0x2c] sm:$0xf]
    %v4793 = vld [vmem:[%s4780 + $0x30] sm:$0xf]
    %v4794 = vld [vmem:[%s4780 + $0x34] sm:$0xf]
    %v4795 = vld [vmem:[%s4780 + $0x38] sm:$0xf]
    %v4796 = vld [vmem:[%s4780 + $0x3c] sm:$0xf]
    %v4797 = vpack.c.bf16 %v4524, %v4524
    %s4798 = scalar_lea.vmem [#allocation8], 320
    %v4799 = vld [vmem:[%s4798] sm:$0xf]
    %v4800 = vld [vmem:[%s4798 + $0x4] sm:$0xf]
    %v4801 = vld [vmem:[%s4798 + $0x8] sm:$0xf]
    %v4802 = vld [vmem:[%s4798 + $0xc] sm:$0xf]
    %v4803 = vld [vmem:[%s4798 + $0x10] sm:$0xf]
    %v4804 = vld [vmem:[%s4798 + $0x14] sm:$0xf]
    %v4805 = vld [vmem:[%s4798 + $0x18] sm:$0xf]
    %v4806 = vld [vmem:[%s4798 + $0x1c] sm:$0xf]
    %v4807 = vld [vmem:[%s4798 + $0x20] sm:$0xf]
    %v4808 = vld [vmem:[%s4798 + $0x24] sm:$0xf]
    %v4809 = vld [vmem:[%s4798 + $0x28] sm:$0xf]
    %v4810 = vld [vmem:[%s4798 + $0x2c] sm:$0xf]
    %v4811 = vld [vmem:[%s4798 + $0x30] sm:$0xf]
    %v4812 = vld [vmem:[%s4798 + $0x34] sm:$0xf]
    %v4813 = vld [vmem:[%s4798 + $0x38] sm:$0xf]
    %v4814 = vld [vmem:[%s4798 + $0x3c] sm:$0xf]
    %v4815 = vpack.c.bf16 %v4534, %v4534
    %v4832 = vunpack.c.l.b16 %v4799
    %v4833 = vunpack.c.l.b16 %v4800
    %v4834 = vunpack.c.l.b16 %v4801
    %v4835 = vunpack.c.l.b16 %v4802
    %v4836 = vunpack.c.l.b16 %v4803
    %v4837 = vunpack.c.l.b16 %v4804
    %v4838 = vunpack.c.l.b16 %v4805
    %v4839 = vunpack.c.l.b16 %v4806
    %v4840 = vunpack.c.l.b16 %v4807
    %v4841 = vunpack.c.l.b16 %v4808
    %v4842 = vunpack.c.l.b16 %v4809
    %v4843 = vunpack.c.l.b16 %v4810
    %v4844 = vunpack.c.l.b16 %v4811
    %v4845 = vunpack.c.l.b16 %v4812
    %v4846 = vunpack.c.l.b16 %v4813
    %v4847 = vunpack.c.l.b16 %v4814
    %v4848 = vpack.c.b16 %v4833, %v4832
    %v4849 = vpack.c.b16 %v4835, %v4834
    %v4850 = vpack.c.b16 %v4837, %v4836
    %v4851 = vpack.c.b16 %v4839, %v4838
    %v4852 = vpack.c.b16 %v4841, %v4840
    %v4853 = vpack.c.b16 %v4843, %v4842
    %v4854 = vpack.c.b16 %v4845, %v4844
    %v4855 = vpack.c.b16 %v4847, %v4846
    %4864 = vmatprep.subr.bf16.mxu0 0
    %4865 = vmatpush1.bf16.msra.mxu0 %v4848
    %4866 = vmatprep.subr.bf16.mxu0 0
    %4867 = vmatpush1.bf16.msra.mxu0 %v4849
    %4868 = vmatprep.subr.bf16.mxu0 0
    %4869 = vmatpush1.bf16.msra.mxu0 %v4850
    %4870 = vmatprep.subr.bf16.mxu0 0
    %4871 = vmatpush1.bf16.msra.mxu0 %v4851
    %4872 = vmatprep.subr.bf16.mxu0 0
    %4873 = vmatpush1.bf16.msra.mxu0 %v4852
    %4874 = vmatprep.subr.bf16.mxu0 0
    %4875 = vmatpush1.bf16.msra.mxu0 %v4853
    %4876 = vmatprep.subr.bf16.mxu0 0
    %4877 = vmatpush1.bf16.msra.mxu0 %v4854
    %4878 = vmatprep.subr.bf16.mxu0 0
    %4879 = vmatpush1.bf16.msra.mxu0 %v4855
    %4880 = vmatprep.subr.bf16.mxu0 0
    %4881 = vmatpush1.bf16.msra.mxu0 0
    %4882 = vmatprep.subr.bf16.mxu0 0
    %4883 = vmatpush1.bf16.msra.mxu0 0
    %4884 = vmatprep.subr.bf16.mxu0 0
    %4885 = vmatpush1.bf16.msra.mxu0 0
    %4886 = vmatprep.subr.bf16.mxu0 0
    %4887 = vmatpush1.bf16.msra.mxu0 0
    %4888 = vmatprep.subr.bf16.mxu0 0
    %4889 = vmatpush1.bf16.msra.mxu0 0
    %4890 = vmatprep.subr.bf16.mxu0 0
    %4891 = vmatpush1.bf16.msra.mxu0 0
    %4892 = vmatprep.subr.bf16.mxu0 0
    %4893 = vmatpush1.bf16.msra.mxu0 0
    %4894 = vmatprep.subr.bf16.mxu0 0
    %4895 = vmatpush1.bf16.msra.mxu0 0
    %4896 = vmatprep.mubr.bf16.mxu0 0
    %4897 = vmatmul.mubr.bf16.gmra.mrb[0].mxu0 %v4815
    %v4898 = vpop.f32.mrb[0].mxu0
    %v4899 = vadd.f32 0.0, %v4898
    %v4900 = vpop.f32.mrb[0].mxu0
    %v4901 = vpop.f32.mrb[0].mxu0
    %v4902 = vpop.f32.mrb[0].mxu0
    %4903 = vdwg.mxu0
    %v4920 = vunpack.c.l.b16 %v4781
    %v4921 = vunpack.c.l.b16 %v4782
    %v4922 = vunpack.c.l.b16 %v4783
    %v4923 = vunpack.c.l.b16 %v4784
    %v4924 = vunpack.c.l.b16 %v4785
    %v4925 = vunpack.c.l.b16 %v4786
    %v4926 = vunpack.c.l.b16 %v4787
    %v4927 = vunpack.c.l.b16 %v4788
    %v4928 = vunpack.c.l.b16 %v4789
    %v4929 = vunpack.c.l.b16 %v4790
    %v4930 = vunpack.c.l.b16 %v4791
    %v4931 = vunpack.c.l.b16 %v4792
    %v4932 = vunpack.c.l.b16 %v4793
    %v4933 = vunpack.c.l.b16 %v4794
    %v4934 = vunpack.c.l.b16 %v4795
    %v4935 = vunpack.c.l.b16 %v4796
    %v4936 = vpack.c.b16 %v4921, %v4920
    %v4937 = vpack.c.b16 %v4923, %v4922
    %v4938 = vpack.c.b16 %v4925, %v4924
    %v4939 = vpack.c.b16 %v4927, %v4926
    %v4940 = vpack.c.b16 %v4929, %v4928
    %v4941 = vpack.c.b16 %v4931, %v4930
    %v4942 = vpack.c.b16 %v4933, %v4932
    %v4943 = vpack.c.b16 %v4935, %v4934
    %4952 = vmatprep.subr.bf16.mxu0 0
    %4953 = vmatpush1.bf16.msra.mxu0 %v4936
    %4954 = vmatprep.subr.bf16.mxu0 0
    %4955 = vmatpush1.bf16.msra.mxu0 %v4937
    %4956 = vmatprep.subr.bf16.mxu0 0
    %4957 = vmatpush1.bf16.msra.mxu0 %v4938
    %4958 = vmatprep.subr.bf16.mxu0 0
    %4959 = vmatpush1.bf16.msra.mxu0 %v4939
    %4960 = vmatprep.subr.bf16.mxu0 0
    %4961 = vmatpush1.bf16.msra.mxu0 %v4940
    %4962 = vmatprep.subr.bf16.mxu0 0
    %4963 = vmatpush1.bf16.msra.mxu0 %v4941
    %4964 = vmatprep.subr.bf16.mxu0 0
    %4965 = vmatpush1.bf16.msra.mxu0 %v4942
    %4966 = vmatprep.subr.bf16.mxu0 0
    %4967 = vmatpush1.bf16.msra.mxu0 %v4943
    %4968 = vmatprep.subr.bf16.mxu0 0
    %4969 = vmatpush1.bf16.msra.mxu0 0
    %4970 = vmatprep.subr.bf16.mxu0 0
    %4971 = vmatpush1.bf16.msra.mxu0 0
    %4972 = vmatprep.subr.bf16.mxu0 0
    %4973 = vmatpush1.bf16.msra.mxu0 0
    %4974 = vmatprep.subr.bf16.mxu0 0
    %4975 = vmatpush1.bf16.msra.mxu0 0
    %4976 = vmatprep.subr.bf16.mxu0 0
    %4977 = vmatpush1.bf16.msra.mxu0 0
    %4978 = vmatprep.subr.bf16.mxu0 0
    %4979 = vmatpush1.bf16.msra.mxu0 0
    %4980 = vmatprep.subr.bf16.mxu0 0
    %4981 = vmatpush1.bf16.msra.mxu0 0
    %4982 = vmatprep.subr.bf16.mxu0 0
    %4983 = vmatpush1.bf16.msra.mxu0 0
    %4984 = vmatprep.mubr.bf16.mxu0 0
    %4985 = vmatmul.mubr.bf16.gmra.mrb[0].mxu0 %v4797
    %v4986 = vpop.f32.mrb[0].mxu0
    %v4987 = vadd.f32 %v4899, %v4986
    %v4988 = vpop.f32.mrb[0].mxu0
    %v4989 = vpop.f32.mrb[0].mxu0
    %v4990 = vpop.f32.mrb[0].mxu0
    %4991 = vdwg.mxu0
    %v4992 = vlaneseq
    %v4993 = vshrl.u32 %v4992, 7
    %v4994 = vsub.s32 0, %v4993
    %v4995 = vrot.slane %v4538, %v4994
    %v4996 = vadd.f32 %v4987, %v4995
    %4997 = vadd.xlane.f32.xlu0 %v4996
    %v4998 = vpop.xlane.xlu0 %4997
    %v4999 = vmul.f32 %v4998, %v358
    %v5000 = vsub.f32 %v4996, %v4999
    %v5001 = vmul.f32 %v5000, %v5000
    %5002 = vadd.xlane.f32.xlu0 %v5001
    %v5003 = vpop.xlane.xlu0 %5002
    %v5004 = vmul.f32 %v5003, %v358
    %v5005 = vadd.f32 %v5004, 1e-05
    %v5006 = vrsqrt.pop %v5005
    %v5007 = vmul.f32 %v5000, %v5006
    %v5008 = vlaneseq
    %v5009 = vshrl.u32 %v5008, 7
    %v5010 = vsub.s32 1, %v5009
    %v5011 = vrot.slane %v4538, %v5010
    %v5012 = vmul.f32 %v5007, %v5011
    %v5013 = vlaneseq
    %v5014 = vshrl.u32 %v5013, 7
    %v5015 = vsub.s32 2, %v5014
    %v5016 = vrot.slane %v4538, %v5015
    %v5017 = vadd.f32 %v5012, %v5016
    %v5018 = vmax.f32 %v5017, 0.0
    %5019 = vset.pattern.permute.xlu0 5
    %5020 = vperm.xlu0 %5019, %v133
    %v5021 = vpop.permute.xlu0 %5020
    %v5024 = vlaneseq
    %v5025 = vshrl.u32 %v5024, 7
    %v5026 = vsub.s32 0, %v5025
    %v5027 = vrot.slane %v4540, %v5026
    %v5028 = vlaneseq
    %v5029 = vshrl.u32 %v5028, 7
    %v5030 = vsub.s32 2, %v5029
    %v5031 = vrot.slane %v4540, %v5030
    %v5032 = vlaneseq
    %v5033 = vshrl.u32 %v5032, 7
    %v5034 = vsub.s32 4, %v5033
    %v5035 = vrot.slane %v4540, %v5034
    %v5036 = vlaneseq
    %v5037 = vshrl.u32 %v5036, 7
    %v5038 = vsub.s32 6, %v5037
    %v5039 = vrot.slane %v4540, %v5038
    %v5044 = vlaneseq
    %v5045 = vshrl.u32 %v5044, 7
    %v5046 = vsub.s32 0, %v5045
    %v5047 = vrot.slane %v5027, %v5046
    %v5048 = vlaneseq
    %v5049 = vshrl.u32 %v5048, 7
    %v5050 = vsub.s32 0, %v5049
    %v5051 = vrot.slane %v5031, %v5050
    %v5052 = vlaneseq
    %v5053 = vshrl.u32 %v5052, 7
    %v5054 = vsub.s32 0, %v5053
    %v5055 = vrot.slane %v5035, %v5054
    %v5056 = vlaneseq
    %v5057 = vshrl.u32 %v5056, 7
    %v5058 = vsub.s32 0, %v5057
    %v5059 = vrot.slane %v5039, %v5058
    %v5060 = vmul.f32 %v5021, %v5047
    %v5061 = vmul.f32 %v5021, %v5051
    %v5062 = vmul.f32 %v5021, %v5055
    %v5063 = vmul.f32 %v5021, %v5059
    %v5064 = vlaneseq
    %v5065 = vshrl.u32 %v5064, 7
    %v5066 = vsub.s32 1, %v5065
    %v5067 = vrot.slane %v4540, %v5066
    %v5068 = vlaneseq
    %v5069 = vshrl.u32 %v5068, 7
    %v5070 = vsub.s32 3, %v5069
    %v5071 = vrot.slane %v4540, %v5070
    %v5072 = vlaneseq
    %v5073 = vshrl.u32 %v5072, 7
    %v5074 = vsub.s32 5, %v5073
    %v5075 = vrot.slane %v4540, %v5074
    %v5076 = vlaneseq
    %v5077 = vshrl.u32 %v5076, 7
    %v5078 = vsub.s32 7, %v5077
    %v5079 = vrot.slane %v4540, %v5078
    %v5084 = vlaneseq
    %v5085 = vshrl.u32 %v5084, 7
    %v5086 = vsub.s32 1, %v5085
    %v5087 = vrot.slane %v5067, %v5086
    %v5088 = vlaneseq
    %v5089 = vshrl.u32 %v5088, 7
    %v5090 = vsub.s32 1, %v5089
    %v5091 = vrot.slane %v5071, %v5090
    %v5092 = vlaneseq
    %v5093 = vshrl.u32 %v5092, 7
    %v5094 = vsub.s32 1, %v5093
    %v5095 = vrot.slane %v5075, %v5094
    %v5096 = vlaneseq
    %v5097 = vshrl.u32 %v5096, 7
    %v5098 = vsub.s32 1, %v5097
    %v5099 = vrot.slane %v5079, %v5098
    %v5100 = vadd.f32 %v5060, %v5087
    %v5101 = vadd.f32 %v5061, %v5091
    %v5102 = vadd.f32 %v5062, %v5095
    %v5103 = vadd.f32 %v5063, %v5099
    %s5104 = scalar_lea.vmem [#allocation10], 1280
    %v5105 = vld [vmem:[%s5104] sm:$0xff]
    %v5106 = vld [vmem:[%s5104 + $0x8] sm:$0xff]
    %v5107 = vld [vmem:[%s5104 + $0x10] sm:$0xff]
    %v5108 = vld [vmem:[%s5104 + $0x18] sm:$0xff]
    %v5109 = vld [vmem:[%s5104 + $0x20] sm:$0xff]
    %v5110 = vld [vmem:[%s5104 + $0x28] sm:$0xff]
    %v5111 = vld [vmem:[%s5104 + $0x30] sm:$0xff]
    %v5112 = vld [vmem:[%s5104 + $0x38] sm:$0xff]
    %v5113 = vld [vmem:[%s5104 + $0x40] sm:$0xff]
    %v5114 = vld [vmem:[%s5104 + $0x48] sm:$0xff]
    %v5115 = vld [vmem:[%s5104 + $0x50] sm:$0xff]
    %v5116 = vld [vmem:[%s5104 + $0x58] sm:$0xff]
    %v5117 = vld [vmem:[%s5104 + $0x60] sm:$0xff]
    %v5118 = vld [vmem:[%s5104 + $0x68] sm:$0xff]
    %v5119 = vld [vmem:[%s5104 + $0x70] sm:$0xff]
    %v5120 = vld [vmem:[%s5104 + $0x78] sm:$0xff]
    %v5121 = vld [vmem:[%s5104 + $0x80] sm:$0xff]
    %v5122 = vld [vmem:[%s5104 + $0x88] sm:$0xff]
    %v5123 = vld [vmem:[%s5104 + $0x90] sm:$0xff]
    %v5124 = vld [vmem:[%s5104 + $0x98] sm:$0xff]
    %v5125 = vld [vmem:[%s5104 + $0xa0] sm:$0xff]
    %v5126 = vld [vmem:[%s5104 + $0xa8] sm:$0xff]
    %v5127 = vld [vmem:[%s5104 + $0xb0] sm:$0xff]
    %v5128 = vld [vmem:[%s5104 + $0xb8] sm:$0xff]
    %v5129 = vld [vmem:[%s5104 + $0xc0] sm:$0xff]
    %v5130 = vld [vmem:[%s5104 + $0xc8] sm:$0xff]
    %v5131 = vld [vmem:[%s5104 + $0xd0] sm:$0xff]
    %v5132 = vld [vmem:[%s5104 + $0xd8] sm:$0xff]
    %v5133 = vld [vmem:[%s5104 + $0xe0] sm:$0xff]
    %v5134 = vld [vmem:[%s5104 + $0xe8] sm:$0xff]
    %v5135 = vld [vmem:[%s5104 + $0xf0] sm:$0xff]
    %v5136 = vld [vmem:[%s5104 + $0xf8] sm:$0xff]
    %v5137 = vpack.c.bf16 %v4779, %v4779
    %v5170 = vunpack.c.l.b16 %v5105
    %v5171 = vunpack.c.h.b16 %v5105
    %v5172 = vunpack.c.l.b16 %v5106
    %v5173 = vunpack.c.h.b16 %v5106
    %v5174 = vunpack.c.l.b16 %v5107
    %v5175 = vunpack.c.h.b16 %v5107
    %v5176 = vunpack.c.l.b16 %v5108
    %v5177 = vunpack.c.h.b16 %v5108
    %v5178 = vunpack.c.l.b16 %v5109
    %v5179 = vunpack.c.h.b16 %v5109
    %v5180 = vunpack.c.l.b16 %v5110
    %v5181 = vunpack.c.h.b16 %v5110
    %v5182 = vunpack.c.l.b16 %v5111
    %v5183 = vunpack.c.h.b16 %v5111
    %v5184 = vunpack.c.l.b16 %v5112
    %v5185 = vunpack.c.h.b16 %v5112
    %v5186 = vunpack.c.l.b16 %v5113
    %v5187 = vunpack.c.h.b16 %v5113
    %v5188 = vunpack.c.l.b16 %v5114
    %v5189 = vunpack.c.h.b16 %v5114
    %v5190 = vunpack.c.l.b16 %v5115
    %v5191 = vunpack.c.h.b16 %v5115
    %v5192 = vunpack.c.l.b16 %v5116
    %v5193 = vunpack.c.h.b16 %v5116
    %v5194 = vunpack.c.l.b16 %v5117
    %v5195 = vunpack.c.h.b16 %v5117
    %v5196 = vunpack.c.l.b16 %v5118
    %v5197 = vunpack.c.h.b16 %v5118
    %v5198 = vunpack.c.l.b16 %v5119
    %v5199 = vunpack.c.h.b16 %v5119
    %v5200 = vunpack.c.l.b16 %v5120
    %v5201 = vunpack.c.h.b16 %v5120
    %v5202 = vunpack.c.l.b16 %v5121
    %v5203 = vunpack.c.h.b16 %v5121
    %v5204 = vunpack.c.l.b16 %v5122
    %v5205 = vunpack.c.h.b16 %v5122
    %v5206 = vunpack.c.l.b16 %v5123
    %v5207 = vunpack.c.h.b16 %v5123
    %v5208 = vunpack.c.l.b16 %v5124
    %v5209 = vunpack.c.h.b16 %v5124
    %v5210 = vunpack.c.l.b16 %v5125
    %v5211 = vunpack.c.h.b16 %v5125
    %v5212 = vunpack.c.l.b16 %v5126
    %v5213 = vunpack.c.h.b16 %v5126
    %v5214 = vunpack.c.l.b16 %v5127
    %v5215 = vunpack.c.h.b16 %v5127
    %v5216 = vunpack.c.l.b16 %v5128
    %v5217 = vunpack.c.h.b16 %v5128
    %v5218 = vunpack.c.l.b16 %v5129
    %v5219 = vunpack.c.h.b16 %v5129
    %v5220 = vunpack.c.l.b16 %v5130
    %v5221 = vunpack.c.h.b16 %v5130
    %v5222 = vunpack.c.l.b16 %v5131
    %v5223 = vunpack.c.h.b16 %v5131
    %v5224 = vunpack.c.l.b16 %v5132
    %v5225 = vunpack.c.h.b16 %v5132
    %v5226 = vunpack.c.l.b16 %v5133
    %v5227 = vunpack.c.h.b16 %v5133
    %v5228 = vunpack.c.l.b16 %v5134
    %v5229 = vunpack.c.h.b16 %v5134
    %v5230 = vunpack.c.l.b16 %v5135
    %v5231 = vunpack.c.h.b16 %v5135
    %v5232 = vunpack.c.l.b16 %v5136
    %v5233 = vunpack.c.h.b16 %v5136
    %v5234 = vpack.c.b16 %v5174, %v5170
    %v5235 = vpack.c.b16 %v5175, %v5171
    %v5236 = vpack.c.b16 %v5176, %v5172
    %v5237 = vpack.c.b16 %v5177, %v5173
    %v5238 = vpack.c.b16 %v5182, %v5178
    %v5239 = vpack.c.b16 %v5183, %v5179
    %v5240 = vpack.c.b16 %v5184, %v5180
    %v5241 = vpack.c.b16 %v5185, %v5181
    %v5242 = vpack.c.b16 %v5190, %v5186
    %v5243 = vpack.c.b16 %v5191, %v5187
    %v5244 = vpack.c.b16 %v5192, %v5188
    %v5245 = vpack.c.b16 %v5193, %v5189
    %v5246 = vpack.c.b16 %v5198, %v5194
    %v5247 = vpack.c.b16 %v5199, %v5195
    %v5248 = vpack.c.b16 %v5200, %v5196
    %v5249 = vpack.c.b16 %v5201, %v5197
    %v5250 = vpack.c.b16 %v5206, %v5202
    %v5251 = vpack.c.b16 %v5207, %v5203
    %v5252 = vpack.c.b16 %v5208, %v5204
    %v5253 = vpack.c.b16 %v5209, %v5205
    %v5254 = vpack.c.b16 %v5214, %v5210
    %v5255 = vpack.c.b16 %v5215, %v5211
    %v5256 = vpack.c.b16 %v5216, %v5212
    %v5257 = vpack.c.b16 %v5217, %v5213
    %v5258 = vpack.c.b16 %v5222, %v5218
    %v5259 = vpack.c.b16 %v5223, %v5219
    %v5260 = vpack.c.b16 %v5224, %v5220
    %v5261 = vpack.c.b16 %v5225, %v5221
    %v5262 = vpack.c.b16 %v5230, %v5226
    %v5263 = vpack.c.b16 %v5231, %v5227
    %v5264 = vpack.c.b16 %v5232, %v5228
    %v5265 = vpack.c.b16 %v5233, %v5229
    %5298 = vmatprep.subr.bf16.mxu0 %v5235
    %5299 = vmatpush1.bf16.msra.mxu0 %v5234
    %5300 = vmatprep.subr.bf16.mxu0 %v5239
    %5301 = vmatpush1.bf16.msra.mxu0 %v5238
    %5302 = vmatprep.subr.bf16.mxu0 %v5243
    %5303 = vmatpush1.bf16.msra.mxu0 %v5242
    %5304 = vmatprep.subr.bf16.mxu0 %v5247
    %5305 = vmatpush1.bf16.msra.mxu0 %v5246
    %5306 = vmatprep.subr.bf16.mxu0 %v5251
    %5307 = vmatpush1.bf16.msra.mxu0 %v5250
    %5308 = vmatprep.subr.bf16.mxu0 %v5255
    %5309 = vmatpush1.bf16.msra.mxu0 %v5254
    %5310 = vmatprep.subr.bf16.mxu0 %v5259
    %5311 = vmatpush1.bf16.msra.mxu0 %v5258
    %5312 = vmatprep.subr.bf16.mxu0 %v5263
    %5313 = vmatpush1.bf16.msra.mxu0 %v5262
    %5314 = vmatprep.subr.bf16.mxu0 0
    %5315 = vmatpush1.bf16.msra.mxu0 0
    %5316 = vmatprep.subr.bf16.mxu0 0
    %5317 = vmatpush1.bf16.msra.mxu0 0
    %5318 = vmatprep.subr.bf16.mxu0 0
    %5319 = vmatpush1.bf16.msra.mxu0 0
    %5320 = vmatprep.subr.bf16.mxu0 0
    %5321 = vmatpush1.bf16.msra.mxu0 0
    %5322 = vmatprep.subr.bf16.mxu0 0
    %5323 = vmatpush1.bf16.msra.mxu0 0
    %5324 = vmatprep.subr.bf16.mxu0 0
    %5325 = vmatpush1.bf16.msra.mxu0 0
    %5326 = vmatprep.subr.bf16.mxu0 0
    %5327 = vmatpush1.bf16.msra.mxu0 0
    %5328 = vmatprep.subr.bf16.mxu0 0
    %5329 = vmatpush1.bf16.msra.mxu0 0
    %5330 = vmatprep.mubr.bf16.mxu0 0
    %5331 = vmatmul.mubr.bf16.gmra.mrb[0].mxu0 %v5137
    %v5332 = vpop.f32.mrb[0].mxu0
    %v5333 = vadd.f32 0.0, %v5332
    %v5334 = vpop.f32.mrb[0].mxu0
    %v5335 = vadd.f32 0.0, %v5334
    %v5336 = vpop.f32.mrb[0].mxu0
    %v5337 = vpop.f32.mrb[0].mxu0
    %5338 = vdwg.mxu0
    %5339 = vmatprep.subr.bf16.mxu0 %v5237
    %5340 = vmatpush1.bf16.msra.mxu0 %v5236
    %5341 = vmatprep.subr.bf16.mxu0 %v5241
    %5342 = vmatpush1.bf16.msra.mxu0 %v5240
    %5343 = vmatprep.subr.bf16.mxu0 %v5245
    %5344 = vmatpush1.bf16.msra.mxu0 %v5244
    %5345 = vmatprep.subr.bf16.mxu0 %v5249
    %5346 = vmatpush1.bf16.msra.mxu0 %v5248
    %5347 = vmatprep.subr.bf16.mxu0 %v5253
    %5348 = vmatpush1.bf16.msra.mxu0 %v5252
    %5349 = vmatprep.subr.bf16.mxu0 %v5257
    %5350 = vmatpush1.bf16.msra.mxu0 %v5256
    %5351 = vmatprep.subr.bf16.mxu0 %v5261
    %5352 = vmatpush1.bf16.msra.mxu0 %v5260
    %5353 = vmatprep.subr.bf16.mxu0 %v5265
    %5354 = vmatpush1.bf16.msra.mxu0 %v5264
    %5355 = vmatprep.subr.bf16.mxu0 0
    %5356 = vmatpush1.bf16.msra.mxu0 0
    %5357 = vmatprep.subr.bf16.mxu0 0
    %5358 = vmatpush1.bf16.msra.mxu0 0
    %5359 = vmatprep.subr.bf16.mxu0 0
    %5360 = vmatpush1.bf16.msra.mxu0 0
    %5361 = vmatprep.subr.bf16.mxu0 0
    %5362 = vmatpush1.bf16.msra.mxu0 0
    %5363 = vmatprep.subr.bf16.mxu0 0
    %5364 = vmatpush1.bf16.msra.mxu0 0
    %5365 = vmatprep.subr.bf16.mxu0 0
    %5366 = vmatpush1.bf16.msra.mxu0 0
    %5367 = vmatprep.subr.bf16.mxu0 0
    %5368 = vmatpush1.bf16.msra.mxu0 0
    %5369 = vmatprep.subr.bf16.mxu0 0
    %5370 = vmatpush1.bf16.msra.mxu0 0
    %5371 = vmatprep.mubr.bf16.mxu0 0
    %5372 = vmatmul.mubr.bf16.gmra.mrb[0].mxu0 %v5137
    %v5373 = vpop.f32.mrb[0].mxu0
    %v5374 = vadd.f32 0.0, %v5373
    %v5375 = vpop.f32.mrb[0].mxu0
    %v5376 = vadd.f32 0.0, %v5375
    %v5377 = vpop.f32.mrb[0].mxu0
    %v5378 = vpop.f32.mrb[0].mxu0
    %5379 = vdwg.mxu0
    %v5380 = vadd.f32 %v5100, %v5333
    %v5381 = vadd.f32 %v5101, %v5335
    %v5382 = vadd.f32 %v5102, %v5374
    %v5383 = vadd.f32 %v5103, %v5376
    %v5384 = vxor.u32 %v5380, 2147483648
    %v5385 = vmul.f32 %v5384, 1.442695
    %v5386 = vpow.pop %v5385
    %v5387 = vadd.f32 %v5386, 1.0
    %v5388 = vrcp.pop %v5387
    %v5389 = vmul.f32 1.0, %v5388
    %v5390 = vxor.u32 %v5381, 2147483648
    %v5391 = vmul.f32 %v5390, 1.442695
    %v5392 = vpow.pop %v5391
    %v5393 = vadd.f32 %v5392, 1.0
    %v5394 = vrcp.pop %v5393
    %v5395 = vmul.f32 1.0, %v5394
    %v5396 = vtanh.pop %v5382
    %v5397 = vxor.u32 %v5383, 2147483648
    %v5398 = vmul.f32 %v5397, 1.442695
    %v5399 = vpow.pop %v5398
    %v5400 = vadd.f32 %v5399, 1.0
    %v5401 = vrcp.pop %v5400
    %v5402 = vmul.f32 1.0, %v5401
    %v5403 = vmul.f32 %v5395, %v5018
    %v5404 = vmul.f32 %v5389, %v5396
    %v5405 = vadd.f32 %v5403, %v5404
    %v5406 = vtanh.pop %v5405
    %v5407 = vmul.f32 %v5402, %v5406
    %s5408 = scalar_lea.vmem [#allocation15], 40
    %5409 = vst [vmem:[%s5408] sm:$0xff] %v5407
    %s5410 = scalar_lea.vmem [#allocation17], 40
    %5411 = vst [vmem:[%s5410] sm:$0xff] %v5405
    %s5412 = scalar_lea.vmem %s3, 48
    %v5413 = vld [vmem:[%s5412] sm:$0xff]
    %s5414 = scalar_lea.vmem %s4, 48
    %v5415 = vld [vmem:[%s5414] sm:$0xff]
    %s5416 = scalar_lea.vmem %s10, 24
    %v5417 = vld [vmem:[%s5416] sm:$0x7]
    %s5418 = scalar_lea.vmem %s11, 24
    %v5419 = vld [vmem:[%s5418] sm:$0x7]
    %s5420 = scalar_lea.vmem %s12, 48
    %v5421 = vld [vmem:[%s5420] sm:$0xff]
    %s5422 = scalar_lea.vmem [#allocation2], 384
    %v5423 = vld [vmem:[%s5422] sm:$0xf]
    %v5424 = vld [vmem:[%s5422 + $0x4] sm:$0xf]
    %v5425 = vld [vmem:[%s5422 + $0x8] sm:$0xf]
    %v5426 = vld [vmem:[%s5422 + $0xc] sm:$0xf]
    %v5427 = vld [vmem:[%s5422 + $0x10] sm:$0xf]
    %v5428 = vld [vmem:[%s5422 + $0x14] sm:$0xf]
    %v5429 = vld [vmem:[%s5422 + $0x18] sm:$0xf]
    %v5430 = vld [vmem:[%s5422 + $0x1c] sm:$0xf]
    %v5431 = vld [vmem:[%s5422 + $0x20] sm:$0xf]
    %v5432 = vld [vmem:[%s5422 + $0x24] sm:$0xf]
    %v5433 = vld [vmem:[%s5422 + $0x28] sm:$0xf]
    %v5434 = vld [vmem:[%s5422 + $0x2c] sm:$0xf]
    %v5435 = vld [vmem:[%s5422 + $0x30] sm:$0xf]
    %v5436 = vld [vmem:[%s5422 + $0x34] sm:$0xf]
    %v5437 = vld [vmem:[%s5422 + $0x38] sm:$0xf]
    %v5438 = vld [vmem:[%s5422 + $0x3c] sm:$0xf]
    %v5439 = vpack.c.bf16 %v5407, %v5407
    %s5440 = scalar_lea.vmem [#allocation5], 384
    %v5441 = vld [vmem:[%s5440] sm:$0xf]
    %v5442 = vld [vmem:[%s5440 + $0x4] sm:$0xf]
    %v5443 = vld [vmem:[%s5440 + $0x8] sm:$0xf]
    %v5444 = vld [vmem:[%s5440 + $0xc] sm:$0xf]
    %v5445 = vld [vmem:[%s5440 + $0x10] sm:$0xf]
    %v5446 = vld [vmem:[%s5440 + $0x14] sm:$0xf]
    %v5447 = vld [vmem:[%s5440 + $0x18] sm:$0xf]
    %v5448 = vld [vmem:[%s5440 + $0x1c] sm:$0xf]
    %v5449 = vld [vmem:[%s5440 + $0x20] sm:$0xf]
    %v5450 = vld [vmem:[%s5440 + $0x24] sm:$0xf]
    %v5451 = vld [vmem:[%s5440 + $0x28] sm:$0xf]
    %v5452 = vld [vmem:[%s5440 + $0x2c] sm:$0xf]
    %v5453 = vld [vmem:[%s5440 + $0x30] sm:$0xf]
    %v5454 = vld [vmem:[%s5440 + $0x34] sm:$0xf]
    %v5455 = vld [vmem:[%s5440 + $0x38] sm:$0xf]
    %v5456 = vld [vmem:[%s5440 + $0x3c] sm:$0xf]
    %v5457 = vpack.c.bf16 %v5413, %v5413
    %v5474 = vunpack.c.l.b16 %v5441
    %v5475 = vunpack.c.l.b16 %v5442
    %v5476 = vunpack.c.l.b16 %v5443
    %v5477 = vunpack.c.l.b16 %v5444
    %v5478 = vunpack.c.l.b16 %v5445
    %v5479 = vunpack.c.l.b16 %v5446
    %v5480 = vunpack.c.l.b16 %v5447
    %v5481 = vunpack.c.l.b16 %v5448
    %v5482 = vunpack.c.l.b16 %v5449
    %v5483 = vunpack.c.l.b16 %v5450
    %v5484 = vunpack.c.l.b16 %v5451
    %v5485 = vunpack.c.l.b16 %v5452
    %v5486 = vunpack.c.l.b16 %v5453
    %v5487 = vunpack.c.l.b16 %v5454
    %v5488 = vunpack.c.l.b16 %v5455
    %v5489 = vunpack.c.l.b16 %v5456
    %v5490 = vpack.c.b16 %v5475, %v5474
    %v5491 = vpack.c.b16 %v5477, %v5476
    %v5492 = vpack.c.b16 %v5479, %v5478
    %v5493 = vpack.c.b16 %v5481, %v5480
    %v5494 = vpack.c.b16 %v5483, %v5482
    %v5495 = vpack.c.b16 %v5485, %v5484
    %v5496 = vpack.c.b16 %v5487, %v5486
    %v5497 = vpack.c.b16 %v5489, %v5488
    %5506 = vmatprep.subr.bf16.mxu0 0
    %5507 = vmatpush1.bf16.msra.mxu0 %v5490
    %5508 = vmatprep.subr.bf16.mxu0 0
    %5509 = vmatpush1.bf16.msra.mxu0 %v5491
    %5510 = vmatprep.subr.bf16.mxu0 0
    %5511 = vmatpush1.bf16.msra.mxu0 %v5492
    %5512 = vmatprep.subr.bf16.mxu0 0
    %5513 = vmatpush1.bf16.msra.mxu0 %v5493
    %5514 = vmatprep.subr.bf16.mxu0 0
    %5515 = vmatpush1.bf16.msra.mxu0 %v5494
    %5516 = vmatprep.subr.bf16.mxu0 0
    %5517 = vmatpush1.bf16.msra.mxu0 %v5495
    %5518 = vmatprep.subr.bf16.mxu0 0
    %5519 = vmatpush1.bf16.msra.mxu0 %v5496
    %5520 = vmatprep.subr.bf16.mxu0 0
    %5521 = vmatpush1.bf16.msra.mxu0 %v5497
    %5522 = vmatprep.subr.bf16.mxu0 0
    %5523 = vmatpush1.bf16.msra.mxu0 0
    %5524 = vmatprep.subr.bf16.mxu0 0
    %5525 = vmatpush1.bf16.msra.mxu0 0
    %5526 = vmatprep.subr.bf16.mxu0 0
    %5527 = vmatpush1.bf16.msra.mxu0 0
    %5528 = vmatprep.subr.bf16.mxu0 0
    %5529 = vmatpush1.bf16.msra.mxu0 0
    %5530 = vmatprep.subr.bf16.mxu0 0
    %5531 = vmatpush1.bf16.msra.mxu0 0
    %5532 = vmatprep.subr.bf16.mxu0 0
    %5533 = vmatpush1.bf16.msra.mxu0 0
    %5534 = vmatprep.subr.bf16.mxu0 0
    %5535 = vmatpush1.bf16.msra.mxu0 0
    %5536 = vmatprep.subr.bf16.mxu0 0
    %5537 = vmatpush1.bf16.msra.mxu0 0
    %5538 = vmatprep.mubr.bf16.mxu0 0
    %5539 = vmatmul.mubr.bf16.gmra.mrb[0].mxu0 %v5457
    %v5540 = vpop.f32.mrb[0].mxu0
    %v5541 = vadd.f32 0.0, %v5540
    %v5542 = vpop.f32.mrb[0].mxu0
    %v5543 = vpop.f32.mrb[0].mxu0
    %v5544 = vpop.f32.mrb[0].mxu0
    %5545 = vdwg.mxu0
    %v5562 = vunpack.c.l.b16 %v5423
    %v5563 = vunpack.c.l.b16 %v5424
    %v5564 = vunpack.c.l.b16 %v5425
    %v5565 = vunpack.c.l.b16 %v5426
    %v5566 = vunpack.c.l.b16 %v5427
    %v5567 = vunpack.c.l.b16 %v5428
    %v5568 = vunpack.c.l.b16 %v5429
    %v5569 = vunpack.c.l.b16 %v5430
    %v5570 = vunpack.c.l.b16 %v5431
    %v5571 = vunpack.c.l.b16 %v5432
    %v5572 = vunpack.c.l.b16 %v5433
    %v5573 = vunpack.c.l.b16 %v5434
    %v5574 = vunpack.c.l.b16 %v5435
    %v5575 = vunpack.c.l.b16 %v5436
    %v5576 = vunpack.c.l.b16 %v5437
    %v5577 = vunpack.c.l.b16 %v5438
    %v5578 = vpack.c.b16 %v5563, %v5562
    %v5579 = vpack.c.b16 %v5565, %v5564
    %v5580 = vpack.c.b16 %v5567, %v5566
    %v5581 = vpack.c.b16 %v5569, %v5568
    %v5582 = vpack.c.b16 %v5571, %v5570
    %v5583 = vpack.c.b16 %v5573, %v5572
    %v5584 = vpack.c.b16 %v5575, %v5574
    %v5585 = vpack.c.b16 %v5577, %v5576
    %5594 = vmatprep.subr.bf16.mxu0 0
    %5595 = vmatpush1.bf16.msra.mxu0 %v5578
    %5596 = vmatprep.subr.bf16.mxu0 0
    %5597 = vmatpush1.bf16.msra.mxu0 %v5579
    %5598 = vmatprep.subr.bf16.mxu0 0
    %5599 = vmatpush1.bf16.msra.mxu0 %v5580
    %5600 = vmatprep.subr.bf16.mxu0 0
    %5601 = vmatpush1.bf16.msra.mxu0 %v5581
    %5602 = vmatprep.subr.bf16.mxu0 0
    %5603 = vmatpush1.bf16.msra.mxu0 %v5582
    %5604 = vmatprep.subr.bf16.mxu0 0
    %5605 = vmatpush1.bf16.msra.mxu0 %v5583
    %5606 = vmatprep.subr.bf16.mxu0 0
    %5607 = vmatpush1.bf16.msra.mxu0 %v5584
    %5608 = vmatprep.subr.bf16.mxu0 0
    %5609 = vmatpush1.bf16.msra.mxu0 %v5585
    %5610 = vmatprep.subr.bf16.mxu0 0
    %5611 = vmatpush1.bf16.msra.mxu0 0
    %5612 = vmatprep.subr.bf16.mxu0 0
    %5613 = vmatpush1.bf16.msra.mxu0 0
    %5614 = vmatprep.subr.bf16.mxu0 0
    %5615 = vmatpush1.bf16.msra.mxu0 0
    %5616 = vmatprep.subr.bf16.mxu0 0
    %5617 = vmatpush1.bf16.msra.mxu0 0
    %5618 = vmatprep.subr.bf16.mxu0 0
    %5619 = vmatpush1.bf16.msra.mxu0 0
    %5620 = vmatprep.subr.bf16.mxu0 0
    %5621 = vmatpush1.bf16.msra.mxu0 0
    %5622 = vmatprep.subr.bf16.mxu0 0
    %5623 = vmatpush1.bf16.msra.mxu0 0
    %5624 = vmatprep.subr.bf16.mxu0 0
    %5625 = vmatpush1.bf16.msra.mxu0 0
    %5626 = vmatprep.mubr.bf16.mxu0 0
    %5627 = vmatmul.mubr.bf16.gmra.mrb[0].mxu0 %v5439
    %v5628 = vpop.f32.mrb[0].mxu0
    %v5629 = vadd.f32 %v5541, %v5628
    %v5630 = vpop.f32.mrb[0].mxu0
    %v5631 = vpop.f32.mrb[0].mxu0
    %v5632 = vpop.f32.mrb[0].mxu0
    %5633 = vdwg.mxu0
    %v5634 = vlaneseq
    %v5635 = vshrl.u32 %v5634, 7
    %v5636 = vsub.s32 0, %v5635
    %v5637 = vrot.slane %v5417, %v5636
    %v5638 = vadd.f32 %v5629, %v5637
    %5639 = vadd.xlane.f32.xlu0 %v5638
    %v5640 = vpop.xlane.xlu0 %5639
    %v5641 = vmul.f32 %v5640, %v358
    %v5642 = vsub.f32 %v5638, %v5641
    %v5643 = vmul.f32 %v5642, %v5642
    %5644 = vadd.xlane.f32.xlu0 %v5643
    %v5645 = vpop.xlane.xlu0 %5644
    %v5646 = vmul.f32 %v5645, %v358
    %v5647 = vadd.f32 %v5646, 1e-05
    %v5648 = vrsqrt.pop %v5647
    %v5649 = vmul.f32 %v5642, %v5648
    %v5650 = vlaneseq
    %v5651 = vshrl.u32 %v5650, 7
    %v5652 = vsub.s32 1, %v5651
    %v5653 = vrot.slane %v5417, %v5652
    %v5654 = vmul.f32 %v5649, %v5653
    %v5655 = vlaneseq
    %v5656 = vshrl.u32 %v5655, 7
    %v5657 = vsub.s32 2, %v5656
    %v5658 = vrot.slane %v5417, %v5657
    %v5659 = vadd.f32 %v5654, %v5658
    %v5660 = vmax.f32 %v5659, 0.0
    %s5661 = scalar_lea.vmem [#allocation7], 384
    %v5662 = vld [vmem:[%s5661] sm:$0xf]
    %v5663 = vld [vmem:[%s5661 + $0x4] sm:$0xf]
    %v5664 = vld [vmem:[%s5661 + $0x8] sm:$0xf]
    %v5665 = vld [vmem:[%s5661 + $0xc] sm:$0xf]
    %v5666 = vld [vmem:[%s5661 + $0x10] sm:$0xf]
    %v5667 = vld [vmem:[%s5661 + $0x14] sm:$0xf]
    %v5668 = vld [vmem:[%s5661 + $0x18] sm:$0xf]
    %v5669 = vld [vmem:[%s5661 + $0x1c] sm:$0xf]
    %v5670 = vld [vmem:[%s5661 + $0x20] sm:$0xf]
    %v5671 = vld [vmem:[%s5661 + $0x24] sm:$0xf]
    %v5672 = vld [vmem:[%s5661 + $0x28] sm:$0xf]
    %v5673 = vld [vmem:[%s5661 + $0x2c] sm:$0xf]
    %v5674 = vld [vmem:[%s5661 + $0x30] sm:$0xf]
    %v5675 = vld [vmem:[%s5661 + $0x34] sm:$0xf]
    %v5676 = vld [vmem:[%s5661 + $0x38] sm:$0xf]
    %v5677 = vld [vmem:[%s5661 + $0x3c] sm:$0xf]
    %v5678 = vpack.c.bf16 %v5405, %v5405
    %s5679 = scalar_lea.vmem [#allocation8], 384
    %v5680 = vld [vmem:[%s5679] sm:$0xf]
    %v5681 = vld [vmem:[%s5679 + $0x4] sm:$0xf]
    %v5682 = vld [vmem:[%s5679 + $0x8] sm:$0xf]
    %v5683 = vld [vmem:[%s5679 + $0xc] sm:$0xf]
    %v5684 = vld [vmem:[%s5679 + $0x10] sm:$0xf]
    %v5685 = vld [vmem:[%s5679 + $0x14] sm:$0xf]
    %v5686 = vld [vmem:[%s5679 + $0x18] sm:$0xf]
    %v5687 = vld [vmem:[%s5679 + $0x1c] sm:$0xf]
    %v5688 = vld [vmem:[%s5679 + $0x20] sm:$0xf]
    %v5689 = vld [vmem:[%s5679 + $0x24] sm:$0xf]
    %v5690 = vld [vmem:[%s5679 + $0x28] sm:$0xf]
    %v5691 = vld [vmem:[%s5679 + $0x2c] sm:$0xf]
    %v5692 = vld [vmem:[%s5679 + $0x30] sm:$0xf]
    %v5693 = vld [vmem:[%s5679 + $0x34] sm:$0xf]
    %v5694 = vld [vmem:[%s5679 + $0x38] sm:$0xf]
    %v5695 = vld [vmem:[%s5679 + $0x3c] sm:$0xf]
    %v5696 = vpack.c.bf16 %v5415, %v5415
    %v5713 = vunpack.c.l.b16 %v5680
    %v5714 = vunpack.c.l.b16 %v5681
    %v5715 = vunpack.c.l.b16 %v5682
    %v5716 = vunpack.c.l.b16 %v5683
    %v5717 = vunpack.c.l.b16 %v5684
    %v5718 = vunpack.c.l.b16 %v5685
    %v5719 = vunpack.c.l.b16 %v5686
    %v5720 = vunpack.c.l.b16 %v5687
    %v5721 = vunpack.c.l.b16 %v5688
    %v5722 = vunpack.c.l.b16 %v5689
    %v5723 = vunpack.c.l.b16 %v5690
    %v5724 = vunpack.c.l.b16 %v5691
    %v5725 = vunpack.c.l.b16 %v5692
    %v5726 = vunpack.c.l.b16 %v5693
    %v5727 = vunpack.c.l.b16 %v5694
    %v5728 = vunpack.c.l.b16 %v5695
    %v5729 = vpack.c.b16 %v5714, %v5713
    %v5730 = vpack.c.b16 %v5716, %v5715
    %v5731 = vpack.c.b16 %v5718, %v5717
    %v5732 = vpack.c.b16 %v5720, %v5719
    %v5733 = vpack.c.b16 %v5722, %v5721
    %v5734 = vpack.c.b16 %v5724, %v5723
    %v5735 = vpack.c.b16 %v5726, %v5725
    %v5736 = vpack.c.b16 %v5728, %v5727
    %5745 = vmatprep.subr.bf16.mxu0 0
    %5746 = vmatpush1.bf16.msra.mxu0 %v5729
    %5747 = vmatprep.subr.bf16.mxu0 0
    %5748 = vmatpush1.bf16.msra.mxu0 %v5730
    %5749 = vmatprep.subr.bf16.mxu0 0
    %5750 = vmatpush1.bf16.msra.mxu0 %v5731
    %5751 = vmatprep.subr.bf16.mxu0 0
    %5752 = vmatpush1.bf16.msra.mxu0 %v5732
    %5753 = vmatprep.subr.bf16.mxu0 0
    %5754 = vmatpush1.bf16.msra.mxu0 %v5733
    %5755 = vmatprep.subr.bf16.mxu0 0
    %5756 = vmatpush1.bf16.msra.mxu0 %v5734
    %5757 = vmatprep.subr.bf16.mxu0 0
    %5758 = vmatpush1.bf16.msra.mxu0 %v5735
    %5759 = vmatprep.subr.bf16.mxu0 0
    %5760 = vmatpush1.bf16.msra.mxu0 %v5736
    %5761 = vmatprep.subr.bf16.mxu0 0
    %5762 = vmatpush1.bf16.msra.mxu0 0
    %5763 = vmatprep.subr.bf16.mxu0 0
    %5764 = vmatpush1.bf16.msra.mxu0 0
    %5765 = vmatprep.subr.bf16.mxu0 0
    %5766 = vmatpush1.bf16.msra.mxu0 0
    %5767 = vmatprep.subr.bf16.mxu0 0
    %5768 = vmatpush1.bf16.msra.mxu0 0
    %5769 = vmatprep.subr.bf16.mxu0 0
    %5770 = vmatpush1.bf16.msra.mxu0 0
    %5771 = vmatprep.subr.bf16.mxu0 0
    %5772 = vmatpush1.bf16.msra.mxu0 0
    %5773 = vmatprep.subr.bf16.mxu0 0
    %5774 = vmatpush1.bf16.msra.mxu0 0
    %5775 = vmatprep.subr.bf16.mxu0 0
    %5776 = vmatpush1.bf16.msra.mxu0 0
    %5777 = vmatprep.mubr.bf16.mxu0 0
    %5778 = vmatmul.mubr.bf16.gmra.mrb[0].mxu0 %v5696
    %v5779 = vpop.f32.mrb[0].mxu0
    %v5780 = vadd.f32 0.0, %v5779
    %v5781 = vpop.f32.mrb[0].mxu0
    %v5782 = vpop.f32.mrb[0].mxu0
    %v5783 = vpop.f32.mrb[0].mxu0
    %5784 = vdwg.mxu0
    %v5801 = vunpack.c.l.b16 %v5662
    %v5802 = vunpack.c.l.b16 %v5663
    %v5803 = vunpack.c.l.b16 %v5664
    %v5804 = vunpack.c.l.b16 %v5665
    %v5805 = vunpack.c.l.b16 %v5666
    %v5806 = vunpack.c.l.b16 %v5667
    %v5807 = vunpack.c.l.b16 %v5668
    %v5808 = vunpack.c.l.b16 %v5669
    %v5809 = vunpack.c.l.b16 %v5670
    %v5810 = vunpack.c.l.b16 %v5671
    %v5811 = vunpack.c.l.b16 %v5672
    %v5812 = vunpack.c.l.b16 %v5673
    %v5813 = vunpack.c.l.b16 %v5674
    %v5814 = vunpack.c.l.b16 %v5675
    %v5815 = vunpack.c.l.b16 %v5676
    %v5816 = vunpack.c.l.b16 %v5677
    %v5817 = vpack.c.b16 %v5802, %v5801
    %v5818 = vpack.c.b16 %v5804, %v5803
    %v5819 = vpack.c.b16 %v5806, %v5805
    %v5820 = vpack.c.b16 %v5808, %v5807
    %v5821 = vpack.c.b16 %v5810, %v5809
    %v5822 = vpack.c.b16 %v5812, %v5811
    %v5823 = vpack.c.b16 %v5814, %v5813
    %v5824 = vpack.c.b16 %v5816, %v5815
    %5833 = vmatprep.subr.bf16.mxu0 0
    %5834 = vmatpush1.bf16.msra.mxu0 %v5817
    %5835 = vmatprep.subr.bf16.mxu0 0
    %5836 = vmatpush1.bf16.msra.mxu0 %v5818
    %5837 = vmatprep.subr.bf16.mxu0 0
    %5838 = vmatpush1.bf16.msra.mxu0 %v5819
    %5839 = vmatprep.subr.bf16.mxu0 0
    %5840 = vmatpush1.bf16.msra.mxu0 %v5820
    %5841 = vmatprep.subr.bf16.mxu0 0
    %5842 = vmatpush1.bf16.msra.mxu0 %v5821
    %5843 = vmatprep.subr.bf16.mxu0 0
    %5844 = vmatpush1.bf16.msra.mxu0 %v5822
    %5845 = vmatprep.subr.bf16.mxu0 0
    %5846 = vmatpush1.bf16.msra.mxu0 %v5823
    %5847 = vmatprep.subr.bf16.mxu0 0
    %5848 = vmatpush1.bf16.msra.mxu0 %v5824
    %5849 = vmatprep.subr.bf16.mxu0 0
    %5850 = vmatpush1.bf16.msra.mxu0 0
    %5851 = vmatprep.subr.bf16.mxu0 0
    %5852 = vmatpush1.bf16.msra.mxu0 0
    %5853 = vmatprep.subr.bf16.mxu0 0
    %5854 = vmatpush1.bf16.msra.mxu0 0
    %5855 = vmatprep.subr.bf16.mxu0 0
    %5856 = vmatpush1.bf16.msra.mxu0 0
    %5857 = vmatprep.subr.bf16.mxu0 0
    %5858 = vmatpush1.bf16.msra.mxu0 0
    %5859 = vmatprep.subr.bf16.mxu0 0
    %5860 = vmatpush1.bf16.msra.mxu0 0
    %5861 = vmatprep.subr.bf16.mxu0 0
    %5862 = vmatpush1.bf16.msra.mxu0 0
    %5863 = vmatprep.subr.bf16.mxu0 0
    %5864 = vmatpush1.bf16.msra.mxu0 0
    %5865 = vmatprep.mubr.bf16.mxu0 0
    %5866 = vmatmul.mubr.bf16.gmra.mrb[0].mxu0 %v5678
    %v5867 = vpop.f32.mrb[0].mxu0
    %v5868 = vadd.f32 %v5780, %v5867
    %v5869 = vpop.f32.mrb[0].mxu0
    %v5870 = vpop.f32.mrb[0].mxu0
    %v5871 = vpop.f32.mrb[0].mxu0
    %5872 = vdwg.mxu0
    %v5873 = vlaneseq
    %v5874 = vshrl.u32 %v5873, 7
    %v5875 = vsub.s32 0, %v5874
    %v5876 = vrot.slane %v5419, %v5875
    %v5877 = vadd.f32 %v5868, %v5876
    %5878 = vadd.xlane.f32.xlu0 %v5877
    %v5879 = vpop.xlane.xlu0 %5878
    %v5880 = vmul.f32 %v5879, %v358
    %v5881 = vsub.f32 %v5877, %v5880
    %v5882 = vmul.f32 %v5881, %v5881
    %5883 = vadd.xlane.f32.xlu0 %v5882
    %v5884 = vpop.xlane.xlu0 %5883
    %v5885 = vmul.f32 %v5884, %v358
    %v5886 = vadd.f32 %v5885, 1e-05
    %v5887 = vrsqrt.pop %v5886
    %v5888 = vmul.f32 %v5881, %v5887
    %v5889 = vlaneseq
    %v5890 = vshrl.u32 %v5889, 7
    %v5891 = vsub.s32 1, %v5890
    %v5892 = vrot.slane %v5419, %v5891
    %v5893 = vmul.f32 %v5888, %v5892
    %v5894 = vlaneseq
    %v5895 = vshrl.u32 %v5894, 7
    %v5896 = vsub.s32 2, %v5895
    %v5897 = vrot.slane %v5419, %v5896
    %v5898 = vadd.f32 %v5893, %v5897
    %v5899 = vmax.f32 %v5898, 0.0
    %5900 = vset.pattern.permute.xlu0 6
    %5901 = vperm.xlu0 %5900, %v133
    %v5902 = vpop.permute.xlu0 %5901
    %v5905 = vlaneseq
    %v5906 = vshrl.u32 %v5905, 7
    %v5907 = vsub.s32 0, %v5906
    %v5908 = vrot.slane %v5421, %v5907
    %v5909 = vlaneseq
    %v5910 = vshrl.u32 %v5909, 7
    %v5911 = vsub.s32 2, %v5910
    %v5912 = vrot.slane %v5421, %v5911
    %v5913 = vlaneseq
    %v5914 = vshrl.u32 %v5913, 7
    %v5915 = vsub.s32 4, %v5914
    %v5916 = vrot.slane %v5421, %v5915
    %v5917 = vlaneseq
    %v5918 = vshrl.u32 %v5917, 7
    %v5919 = vsub.s32 6, %v5918
    %v5920 = vrot.slane %v5421, %v5919
    %v5925 = vlaneseq
    %v5926 = vshrl.u32 %v5925, 7
    %v5927 = vsub.s32 0, %v5926
    %v5928 = vrot.slane %v5908, %v5927
    %v5929 = vlaneseq
    %v5930 = vshrl.u32 %v5929, 7
    %v5931 = vsub.s32 0, %v5930
    %v5932 = vrot.slane %v5912, %v5931
    %v5933 = vlaneseq
    %v5934 = vshrl.u32 %v5933, 7
    %v5935 = vsub.s32 0, %v5934
    %v5936 = vrot.slane %v5916, %v5935
    %v5937 = vlaneseq
    %v5938 = vshrl.u32 %v5937, 7
    %v5939 = vsub.s32 0, %v5938
    %v5940 = vrot.slane %v5920, %v5939
    %v5941 = vmul.f32 %v5902, %v5928
    %v5942 = vmul.f32 %v5902, %v5932
    %v5943 = vmul.f32 %v5902, %v5936
    %v5944 = vmul.f32 %v5902, %v5940
    %v5945 = vlaneseq
    %v5946 = vshrl.u32 %v5945, 7
    %v5947 = vsub.s32 1, %v5946
    %v5948 = vrot.slane %v5421, %v5947
    %v5949 = vlaneseq
    %v5950 = vshrl.u32 %v5949, 7
    %v5951 = vsub.s32 3, %v5950
    %v5952 = vrot.slane %v5421, %v5951
    %v5953 = vlaneseq
    %v5954 = vshrl.u32 %v5953, 7
    %v5955 = vsub.s32 5, %v5954
    %v5956 = vrot.slane %v5421, %v5955
    %v5957 = vlaneseq
    %v5958 = vshrl.u32 %v5957, 7
    %v5959 = vsub.s32 7, %v5958
    %v5960 = vrot.slane %v5421, %v5959
    %v5965 = vlaneseq
    %v5966 = vshrl.u32 %v5965, 7
    %v5967 = vsub.s32 1, %v5966
    %v5968 = vrot.slane %v5948, %v5967
    %v5969 = vlaneseq
    %v5970 = vshrl.u32 %v5969, 7
    %v5971 = vsub.s32 1, %v5970
    %v5972 = vrot.slane %v5952, %v5971
    %v5973 = vlaneseq
    %v5974 = vshrl.u32 %v5973, 7
    %v5975 = vsub.s32 1, %v5974
    %v5976 = vrot.slane %v5956, %v5975
    %v5977 = vlaneseq
    %v5978 = vshrl.u32 %v5977, 7
    %v5979 = vsub.s32 1, %v5978
    %v5980 = vrot.slane %v5960, %v5979
    %v5981 = vadd.f32 %v5941, %v5968
    %v5982 = vadd.f32 %v5942, %v5972
    %v5983 = vadd.f32 %v5943, %v5976
    %v5984 = vadd.f32 %v5944, %v5980
    %s5985 = scalar_lea.vmem [#allocation10], 1536
    %v5986 = vld [vmem:[%s5985] sm:$0xff]
    %v5987 = vld [vmem:[%s5985 + $0x8] sm:$0xff]
    %v5988 = vld [vmem:[%s5985 + $0x10] sm:$0xff]
    %v5989 = vld [vmem:[%s5985 + $0x18] sm:$0xff]
    %v5990 = vld [vmem:[%s5985 + $0x20] sm:$0xff]
    %v5991 = vld [vmem:[%s5985 + $0x28] sm:$0xff]
    %v5992 = vld [vmem:[%s5985 + $0x30] sm:$0xff]
    %v5993 = vld [vmem:[%s5985 + $0x38] sm:$0xff]
    %v5994 = vld [vmem:[%s5985 + $0x40] sm:$0xff]
    %v5995 = vld [vmem:[%s5985 + $0x48] sm:$0xff]
    %v5996 = vld [vmem:[%s5985 + $0x50] sm:$0xff]
    %v5997 = vld [vmem:[%s5985 + $0x58] sm:$0xff]
    %v5998 = vld [vmem:[%s5985 + $0x60] sm:$0xff]
    %v5999 = vld [vmem:[%s5985 + $0x68] sm:$0xff]
    %v6000 = vld [vmem:[%s5985 + $0x70] sm:$0xff]
    %v6001 = vld [vmem:[%s5985 + $0x78] sm:$0xff]
    %v6002 = vld [vmem:[%s5985 + $0x80] sm:$0xff]
    %v6003 = vld [vmem:[%s5985 + $0x88] sm:$0xff]
    %v6004 = vld [vmem:[%s5985 + $0x90] sm:$0xff]
    %v6005 = vld [vmem:[%s5985 + $0x98] sm:$0xff]
    %v6006 = vld [vmem:[%s5985 + $0xa0] sm:$0xff]
    %v6007 = vld [vmem:[%s5985 + $0xa8] sm:$0xff]
    %v6008 = vld [vmem:[%s5985 + $0xb0] sm:$0xff]
    %v6009 = vld [vmem:[%s5985 + $0xb8] sm:$0xff]
    %v6010 = vld [vmem:[%s5985 + $0xc0] sm:$0xff]
    %v6011 = vld [vmem:[%s5985 + $0xc8] sm:$0xff]
    %v6012 = vld [vmem:[%s5985 + $0xd0] sm:$0xff]
    %v6013 = vld [vmem:[%s5985 + $0xd8] sm:$0xff]
    %v6014 = vld [vmem:[%s5985 + $0xe0] sm:$0xff]
    %v6015 = vld [vmem:[%s5985 + $0xe8] sm:$0xff]
    %v6016 = vld [vmem:[%s5985 + $0xf0] sm:$0xff]
    %v6017 = vld [vmem:[%s5985 + $0xf8] sm:$0xff]
    %v6018 = vpack.c.bf16 %v5660, %v5660
    %v6051 = vunpack.c.l.b16 %v5986
    %v6052 = vunpack.c.h.b16 %v5986
    %v6053 = vunpack.c.l.b16 %v5987
    %v6054 = vunpack.c.h.b16 %v5987
    %v6055 = vunpack.c.l.b16 %v5988
    %v6056 = vunpack.c.h.b16 %v5988
    %v6057 = vunpack.c.l.b16 %v5989
    %v6058 = vunpack.c.h.b16 %v5989
    %v6059 = vunpack.c.l.b16 %v5990
    %v6060 = vunpack.c.h.b16 %v5990
    %v6061 = vunpack.c.l.b16 %v5991
    %v6062 = vunpack.c.h.b16 %v5991
    %v6063 = vunpack.c.l.b16 %v5992
    %v6064 = vunpack.c.h.b16 %v5992
    %v6065 = vunpack.c.l.b16 %v5993
    %v6066 = vunpack.c.h.b16 %v5993
    %v6067 = vunpack.c.l.b16 %v5994
    %v6068 = vunpack.c.h.b16 %v5994
    %v6069 = vunpack.c.l.b16 %v5995
    %v6070 = vunpack.c.h.b16 %v5995
    %v6071 = vunpack.c.l.b16 %v5996
    %v6072 = vunpack.c.h.b16 %v5996
    %v6073 = vunpack.c.l.b16 %v5997
    %v6074 = vunpack.c.h.b16 %v5997
    %v6075 = vunpack.c.l.b16 %v5998
    %v6076 = vunpack.c.h.b16 %v5998
    %v6077 = vunpack.c.l.b16 %v5999
    %v6078 = vunpack.c.h.b16 %v5999
    %v6079 = vunpack.c.l.b16 %v6000
    %v6080 = vunpack.c.h.b16 %v6000
    %v6081 = vunpack.c.l.b16 %v6001
    %v6082 = vunpack.c.h.b16 %v6001
    %v6083 = vunpack.c.l.b16 %v6002
    %v6084 = vunpack.c.h.b16 %v6002
    %v6085 = vunpack.c.l.b16 %v6003
    %v6086 = vunpack.c.h.b16 %v6003
    %v6087 = vunpack.c.l.b16 %v6004
    %v6088 = vunpack.c.h.b16 %v6004
    %v6089 = vunpack.c.l.b16 %v6005
    %v6090 = vunpack.c.h.b16 %v6005
    %v6091 = vunpack.c.l.b16 %v6006
    %v6092 = vunpack.c.h.b16 %v6006
    %v6093 = vunpack.c.l.b16 %v6007
    %v6094 = vunpack.c.h.b16 %v6007
    %v6095 = vunpack.c.l.b16 %v6008
    %v6096 = vunpack.c.h.b16 %v6008
    %v6097 = vunpack.c.l.b16 %v6009
    %v6098 = vunpack.c.h.b16 %v6009
    %v6099 = vunpack.c.l.b16 %v6010
    %v6100 = vunpack.c.h.b16 %v6010
    %v6101 = vunpack.c.l.b16 %v6011
    %v6102 = vunpack.c.h.b16 %v6011
    %v6103 = vunpack.c.l.b16 %v6012
    %v6104 = vunpack.c.h.b16 %v6012
    %v6105 = vunpack.c.l.b16 %v6013
    %v6106 = vunpack.c.h.b16 %v6013
    %v6107 = vunpack.c.l.b16 %v6014
    %v6108 = vunpack.c.h.b16 %v6014
    %v6109 = vunpack.c.l.b16 %v6015
    %v6110 = vunpack.c.h.b16 %v6015
    %v6111 = vunpack.c.l.b16 %v6016
    %v6112 = vunpack.c.h.b16 %v6016
    %v6113 = vunpack.c.l.b16 %v6017
    %v6114 = vunpack.c.h.b16 %v6017
    %v6115 = vpack.c.b16 %v6055, %v6051
    %v6116 = vpack.c.b16 %v6056, %v6052
    %v6117 = vpack.c.b16 %v6057, %v6053
    %v6118 = vpack.c.b16 %v6058, %v6054
    %v6119 = vpack.c.b16 %v6063, %v6059
    %v6120 = vpack.c.b16 %v6064, %v6060
    %v6121 = vpack.c.b16 %v6065, %v6061
    %v6122 = vpack.c.b16 %v6066, %v6062
    %v6123 = vpack.c.b16 %v6071, %v6067
    %v6124 = vpack.c.b16 %v6072, %v6068
    %v6125 = vpack.c.b16 %v6073, %v6069
    %v6126 = vpack.c.b16 %v6074, %v6070
    %v6127 = vpack.c.b16 %v6079, %v6075
    %v6128 = vpack.c.b16 %v6080, %v6076
    %v6129 = vpack.c.b16 %v6081, %v6077
    %v6130 = vpack.c.b16 %v6082, %v6078
    %v6131 = vpack.c.b16 %v6087, %v6083
    %v6132 = vpack.c.b16 %v6088, %v6084
    %v6133 = vpack.c.b16 %v6089, %v6085
    %v6134 = vpack.c.b16 %v6090, %v6086
    %v6135 = vpack.c.b16 %v6095, %v6091
    %v6136 = vpack.c.b16 %v6096, %v6092
    %v6137 = vpack.c.b16 %v6097, %v6093
    %v6138 = vpack.c.b16 %v6098, %v6094
    %v6139 = vpack.c.b16 %v6103, %v6099
    %v6140 = vpack.c.b16 %v6104, %v6100
    %v6141 = vpack.c.b16 %v6105, %v6101
    %v6142 = vpack.c.b16 %v6106, %v6102
    %v6143 = vpack.c.b16 %v6111, %v6107
    %v6144 = vpack.c.b16 %v6112, %v6108
    %v6145 = vpack.c.b16 %v6113, %v6109
    %v6146 = vpack.c.b16 %v6114, %v6110
    %6179 = vmatprep.subr.bf16.mxu0 %v6116
    %6180 = vmatpush1.bf16.msra.mxu0 %v6115
    %6181 = vmatprep.subr.bf16.mxu0 %v6120
    %6182 = vmatpush1.bf16.msra.mxu0 %v6119
    %6183 = vmatprep.subr.bf16.mxu0 %v6124
    %6184 = vmatpush1.bf16.msra.mxu0 %v6123
    %6185 = vmatprep.subr.bf16.mxu0 %v6128
    %6186 = vmatpush1.bf16.msra.mxu0 %v6127
    %6187 = vmatprep.subr.bf16.mxu0 %v6132
    %6188 = vmatpush1.bf16.msra.mxu0 %v6131
    %6189 = vmatprep.subr.bf16.mxu0 %v6136
    %6190 = vmatpush1.bf16.msra.mxu0 %v6135
    %6191 = vmatprep.subr.bf16.mxu0 %v6140
    %6192 = vmatpush1.bf16.msra.mxu0 %v6139
    %6193 = vmatprep.subr.bf16.mxu0 %v6144
    %6194 = vmatpush1.bf16.msra.mxu0 %v6143
    %6195 = vmatprep.subr.bf16.mxu0 0
    %6196 = vmatpush1.bf16.msra.mxu0 0
    %6197 = vmatprep.subr.bf16.mxu0 0
    %6198 = vmatpush1.bf16.msra.mxu0 0
    %6199 = vmatprep.subr.bf16.mxu0 0
    %6200 = vmatpush1.bf16.msra.mxu0 0
    %6201 = vmatprep.subr.bf16.mxu0 0
    %6202 = vmatpush1.bf16.msra.mxu0 0
    %6203 = vmatprep.subr.bf16.mxu0 0
    %6204 = vmatpush1.bf16.msra.mxu0 0
    %6205 = vmatprep.subr.bf16.mxu0 0
    %6206 = vmatpush1.bf16.msra.mxu0 0
    %6207 = vmatprep.subr.bf16.mxu0 0
    %6208 = vmatpush1.bf16.msra.mxu0 0
    %6209 = vmatprep.subr.bf16.mxu0 0
    %6210 = vmatpush1.bf16.msra.mxu0 0
    %6211 = vmatprep.mubr.bf16.mxu0 0
    %6212 = vmatmul.mubr.bf16.gmra.mrb[0].mxu0 %v6018
    %v6213 = vpop.f32.mrb[0].mxu0
    %v6214 = vadd.f32 0.0, %v6213
    %v6215 = vpop.f32.mrb[0].mxu0
    %v6216 = vadd.f32 0.0, %v6215
    %v6217 = vpop.f32.mrb[0].mxu0
    %v6218 = vpop.f32.mrb[0].mxu0
    %6219 = vdwg.mxu0
    %6220 = vmatprep.subr.bf16.mxu0 %v6118
    %6221 = vmatpush1.bf16.msra.mxu0 %v6117
    %6222 = vmatprep.subr.bf16.mxu0 %v6122
    %6223 = vmatpush1.bf16.msra.mxu0 %v6121
    %6224 = vmatprep.subr.bf16.mxu0 %v6126
    %6225 = vmatpush1.bf16.msra.mxu0 %v6125
    %6226 = vmatprep.subr.bf16.mxu0 %v6130
    %6227 = vmatpush1.bf16.msra.mxu0 %v6129
    %6228 = vmatprep.subr.bf16.mxu0 %v6134
    %6229 = vmatpush1.bf16.msra.mxu0 %v6133
    %6230 = vmatprep.subr.bf16.mxu0 %v6138
    %6231 = vmatpush1.bf16.msra.mxu0 %v6137
    %6232 = vmatprep.subr.bf16.mxu0 %v6142
    %6233 = vmatpush1.bf16.msra.mxu0 %v6141
    %6234 = vmatprep.subr.bf16.mxu0 %v6146
    %6235 = vmatpush1.bf16.msra.mxu0 %v6145
    %6236 = vmatprep.subr.bf16.mxu0 0
    %6237 = vmatpush1.bf16.msra.mxu0 0
    %6238 = vmatprep.subr.bf16.mxu0 0
    %6239 = vmatpush1.bf16.msra.mxu0 0
    %6240 = vmatprep.subr.bf16.mxu0 0
    %6241 = vmatpush1.bf16.msra.mxu0 0
    %6242 = vmatprep.subr.bf16.mxu0 0
    %6243 = vmatpush1.bf16.msra.mxu0 0
    %6244 = vmatprep.subr.bf16.mxu0 0
    %6245 = vmatpush1.bf16.msra.mxu0 0
    %6246 = vmatprep.subr.bf16.mxu0 0
    %6247 = vmatpush1.bf16.msra.mxu0 0
    %6248 = vmatprep.subr.bf16.mxu0 0
    %6249 = vmatpush1.bf16.msra.mxu0 0
    %6250 = vmatprep.subr.bf16.mxu0 0
    %6251 = vmatpush1.bf16.msra.mxu0 0
    %6252 = vmatprep.mubr.bf16.mxu0 0
    %6253 = vmatmul.mubr.bf16.gmra.mrb[0].mxu0 %v6018
    %v6254 = vpop.f32.mrb[0].mxu0
    %v6255 = vadd.f32 0.0, %v6254
    %v6256 = vpop.f32.mrb[0].mxu0
    %v6257 = vadd.f32 0.0, %v6256
    %v6258 = vpop.f32.mrb[0].mxu0
    %v6259 = vpop.f32.mrb[0].mxu0
    %6260 = vdwg.mxu0
    %v6261 = vadd.f32 %v5981, %v6214
    %v6262 = vadd.f32 %v5982, %v6216
    %v6263 = vadd.f32 %v5983, %v6255
    %v6264 = vadd.f32 %v5984, %v6257
    %v6265 = vxor.u32 %v6261, 2147483648
    %v6266 = vmul.f32 %v6265, 1.442695
    %v6267 = vpow.pop %v6266
    %v6268 = vadd.f32 %v6267, 1.0
    %v6269 = vrcp.pop %v6268
    %v6270 = vmul.f32 1.0, %v6269
    %v6271 = vxor.u32 %v6262, 2147483648
    %v6272 = vmul.f32 %v6271, 1.442695
    %v6273 = vpow.pop %v6272
    %v6274 = vadd.f32 %v6273, 1.0
    %v6275 = vrcp.pop %v6274
    %v6276 = vmul.f32 1.0, %v6275
    %v6277 = vtanh.pop %v6263
    %v6278 = vxor.u32 %v6264, 2147483648
    %v6279 = vmul.f32 %v6278, 1.442695
    %v6280 = vpow.pop %v6279
    %v6281 = vadd.f32 %v6280, 1.0
    %v6282 = vrcp.pop %v6281
    %v6283 = vmul.f32 1.0, %v6282
    %v6284 = vmul.f32 %v6276, %v5899
    %v6285 = vmul.f32 %v6270, %v6277
    %v6286 = vadd.f32 %v6284, %v6285
    %v6287 = vtanh.pop %v6286
    %v6288 = vmul.f32 %v6283, %v6287
    %s6289 = scalar_lea.vmem [#allocation15], 48
    %6290 = vst [vmem:[%s6289] sm:$0xff] %v6288
    %s6291 = scalar_lea.vmem [#allocation17], 48
    %6292 = vst [vmem:[%s6291] sm:$0xff] %v6286
    %s6293 = scalar_lea.vmem %s3, 56
    %v6294 = vld [vmem:[%s6293] sm:$0xff]
    %s6295 = scalar_lea.vmem %s4, 56
    %v6296 = vld [vmem:[%s6295] sm:$0xff]
    %s6297 = scalar_lea.vmem %s10, 28
    %v6298 = vld [vmem:[%s6297] sm:$0x7]
    %s6299 = scalar_lea.vmem %s11, 28
    %v6300 = vld [vmem:[%s6299] sm:$0x7]
    %s6301 = scalar_lea.vmem %s12, 56
    %v6302 = vld [vmem:[%s6301] sm:$0xff]
    %s6303 = scalar_lea.vmem [#allocation2], 448
    %v6304 = vld [vmem:[%s6303] sm:$0xf]
    %v6305 = vld [vmem:[%s6303 + $0x4] sm:$0xf]
    %v6306 = vld [vmem:[%s6303 + $0x8] sm:$0xf]
    %v6307 = vld [vmem:[%s6303 + $0xc] sm:$0xf]
    %v6308 = vld [vmem:[%s6303 + $0x10] sm:$0xf]
    %v6309 = vld [vmem:[%s6303 + $0x14] sm:$0xf]
    %v6310 = vld [vmem:[%s6303 + $0x18] sm:$0xf]
    %v6311 = vld [vmem:[%s6303 + $0x1c] sm:$0xf]
    %v6312 = vld [vmem:[%s6303 + $0x20] sm:$0xf]
    %v6313 = vld [vmem:[%s6303 + $0x24] sm:$0xf]
    %v6314 = vld [vmem:[%s6303 + $0x28] sm:$0xf]
    %v6315 = vld [vmem:[%s6303 + $0x2c] sm:$0xf]
    %v6316 = vld [vmem:[%s6303 + $0x30] sm:$0xf]
    %v6317 = vld [vmem:[%s6303 + $0x34] sm:$0xf]
    %v6318 = vld [vmem:[%s6303 + $0x38] sm:$0xf]
    %v6319 = vld [vmem:[%s6303 + $0x3c] sm:$0xf]
    %v6320 = vpack.c.bf16 %v6288, %v6288
    %s6321 = scalar_lea.vmem [#allocation5], 448
    %v6322 = vld [vmem:[%s6321] sm:$0xf]
    %v6323 = vld [vmem:[%s6321 + $0x4] sm:$0xf]
    %v6324 = vld [vmem:[%s6321 + $0x8] sm:$0xf]
    %v6325 = vld [vmem:[%s6321 + $0xc] sm:$0xf]
    %v6326 = vld [vmem:[%s6321 + $0x10] sm:$0xf]
    %v6327 = vld [vmem:[%s6321 + $0x14] sm:$0xf]
    %v6328 = vld [vmem:[%s6321 + $0x18] sm:$0xf]
    %v6329 = vld [vmem:[%s6321 + $0x1c] sm:$0xf]
    %v6330 = vld [vmem:[%s6321 + $0x20] sm:$0xf]
    %v6331 = vld [vmem:[%s6321 + $0x24] sm:$0xf]
    %v6332 = vld [vmem:[%s6321 + $0x28] sm:$0xf]
    %v6333 = vld [vmem:[%s6321 + $0x2c] sm:$0xf]
    %v6334 = vld [vmem:[%s6321 + $0x30] sm:$0xf]
    %v6335 = vld [vmem:[%s6321 + $0x34] sm:$0xf]
    %v6336 = vld [vmem:[%s6321 + $0x38] sm:$0xf]
    %v6337 = vld [vmem:[%s6321 + $0x3c] sm:$0xf]
    %v6338 = vpack.c.bf16 %v6294, %v6294
    %v6355 = vunpack.c.l.b16 %v6322
    %v6356 = vunpack.c.l.b16 %v6323
    %v6357 = vunpack.c.l.b16 %v6324
    %v6358 = vunpack.c.l.b16 %v6325
    %v6359 = vunpack.c.l.b16 %v6326
    %v6360 = vunpack.c.l.b16 %v6327
    %v6361 = vunpack.c.l.b16 %v6328
    %v6362 = vunpack.c.l.b16 %v6329
    %v6363 = vunpack.c.l.b16 %v6330
    %v6364 = vunpack.c.l.b16 %v6331
    %v6365 = vunpack.c.l.b16 %v6332
    %v6366 = vunpack.c.l.b16 %v6333
    %v6367 = vunpack.c.l.b16 %v6334
    %v6368 = vunpack.c.l.b16 %v6335
    %v6369 = vunpack.c.l.b16 %v6336
    %v6370 = vunpack.c.l.b16 %v6337
    %v6371 = vpack.c.b16 %v6356, %v6355
    %v6372 = vpack.c.b16 %v6358, %v6357
    %v6373 = vpack.c.b16 %v6360, %v6359
    %v6374 = vpack.c.b16 %v6362, %v6361
    %v6375 = vpack.c.b16 %v6364, %v6363
    %v6376 = vpack.c.b16 %v6366, %v6365
    %v6377 = vpack.c.b16 %v6368, %v6367
    %v6378 = vpack.c.b16 %v6370, %v6369
    %6387 = vmatprep.subr.bf16.mxu0 0
    %6388 = vmatpush1.bf16.msra.mxu0 %v6371
    %6389 = vmatprep.subr.bf16.mxu0 0
    %6390 = vmatpush1.bf16.msra.mxu0 %v6372
    %6391 = vmatprep.subr.bf16.mxu0 0
    %6392 = vmatpush1.bf16.msra.mxu0 %v6373
    %6393 = vmatprep.subr.bf16.mxu0 0
    %6394 = vmatpush1.bf16.msra.mxu0 %v6374
    %6395 = vmatprep.subr.bf16.mxu0 0
    %6396 = vmatpush1.bf16.msra.mxu0 %v6375
    %6397 = vmatprep.subr.bf16.mxu0 0
    %6398 = vmatpush1.bf16.msra.mxu0 %v6376
    %6399 = vmatprep.subr.bf16.mxu0 0
    %6400 = vmatpush1.bf16.msra.mxu0 %v6377
    %6401 = vmatprep.subr.bf16.mxu0 0
    %6402 = vmatpush1.bf16.msra.mxu0 %v6378
    %6403 = vmatprep.subr.bf16.mxu0 0
    %6404 = vmatpush1.bf16.msra.mxu0 0
    %6405 = vmatprep.subr.bf16.mxu0 0
    %6406 = vmatpush1.bf16.msra.mxu0 0
    %6407 = vmatprep.subr.bf16.mxu0 0
    %6408 = vmatpush1.bf16.msra.mxu0 0
    %6409 = vmatprep.subr.bf16.mxu0 0
    %6410 = vmatpush1.bf16.msra.mxu0 0
    %6411 = vmatprep.subr.bf16.mxu0 0
    %6412 = vmatpush1.bf16.msra.mxu0 0
    %6413 = vmatprep.subr.bf16.mxu0 0
    %6414 = vmatpush1.bf16.msra.mxu0 0
    %6415 = vmatprep.subr.bf16.mxu0 0
    %6416 = vmatpush1.bf16.msra.mxu0 0
    %6417 = vmatprep.subr.bf16.mxu0 0
    %6418 = vmatpush1.bf16.msra.mxu0 0
    %6419 = vmatprep.mubr.bf16.mxu0 0
    %6420 = vmatmul.mubr.bf16.gmra.mrb[0].mxu0 %v6338
    %v6421 = vpop.f32.mrb[0].mxu0
    %v6422 = vadd.f32 0.0, %v6421
    %v6423 = vpop.f32.mrb[0].mxu0
    %v6424 = vpop.f32.mrb[0].mxu0
    %v6425 = vpop.f32.mrb[0].mxu0
    %6426 = vdwg.mxu0
    %v6443 = vunpack.c.l.b16 %v6304
    %v6444 = vunpack.c.l.b16 %v6305
    %v6445 = vunpack.c.l.b16 %v6306
    %v6446 = vunpack.c.l.b16 %v6307
    %v6447 = vunpack.c.l.b16 %v6308
    %v6448 = vunpack.c.l.b16 %v6309
    %v6449 = vunpack.c.l.b16 %v6310
    %v6450 = vunpack.c.l.b16 %v6311
    %v6451 = vunpack.c.l.b16 %v6312
    %v6452 = vunpack.c.l.b16 %v6313
    %v6453 = vunpack.c.l.b16 %v6314
    %v6454 = vunpack.c.l.b16 %v6315
    %v6455 = vunpack.c.l.b16 %v6316
    %v6456 = vunpack.c.l.b16 %v6317
    %v6457 = vunpack.c.l.b16 %v6318
    %v6458 = vunpack.c.l.b16 %v6319
    %v6459 = vpack.c.b16 %v6444, %v6443
    %v6460 = vpack.c.b16 %v6446, %v6445
    %v6461 = vpack.c.b16 %v6448, %v6447
    %v6462 = vpack.c.b16 %v6450, %v6449
    %v6463 = vpack.c.b16 %v6452, %v6451
    %v6464 = vpack.c.b16 %v6454, %v6453
    %v6465 = vpack.c.b16 %v6456, %v6455
    %v6466 = vpack.c.b16 %v6458, %v6457
    %6475 = vmatprep.subr.bf16.mxu0 0
    %6476 = vmatpush1.bf16.msra.mxu0 %v6459
    %6477 = vmatprep.subr.bf16.mxu0 0
    %6478 = vmatpush1.bf16.msra.mxu0 %v6460
    %6479 = vmatprep.subr.bf16.mxu0 0
    %6480 = vmatpush1.bf16.msra.mxu0 %v6461
    %6481 = vmatprep.subr.bf16.mxu0 0
    %6482 = vmatpush1.bf16.msra.mxu0 %v6462
    %6483 = vmatprep.subr.bf16.mxu0 0
    %6484 = vmatpush1.bf16.msra.mxu0 %v6463
    %6485 = vmatprep.subr.bf16.mxu0 0
    %6486 = vmatpush1.bf16.msra.mxu0 %v6464
    %6487 = vmatprep.subr.bf16.mxu0 0
    %6488 = vmatpush1.bf16.msra.mxu0 %v6465
    %6489 = vmatprep.subr.bf16.mxu0 0
    %6490 = vmatpush1.bf16.msra.mxu0 %v6466
    %6491 = vmatprep.subr.bf16.mxu0 0
    %6492 = vmatpush1.bf16.msra.mxu0 0
    %6493 = vmatprep.subr.bf16.mxu0 0
    %6494 = vmatpush1.bf16.msra.mxu0 0
    %6495 = vmatprep.subr.bf16.mxu0 0
    %6496 = vmatpush1.bf16.msra.mxu0 0
    %6497 = vmatprep.subr.bf16.mxu0 0
    %6498 = vmatpush1.bf16.msra.mxu0 0
    %6499 = vmatprep.subr.bf16.mxu0 0
    %6500 = vmatpush1.bf16.msra.mxu0 0
    %6501 = vmatprep.subr.bf16.mxu0 0
    %6502 = vmatpush1.bf16.msra.mxu0 0
    %6503 = vmatprep.subr.bf16.mxu0 0
    %6504 = vmatpush1.bf16.msra.mxu0 0
    %6505 = vmatprep.subr.bf16.mxu0 0
    %6506 = vmatpush1.bf16.msra.mxu0 0
    %6507 = vmatprep.mubr.bf16.mxu0 0
    %6508 = vmatmul.mubr.bf16.gmra.mrb[0].mxu0 %v6320
    %v6509 = vpop.f32.mrb[0].mxu0
    %v6510 = vadd.f32 %v6422, %v6509
    %v6511 = vpop.f32.mrb[0].mxu0
    %v6512 = vpop.f32.mrb[0].mxu0
    %v6513 = vpop.f32.mrb[0].mxu0
    %6514 = vdwg.mxu0
    %v6515 = vlaneseq
    %v6516 = vshrl.u32 %v6515, 7
    %v6517 = vsub.s32 0, %v6516
    %v6518 = vrot.slane %v6298, %v6517
    %v6519 = vadd.f32 %v6510, %v6518
    %6520 = vadd.xlane.f32.xlu0 %v6519
    %v6521 = vpop.xlane.xlu0 %6520
    %v6522 = vmul.f32 %v6521, %v358
    %v6523 = vsub.f32 %v6519, %v6522
    %v6524 = vmul.f32 %v6523, %v6523
    %6525 = vadd.xlane.f32.xlu0 %v6524
    %v6526 = vpop.xlane.xlu0 %6525
    %v6527 = vmul.f32 %v6526, %v358
    %v6528 = vadd.f32 %v6527, 1e-05
    %v6529 = vrsqrt.pop %v6528
    %v6530 = vmul.f32 %v6523, %v6529
    %v6531 = vlaneseq
    %v6532 = vshrl.u32 %v6531, 7
    %v6533 = vsub.s32 1, %v6532
    %v6534 = vrot.slane %v6298, %v6533
    %v6535 = vmul.f32 %v6530, %v6534
    %v6536 = vlaneseq
    %v6537 = vshrl.u32 %v6536, 7
    %v6538 = vsub.s32 2, %v6537
    %v6539 = vrot.slane %v6298, %v6538
    %v6540 = vadd.f32 %v6535, %v6539
    %v6541 = vmax.f32 %v6540, 0.0
    %s6542 = scalar_lea.vmem [#allocation7], 448
    %v6543 = vld [vmem:[%s6542] sm:$0xf]
    %v6544 = vld [vmem:[%s6542 + $0x4] sm:$0xf]
    %v6545 = vld [vmem:[%s6542 + $0x8] sm:$0xf]
    %v6546 = vld [vmem:[%s6542 + $0xc] sm:$0xf]
    %v6547 = vld [vmem:[%s6542 + $0x10] sm:$0xf]
    %v6548 = vld [vmem:[%s6542 + $0x14] sm:$0xf]
    %v6549 = vld [vmem:[%s6542 + $0x18] sm:$0xf]
    %v6550 = vld [vmem:[%s6542 + $0x1c] sm:$0xf]
    %v6551 = vld [vmem:[%s6542 + $0x20] sm:$0xf]
    %v6552 = vld [vmem:[%s6542 + $0x24] sm:$0xf]
    %v6553 = vld [vmem:[%s6542 + $0x28] sm:$0xf]
    %v6554 = vld [vmem:[%s6542 + $0x2c] sm:$0xf]
    %v6555 = vld [vmem:[%s6542 + $0x30] sm:$0xf]
    %v6556 = vld [vmem:[%s6542 + $0x34] sm:$0xf]
    %v6557 = vld [vmem:[%s6542 + $0x38] sm:$0xf]
    %v6558 = vld [vmem:[%s6542 + $0x3c] sm:$0xf]
    %v6559 = vpack.c.bf16 %v6286, %v6286
    %s6560 = scalar_lea.vmem [#allocation8], 448
    %v6561 = vld [vmem:[%s6560] sm:$0xf]
    %v6562 = vld [vmem:[%s6560 + $0x4] sm:$0xf]
    %v6563 = vld [vmem:[%s6560 + $0x8] sm:$0xf]
    %v6564 = vld [vmem:[%s6560 + $0xc] sm:$0xf]
    %v6565 = vld [vmem:[%s6560 + $0x10] sm:$0xf]
    %v6566 = vld [vmem:[%s6560 + $0x14] sm:$0xf]
    %v6567 = vld [vmem:[%s6560 + $0x18] sm:$0xf]
    %v6568 = vld [vmem:[%s6560 + $0x1c] sm:$0xf]
    %v6569 = vld [vmem:[%s6560 + $0x20] sm:$0xf]
    %v6570 = vld [vmem:[%s6560 + $0x24] sm:$0xf]
    %v6571 = vld [vmem:[%s6560 + $0x28] sm:$0xf]
    %v6572 = vld [vmem:[%s6560 + $0x2c] sm:$0xf]
    %v6573 = vld [vmem:[%s6560 + $0x30] sm:$0xf]
    %v6574 = vld [vmem:[%s6560 + $0x34] sm:$0xf]
    %v6575 = vld [vmem:[%s6560 + $0x38] sm:$0xf]
    %v6576 = vld [vmem:[%s6560 + $0x3c] sm:$0xf]
    %v6577 = vpack.c.bf16 %v6296, %v6296
    %v6594 = vunpack.c.l.b16 %v6561
    %v6595 = vunpack.c.l.b16 %v6562
    %v6596 = vunpack.c.l.b16 %v6563
    %v6597 = vunpack.c.l.b16 %v6564
    %v6598 = vunpack.c.l.b16 %v6565
    %v6599 = vunpack.c.l.b16 %v6566
    %v6600 = vunpack.c.l.b16 %v6567
    %v6601 = vunpack.c.l.b16 %v6568
    %v6602 = vunpack.c.l.b16 %v6569
    %v6603 = vunpack.c.l.b16 %v6570
    %v6604 = vunpack.c.l.b16 %v6571
    %v6605 = vunpack.c.l.b16 %v6572
    %v6606 = vunpack.c.l.b16 %v6573
    %v6607 = vunpack.c.l.b16 %v6574
    %v6608 = vunpack.c.l.b16 %v6575
    %v6609 = vunpack.c.l.b16 %v6576
    %v6610 = vpack.c.b16 %v6595, %v6594
    %v6611 = vpack.c.b16 %v6597, %v6596
    %v6612 = vpack.c.b16 %v6599, %v6598
    %v6613 = vpack.c.b16 %v6601, %v6600
    %v6614 = vpack.c.b16 %v6603, %v6602
    %v6615 = vpack.c.b16 %v6605, %v6604
    %v6616 = vpack.c.b16 %v6607, %v6606
    %v6617 = vpack.c.b16 %v6609, %v6608
    %6626 = vmatprep.subr.bf16.mxu0 0
    %6627 = vmatpush1.bf16.msra.mxu0 %v6610
    %6628 = vmatprep.subr.bf16.mxu0 0
    %6629 = vmatpush1.bf16.msra.mxu0 %v6611
    %6630 = vmatprep.subr.bf16.mxu0 0
    %6631 = vmatpush1.bf16.msra.mxu0 %v6612
    %6632 = vmatprep.subr.bf16.mxu0 0
    %6633 = vmatpush1.bf16.msra.mxu0 %v6613
    %6634 = vmatprep.subr.bf16.mxu0 0
    %6635 = vmatpush1.bf16.msra.mxu0 %v6614
    %6636 = vmatprep.subr.bf16.mxu0 0
    %6637 = vmatpush1.bf16.msra.mxu0 %v6615
    %6638 = vmatprep.subr.bf16.mxu0 0
    %6639 = vmatpush1.bf16.msra.mxu0 %v6616
    %6640 = vmatprep.subr.bf16.mxu0 0
    %6641 = vmatpush1.bf16.msra.mxu0 %v6617
    %6642 = vmatprep.subr.bf16.mxu0 0
    %6643 = vmatpush1.bf16.msra.mxu0 0
    %6644 = vmatprep.subr.bf16.mxu0 0
    %6645 = vmatpush1.bf16.msra.mxu0 0
    %6646 = vmatprep.subr.bf16.mxu0 0
    %6647 = vmatpush1.bf16.msra.mxu0 0
    %6648 = vmatprep.subr.bf16.mxu0 0
    %6649 = vmatpush1.bf16.msra.mxu0 0
    %6650 = vmatprep.subr.bf16.mxu0 0
    %6651 = vmatpush1.bf16.msra.mxu0 0
    %6652 = vmatprep.subr.bf16.mxu0 0
    %6653 = vmatpush1.bf16.msra.mxu0 0
    %6654 = vmatprep.subr.bf16.mxu0 0
    %6655 = vmatpush1.bf16.msra.mxu0 0
    %6656 = vmatprep.subr.bf16.mxu0 0
    %6657 = vmatpush1.bf16.msra.mxu0 0
    %6658 = vmatprep.mubr.bf16.mxu0 0
    %6659 = vmatmul.mubr.bf16.gmra.mrb[0].mxu0 %v6577
    %v6660 = vpop.f32.mrb[0].mxu0
    %v6661 = vadd.f32 0.0, %v6660
    %v6662 = vpop.f32.mrb[0].mxu0
    %v6663 = vpop.f32.mrb[0].mxu0
    %v6664 = vpop.f32.mrb[0].mxu0
    %6665 = vdwg.mxu0
    %v6682 = vunpack.c.l.b16 %v6543
    %v6683 = vunpack.c.l.b16 %v6544
    %v6684 = vunpack.c.l.b16 %v6545
    %v6685 = vunpack.c.l.b16 %v6546
    %v6686 = vunpack.c.l.b16 %v6547
    %v6687 = vunpack.c.l.b16 %v6548
    %v6688 = vunpack.c.l.b16 %v6549
    %v6689 = vunpack.c.l.b16 %v6550
    %v6690 = vunpack.c.l.b16 %v6551
    %v6691 = vunpack.c.l.b16 %v6552
    %v6692 = vunpack.c.l.b16 %v6553
    %v6693 = vunpack.c.l.b16 %v6554
    %v6694 = vunpack.c.l.b16 %v6555
    %v6695 = vunpack.c.l.b16 %v6556
    %v6696 = vunpack.c.l.b16 %v6557
    %v6697 = vunpack.c.l.b16 %v6558
    %v6698 = vpack.c.b16 %v6683, %v6682
    %v6699 = vpack.c.b16 %v6685, %v6684
    %v6700 = vpack.c.b16 %v6687, %v6686
    %v6701 = vpack.c.b16 %v6689, %v6688
    %v6702 = vpack.c.b16 %v6691, %v6690
    %v6703 = vpack.c.b16 %v6693, %v6692
    %v6704 = vpack.c.b16 %v6695, %v6694
    %v6705 = vpack.c.b16 %v6697, %v6696
    %6714 = vmatprep.subr.bf16.mxu0 0
    %6715 = vmatpush1.bf16.msra.mxu0 %v6698
    %6716 = vmatprep.subr.bf16.mxu0 0
    %6717 = vmatpush1.bf16.msra.mxu0 %v6699
    %6718 = vmatprep.subr.bf16.mxu0 0
    %6719 = vmatpush1.bf16.msra.mxu0 %v6700
    %6720 = vmatprep.subr.bf16.mxu0 0
    %6721 = vmatpush1.bf16.msra.mxu0 %v6701
    %6722 = vmatprep.subr.bf16.mxu0 0
    %6723 = vmatpush1.bf16.msra.mxu0 %v6702
    %6724 = vmatprep.subr.bf16.mxu0 0
    %6725 = vmatpush1.bf16.msra.mxu0 %v6703
    %6726 = vmatprep.subr.bf16.mxu0 0
    %6727 = vmatpush1.bf16.msra.mxu0 %v6704
    %6728 = vmatprep.subr.bf16.mxu0 0
    %6729 = vmatpush1.bf16.msra.mxu0 %v6705
    %6730 = vmatprep.subr.bf16.mxu0 0
    %6731 = vmatpush1.bf16.msra.mxu0 0
    %6732 = vmatprep.subr.bf16.mxu0 0
    %6733 = vmatpush1.bf16.msra.mxu0 0
    %6734 = vmatprep.subr.bf16.mxu0 0
    %6735 = vmatpush1.bf16.msra.mxu0 0
    %6736 = vmatprep.subr.bf16.mxu0 0
    %6737 = vmatpush1.bf16.msra.mxu0 0
    %6738 = vmatprep.subr.bf16.mxu0 0
    %6739 = vmatpush1.bf16.msra.mxu0 0
    %6740 = vmatprep.subr.bf16.mxu0 0
    %6741 = vmatpush1.bf16.msra.mxu0 0
    %6742 = vmatprep.subr.bf16.mxu0 0
    %6743 = vmatpush1.bf16.msra.mxu0 0
    %6744 = vmatprep.subr.bf16.mxu0 0
    %6745 = vmatpush1.bf16.msra.mxu0 0
    %6746 = vmatprep.mubr.bf16.mxu0 0
    %6747 = vmatmul.mubr.bf16.gmra.mrb[0].mxu0 %v6559
    %v6748 = vpop.f32.mrb[0].mxu0
    %v6749 = vadd.f32 %v6661, %v6748
    %v6750 = vpop.f32.mrb[0].mxu0
    %v6751 = vpop.f32.mrb[0].mxu0
    %v6752 = vpop.f32.mrb[0].mxu0
    %6753 = vdwg.mxu0
    %v6754 = vlaneseq
    %v6755 = vshrl.u32 %v6754, 7
    %v6756 = vsub.s32 0, %v6755
    %v6757 = vrot.slane %v6300, %v6756
    %v6758 = vadd.f32 %v6749, %v6757
    %6759 = vadd.xlane.f32.xlu0 %v6758
    %v6760 = vpop.xlane.xlu0 %6759
    %v6761 = vmul.f32 %v6760, %v358
    %v6762 = vsub.f32 %v6758, %v6761
    %v6763 = vmul.f32 %v6762, %v6762
    %6764 = vadd.xlane.f32.xlu0 %v6763
    %v6765 = vpop.xlane.xlu0 %6764
    %v6766 = vmul.f32 %v6765, %v358
    %v6767 = vadd.f32 %v6766, 1e-05
    %v6768 = vrsqrt.pop %v6767
    %v6769 = vmul.f32 %v6762, %v6768
    %v6770 = vlaneseq
    %v6771 = vshrl.u32 %v6770, 7
    %v6772 = vsub.s32 1, %v6771
    %v6773 = vrot.slane %v6300, %v6772
    %v6774 = vmul.f32 %v6769, %v6773
    %v6775 = vlaneseq
    %v6776 = vshrl.u32 %v6775, 7
    %v6777 = vsub.s32 2, %v6776
    %v6778 = vrot.slane %v6300, %v6777
    %v6779 = vadd.f32 %v6774, %v6778
    %v6780 = vmax.f32 %v6779, 0.0
    %6781 = vset.pattern.permute.xlu0 7
    %6782 = vperm.xlu0 %6781, %v133
    %v6783 = vpop.permute.xlu0 %6782
    %v6786 = vlaneseq
    %v6787 = vshrl.u32 %v6786, 7
    %v6788 = vsub.s32 0, %v6787
    %v6789 = vrot.slane %v6302, %v6788
    %v6790 = vlaneseq
    %v6791 = vshrl.u32 %v6790, 7
    %v6792 = vsub.s32 2, %v6791
    %v6793 = vrot.slane %v6302, %v6792
    %v6794 = vlaneseq
    %v6795 = vshrl.u32 %v6794, 7
    %v6796 = vsub.s32 4, %v6795
    %v6797 = vrot.slane %v6302, %v6796
    %v6798 = vlaneseq
    %v6799 = vshrl.u32 %v6798, 7
    %v6800 = vsub.s32 6, %v6799
    %v6801 = vrot.slane %v6302, %v6800
    %v6806 = vlaneseq
    %v6807 = vshrl.u32 %v6806, 7
    %v6808 = vsub.s32 0, %v6807
    %v6809 = vrot.slane %v6789, %v6808
    %v6810 = vlaneseq
    %v6811 = vshrl.u32 %v6810, 7
    %v6812 = vsub.s32 0, %v6811
    %v6813 = vrot.slane %v6793, %v6812
    %v6814 = vlaneseq
    %v6815 = vshrl.u32 %v6814, 7
    %v6816 = vsub.s32 0, %v6815
    %v6817 = vrot.slane %v6797, %v6816
    %v6818 = vlaneseq
    %v6819 = vshrl.u32 %v6818, 7
    %v6820 = vsub.s32 0, %v6819
    %v6821 = vrot.slane %v6801, %v6820
    %v6822 = vmul.f32 %v6783, %v6809
    %v6823 = vmul.f32 %v6783, %v6813
    %v6824 = vmul.f32 %v6783, %v6817
    %v6825 = vmul.f32 %v6783, %v6821
    %v6826 = vlaneseq
    %v6827 = vshrl.u32 %v6826, 7
    %v6828 = vsub.s32 1, %v6827
    %v6829 = vrot.slane %v6302, %v6828
    %v6830 = vlaneseq
    %v6831 = vshrl.u32 %v6830, 7
    %v6832 = vsub.s32 3, %v6831
    %v6833 = vrot.slane %v6302, %v6832
    %v6834 = vlaneseq
    %v6835 = vshrl.u32 %v6834, 7
    %v6836 = vsub.s32 5, %v6835
    %v6837 = vrot.slane %v6302, %v6836
    %v6838 = vlaneseq
    %v6839 = vshrl.u32 %v6838, 7
    %v6840 = vsub.s32 7, %v6839
    %v6841 = vrot.slane %v6302, %v6840
    %v6846 = vlaneseq
    %v6847 = vshrl.u32 %v6846, 7
    %v6848 = vsub.s32 1, %v6847
    %v6849 = vrot.slane %v6829, %v6848
    %v6850 = vlaneseq
    %v6851 = vshrl.u32 %v6850, 7
    %v6852 = vsub.s32 1, %v6851
    %v6853 = vrot.slane %v6833, %v6852
    %v6854 = vlaneseq
    %v6855 = vshrl.u32 %v6854, 7
    %v6856 = vsub.s32 1, %v6855
    %v6857 = vrot.slane %v6837, %v6856
    %v6858 = vlaneseq
    %v6859 = vshrl.u32 %v6858, 7
    %v6860 = vsub.s32 1, %v6859
    %v6861 = vrot.slane %v6841, %v6860
    %v6862 = vadd.f32 %v6822, %v6849
    %v6863 = vadd.f32 %v6823, %v6853
    %v6864 = vadd.f32 %v6824, %v6857
    %v6865 = vadd.f32 %v6825, %v6861
    %s6866 = scalar_lea.vmem [#allocation10], 1792
    %v6867 = vld [vmem:[%s6866] sm:$0xff]
    %v6868 = vld [vmem:[%s6866 + $0x8] sm:$0xff]
    %v6869 = vld [vmem:[%s6866 + $0x10] sm:$0xff]
    %v6870 = vld [vmem:[%s6866 + $0x18] sm:$0xff]
    %v6871 = vld [vmem:[%s6866 + $0x20] sm:$0xff]
    %v6872 = vld [vmem:[%s6866 + $0x28] sm:$0xff]
    %v6873 = vld [vmem:[%s6866 + $0x30] sm:$0xff]
    %v6874 = vld [vmem:[%s6866 + $0x38] sm:$0xff]
    %v6875 = vld [vmem:[%s6866 + $0x40] sm:$0xff]
    %v6876 = vld [vmem:[%s6866 + $0x48] sm:$0xff]
    %v6877 = vld [vmem:[%s6866 + $0x50] sm:$0xff]
    %v6878 = vld [vmem:[%s6866 + $0x58] sm:$0xff]
    %v6879 = vld [vmem:[%s6866 + $0x60] sm:$0xff]
    %v6880 = vld [vmem:[%s6866 + $0x68] sm:$0xff]
    %v6881 = vld [vmem:[%s6866 + $0x70] sm:$0xff]
    %v6882 = vld [vmem:[%s6866 + $0x78] sm:$0xff]
    %v6883 = vld [vmem:[%s6866 + $0x80] sm:$0xff]
    %v6884 = vld [vmem:[%s6866 + $0x88] sm:$0xff]
    %v6885 = vld [vmem:[%s6866 + $0x90] sm:$0xff]
    %v6886 = vld [vmem:[%s6866 + $0x98] sm:$0xff]
    %v6887 = vld [vmem:[%s6866 + $0xa0] sm:$0xff]
    %v6888 = vld [vmem:[%s6866 + $0xa8] sm:$0xff]
    %v6889 = vld [vmem:[%s6866 + $0xb0] sm:$0xff]
    %v6890 = vld [vmem:[%s6866 + $0xb8] sm:$0xff]
    %v6891 = vld [vmem:[%s6866 + $0xc0] sm:$0xff]
    %v6892 = vld [vmem:[%s6866 + $0xc8] sm:$0xff]
    %v6893 = vld [vmem:[%s6866 + $0xd0] sm:$0xff]
    %v6894 = vld [vmem:[%s6866 + $0xd8] sm:$0xff]
    %v6895 = vld [vmem:[%s6866 + $0xe0] sm:$0xff]
    %v6896 = vld [vmem:[%s6866 + $0xe8] sm:$0xff]
    %v6897 = vld [vmem:[%s6866 + $0xf0] sm:$0xff]
    %v6898 = vld [vmem:[%s6866 + $0xf8] sm:$0xff]
    %v6899 = vpack.c.bf16 %v6541, %v6541
    %v6932 = vunpack.c.l.b16 %v6867
    %v6933 = vunpack.c.h.b16 %v6867
    %v6934 = vunpack.c.l.b16 %v6868
    %v6935 = vunpack.c.h.b16 %v6868
    %v6936 = vunpack.c.l.b16 %v6869
    %v6937 = vunpack.c.h.b16 %v6869
    %v6938 = vunpack.c.l.b16 %v6870
    %v6939 = vunpack.c.h.b16 %v6870
    %v6940 = vunpack.c.l.b16 %v6871
    %v6941 = vunpack.c.h.b16 %v6871
    %v6942 = vunpack.c.l.b16 %v6872
    %v6943 = vunpack.c.h.b16 %v6872
    %v6944 = vunpack.c.l.b16 %v6873
    %v6945 = vunpack.c.h.b16 %v6873
    %v6946 = vunpack.c.l.b16 %v6874
    %v6947 = vunpack.c.h.b16 %v6874
    %v6948 = vunpack.c.l.b16 %v6875
    %v6949 = vunpack.c.h.b16 %v6875
    %v6950 = vunpack.c.l.b16 %v6876
    %v6951 = vunpack.c.h.b16 %v6876
    %v6952 = vunpack.c.l.b16 %v6877
    %v6953 = vunpack.c.h.b16 %v6877
    %v6954 = vunpack.c.l.b16 %v6878
    %v6955 = vunpack.c.h.b16 %v6878
    %v6956 = vunpack.c.l.b16 %v6879
    %v6957 = vunpack.c.h.b16 %v6879
    %v6958 = vunpack.c.l.b16 %v6880
    %v6959 = vunpack.c.h.b16 %v6880
    %v6960 = vunpack.c.l.b16 %v6881
    %v6961 = vunpack.c.h.b16 %v6881
    %v6962 = vunpack.c.l.b16 %v6882
    %v6963 = vunpack.c.h.b16 %v6882
    %v6964 = vunpack.c.l.b16 %v6883
    %v6965 = vunpack.c.h.b16 %v6883
    %v6966 = vunpack.c.l.b16 %v6884
    %v6967 = vunpack.c.h.b16 %v6884
    %v6968 = vunpack.c.l.b16 %v6885
    %v6969 = vunpack.c.h.b16 %v6885
    %v6970 = vunpack.c.l.b16 %v6886
    %v6971 = vunpack.c.h.b16 %v6886
    %v6972 = vunpack.c.l.b16 %v6887
    %v6973 = vunpack.c.h.b16 %v6887
    %v6974 = vunpack.c.l.b16 %v6888
    %v6975 = vunpack.c.h.b16 %v6888
    %v6976 = vunpack.c.l.b16 %v6889
    %v6977 = vunpack.c.h.b16 %v6889
    %v6978 = vunpack.c.l.b16 %v6890
    %v6979 = vunpack.c.h.b16 %v6890
    %v6980 = vunpack.c.l.b16 %v6891
    %v6981 = vunpack.c.h.b16 %v6891
    %v6982 = vunpack.c.l.b16 %v6892
    %v6983 = vunpack.c.h.b16 %v6892
    %v6984 = vunpack.c.l.b16 %v6893
    %v6985 = vunpack.c.h.b16 %v6893
    %v6986 = vunpack.c.l.b16 %v6894
    %v6987 = vunpack.c.h.b16 %v6894
    %v6988 = vunpack.c.l.b16 %v6895
    %v6989 = vunpack.c.h.b16 %v6895
    %v6990 = vunpack.c.l.b16 %v6896
    %v6991 = vunpack.c.h.b16 %v6896
    %v6992 = vunpack.c.l.b16 %v6897
    %v6993 = vunpack.c.h.b16 %v6897
    %v6994 = vunpack.c.l.b16 %v6898
    %v6995 = vunpack.c.h.b16 %v6898
    %v6996 = vpack.c.b16 %v6936, %v6932
    %v6997 = vpack.c.b16 %v6937, %v6933
    %v6998 = vpack.c.b16 %v6938, %v6934
    %v6999 = vpack.c.b16 %v6939, %v6935
    %v7000 = vpack.c.b16 %v6944, %v6940
    %v7001 = vpack.c.b16 %v6945, %v6941
    %v7002 = vpack.c.b16 %v6946, %v6942
    %v7003 = vpack.c.b16 %v6947, %v6943
    %v7004 = vpack.c.b16 %v6952, %v6948
    %v7005 = vpack.c.b16 %v6953, %v6949
    %v7006 = vpack.c.b16 %v6954, %v6950
    %v7007 = vpack.c.b16 %v6955, %v6951
    %v7008 = vpack.c.b16 %v6960, %v6956
    %v7009 = vpack.c.b16 %v6961, %v6957
    %v7010 = vpack.c.b16 %v6962, %v6958
    %v7011 = vpack.c.b16 %v6963, %v6959
    %v7012 = vpack.c.b16 %v6968, %v6964
    %v7013 = vpack.c.b16 %v6969, %v6965
    %v7014 = vpack.c.b16 %v6970, %v6966
    %v7015 = vpack.c.b16 %v6971, %v6967
    %v7016 = vpack.c.b16 %v6976, %v6972
    %v7017 = vpack.c.b16 %v6977, %v6973
    %v7018 = vpack.c.b16 %v6978, %v6974
    %v7019 = vpack.c.b16 %v6979, %v6975
    %v7020 = vpack.c.b16 %v6984, %v6980
    %v7021 = vpack.c.b16 %v6985, %v6981
    %v7022 = vpack.c.b16 %v6986, %v6982
    %v7023 = vpack.c.b16 %v6987, %v6983
    %v7024 = vpack.c.b16 %v6992, %v6988
    %v7025 = vpack.c.b16 %v6993, %v6989
    %v7026 = vpack.c.b16 %v6994, %v6990
    %v7027 = vpack.c.b16 %v6995, %v6991
    %7060 = vmatprep.subr.bf16.mxu0 %v6997
    %7061 = vmatpush1.bf16.msra.mxu0 %v6996
    %7062 = vmatprep.subr.bf16.mxu0 %v7001
    %7063 = vmatpush1.bf16.msra.mxu0 %v7000
    %7064 = vmatprep.subr.bf16.mxu0 %v7005
    %7065 = vmatpush1.bf16.msra.mxu0 %v7004
    %7066 = vmatprep.subr.bf16.mxu0 %v7009
    %7067 = vmatpush1.bf16.msra.mxu0 %v7008
    %7068 = vmatprep.subr.bf16.mxu0 %v7013
    %7069 = vmatpush1.bf16.msra.mxu0 %v7012
    %7070 = vmatprep.subr.bf16.mxu0 %v7017
    %7071 = vmatpush1.bf16.msra.mxu0 %v7016
    %7072 = vmatprep.subr.bf16.mxu0 %v7021
    %7073 = vmatpush1.bf16.msra.mxu0 %v7020
    %7074 = vmatprep.subr.bf16.mxu0 %v7025
    %7075 = vmatpush1.bf16.msra.mxu0 %v7024
    %7076 = vmatprep.subr.bf16.mxu0 0
    %7077 = vmatpush1.bf16.msra.mxu0 0
    %7078 = vmatprep.subr.bf16.mxu0 0
    %7079 = vmatpush1.bf16.msra.mxu0 0
    %7080 = vmatprep.subr.bf16.mxu0 0
    %7081 = vmatpush1.bf16.msra.mxu0 0
    %7082 = vmatprep.subr.bf16.mxu0 0
    %7083 = vmatpush1.bf16.msra.mxu0 0
    %7084 = vmatprep.subr.bf16.mxu0 0
    %7085 = vmatpush1.bf16.msra.mxu0 0
    %7086 = vmatprep.subr.bf16.mxu0 0
    %7087 = vmatpush1.bf16.msra.mxu0 0
    %7088 = vmatprep.subr.bf16.mxu0 0
    %7089 = vmatpush1.bf16.msra.mxu0 0
    %7090 = vmatprep.subr.bf16.mxu0 0
    %7091 = vmatpush1.bf16.msra.mxu0 0
    %7092 = vmatprep.mubr.bf16.mxu0 0
    %7093 = vmatmul.mubr.bf16.gmra.mrb[0].mxu0 %v6899
    %v7094 = vpop.f32.mrb[0].mxu0
    %v7095 = vadd.f32 0.0, %v7094
    %v7096 = vpop.f32.mrb[0].mxu0
    %v7097 = vadd.f32 0.0, %v7096
    %v7098 = vpop.f32.mrb[0].mxu0
    %v7099 = vpop.f32.mrb[0].mxu0
    %7100 = vdwg.mxu0
    %7101 = vmatprep.subr.bf16.mxu0 %v6999
    %7102 = vmatpush1.bf16.msra.mxu0 %v6998
    %7103 = vmatprep.subr.bf16.mxu0 %v7003
    %7104 = vmatpush1.bf16.msra.mxu0 %v7002
    %7105 = vmatprep.subr.bf16.mxu0 %v7007
    %7106 = vmatpush1.bf16.msra.mxu0 %v7006
    %7107 = vmatprep.subr.bf16.mxu0 %v7011
    %7108 = vmatpush1.bf16.msra.mxu0 %v7010
    %7109 = vmatprep.subr.bf16.mxu0 %v7015
    %7110 = vmatpush1.bf16.msra.mxu0 %v7014
    %7111 = vmatprep.subr.bf16.mxu0 %v7019
    %7112 = vmatpush1.bf16.msra.mxu0 %v7018
    %7113 = vmatprep.subr.bf16.mxu0 %v7023
    %7114 = vmatpush1.bf16.msra.mxu0 %v7022
    %7115 = vmatprep.subr.bf16.mxu0 %v7027
    %7116 = vmatpush1.bf16.msra.mxu0 %v7026
    %7117 = vmatprep.subr.bf16.mxu0 0
    %7118 = vmatpush1.bf16.msra.mxu0 0
    %7119 = vmatprep.subr.bf16.mxu0 0
    %7120 = vmatpush1.bf16.msra.mxu0 0
    %7121 = vmatprep.subr.bf16.mxu0 0
    %7122 = vmatpush1.bf16.msra.mxu0 0
    %7123 = vmatprep.subr.bf16.mxu0 0
    %7124 = vmatpush1.bf16.msra.mxu0 0
    %7125 = vmatprep.subr.bf16.mxu0 0
    %7126 = vmatpush1.bf16.msra.mxu0 0
    %7127 = vmatprep.subr.bf16.mxu0 0
    %7128 = vmatpush1.bf16.msra.mxu0 0
    %7129 = vmatprep.subr.bf16.mxu0 0
    %7130 = vmatpush1.bf16.msra.mxu0 0
    %7131 = vmatprep.subr.bf16.mxu0 0
    %7132 = vmatpush1.bf16.msra.mxu0 0
    %7133 = vmatprep.mubr.bf16.mxu0 0
    %7134 = vmatmul.mubr.bf16.gmra.mrb[0].mxu0 %v6899
    %v7135 = vpop.f32.mrb[0].mxu0
    %v7136 = vadd.f32 0.0, %v7135
    %v7137 = vpop.f32.mrb[0].mxu0
    %v7138 = vadd.f32 0.0, %v7137
    %v7139 = vpop.f32.mrb[0].mxu0
    %v7140 = vpop.f32.mrb[0].mxu0
    %7141 = vdwg.mxu0
    %v7142 = vadd.f32 %v6862, %v7095
    %v7143 = vadd.f32 %v6863, %v7097
    %v7144 = vadd.f32 %v6864, %v7136
    %v7145 = vadd.f32 %v6865, %v7138
    %v7146 = vxor.u32 %v7142, 2147483648
    %v7147 = vmul.f32 %v7146, 1.442695
    %v7148 = vpow.pop %v7147
    %v7149 = vadd.f32 %v7148, 1.0
    %v7150 = vrcp.pop %v7149
    %v7151 = vmul.f32 1.0, %v7150
    %v7152 = vxor.u32 %v7143, 2147483648
    %v7153 = vmul.f32 %v7152, 1.442695
    %v7154 = vpow.pop %v7153
    %v7155 = vadd.f32 %v7154, 1.0
    %v7156 = vrcp.pop %v7155
    %v7157 = vmul.f32 1.0, %v7156
    %v7158 = vtanh.pop %v7144
    %v7159 = vxor.u32 %v7145, 2147483648
    %v7160 = vmul.f32 %v7159, 1.442695
    %v7161 = vpow.pop %v7160
    %v7162 = vadd.f32 %v7161, 1.0
    %v7163 = vrcp.pop %v7162
    %v7164 = vmul.f32 1.0, %v7163
    %v7165 = vmul.f32 %v7157, %v6780
    %v7166 = vmul.f32 %v7151, %v7158
    %v7167 = vadd.f32 %v7165, %v7166
    %v7168 = vtanh.pop %v7167
    %v7169 = vmul.f32 %v7164, %v7168
    %s7170 = scalar_lea.vmem [#allocation15], 56
    %7171 = vst [vmem:[%s7170] sm:$0xff] %v7169
    %s7172 = scalar_lea.vmem [#allocation17], 56
    %7173 = vst [vmem:[%s7172] sm:$0xff] %v7167
    %7174 = vst [vmem:[#allocation12] sm:$0xff] %v7169
    %7175 = vst [vmem:[#allocation14] sm:$0xff] %v7167
    %v7176 = vld [vmem:[%s13] sm:$0xff]
    %v7177 = vld [vmem:[%s13 + $0x8] sm:$0xff]
    %v7178 = vld [vmem:[%s14] sm:$0x3]
    %v7180 = vlaneseq
    %v7181 = vshrl.u32 %v7180, 7
    %v7182 = vsub.s32 0, %v7181
    %v7183 = vrot.slane %v7178, %v7182
    %v7184 = vlaneseq
    %v7185 = vshrl.u32 %v7184, 7
    %v7186 = vsub.s32 1, %v7185
    %v7187 = vrot.slane %v7178, %v7186
    %vm7190 = vcmask 64512
    %v7191 = vsel %vm7190, %v133, 0
    %7193 = vmatprep.subr.mxu0 %v7177
    %7194 = vmatpush1.msra.mxu0 %v7176
    %7195 = vmatprep.subr.mxu0 0.0
    %7196 = vmatpush1.msra.mxu0 0.0
    %7197 = vmatprep.subr.mxu0 0.0
    %7198 = vmatpush1.msra.mxu0 0.0
    %7199 = vmatprep.subr.mxu0 0.0
    %7200 = vmatpush1.msra.mxu0 0.0
    %7201 = vmatprep.subr.mxu0 0.0
    %7202 = vmatpush1.msra.mxu0 0.0
    %7203 = vmatprep.subr.mxu0 0.0
    %7204 = vmatpush1.msra.mxu0 0.0
    %7205 = vmatprep.subr.mxu0 0.0
    %7206 = vmatpush1.msra.mxu0 0.0
    %7207 = vmatprep.subr.mxu0 0.0
    %7208 = vmatpush1.msra.mxu0 0.0
    %7209 = vmatprep.subr.mxu0 0.0
    %7210 = vmatpush1.msra.mxu0 0.0
    %7211 = vmatprep.subr.mxu0 0.0
    %7212 = vmatpush1.msra.mxu0 0.0
    %7213 = vmatprep.subr.mxu0 0.0
    %7214 = vmatpush1.msra.mxu0 0.0
    %7215 = vmatprep.subr.mxu0 0.0
    %7216 = vmatpush1.msra.mxu0 0.0
    %7217 = vmatprep.subr.mxu0 0.0
    %7218 = vmatpush1.msra.mxu0 0.0
    %7219 = vmatprep.subr.mxu0 0.0
    %7220 = vmatpush1.msra.mxu0 0.0
    %7221 = vmatprep.subr.mxu0 0.0
    %7222 = vmatpush1.msra.mxu0 0.0
    %7223 = vmatprep.subr.mxu0 0.0
    %7224 = vmatpush1.msra.mxu0 0.0
    %7225 = vmatprep.subr.mxu0 0.0
    %7226 = vmatpush1.msra.mxu0 0.0
    %7227 = vmatprep.subr.mxu0 0.0
    %7228 = vmatpush1.msra.mxu0 0.0
    %7229 = vmatprep.subr.mxu0 0.0
    %7230 = vmatpush1.msra.mxu0 0.0
    %7231 = vmatprep.subr.mxu0 0.0
    %7232 = vmatpush1.msra.mxu0 0.0
    %7233 = vmatprep.subr.mxu0 0.0
    %7234 = vmatpush1.msra.mxu0 0.0
    %7235 = vmatprep.subr.mxu0 0.0
    %7236 = vmatpush1.msra.mxu0 0.0
    %7237 = vmatprep.subr.mxu0 0.0
    %7238 = vmatpush1.msra.mxu0 0.0
    %7239 = vmatprep.subr.mxu0 0.0
    %7240 = vmatpush1.msra.mxu0 0.0
    %7241 = vmatprep.subr.mxu0 0.0
    %7242 = vmatpush1.msra.mxu0 0.0
    %7243 = vmatprep.subr.mxu0 0.0
    %7244 = vmatpush1.msra.mxu0 0.0
    %7245 = vmatprep.subr.mxu0 0.0
    %7246 = vmatpush1.msra.mxu0 0.0
    %7247 = vmatprep.subr.mxu0 0.0
    %7248 = vmatpush1.msra.mxu0 0.0
    %7249 = vmatprep.subr.mxu0 0.0
    %7250 = vmatpush1.msra.mxu0 0.0
    %7251 = vmatprep.subr.mxu0 0.0
    %7252 = vmatpush1.msra.mxu0 0.0
    %7253 = vmatprep.subr.mxu0 0.0
    %7254 = vmatpush1.msra.mxu0 0.0
    %7255 = vmatprep.subr.mxu0 0.0
    %7256 = vmatpush1.msra.mxu0 0.0
    %7257 = vmatprep.mubr.f32.mxu0 0.0
    %7258 = vmatmul.mubr.f32.gmra.mrb[0].mxu0 %v7191
    %v7259 = vpop.f32.mrb[0].mxu0
    %v7260 = vadd.f32 %v7183, %v7259
    %v7261 = vpop.f32.mrb[0].mxu0
    %v7262 = vadd.f32 %v7187, %v7261
    %7263 = vdwg.mxu0
    %v7264 = vadd.f32 %v7169, %v7260
    %v7265 = vadd.f32 %v7167, %v7262
    %v7266 = vld [vmem:[%s15] sm:$0xff]
    %v7267 = vld [vmem:[%s15 + $0x8] sm:$0xff]
    %v7268 = vld [vmem:[%s15 + $0x10] sm:$0xff]
    %v7269 = vld [vmem:[%s15 + $0x18] sm:$0xff]
    %v7270 = vld [vmem:[%s15 + $0x20] sm:$0xff]
    %v7271 = vld [vmem:[%s15 + $0x28] sm:$0xff]
    %v7272 = vld [vmem:[%s15 + $0x30] sm:$0xff]
    %v7273 = vld [vmem:[%s15 + $0x38] sm:$0xff]
    %v7274 = vld [vmem:[%s15 + $0x40] sm:$0xff]
    %v7275 = vld [vmem:[%s15 + $0x48] sm:$0xff]
    %v7276 = vld [vmem:[%s15 + $0x50] sm:$0xff]
    %v7277 = vld [vmem:[%s15 + $0x58] sm:$0xff]
    %v7278 = vld [vmem:[%s15 + $0x60] sm:$0xff]
    %v7279 = vld [vmem:[%s15 + $0x68] sm:$0xff]
    %v7280 = vld [vmem:[%s15 + $0x70] sm:$0xff]
    %v7281 = vld [vmem:[%s15 + $0x78] sm:$0xff]
    %v7282 = vld [vmem:[%s15 + $0x80] sm:$0xff]
    %v7283 = vld [vmem:[%s15 + $0x88] sm:$0xff]
    %v7284 = vld [vmem:[%s15 + $0x90] sm:$0xff]
    %v7285 = vld [vmem:[%s15 + $0x98] sm:$0xff]
    %v7286 = vld [vmem:[%s15 + $0xa0] sm:$0xff]
    %v7287 = vld [vmem:[%s15 + $0xa8] sm:$0xff]
    %v7288 = vld [vmem:[%s15 + $0xb0] sm:$0xff]
    %v7289 = vld [vmem:[%s15 + $0xb8] sm:$0xff]
    %v7290 = vld [vmem:[%s15 + $0xc0] sm:$0xff]
    %v7291 = vld [vmem:[%s15 + $0xc8] sm:$0xff]
    %v7292 = vld [vmem:[%s15 + $0xd0] sm:$0xff]
    %v7293 = vld [vmem:[%s15 + $0xd8] sm:$0xff]
    %v7294 = vld [vmem:[%s15 + $0xe0] sm:$0xff]
    %v7295 = vld [vmem:[%s15 + $0xe8] sm:$0xff]
    %v7296 = vld [vmem:[%s15 + $0xf0] sm:$0xff]
    %v7297 = vld [vmem:[%s15 + $0xf8] sm:$0xff]
    %7298 = vmatprep.subr.mxu0 0.0
    %7299 = vmatpush1.msra.mxu0 %v7282
    %7300 = vmatprep.subr.mxu0 0.0
    %7301 = vmatpush1.msra.mxu0 %v7283
    %7302 = vmatprep.subr.mxu0 0.0
    %7303 = vmatpush1.msra.mxu0 %v7284
    %7304 = vmatprep.subr.mxu0 0.0
    %7305 = vmatpush1.msra.mxu0 %v7285
    %7306 = vmatprep.subr.mxu0 0.0
    %7307 = vmatpush1.msra.mxu0 %v7286
    %7308 = vmatprep.subr.mxu0 0.0
    %7309 = vmatpush1.msra.mxu0 %v7287
    %7310 = vmatprep.subr.mxu0 0.0
    %7311 = vmatpush1.msra.mxu0 %v7288
    %7312 = vmatprep.subr.mxu0 0.0
    %7313 = vmatpush1.msra.mxu0 %v7289
    %7314 = vmatprep.subr.mxu0 0.0
    %7315 = vmatpush1.msra.mxu0 %v7290
    %7316 = vmatprep.subr.mxu0 0.0
    %7317 = vmatpush1.msra.mxu0 %v7291
    %7318 = vmatprep.subr.mxu0 0.0
    %7319 = vmatpush1.msra.mxu0 %v7292
    %7320 = vmatprep.subr.mxu0 0.0
    %7321 = vmatpush1.msra.mxu0 %v7293
    %7322 = vmatprep.subr.mxu0 0.0
    %7323 = vmatpush1.msra.mxu0 %v7294
    %7324 = vmatprep.subr.mxu0 0.0
    %7325 = vmatpush1.msra.mxu0 %v7295
    %7326 = vmatprep.subr.mxu0 0.0
    %7327 = vmatpush1.msra.mxu0 %v7296
    %7328 = vmatprep.subr.mxu0 0.0
    %7329 = vmatpush1.msra.mxu0 %v7297
    %7330 = vmatprep.subr.mxu0 0.0
    %7331 = vmatpush1.msra.mxu0 0.0
    %7332 = vmatprep.subr.mxu0 0.0
    %7333 = vmatpush1.msra.mxu0 0.0
    %7334 = vmatprep.subr.mxu0 0.0
    %7335 = vmatpush1.msra.mxu0 0.0
    %7336 = vmatprep.subr.mxu0 0.0
    %7337 = vmatpush1.msra.mxu0 0.0
    %7338 = vmatprep.subr.mxu0 0.0
    %7339 = vmatpush1.msra.mxu0 0.0
    %7340 = vmatprep.subr.mxu0 0.0
    %7341 = vmatpush1.msra.mxu0 0.0
    %7342 = vmatprep.subr.mxu0 0.0
    %7343 = vmatpush1.msra.mxu0 0.0
    %7344 = vmatprep.subr.mxu0 0.0
    %7345 = vmatpush1.msra.mxu0 0.0
    %7346 = vmatprep.subr.mxu0 0.0
    %7347 = vmatpush1.msra.mxu0 0.0
    %7348 = vmatprep.subr.mxu0 0.0
    %7349 = vmatpush1.msra.mxu0 0.0
    %7350 = vmatprep.subr.mxu0 0.0
    %7351 = vmatpush1.msra.mxu0 0.0
    %7352 = vmatprep.subr.mxu0 0.0
    %7353 = vmatpush1.msra.mxu0 0.0
    %7354 = vmatprep.subr.mxu0 0.0
    %7355 = vmatpush1.msra.mxu0 0.0
    %7356 = vmatprep.subr.mxu0 0.0
    %7357 = vmatpush1.msra.mxu0 0.0
    %7358 = vmatprep.subr.mxu0 0.0
    %7359 = vmatpush1.msra.mxu0 0.0
    %7360 = vmatprep.subr.mxu0 0.0
    %7361 = vmatpush1.msra.mxu0 0.0
    %7362 = vmatprep.mubr.f32.mxu0 0.0
    %7363 = vmatmul.mubr.f32.gmra.mrb[0].mxu0 %v7265
    %v7364 = vpop.f32.mrb[0].mxu0
    %v7365 = vadd.f32 0.0, %v7364
    %v7366 = vpop.f32.mrb[0].mxu0
    %7367 = vdwg.mxu0
    %7368 = vmatprep.subr.mxu0 0.0
    %7369 = vmatpush1.msra.mxu0 %v7266
    %7370 = vmatprep.subr.mxu0 0.0
    %7371 = vmatpush1.msra.mxu0 %v7267
    %7372 = vmatprep.subr.mxu0 0.0
    %7373 = vmatpush1.msra.mxu0 %v7268
    %7374 = vmatprep.subr.mxu0 0.0
    %7375 = vmatpush1.msra.mxu0 %v7269
    %7376 = vmatprep.subr.mxu0 0.0
    %7377 = vmatpush1.msra.mxu0 %v7270
    %7378 = vmatprep.subr.mxu0 0.0
    %7379 = vmatpush1.msra.mxu0 %v7271
    %7380 = vmatprep.subr.mxu0 0.0
    %7381 = vmatpush1.msra.mxu0 %v7272
    %7382 = vmatprep.subr.mxu0 0.0
    %7383 = vmatpush1.msra.mxu0 %v7273
    %7384 = vmatprep.subr.mxu0 0.0
    %7385 = vmatpush1.msra.mxu0 %v7274
    %7386 = vmatprep.subr.mxu0 0.0
    %7387 = vmatpush1.msra.mxu0 %v7275
    %7388 = vmatprep.subr.mxu0 0.0
    %7389 = vmatpush1.msra.mxu0 %v7276
    %7390 = vmatprep.subr.mxu0 0.0
    %7391 = vmatpush1.msra.mxu0 %v7277
    %7392 = vmatprep.subr.mxu0 0.0
    %7393 = vmatpush1.msra.mxu0 %v7278
    %7394 = vmatprep.subr.mxu0 0.0
    %7395 = vmatpush1.msra.mxu0 %v7279
    %7396 = vmatprep.subr.mxu0 0.0
    %7397 = vmatpush1.msra.mxu0 %v7280
    %7398 = vmatprep.subr.mxu0 0.0
    %7399 = vmatpush1.msra.mxu0 %v7281
    %7400 = vmatprep.subr.mxu0 0.0
    %7401 = vmatpush1.msra.mxu0 0.0
    %7402 = vmatprep.subr.mxu0 0.0
    %7403 = vmatpush1.msra.mxu0 0.0
    %7404 = vmatprep.subr.mxu0 0.0
    %7405 = vmatpush1.msra.mxu0 0.0
    %7406 = vmatprep.subr.mxu0 0.0
    %7407 = vmatpush1.msra.mxu0 0.0
    %7408 = vmatprep.subr.mxu0 0.0
    %7409 = vmatpush1.msra.mxu0 0.0
    %7410 = vmatprep.subr.mxu0 0.0
    %7411 = vmatpush1.msra.mxu0 0.0
    %7412 = vmatprep.subr.mxu0 0.0
    %7413 = vmatpush1.msra.mxu0 0.0
    %7414 = vmatprep.subr.mxu0 0.0
    %7415 = vmatpush1.msra.mxu0 0.0
    %7416 = vmatprep.subr.mxu0 0.0
    %7417 = vmatpush1.msra.mxu0 0.0
    %7418 = vmatprep.subr.mxu0 0.0
    %7419 = vmatpush1.msra.mxu0 0.0
    %7420 = vmatprep.subr.mxu0 0.0
    %7421 = vmatpush1.msra.mxu0 0.0
    %7422 = vmatprep.subr.mxu0 0.0
    %7423 = vmatpush1.msra.mxu0 0.0
    %7424 = vmatprep.subr.mxu0 0.0
    %7425 = vmatpush1.msra.mxu0 0.0
    %7426 = vmatprep.subr.mxu0 0.0
    %7427 = vmatpush1.msra.mxu0 0.0
    %7428 = vmatprep.subr.mxu0 0.0
    %7429 = vmatpush1.msra.mxu0 0.0
    %7430 = vmatprep.subr.mxu0 0.0
    %7431 = vmatpush1.msra.mxu0 0.0
    %7432 = vmatprep.mubr.f32.mxu0 0.0
    %7433 = vmatmul.mubr.f32.gmra.mrb[0].mxu0 %v7264
    %v7434 = vpop.f32.mrb[0].mxu0
    %v7435 = vadd.f32 %v7365, %v7434
    %v7436 = vpop.f32.mrb[0].mxu0
    %7437 = vdwg.mxu0
    %v7438 = vld [vmem:[%s16] sm:$0x1]
    %v7439 = vlaneseq
    %v7440 = vshrl.u32 %v7439, 7
    %v7441 = vsub.s32 0, %v7440
    %v7442 = vrot.slane %v7438, %v7441
    %v7443 = vadd.f32 %v7435, %v7442
    %v7444 = vld [vmem:[%s16 + $0x1] sm:$0x1]
    %v7445 = vld [vmem:[%s16 + $0x2] sm:$0x1]
    %vm7446 = vcmask 130048
    %v7447 = vsel %vm7446, %v7443, 0.0
    %7448 = vadd.xlane.f32.xlu0 %v7447
    %v7449 = vpop.xlane.xlu0 %7448
    %v7450 = vrcp.pop 16.0
    %v7451 = vmul.f32 %v7449, %v7450
    %v7452 = vsub.f32 %v7443, %v7451
    %v7453 = vmul.f32 %v7452, %v7452
    %v7454 = vsel %vm7446, %v7453, 0.0
    %7455 = vadd.xlane.f32.xlu0 %v7454
    %v7456 = vpop.xlane.xlu0 %7455
    %v7457 = vmul.f32 %v7456, %v7450
    %v7458 = vadd.f32 %v7457, 1e-05
    %v7459 = vrsqrt.pop %v7458
    %v7460 = vmul.f32 %v7452, %v7459
    %v7461 = vlaneseq
    %v7462 = vshrl.u32 %v7461, 7
    %v7463 = vsub.s32 0, %v7462
    %v7464 = vrot.slane %v7444, %v7463
    %v7465 = vmul.f32 %v7460, %v7464
    %v7466 = vlaneseq
    %v7467 = vshrl.u32 %v7466, 7
    %v7468 = vsub.s32 0, %v7467
    %v7469 = vrot.slane %v7445, %v7468
    %v7470 = vadd.f32 %v7465, %v7469
    %v7471 = vmax.f32 %v7470, 0.0
    %7472 = vst.msk [vmem:[#allocation11] sm:$0xff] %vm7446, %v7471
    // Predicated region
    $region90: #{lattice_rnn_forward.1} parent=1 // pred_check
      _
    $region91: #{lattice_rnn_forward.1} parent=1 // pred_check_branch
      %7474 = sbr.rel (0) target = $region93
    $region92: #{lattice_rnn_forward.1} parent=1 // pred_region
      %s7476 = ssub.s32 128, 128
      %7477 = vsyncadd [#allocation4], %s7476
      %s7479 = sshll.u32 [#allocation11], 4
      %s7480 = int_to_ptr.vmem [resolvable:$true] %s7479
      %7482 = dma.vmem_to_hbm [thread:$0]  %s7480, 128, %s17, [#allocation4]
    $region93: #{lattice_rnn_forward.1} parent=1 // pred_fallthru
      _
    // Predicated region
    $region94: #{lattice_rnn_forward.1} parent=1 // pred_check
      _
    $region95: #{lattice_rnn_forward.1} parent=1 // pred_check_branch
      %7484 = sbr.rel (0) target = $region97
    $region96: #{lattice_rnn_forward.1} parent=1 // pred_region
      %s7486 = ssub.s32 128, 128
      %7487 = vsyncadd [#allocation13], %s7486
      %s7489 = sshll.u32 [#allocation12], 4
      %s7490 = int_to_ptr.vmem [resolvable:$true] %s7489
      %7492 = dma.vmem_to_hbm [thread:$0]  %s7490, 128, %s18, [#allocation13]
    $region97: #{lattice_rnn_forward.1} parent=1 // pred_fallthru
      _
    // Predicated region
    $region98: #{lattice_rnn_forward.1} parent=1 // pred_check
      _
    $region99: #{lattice_rnn_forward.1} parent=1 // pred_check_branch
      %7494 = sbr.rel (0) target = $region101
    $region100: #{lattice_rnn_forward.1} parent=1 // pred_region
      %s7496 = ssub.s32 128, 128
      %7497 = vsyncadd [#allocation13], %s7496
      %s7499 = sshll.u32 [#allocation14], 4
      %s7500 = int_to_ptr.vmem [resolvable:$true] %s7499
      %7502 = dma.vmem_to_hbm [thread:$0]  %s7500, 128, %s19, [#allocation13]
    $region101: #{lattice_rnn_forward.1} parent=1 // pred_fallthru
      _
    // Predicated region
    $region102: #{lattice_rnn_forward.1} parent=1 // pred_check
      _
    $region103: #{lattice_rnn_forward.1} parent=1 // pred_check_branch
      %7504 = sbr.rel (0) target = $region105
    $region104: #{lattice_rnn_forward.1} parent=1 // pred_region
      %s7506 = ssub.s32 1024, 1024
      %7507 = vsyncadd [#allocation16], %s7506
      %s7508 = sshll.u32 [#allocation15], 4
      %s7509 = int_to_ptr.vmem [resolvable:$true] %s7508
      %7514 = dma.vmem_to_hbm [thread:$0]  %s7509, 1024, %s20, [#allocation16], 128, 128, 8
    $region105: #{lattice_rnn_forward.1} parent=1 // pred_fallthru
      _
    // Predicated region
    $region106: #{lattice_rnn_forward.1} parent=1 // pred_check
      _
    $region107: #{lattice_rnn_forward.1} parent=1 // pred_check_branch
      %7516 = sbr.rel (0) target = $region109
    $region108: #{lattice_rnn_forward.1} parent=1 // pred_region
      %s7518 = ssub.s32 1024, 1024
      %7519 = vsyncadd [#allocation16], %s7518
      %s7520 = sshll.u32 [#allocation17], 4
      %s7521 = int_to_ptr.vmem [resolvable:$true] %s7520
      %7526 = dma.vmem_to_hbm [thread:$0]  %s7521, 1024, %s21, [#allocation16], 128, 128, 8
    $region109: #{lattice_rnn_forward.1} parent=1 // pred_fallthru
      _
    // Predicated region
    $region110: #{lattice_rnn_forward.1} parent=1 // pred_check
      _
    $region111: #{lattice_rnn_forward.1} parent=1 // pred_check_branch
      %7528 = sbr.rel (0) target = $region113
    $region112: #{lattice_rnn_forward.1} parent=1 // pred_region
      %7529 = dma.done [#allocation4], 128
    $region113: #{lattice_rnn_forward.1} parent=1 // pred_fallthru
      _
    // Predicated region
    $region114: #{lattice_rnn_forward.1} parent=1 // pred_check
      _
    $region115: #{lattice_rnn_forward.1} parent=1 // pred_check_branch
      %7531 = sbr.rel (0) target = $region117
    $region116: #{lattice_rnn_forward.1} parent=1 // pred_region
      %7532 = dma.done [#allocation13], 128
    $region117: #{lattice_rnn_forward.1} parent=1 // pred_fallthru
      _
    // Predicated region
    $region118: #{lattice_rnn_forward.1} parent=1 // pred_check
      _
    $region119: #{lattice_rnn_forward.1} parent=1 // pred_check_branch
      %7534 = sbr.rel (0) target = $region121
    $region120: #{lattice_rnn_forward.1} parent=1 // pred_region
      %7535 = dma.done [#allocation13], 128
    $region121: #{lattice_rnn_forward.1} parent=1 // pred_fallthru
      _
    // Predicated region
    $region122: #{lattice_rnn_forward.1} parent=1 // pred_check
      _
    $region123: #{lattice_rnn_forward.1} parent=1 // pred_check_branch
      %7537 = sbr.rel (0) target = $region125
    $region124: #{lattice_rnn_forward.1} parent=1 // pred_region
      %7538 = dma.done [#allocation16], 1024
    $region125: #{lattice_rnn_forward.1} parent=1 // pred_fallthru
      _
    // Predicated region
    $region126: #{lattice_rnn_forward.1} parent=1 // pred_check
      _
    $region127: #{lattice_rnn_forward.1} parent=1 // pred_check_branch
      %7540 = sbr.rel (0) target = $region129
    $region128: #{lattice_rnn_forward.1} parent=1 // pred_region
      %7541 = dma.done [#allocation16], 1024
    $region129: #{lattice_rnn_forward.1} parent=1 // pred_fallthru
      _
    %7542 = vsyncpa [#allocation3], 1
    %7543 = vsyncpa [#allocation6], 1
    %7544 = vsyncpa [#allocation9], 1
    %7545 = vsyncpa [#allocation4], 1
    %7546 = vsyncpa [#allocation13], 1
    %7547 = vsyncpa [#allocation16], 1

</llo_original>
